<compile_context>
chip_gen: v7x
topology: tpu7x:2x2x1
jax: 0.10.0
libtpu: 0.0.40
codegen_flags: <defaults>
</compile_context>

<pallas_src>
import jax
import jax.numpy as jnp
from jax.experimental import pallas as pl
from jax.experimental.pallas import tpu as pltpu


# ----------------------------------------------------------------------------
# Wrapper-side im2col for the fused conv+relu+pool kernel.
# Produces, for each of the 4 pooling phases (ph, pw) in {0,1}^2, the im2col
# patch matrix of the conv outputs that land in that phase of the 2x2 windows.
#   x: (N, H, W, C)  ->  (N, 4, (H//2)*(W//2), 9*C)  in bfloat16
# Patch columns are ordered (dy, dx, cin) to match the weight reshape below.
# ----------------------------------------------------------------------------
def _pool_phase_patches(x_nhwc):
    N, H, W, C = x_nhwc.shape
    Hh, Wh = H // 2, W // 2
    xp = jnp.pad(x_nhwc, ((0, 0), (1, 1), (1, 1), (0, 0)))
    phases = []
    for ph in range(2):
        for pw in range(2):
            taps = [
                xp[:, ph + dy: ph + dy + 2 * Hh: 2,
                      pw + dx: pw + dx + 2 * Wh: 2, :]
                for dy in range(3) for dx in range(3)
            ]
            patch = jnp.concatenate(taps, axis=-1)          # (N, Hh, Wh, 9C)
            phases.append(patch.reshape(N, Hh * Wh, 9 * C))
    return jnp.stack(phases, axis=1).astype(jnp.bfloat16)   # (N, 4, Mp, 9C)


# ----------------------------------------------------------------------------
# Fused Conv3x3(pad=1) + bias + ReLU + MaxPool2x2 kernel: max of 4 GEMMs.
# Grid = (N,), one batch element per step (parallel -> v7x cores split batch).
# ----------------------------------------------------------------------------
def _conv_relu_pool_kernel(p_ref, w_ref, b_ref, o_ref):
    # p_ref: (4, Mp, K) bf16   -- im2col patches, one slab per pooling phase
    # w_ref: (K, Cout)  bf16   -- conv weight rows ordered (dy, dx, cin)
    # b_ref: (1, Cout)  f32
    # o_ref: (Mp, Cout) bf16   -- pooled activation, rows ordered (h, w)
    w = w_ref[...]
    m = jnp.dot(p_ref[0], w, preferred_element_type=jnp.float32)
    for phase in range(1, 4):
        m = jnp.maximum(
            m, jnp.dot(p_ref[phase], w, preferred_element_type=jnp.float32))
    # relu(max_p(m_p) + b) == max_p(relu(m_p + b))  (monotone), i.e. the
    # PyTorch order conv -> relu -> maxpool.
    y = jnp.maximum(m + b_ref[...], 0.0)
    o_ref[...] = y.astype(o_ref.dtype)


def conv3x3_relu_pool(patches, w, b):
    # patches: (N, 4, Mp, K) bf16 ; w: (K, Cout) bf16 ; b: (Cout,) f32
    N, _, Mp, K = patches.shape
    Cout = w.shape[1]
    return pl.pallas_call(
        _conv_relu_pool_kernel,
        out_shape=jax.ShapeDtypeStruct((N, Mp, Cout), jnp.bfloat16),
        grid=(N,),
        in_specs=[
            pl.BlockSpec((None, 4, Mp, K), lambda n: (n, 0, 0, 0)),
            pl.BlockSpec((K, Cout), lambda n: (0, 0)),     # weight stays resident
            pl.BlockSpec((1, Cout), lambda n: (0, 0)),
        ],
        out_specs=pl.BlockSpec((None, Mp, Cout), lambda n: (n, 0, 0)),
        compiler_params=pltpu.CompilerParams(
            dimension_semantics=("parallel",)),
    )(patches, w, b.reshape(1, Cout))


# ----------------------------------------------------------------------------
# Fused FC head: logits_pad = relu(x @ W1 + b1) @ W2  (bias2 added outside).
# Grid = (2, F//tk):
#   axis 0 ("parallel"): splits the fc1 hidden dim (512 -> 2 x 256) and the
#     corresponding fc2 rows, so the two halves (and their weight streams) can
#     run on v7x's two TensorCores; partial fc2 outputs are summed outside.
#   axis 1 ("arbitrary"): K-tiles the fc1 contraction with a VMEM f32
#     accumulator, so the big fc1 weight DMA is double-buffered and overlapped
#     with the MXU instead of a single exposed block transfer.
# ----------------------------------------------------------------------------
def _fc_head_kernel(x_ref, w1_ref, b1_ref, w2_ref, o_ref, acc_ref):
    k = pl.program_id(1)

    @pl.when(k == 0)
    def _():
        acc_ref[...] = jnp.zeros_like(acc_ref)

    acc_ref[...] += jnp.dot(x_ref[...], w1_ref[...],
                            preferred_element_type=jnp.float32)

    @pl.when(k == pl.num_programs(1) - 1)
    def _():
        h = jnp.maximum(acc_ref[...] + b1_ref[...], 0.0).astype(jnp.bfloat16)
        # Dropout(p=0.7) after relu -> identity in eval mode.
        o_ref[...] = jnp.dot(h, w2_ref[...], preferred_element_type=jnp.float32)


def fc_head(x, w1, b1, w2, *, tk=1024):
    # x: (N, F) bf16 ; w1: (F, H1) bf16 ; b1: (1, H1) f32 ; w2: (H1, Cpad) bf16
    N, F = x.shape
    H1 = w1.shape[1]
    Cpad = w2.shape[1]
    tk = min(tk, F)
    assert F % tk == 0 and H1 % 2 == 0
    Hj = H1 // 2
    out = pl.pallas_call(
        _fc_head_kernel,
        out_shape=jax.ShapeDtypeStruct((2, N, Cpad), jnp.float32),
        grid=(2, F // tk),
        in_specs=[
            pl.BlockSpec((N, tk), lambda j, k: (0, k)),
            pl.BlockSpec((tk, Hj), lambda j, k: (k, j)),
            pl.BlockSpec((1, Hj), lambda j, k: (0, j)),
            pl.BlockSpec((Hj, Cpad), lambda j, k: (j, 0)),
        ],
        out_specs=pl.BlockSpec((None, N, Cpad), lambda j, k: (j, 0, 0)),
        scratch_shapes=[pltpu.VMEM((N, Hj), jnp.float32)],
        compiler_params=pltpu.CompilerParams(
            dimension_semantics=("parallel", "arbitrary")),
    )(x, w1, b1, w2)
    return out[0] + out[1]                     # sum the two hidden-dim halves


# ----------------------------------------------------------------------------
# Parameter construction (deterministic, synthetic) and forward pass.
# ----------------------------------------------------------------------------
def init_params(key, num_classes, hw):
    ks = jax.random.split(key, 10)
    feat_hw = hw // 8                              # three 2x2 pools
    fc_in = 256 * feat_hw * feat_hw
    cpad = ((num_classes + 127) // 128) * 128      # lane-dense fc2 output

    def u(k, shape, fan_in):
        bound = 1.0 / jnp.sqrt(fan_in)
        return jax.random.uniform(k, shape, jnp.float32, -bound, bound)

    def conv_w(k, cin, cout):
        # HWIO (3,3,cin,cout) flattened to (9*cin, cout), row order (dy,dx,cin)
        # to match the im2col patch columns.  bf16 (MXU-native).
        w = u(k, (3, 3, cin, cout), cin * 9)
        return w.reshape(9 * cin, cout).astype(jnp.bfloat16)

    fc2_w = u(ks[8], (512, num_classes), 512)
    fc2_w = jnp.pad(fc2_w, ((0, 0), (0, cpad - num_classes))).astype(jnp.bfloat16)

    return {
        "conv1_w": conv_w(ks[0], 3, 64),   "conv1_b": u(ks[1], (64,), 3 * 9),
        "conv2_w": conv_w(ks[2], 64, 128), "conv2_b": u(ks[3], (128,), 64 * 9),
        "conv3_w": conv_w(ks[4], 128, 256), "conv3_b": u(ks[5], (256,), 128 * 9),
        # fc1 rows ordered for the NHWC-major flatten (fixed row permutation of
        # the PyTorch NCHW-major layout) -> no runtime transpose before fc1.
        "fc1_w": u(ks[6], (fc_in, 512), fc_in).astype(jnp.bfloat16),
        "fc1_b": u(ks[7], (512,), fc_in).reshape(1, 512),
        "fc2_w": fc2_w,
        "fc2_b": u(ks[9], (num_classes,), 512),
    }


def forward(params, x_nchw):
    num_classes = params["fc2_b"].shape[0]
    # NCHW (PyTorch convention) -> NHWC once; channels live on the lane dim.
    x = jnp.transpose(x_nchw, (0, 2, 3, 1)).astype(jnp.float32)
    N = x.shape[0]

    for i in (1, 2, 3):
        H = x.shape[1]
        patches = _pool_phase_patches(x)                       # XLA glue, <1 MB
        y = conv3x3_relu_pool(patches,
                              params[f"conv{i}_w"], params[f"conv{i}_b"])
        x = y.reshape(N, H // 2, H // 2, y.shape[-1])          # NHWC for next layer
        # Dropout(p=0.7) -> identity in eval mode.

    feats = x.reshape(N, -1).astype(jnp.bfloat16)              # NHWC-major flatten
    logits_pad = fc_head(feats, params["fc1_w"], params["fc1_b"],
                         params["fc2_w"])
    return logits_pad[:, :num_classes] + params["fc2_b"]


if __name__ == "__main__":
    NUM_CLASSES = 1000
    N, C, HW = 2, 3, 32                      # small shapes; 32 -> 16 -> 8 -> 4

    key = jax.random.PRNGKey(0)
    k_params, k_x = jax.random.split(key)
    params = init_params(k_params, NUM_CLASSES, HW)
    x = jax.random.normal(k_x, (N, C, HW, HW), jnp.float32)

    fwd = jax.jit(forward)
    out = jax.block_until_ready(fwd(params, x))
    assert out.shape == (N, NUM_CLASSES), out.shape
    assert jnp.isfinite(out).all()
    print("KERNEL_OK")
</pallas_src>

<mosaic_0001>
module attributes {stable_mosaic.version = 11 : i64} {
  func.func @_conv_relu_pool_kernel(%arg0: i32, %arg1: memref<1x4x256x27xbf16, #tpu.memory_space<vmem>>, %arg2: memref<27x64xbf16, #tpu.memory_space<vmem>>, %arg3: memref<1x64xf32, #tpu.memory_space<vmem>>, %arg4: memref<1x256x64xbf16, #tpu.memory_space<vmem>>) attributes {dimension_semantics = [#tpu.dimension_semantics<parallel>], iteration_bounds = array<i64: 2>, scalar_prefetch = 0 : i64, scratch_operands = 0 : i64, tpu.core_type = #tpu.core_type<tc>, window_params = [{transform_indices = @transform_0, window_bounds = array<i64: 1, 4, 256, 27>}, {pipeline_mode = #tpu.pipeline_mode<synchronous>, transform_indices = @transform_1, window_bounds = array<i64: 27, 64>}, {pipeline_mode = #tpu.pipeline_mode<synchronous>, transform_indices = @transform_2, window_bounds = array<i64: 1, 64>}, {transform_indices = @transform_3, window_bounds = array<i64: 1, 256, 64>}]} {
    %c0 = arith.constant 0 : index
    %c0_0 = arith.constant 0 : index
    %0 = vector.load %arg2[%c0, %c0_0] : memref<27x64xbf16, #tpu.memory_space<vmem>>, vector<27x64xbf16>
    %c0_1 = arith.constant 0 : index
    %c0_2 = arith.constant 0 : index
    %c0_3 = arith.constant 0 : index
    %c0_4 = arith.constant 0 : index
    %1 = vector.load %arg1[%c0_1, %c0_2, %c0_3, %c0_4] : memref<1x4x256x27xbf16, #tpu.memory_space<vmem>>, vector<1x1x256x27xbf16>
    %2 = vector.shape_cast %1 : vector<1x1x256x27xbf16> to vector<256x27xbf16>
    %cst = arith.constant dense<0.000000e+00> : vector<256x64xf32>
    %3 = tpu.matmul %2, %0, %cst {dimension_numbers = #tpu.dot_dimension_numbers<[1], [0], [0], [1], [0, 0, 1, 1], [], []>} : vector<256x27xbf16>, vector<27x64xbf16>, vector<256x64xf32> -> vector<256x64xf32>
    %c0_5 = arith.constant 0 : index
    %c1 = arith.constant 1 : index
    %c0_6 = arith.constant 0 : index
    %c0_7 = arith.constant 0 : index
    %4 = vector.load %arg1[%c0_5, %c1, %c0_6, %c0_7] : memref<1x4x256x27xbf16, #tpu.memory_space<vmem>>, vector<1x1x256x27xbf16>
    %5 = vector.shape_cast %4 : vector<1x1x256x27xbf16> to vector<256x27xbf16>
    %cst_8 = arith.constant dense<0.000000e+00> : vector<256x64xf32>
    %6 = tpu.matmul %5, %0, %cst_8 {dimension_numbers = #tpu.dot_dimension_numbers<[1], [0], [0], [1], [0, 0, 1, 1], [], []>} : vector<256x27xbf16>, vector<27x64xbf16>, vector<256x64xf32> -> vector<256x64xf32>
    %7 = arith.maximumf %3, %6 : vector<256x64xf32>
    %c0_9 = arith.constant 0 : index
    %c2 = arith.constant 2 : index
    %c0_10 = arith.constant 0 : index
    %c0_11 = arith.constant 0 : index
    %8 = vector.load %arg1[%c0_9, %c2, %c0_10, %c0_11] : memref<1x4x256x27xbf16, #tpu.memory_space<vmem>>, vector<1x1x256x27xbf16>
    %9 = vector.shape_cast %8 : vector<1x1x256x27xbf16> to vector<256x27xbf16>
    %cst_12 = arith.constant dense<0.000000e+00> : vector<256x64xf32>
    %10 = tpu.matmul %9, %0, %cst_12 {dimension_numbers = #tpu.dot_dimension_numbers<[1], [0], [0], [1], [0, 0, 1, 1], [], []>} : vector<256x27xbf16>, vector<27x64xbf16>, vector<256x64xf32> -> vector<256x64xf32>
    %11 = arith.maximumf %7, %10 : vector<256x64xf32>
    %c0_13 = arith.constant 0 : index
    %c3 = arith.constant 3 : index
    %c0_14 = arith.constant 0 : index
    %c0_15 = arith.constant 0 : index
    %12 = vector.load %arg1[%c0_13, %c3, %c0_14, %c0_15] : memref<1x4x256x27xbf16, #tpu.memory_space<vmem>>, vector<1x1x256x27xbf16>
    %13 = vector.shape_cast %12 : vector<1x1x256x27xbf16> to vector<256x27xbf16>
    %cst_16 = arith.constant dense<0.000000e+00> : vector<256x64xf32>
    %14 = tpu.matmul %13, %0, %cst_16 {dimension_numbers = #tpu.dot_dimension_numbers<[1], [0], [0], [1], [0, 0, 1, 1], [], []>} : vector<256x27xbf16>, vector<27x64xbf16>, vector<256x64xf32> -> vector<256x64xf32>
    %15 = arith.maximumf %11, %14 : vector<256x64xf32>
    %c0_17 = arith.constant 0 : index
    %c0_18 = arith.constant 0 : index
    %16 = vector.load %arg3[%c0_17, %c0_18] : memref<1x64xf32, #tpu.memory_space<vmem>>, vector<1x64xf32>
    %17 = vector.broadcast %16 : vector<1x64xf32> to vector<256x64xf32>
    %18 = arith.addf %15, %17 : vector<256x64xf32>
    %cst_19 = arith.constant 0.000000e+00 : f32
    %19 = vector.broadcast %cst_19 : f32 to vector<256x64xf32>
    %20 = arith.maximumf %18, %19 : vector<256x64xf32>
    %21 = arith.truncf %20 : vector<256x64xf32> to vector<256x64xbf16>
    %c0_20 = arith.constant 0 : index
    %c0_21 = arith.constant 0 : index
    %c0_22 = arith.constant 0 : index
    %22 = vector.load %arg4[%c0_20, %c0_21, %c0_22] : memref<1x256x64xbf16, #tpu.memory_space<vmem>>, vector<1x256x64xbf16>
    %23 = vector.shape_cast %22 : vector<1x256x64xbf16> to vector<256x64xbf16>
    %24 = vector.shape_cast %21 : vector<256x64xbf16> to vector<1x256x64xbf16>
    tpu.vector_store %arg4[%c0_20, %c0_21, %c0_22], %24 {strides = array<i32>} : memref<1x256x64xbf16, #tpu.memory_space<vmem>>, vector<1x256x64xbf16>,
    return
  }
  func.func @transform_0(%arg0: i32) -> (i32, i32, i32, i32) {
    %c0_i32 = arith.constant 0 : i32
    %c0_i32_0 = arith.constant 0 : i32
    %c0_i32_1 = arith.constant 0 : i32
    %c0_i32_2 = arith.constant 0 : i32
    return %arg0, %c0_i32, %c0_i32_0, %c0_i32_1 : i32, i32, i32, i32
  }
  func.func @transform_1(%arg0: i32) -> (i32, i32) {
    %c0_i32 = arith.constant 0 : i32
    %c0_i32_0 = arith.constant 0 : i32
    %c0_i32_1 = arith.constant 0 : i32
    return %c0_i32, %c0_i32_0 : i32, i32
  }
  func.func @transform_2(%arg0: i32) -> (i32, i32) {
    %c0_i32 = arith.constant 0 : i32
    %c0_i32_0 = arith.constant 0 : i32
    %c0_i32_1 = arith.constant 0 : i32
    return %c0_i32, %c0_i32_0 : i32, i32
  }
  func.func @transform_3(%arg0: i32) -> (i32, i32, i32) {
    %c0_i32 = arith.constant 0 : i32
    %c0_i32_0 = arith.constant 0 : i32
    %c0_i32_1 = arith.constant 0 : i32
    return %arg0, %c0_i32, %c0_i32_0 : i32, i32, i32
  }
}

module attributes {stable_mosaic.version = 11 : i64} {
  func.func @_conv_relu_pool_kernel(%arg0: i32, %arg1: memref<1x4x64x576xbf16, #tpu.memory_space<vmem>>, %arg2: memref<576x128xbf16, #tpu.memory_space<vmem>>, %arg3: memref<1x128xf32, #tpu.memory_space<vmem>>, %arg4: memref<1x64x128xbf16, #tpu.memory_space<vmem>>) attributes {dimension_semantics = [#tpu.dimension_semantics<parallel>], iteration_bounds = array<i64: 2>, scalar_prefetch = 0 : i64, scratch_operands = 0 : i64, tpu.core_type = #tpu.core_type<tc>, window_params = [{transform_indices = @transform_0, window_bounds = array<i64: 1, 4, 64, 576>}, {pipeline_mode = #tpu.pipeline_mode<synchronous>, transform_indices = @transform_1, window_bounds = array<i64: 576, 128>}, {pipeline_mode = #tpu.pipeline_mode<synchronous>, transform_indices = @transform_2, window_bounds = array<i64: 1, 128>}, {transform_indices = @transform_3, window_bounds = array<i64: 1, 64, 128>}]} {
    %c0 = arith.constant 0 : index
    %c0_0 = arith.constant 0 : index
    %0 = vector.load %arg2[%c0, %c0_0] : memref<576x128xbf16, #tpu.memory_space<vmem>>, vector<576x128xbf16>
    %c0_1 = arith.constant 0 : index
    %c0_2 = arith.constant 0 : index
    %c0_3 = arith.constant 0 : index
    %c0_4 = arith.constant 0 : index
    %1 = vector.load %arg1[%c0_1, %c0_2, %c0_3, %c0_4] : memref<1x4x64x576xbf16, #tpu.memory_space<vmem>>, vector<1x1x64x576xbf16>
    %2 = vector.shape_cast %1 : vector<1x1x64x576xbf16> to vector<64x576xbf16>
    %cst = arith.constant dense<0.000000e+00> : vector<64x128xf32>
    %3 = tpu.matmul %2, %0, %cst {dimension_numbers = #tpu.dot_dimension_numbers<[1], [0], [0], [1], [0, 0, 1, 1], [], []>} : vector<64x576xbf16>, vector<576x128xbf16>, vector<64x128xf32> -> vector<64x128xf32>
    %c0_5 = arith.constant 0 : index
    %c1 = arith.constant 1 : index
    %c0_6 = arith.constant 0 : index
    %c0_7 = arith.constant 0 : index
    %4 = vector.load %arg1[%c0_5, %c1, %c0_6, %c0_7] : memref<1x4x64x576xbf16, #tpu.memory_space<vmem>>, vector<1x1x64x576xbf16>
    %5 = vector.shape_cast %4 : vector<1x1x64x576xbf16> to vector<64x576xbf16>
    %cst_8 = arith.constant dense<0.000000e+00> : vector<64x128xf32>
    %6 = tpu.matmul %5, %0, %cst_8 {dimension_numbers = #tpu.dot_dimension_numbers<[1], [0], [0], [1], [0, 0, 1, 1], [], []>} : vector<64x576xbf16>, vector<576x128xbf16>, vector<64x128xf32> -> vector<64x128xf32>
    %7 = arith.maximumf %3, %6 : vector<64x128xf32>
    %c0_9 = arith.constant 0 : index
    %c2 = arith.constant 2 : index
    %c0_10 = arith.constant 0 : index
    %c0_11 = arith.constant 0 : index
    %8 = vector.load %arg1[%c0_9, %c2, %c0_10, %c0_11] : memref<1x4x64x576xbf16, #tpu.memory_space<vmem>>, vector<1x1x64x576xbf16>
    %9 = vector.shape_cast %8 : vector<1x1x64x576xbf16> to vector<64x576xbf16>
    %cst_12 = arith.constant dense<0.000000e+00> : vector<64x128xf32>
    %10 = tpu.matmul %9, %0, %cst_12 {dimension_numbers = #tpu.dot_dimension_numbers<[1], [0], [0], [1], [0, 0, 1, 1], [], []>} : vector<64x576xbf16>, vector<576x128xbf16>, vector<64x128xf32> -> vector<64x128xf32>
    %11 = arith.maximumf %7, %10 : vector<64x128xf32>
    %c0_13 = arith.constant 0 : index
    %c3 = arith.constant 3 : index
    %c0_14 = arith.constant 0 : index
    %c0_15 = arith.constant 0 : index
    %12 = vector.load %arg1[%c0_13, %c3, %c0_14, %c0_15] : memref<1x4x64x576xbf16, #tpu.memory_space<vmem>>, vector<1x1x64x576xbf16>
    %13 = vector.shape_cast %12 : vector<1x1x64x576xbf16> to vector<64x576xbf16>
    %cst_16 = arith.constant dense<0.000000e+00> : vector<64x128xf32>
    %14 = tpu.matmul %13, %0, %cst_16 {dimension_numbers = #tpu.dot_dimension_numbers<[1], [0], [0], [1], [0, 0, 1, 1], [], []>} : vector<64x576xbf16>, vector<576x128xbf16>, vector<64x128xf32> -> vector<64x128xf32>
    %15 = arith.maximumf %11, %14 : vector<64x128xf32>
    %c0_17 = arith.constant 0 : index
    %c0_18 = arith.constant 0 : index
    %16 = vector.load %arg3[%c0_17, %c0_18] : memref<1x128xf32, #tpu.memory_space<vmem>>, vector<1x128xf32>
    %17 = vector.broadcast %16 : vector<1x128xf32> to vector<64x128xf32>
    %18 = arith.addf %15, %17 : vector<64x128xf32>
    %cst_19 = arith.constant 0.000000e+00 : f32
    %19 = vector.broadcast %cst_19 : f32 to vector<64x128xf32>
    %20 = arith.maximumf %18, %19 : vector<64x128xf32>
    %21 = arith.truncf %20 : vector<64x128xf32> to vector<64x128xbf16>
    %c0_20 = arith.constant 0 : index
    %c0_21 = arith.constant 0 : index
    %c0_22 = arith.constant 0 : index
    %22 = vector.load %arg4[%c0_20, %c0_21, %c0_22] : memref<1x64x128xbf16, #tpu.memory_space<vmem>>, vector<1x64x128xbf16>
    %23 = vector.shape_cast %22 : vector<1x64x128xbf16> to vector<64x128xbf16>
    %24 = vector.shape_cast %21 : vector<64x128xbf16> to vector<1x64x128xbf16>
    tpu.vector_store %arg4[%c0_20, %c0_21, %c0_22], %24 {strides = array<i32>} : memref<1x64x128xbf16, #tpu.memory_space<vmem>>, vector<1x64x128xbf16>,
    return
  }
  func.func @transform_0(%arg0: i32) -> (i32, i32, i32, i32) {
    %c0_i32 = arith.constant 0 : i32
    %c0_i32_0 = arith.constant 0 : i32
    %c0_i32_1 = arith.constant 0 : i32
    %c0_i32_2 = arith.constant 0 : i32
    return %arg0, %c0_i32, %c0_i32_0, %c0_i32_1 : i32, i32, i32, i32
  }
  func.func @transform_1(%arg0: i32) -> (i32, i32) {
    %c0_i32 = arith.constant 0 : i32
    %c0_i32_0 = arith.constant 0 : i32
    %c0_i32_1 = arith.constant 0 : i32
    return %c0_i32, %c0_i32_0 : i32, i32
  }
  func.func @transform_2(%arg0: i32) -> (i32, i32) {
    %c0_i32 = arith.constant 0 : i32
    %c0_i32_0 = arith.constant 0 : i32
    %c0_i32_1 = arith.constant 0 : i32
    return %c0_i32, %c0_i32_0 : i32, i32
  }
  func.func @transform_3(%arg0: i32) -> (i32, i32, i32) {
    %c0_i32 = arith.constant 0 : i32
    %c0_i32_0 = arith.constant 0 : i32
    %c0_i32_1 = arith.constant 0 : i32
    return %arg0, %c0_i32, %c0_i32_0 : i32, i32, i32
  }
}

module attributes {stable_mosaic.version = 11 : i64} {
  func.func @_conv_relu_pool_kernel(%arg0: i32, %arg1: memref<1x4x16x1152xbf16, #tpu.memory_space<vmem>>, %arg2: memref<1152x256xbf16, #tpu.memory_space<vmem>>, %arg3: memref<1x256xf32, #tpu.memory_space<vmem>>, %arg4: memref<1x16x256xbf16, #tpu.memory_space<vmem>>) attributes {dimension_semantics = [#tpu.dimension_semantics<parallel>], iteration_bounds = array<i64: 2>, scalar_prefetch = 0 : i64, scratch_operands = 0 : i64, tpu.core_type = #tpu.core_type<tc>, window_params = [{transform_indices = @transform_0, window_bounds = array<i64: 1, 4, 16, 1152>}, {pipeline_mode = #tpu.pipeline_mode<synchronous>, transform_indices = @transform_1, window_bounds = array<i64: 1152, 256>}, {pipeline_mode = #tpu.pipeline_mode<synchronous>, transform_indices = @transform_2, window_bounds = array<i64: 1, 256>}, {transform_indices = @transform_3, window_bounds = array<i64: 1, 16, 256>}]} {
    %c0 = arith.constant 0 : index
    %c0_0 = arith.constant 0 : index
    %0 = vector.load %arg2[%c0, %c0_0] : memref<1152x256xbf16, #tpu.memory_space<vmem>>, vector<1152x256xbf16>
    %c0_1 = arith.constant 0 : index
    %c0_2 = arith.constant 0 : index
    %c0_3 = arith.constant 0 : index
    %c0_4 = arith.constant 0 : index
    %1 = vector.load %arg1[%c0_1, %c0_2, %c0_3, %c0_4] : memref<1x4x16x1152xbf16, #tpu.memory_space<vmem>>, vector<1x1x16x1152xbf16>
    %2 = vector.shape_cast %1 : vector<1x1x16x1152xbf16> to vector<16x1152xbf16>
    %cst = arith.constant dense<0.000000e+00> : vector<16x256xf32>
    %3 = tpu.matmul %2, %0, %cst {dimension_numbers = #tpu.dot_dimension_numbers<[1], [0], [0], [1], [0, 0, 1, 1], [], []>} : vector<16x1152xbf16>, vector<1152x256xbf16>, vector<16x256xf32> -> vector<16x256xf32>
    %c0_5 = arith.constant 0 : index
    %c1 = arith.constant 1 : index
    %c0_6 = arith.constant 0 : index
    %c0_7 = arith.constant 0 : index
    %4 = vector.load %arg1[%c0_5, %c1, %c0_6, %c0_7] : memref<1x4x16x1152xbf16, #tpu.memory_space<vmem>>, vector<1x1x16x1152xbf16>
    %5 = vector.shape_cast %4 : vector<1x1x16x1152xbf16> to vector<16x1152xbf16>
    %cst_8 = arith.constant dense<0.000000e+00> : vector<16x256xf32>
    %6 = tpu.matmul %5, %0, %cst_8 {dimension_numbers = #tpu.dot_dimension_numbers<[1], [0], [0], [1], [0, 0, 1, 1], [], []>} : vector<16x1152xbf16>, vector<1152x256xbf16>, vector<16x256xf32> -> vector<16x256xf32>
    %7 = arith.maximumf %3, %6 : vector<16x256xf32>
    %c0_9 = arith.constant 0 : index
    %c2 = arith.constant 2 : index
    %c0_10 = arith.constant 0 : index
    %c0_11 = arith.constant 0 : index
    %8 = vector.load %arg1[%c0_9, %c2, %c0_10, %c0_11] : memref<1x4x16x1152xbf16, #tpu.memory_space<vmem>>, vector<1x1x16x1152xbf16>
    %9 = vector.shape_cast %8 : vector<1x1x16x1152xbf16> to vector<16x1152xbf16>
    %cst_12 = arith.constant dense<0.000000e+00> : vector<16x256xf32>
    %10 = tpu.matmul %9, %0, %cst_12 {dimension_numbers = #tpu.dot_dimension_numbers<[1], [0], [0], [1], [0, 0, 1, 1], [], []>} : vector<16x1152xbf16>, vector<1152x256xbf16>, vector<16x256xf32> -> vector<16x256xf32>
    %11 = arith.maximumf %7, %10 : vector<16x256xf32>
    %c0_13 = arith.constant 0 : index
    %c3 = arith.constant 3 : index
    %c0_14 = arith.constant 0 : index
    %c0_15 = arith.constant 0 : index
    %12 = vector.load %arg1[%c0_13, %c3, %c0_14, %c0_15] : memref<1x4x16x1152xbf16, #tpu.memory_space<vmem>>, vector<1x1x16x1152xbf16>
    %13 = vector.shape_cast %12 : vector<1x1x16x1152xbf16> to vector<16x1152xbf16>
    %cst_16 = arith.constant dense<0.000000e+00> : vector<16x256xf32>
    %14 = tpu.matmul %13, %0, %cst_16 {dimension_numbers = #tpu.dot_dimension_numbers<[1], [0], [0], [1], [0, 0, 1, 1], [], []>} : vector<16x1152xbf16>, vector<1152x256xbf16>, vector<16x256xf32> -> vector<16x256xf32>
    %15 = arith.maximumf %11, %14 : vector<16x256xf32>
    %c0_17 = arith.constant 0 : index
    %c0_18 = arith.constant 0 : index
    %16 = vector.load %arg3[%c0_17, %c0_18] : memref<1x256xf32, #tpu.memory_space<vmem>>, vector<1x256xf32>
    %17 = vector.broadcast %16 : vector<1x256xf32> to vector<16x256xf32>
    %18 = arith.addf %15, %17 : vector<16x256xf32>
    %cst_19 = arith.constant 0.000000e+00 : f32
    %19 = vector.broadcast %cst_19 : f32 to vector<16x256xf32>
    %20 = arith.maximumf %18, %19 : vector<16x256xf32>
    %21 = arith.truncf %20 : vector<16x256xf32> to vector<16x256xbf16>
    %c0_20 = arith.constant 0 : index
    %c0_21 = arith.constant 0 : index
    %c0_22 = arith.constant 0 : index
    %22 = vector.load %arg4[%c0_20, %c0_21, %c0_22] : memref<1x16x256xbf16, #tpu.memory_space<vmem>>, vector<1x16x256xbf16>
    %23 = vector.shape_cast %22 : vector<1x16x256xbf16> to vector<16x256xbf16>
    %24 = vector.shape_cast %21 : vector<16x256xbf16> to vector<1x16x256xbf16>
    tpu.vector_store %arg4[%c0_20, %c0_21, %c0_22], %24 {strides = array<i32>} : memref<1x16x256xbf16, #tpu.memory_space<vmem>>, vector<1x16x256xbf16>,
    return
  }
  func.func @transform_0(%arg0: i32) -> (i32, i32, i32, i32) {
    %c0_i32 = arith.constant 0 : i32
    %c0_i32_0 = arith.constant 0 : i32
    %c0_i32_1 = arith.constant 0 : i32
    %c0_i32_2 = arith.constant 0 : i32
    return %arg0, %c0_i32, %c0_i32_0, %c0_i32_1 : i32, i32, i32, i32
  }
  func.func @transform_1(%arg0: i32) -> (i32, i32) {
    %c0_i32 = arith.constant 0 : i32
    %c0_i32_0 = arith.constant 0 : i32
    %c0_i32_1 = arith.constant 0 : i32
    return %c0_i32, %c0_i32_0 : i32, i32
  }
  func.func @transform_2(%arg0: i32) -> (i32, i32) {
    %c0_i32 = arith.constant 0 : i32
    %c0_i32_0 = arith.constant 0 : i32
    %c0_i32_1 = arith.constant 0 : i32
    return %c0_i32, %c0_i32_0 : i32, i32
  }
  func.func @transform_3(%arg0: i32) -> (i32, i32, i32) {
    %c0_i32 = arith.constant 0 : i32
    %c0_i32_0 = arith.constant 0 : i32
    %c0_i32_1 = arith.constant 0 : i32
    return %arg0, %c0_i32, %c0_i32_0 : i32, i32, i32
  }
}

module attributes {stable_mosaic.version = 11 : i64} {
  func.func @_fc_head_kernel(%arg0: i32, %arg1: i32, %arg2: memref<2x1024xbf16, #tpu.memory_space<vmem>>, %arg3: memref<1024x256xbf16, #tpu.memory_space<vmem>>, %arg4: memref<1x256xf32, #tpu.memory_space<vmem>>, %arg5: memref<256x1024xbf16, #tpu.memory_space<vmem>>, %arg6: memref<1x2x1024xf32, #tpu.memory_space<vmem>>, %arg7: memref<2x256xf32, #tpu.memory_space<vmem>>) attributes {dimension_semantics = [#tpu.dimension_semantics<parallel>, #tpu.dimension_semantics<arbitrary>], iteration_bounds = array<i64: 2, 4>, scalar_prefetch = 0 : i64, scratch_operands = 1 : i64, tpu.core_type = #tpu.core_type<tc>, window_params = [{transform_indices = @transform_0, window_bounds = array<i64: 2, 1024>}, {transform_indices = @transform_1, window_bounds = array<i64: 1024, 256>}, {transform_indices = @transform_2, window_bounds = array<i64: 1, 256>}, {transform_indices = @transform_3, window_bounds = array<i64: 256, 1024>}, {transform_indices = @transform_4, window_bounds = array<i64: 1, 2, 1024>}]} {
    %c0_i32 = arith.constant 0 : i32
    %0 = arith.cmpi eq, %arg1, %c0_i32 : i32
    %1 = arith.extui %0 : i1 to i32
    %c0_i32_0 = arith.constant 0 : i32
    %2 = arith.cmpi ne, %1, %c0_i32_0 : i32
    scf.if %2 {
      %cst_9 = arith.constant 0.000000e+00 : f32
      %12 = vector.broadcast %cst_9 : f32 to vector<2x256xf32>
      %c0_10 = arith.constant 0 : index
      %c0_11 = arith.constant 0 : index
      %13 = vector.load %arg7[%c0_10, %c0_11] : memref<2x256xf32, #tpu.memory_space<vmem>>, vector<2x256xf32>
      tpu.vector_store %arg7[%c0_10, %c0_11], %12 {strides = array<i32>} : memref<2x256xf32, #tpu.memory_space<vmem>>, vector<2x256xf32>,
    } else {
    }
    %c0 = arith.constant 0 : index
    %c0_1 = arith.constant 0 : index
    %3 = vector.load %arg7[%c0, %c0_1] : memref<2x256xf32, #tpu.memory_space<vmem>>, vector<2x256xf32>
    %c0_2 = arith.constant 0 : index
    %c0_3 = arith.constant 0 : index
    %4 = vector.load %arg2[%c0_2, %c0_3] : memref<2x1024xbf16, #tpu.memory_space<vmem>>, vector<2x1024xbf16>
    %c0_4 = arith.constant 0 : index
    %c0_5 = arith.constant 0 : index
    %5 = vector.load %arg3[%c0_4, %c0_5] : memref<1024x256xbf16, #tpu.memory_space<vmem>>, vector<1024x256xbf16>
    %cst = arith.constant dense<0.000000e+00> : vector<2x256xf32>
    %6 = tpu.matmul %4, %5, %cst {dimension_numbers = #tpu.dot_dimension_numbers<[1], [0], [0], [1], [0, 0, 1, 1], [], []>} : vector<2x1024xbf16>, vector<1024x256xbf16>, vector<2x256xf32> -> vector<2x256xf32>
    %7 = arith.addf %3, %6 : vector<2x256xf32>
    %c0_6 = arith.constant 0 : index
    %c0_7 = arith.constant 0 : index
    %8 = vector.load %arg7[%c0_6, %c0_7] : memref<2x256xf32, #tpu.memory_space<vmem>>, vector<2x256xf32>
    tpu.vector_store %arg7[%c0_6, %c0_7], %7 {strides = array<i32>} : memref<2x256xf32, #tpu.memory_space<vmem>>, vector<2x256xf32>,
    %c3_i32 = arith.constant 3 : i32
    %9 = arith.cmpi eq, %arg1, %c3_i32 : i32
    %10 = arith.extui %9 : i1 to i32
    %c0_i32_8 = arith.constant 0 : i32
    %11 = arith.cmpi ne, %10, %c0_i32_8 : i32
    scf.if %11 {
      %c0_9 = arith.constant 0 : index
      %c0_10 = arith.constant 0 : index
      %12 = vector.load %arg7[%c0_9, %c0_10] : memref<2x256xf32, #tpu.memory_space<vmem>>, vector<2x256xf32>
      %c0_11 = arith.constant 0 : index
      %c0_12 = arith.constant 0 : index
      %13 = vector.load %arg4[%c0_11, %c0_12] : memref<1x256xf32, #tpu.memory_space<vmem>>, vector<1x256xf32>
      %14 = vector.broadcast %13 : vector<1x256xf32> to vector<2x256xf32>
      %15 = arith.addf %12, %14 : vector<2x256xf32>
      %cst_13 = arith.constant 0.000000e+00 : f32
      %16 = vector.broadcast %cst_13 : f32 to vector<2x256xf32>
      %17 = arith.maximumf %15, %16 : vector<2x256xf32>
      %18 = arith.truncf %17 : vector<2x256xf32> to vector<2x256xbf16>
      %c0_14 = arith.constant 0 : index
      %c0_15 = arith.constant 0 : index
      %19 = vector.load %arg5[%c0_14, %c0_15] : memref<256x1024xbf16, #tpu.memory_space<vmem>>, vector<256x1024xbf16>
      %cst_16 = arith.constant dense<0.000000e+00> : vector<2x1024xf32>
      %20 = tpu.matmul %18, %19, %cst_16 {dimension_numbers = #tpu.dot_dimension_numbers<[1], [0], [0], [1], [0, 0, 1, 1], [], []>} : vector<2x256xbf16>, vector<256x1024xbf16>, vector<2x1024xf32> -> vector<2x1024xf32>
      %c0_17 = arith.constant 0 : index
      %c0_18 = arith.constant 0 : index
      %c0_19 = arith.constant 0 : index
      %21 = vector.load %arg6[%c0_17, %c0_18, %c0_19] : memref<1x2x1024xf32, #tpu.memory_space<vmem>>, vector<1x2x1024xf32>
      %22 = vector.shape_cast %21 : vector<1x2x1024xf32> to vector<2x1024xf32>
      %23 = vector.shape_cast %20 : vector<2x1024xf32> to vector<1x2x1024xf32>
      tpu.vector_store %arg6[%c0_17, %c0_18, %c0_19], %23 {strides = array<i32>} : memref<1x2x1024xf32, #tpu.memory_space<vmem>>, vector<1x2x1024xf32>,
    } else {
    }
    return
  }
  func.func @transform_0(%arg0: i32, %arg1: i32) -> (i32, i32) {
    %c0_i32 = arith.constant 0 : i32
    %c0_i32_0 = arith.constant 0 : i32
    return %c0_i32, %arg1 : i32, i32
  }
  func.func @transform_1(%arg0: i32, %arg1: i32) -> (i32, i32) {
    %c0_i32 = arith.constant 0 : i32
    return %arg1, %arg0 : i32, i32
  }
  func.func @transform_2(%arg0: i32, %arg1: i32) -> (i32, i32) {
    %c0_i32 = arith.constant 0 : i32
    %c0_i32_0 = arith.constant 0 : i32
    return %c0_i32, %arg0 : i32, i32
  }
  func.func @transform_3(%arg0: i32, %arg1: i32) -> (i32, i32) {
    %c0_i32 = arith.constant 0 : i32
    %c0_i32_0 = arith.constant 0 : i32
    return %arg0, %c0_i32 : i32, i32
  }
  func.func @transform_4(%arg0: i32, %arg1: i32) -> (i32, i32, i32) {
    %c0_i32 = arith.constant 0 : i32
    %c0_i32_0 = arith.constant 0 : i32
    %c0_i32_1 = arith.constant 0 : i32
    return %arg0, %c0_i32, %c0_i32_0 : i32, i32, i32
  }
}

</mosaic_0001>

<llo_original>
// kernel: forward.4
$region0: #{forward.4}
  #allocation0 [shape = 'u32[]', space=smem, size = 0x4, offset = 0x4, fixed_abs, tag = 'smem constant byte address 0x4 - core index']
  #allocation1 [shape = 'u32[144,128]{1,0:T(1,128)}', space=vmem, size = 0x12000, scoped, tag = 'internal scratch']
  %s0 = inlined_call_operand.vmem [shape: bf16[2,4,256,27], index: 0, kind: input, shape index: {}]
  %s1 = inlined_call_operand.vmem [shape: bf16[27,64], index: 1, kind: input, shape index: {}]
  %s2 = inlined_call_operand.vmem [shape: f32[1,64], index: 2, kind: input, shape index: {}]
  %s3 = inlined_call_operand.vmem [shape: bf16[2,256,64], index: 3, kind: output, shape index: {}]
  %s4 = sld [smem:[#allocation0]]
  $region45: #{forward.4} parent=0
    _
  %s6 = ssub.s32 1, %s4
  %s7 = scalar_select 0, %s6, %s4
  loop: start=0, step=1, limit=4
  $region2: #{forward.4} parent=0 // loop_pre_header
    _
  $region3: #{forward.4} parent=0 // loop_header
    %s9 = sphi 0, %s13
    %p10 = scmp.ge.s32.totalorder %s9, 4
    %s19 = sphi 0, %s21
    %s22 = sphi 0, %s19
    %s23 = sphi 0, %s22
    %s39 = sphi 0, %s23
    %s43 = sphi 0, %s43
    %s45 = sphi 0, %s43
    %s46 = sphi 0, %s45
    %s60 = sphi 0, %s46
    %s64 = sphi 0, %s64
    %s66 = sphi 0, %s64
    %s67 = sphi 0, %s66
    %s81 = sphi 0, %s67
    %s87 = sphi 0, %s89
    %s90 = sphi 0, %s87
    %s91 = sphi 0, %s90
    %s107 = sphi 0, %s91
  $region4: #{forward.4} parent=0 // loop_header_branch
    %12 = sbr.rel (%p10) target = $region8
  $region5: #{forward.4} parent=0 // loop_body
    %s14 = ssub.s32 %s9, 1
    %s15 = ssub.s32 %s9, 2
    %s16 = sadd.s32 %s9, 1
    %s17 = ssub.s32 %s9, %s16
    %p18 = scmp.eq.s32.totalorder %s17, 0
    %s20 = sadd.s32 %s19, 1
    %s21 = scalar_select %p18, %s19, %s20
    %p24 = pneg %p18
    %p25 = scmp.eq.s32.totalorder %s9, 1
    %p26 = por %p24, %p25
    %p27 = scmp.ne.s32.totalorder %s19, %s22
    %p28 = scmp.eq.s32.totalorder %s9, 0
    %p29 = por %p27, %p28
    %p30 = scmp.ne.s32.totalorder %s19, %s22
    %p31 = scmp.eq.s32.totalorder %s14, 1
    %p32 = por %p30, %p31
    %p33 = scmp.ne.s32.totalorder %s22, %s23
    %p34 = scmp.eq.s32.totalorder %s14, 0
    %p35 = por %p33, %p34
    %p36 = scmp.ne.s32.totalorder %s22, %s23
    %p37 = scmp.eq.s32.totalorder %s15, 1
    %p38 = por %p36, %p37
    %p40 = scmp.ne.s32.totalorder %s23, %s39
    %p41 = scmp.eq.s32.totalorder %s15, 0
    %p42 = por %p40, %p41
    %s44 = sadd.s32 %s43, 1
    %p47 = scmp.eq.s32.totalorder %s9, 1
    %p48 = scmp.ne.s32.totalorder %s43, %s45
    %p49 = scmp.eq.s32.totalorder %s9, 0
    %p50 = por %p48, %p49
    %p51 = scmp.ne.s32.totalorder %s43, %s45
    %p52 = scmp.eq.s32.totalorder %s14, 1
    %p53 = por %p51, %p52
    %p54 = scmp.ne.s32.totalorder %s45, %s46
    %p55 = scmp.eq.s32.totalorder %s14, 0
    %p56 = por %p54, %p55
    %p57 = scmp.ne.s32.totalorder %s45, %s46
    %p58 = scmp.eq.s32.totalorder %s15, 1
    %p59 = por %p57, %p58
    %p61 = scmp.ne.s32.totalorder %s46, %s60
    %p62 = scmp.eq.s32.totalorder %s15, 0
    %p63 = por %p61, %p62
    %s65 = sadd.s32 %s64, 1
    %p68 = scmp.eq.s32.totalorder %s9, 1
    %p69 = scmp.ne.s32.totalorder %s64, %s66
    %p70 = scmp.eq.s32.totalorder %s9, 0
    %p71 = por %p69, %p70
    %p72 = scmp.ne.s32.totalorder %s64, %s66
    %p73 = scmp.eq.s32.totalorder %s14, 1
    %p74 = por %p72, %p73
    %p75 = scmp.ne.s32.totalorder %s66, %s67
    %p76 = scmp.eq.s32.totalorder %s14, 0
    %p77 = por %p75, %p76
    %p78 = scmp.ne.s32.totalorder %s66, %s67
    %p79 = scmp.eq.s32.totalorder %s15, 1
    %p80 = por %p78, %p79
    %p82 = scmp.ne.s32.totalorder %s67, %s81
    %p83 = scmp.eq.s32.totalorder %s15, 0
    %p84 = por %p82, %p83
    %s85 = ssub.s32 %s9, %s16
    %p86 = scmp.eq.s32.totalorder %s85, 0
    %s88 = sadd.s32 %s87, 1
    %s89 = scalar_select %p86, %s87, %s88
    %p92 = pneg %p86
    %p93 = scmp.eq.s32.totalorder %s9, 1
    %p94 = por %p92, %p93
    %p95 = scmp.ne.s32.totalorder %s87, %s90
    %p96 = scmp.eq.s32.totalorder %s9, 0
    %p97 = por %p95, %p96
    %p98 = scmp.ne.s32.totalorder %s87, %s90
    %p99 = scmp.eq.s32.totalorder %s14, 1
    %p100 = por %p98, %p99
    %p101 = scmp.ne.s32.totalorder %s90, %s91
    %p102 = scmp.eq.s32.totalorder %s14, 0
    %p103 = por %p101, %p102
    %p104 = scmp.ne.s32.totalorder %s90, %s91
    %p105 = scmp.eq.s32.totalorder %s15, 1
    %p106 = por %p104, %p105
    %p108 = scmp.ne.s32.totalorder %s91, %s107
    %p109 = scmp.eq.s32.totalorder %s15, 0
    %p110 = por %p108, %p109
    %p111 = scmp.le.s32.totalorder 1, %s9
    %p112 = scmp.lt.s32.totalorder %s9, 3
    %p113 = pnand %p111, %p112
    %p114 = pneg %p113
    // Predicated region
    $region9: #{forward.4} parent=5 // pred_check
      _
    $region10: #{forward.4} parent=5 // pred_check_branch
      %116 = sbr.rel (%p113) target = $region12
    $region11: #{forward.4} parent=5 // pred_region
      %s117 = ssub.s32 %s9, 1
      // Predicated region
      $region13: #{forward.4} parent=11 // pred_check
        %p118 = pneg %p56
      $region14: #{forward.4} parent=11 // pred_check_branch
        %120 = sbr.rel (%p118) target = $region16
      $region15: #{forward.4} parent=11 // pred_region
        _
      $region16: #{forward.4} parent=11 // pred_fallthru
        _
      // Predicated region
      $region17: #{forward.4} parent=11 // pred_check
        %p121 = pneg %p77
      $region18: #{forward.4} parent=11 // pred_check_branch
        %123 = sbr.rel (%p121) target = $region20
      $region19: #{forward.4} parent=11 // pred_region
        _
      $region20: #{forward.4} parent=11 // pred_fallthru
        _
    $region12: #{forward.4} parent=5 // pred_fallthru
      _
    %p124 = scmp.lt.s32.totalorder %s9, 2
    // Predicated region
    $region21: #{forward.4} parent=5 // pred_check
      %p125 = pneg %p124
    $region22: #{forward.4} parent=5 // pred_check_branch
      %127 = sbr.rel (%p125) target = $region24
    $region23: #{forward.4} parent=5 // pred_region
      // Predicated region
      $region25: #{forward.4} parent=23 // pred_check
        %p128 = pneg %p29
      $region26: #{forward.4} parent=23 // pred_check_branch
        %130 = sbr.rel (%p128) target = $region28
      $region27: #{forward.4} parent=23 // pred_region
        %p131 = scmp.lt.s32.totalorder %s9, 1
        %s132 = scalar_select %p131, %s9, 1
        %s133 = smul.addr %s132, 128
        %s134 = smul.addr %s133, 4
        %s135 = scalar_lea.vmem %s0, %s134
      $region28: #{forward.4} parent=23 // pred_fallthru
        _
    $region24: #{forward.4} parent=5 // pred_fallthru
      _
    %p136 = scmp.le.s32.totalorder 1, %s9
    %p137 = scmp.lt.s32.totalorder %s9, 3
    %p138 = pnand %p136, %p137
    %p139 = pneg %p138
    // Predicated region
    $region29: #{forward.4} parent=5 // pred_check
      _
    $region30: #{forward.4} parent=5 // pred_check_branch
      %141 = sbr.rel (%p138) target = $region32
    $region31: #{forward.4} parent=5 // pred_region
      %s142 = ssub.s32 %s9, 1
      %p143 = scmp.lt.s32.totalorder %s14, 1
      %s144 = scalar_select %p143, %s14, 1
      %s145 = smul.addr %s144, 128
      %s146 = smul.addr %s145, 4
      %s147 = scalar_lea.vmem %s0, %s146
      %p148 = pneg %p35
      %p149 = pneg %p32
      %p150 = pneg %p56
      %p151 = pneg %p53
      %p152 = pneg %p77
      %p153 = pneg %p74
      %p154 = pneg %p103
      %p155 = pneg %p100
      %p156 = scmp.lt.s32.totalorder %s14, 1
      %s157 = scalar_select %p156, %s14, 1
      %s158 = smul.addr %s157, 32
      %s159 = smul.addr %s158, 4
      %s160 = scalar_lea.vmem %s3, %s159
      %p161 = scmp.lt.s32.totalorder %s14, 1
      %s162 = scalar_select %p161, %s14, 1
      %s163 = smul.addr %s162, 128
      %s164 = smul.addr %s163, 4
      %s165 = scalar_lea.vmem %s0, %s164
      %p166 = scmp.lt.s32.totalorder %s14, 1
      %s167 = scalar_select %p166, %s14, 1
      %s168 = smul.addr %s167, 32
      %s169 = smul.addr %s168, 4
      %s170 = scalar_lea.vmem %s3, %s169
      %v172 = vld [vmem:[%s1] sm:$0xf]
      %v173 = vld [vmem:[%s1 + $0x4] sm:$0xf]
      %v174 = vld [vmem:[%s1 + $0x8] sm:$0xf]
      %v175 = vld [vmem:[%s1 + $0xc] sm:$0x3]
      %v176 = vld [vmem:[%s165] sm:$0xf]
      %v177 = vld [vmem:[%s165 + $0x4] sm:$0xf]
      %v178 = vld [vmem:[%s165 + $0x8] sm:$0xf]
      %v179 = vld [vmem:[%s165 + $0xc] sm:$0xf]
      %v180 = vld [vmem:[%s165 + $0x10] sm:$0xf]
      %v181 = vld [vmem:[%s165 + $0x14] sm:$0xf]
      %v182 = vld [vmem:[%s165 + $0x18] sm:$0xf]
      %v183 = vld [vmem:[%s165 + $0x1c] sm:$0xf]
      %v184 = vld [vmem:[%s165 + $0x20] sm:$0xf]
      %v185 = vld [vmem:[%s165 + $0x24] sm:$0xf]
      %v186 = vld [vmem:[%s165 + $0x28] sm:$0xf]
      %v187 = vld [vmem:[%s165 + $0x2c] sm:$0xf]
      %v188 = vld [vmem:[%s165 + $0x30] sm:$0xf]
      %v189 = vld [vmem:[%s165 + $0x34] sm:$0xf]
      %v190 = vld [vmem:[%s165 + $0x38] sm:$0xf]
      %v191 = vld [vmem:[%s165 + $0x3c] sm:$0xf]
      %v192 = vld [vmem:[%s165 + $0x40] sm:$0xf]
      %v193 = vld [vmem:[%s165 + $0x44] sm:$0xf]
      %v194 = vld [vmem:[%s165 + $0x48] sm:$0xf]
      %v195 = vld [vmem:[%s165 + $0x4c] sm:$0xf]
      %v196 = vld [vmem:[%s165 + $0x50] sm:$0xf]
      %v197 = vld [vmem:[%s165 + $0x54] sm:$0xf]
      %v198 = vld [vmem:[%s165 + $0x58] sm:$0xf]
      %v199 = vld [vmem:[%s165 + $0x5c] sm:$0xf]
      %v200 = vld [vmem:[%s165 + $0x60] sm:$0xf]
      %v201 = vld [vmem:[%s165 + $0x64] sm:$0xf]
      %v202 = vld [vmem:[%s165 + $0x68] sm:$0xf]
      %v203 = vld [vmem:[%s165 + $0x6c] sm:$0xf]
      %v204 = vld [vmem:[%s165 + $0x70] sm:$0xf]
      %v205 = vld [vmem:[%s165 + $0x74] sm:$0xf]
      %v206 = vld [vmem:[%s165 + $0x78] sm:$0xf]
      %v207 = vld [vmem:[%s165 + $0x7c] sm:$0xf]
      %v240 = vunpack.c.l.b16 %v176
      %v241 = vunpack.c.l.b16 %v177
      %v242 = vunpack.c.l.b16 %v178
      %v243 = vunpack.c.l.b16 %v179
      %v244 = vunpack.c.l.b16 %v180
      %v245 = vunpack.c.l.b16 %v181
      %v246 = vunpack.c.l.b16 %v182
      %v247 = vunpack.c.l.b16 %v183
      %v248 = vunpack.c.l.b16 %v184
      %v249 = vunpack.c.l.b16 %v185
      %v250 = vunpack.c.l.b16 %v186
      %v251 = vunpack.c.l.b16 %v187
      %v252 = vunpack.c.l.b16 %v188
      %v253 = vunpack.c.l.b16 %v189
      %v254 = vunpack.c.l.b16 %v190
      %v255 = vunpack.c.l.b16 %v191
      %v256 = vunpack.c.l.b16 %v192
      %v257 = vunpack.c.l.b16 %v193
      %v258 = vunpack.c.l.b16 %v194
      %v259 = vunpack.c.l.b16 %v195
      %v260 = vunpack.c.l.b16 %v196
      %v261 = vunpack.c.l.b16 %v197
      %v262 = vunpack.c.l.b16 %v198
      %v263 = vunpack.c.l.b16 %v199
      %v264 = vunpack.c.l.b16 %v200
      %v265 = vunpack.c.l.b16 %v201
      %v266 = vunpack.c.l.b16 %v202
      %v267 = vunpack.c.l.b16 %v203
      %v268 = vunpack.c.l.b16 %v204
      %v269 = vunpack.c.l.b16 %v205
      %v270 = vunpack.c.l.b16 %v206
      %v271 = vunpack.c.l.b16 %v207
      %v272 = vpack.c.b16 %v241, %v240
      %v273 = vpack.c.b16 %v243, %v242
      %v274 = vpack.c.b16 %v245, %v244
      %v275 = vpack.c.b16 %v247, %v246
      %v276 = vpack.c.b16 %v249, %v248
      %v277 = vpack.c.b16 %v251, %v250
      %v278 = vpack.c.b16 %v253, %v252
      %v279 = vpack.c.b16 %v255, %v254
      %v280 = vpack.c.b16 %v257, %v256
      %v281 = vpack.c.b16 %v259, %v258
      %v282 = vpack.c.b16 %v261, %v260
      %v283 = vpack.c.b16 %v263, %v262
      %v284 = vpack.c.b16 %v265, %v264
      %v285 = vpack.c.b16 %v267, %v266
      %v286 = vpack.c.b16 %v269, %v268
      %v287 = vpack.c.b16 %v271, %v270
      %v292 = vunpack.c.l.b16 %v172
      %v293 = vunpack.c.l.b16 %v173
      %v294 = vunpack.c.l.b16 %v174
      %v295 = vunpack.c.l.b16 %v175
      %v296 = vpack.c.b16 %v293, %v292
      %v297 = vpack.c.b16 %v295, %v294
      %vm299 = vcmask 220160
      %v301 = vsel %vm299, %v272, 0
      %v304 = vsel %vm299, %v273, 0
      %v307 = vsel %vm299, %v274, 0
      %v310 = vsel %vm299, %v275, 0
      %v313 = vsel %vm299, %v276, 0
      %v316 = vsel %vm299, %v277, 0
      %v319 = vsel %vm299, %v278, 0
      %v322 = vsel %vm299, %v279, 0
      %v325 = vsel %vm299, %v280, 0
      %v328 = vsel %vm299, %v281, 0
      %v331 = vsel %vm299, %v282, 0
      %v334 = vsel %vm299, %v283, 0
      %v337 = vsel %vm299, %v284, 0
      %v340 = vsel %vm299, %v285, 0
      %v343 = vsel %vm299, %v286, 0
      %v346 = vsel %vm299, %v287, 0
      %vm348 = vcmask 1044480
      %vm349 = vcmask 1045504
      %v350 = vsel %vm348, 4294967295, 65535
      %v351 = vsel %vm349, %v350, 0
      %v353 = vand.u32 %v297, %v351
      %355 = vmatprep.subr.bf16.mxu0 0
      %356 = vmatpush1.bf16.msra.mxu0 %v296
      %357 = vmatprep.subr.bf16.mxu0 0
      %358 = vmatpush1.bf16.msra.mxu0 %v353
      %359 = vmatprep.subr.bf16.mxu0 0
      %360 = vmatpush1.bf16.msra.mxu0 0
      %361 = vmatprep.subr.bf16.mxu0 0
      %362 = vmatpush1.bf16.msra.mxu0 0
      %363 = vmatprep.subr.bf16.mxu0 0
      %364 = vmatpush1.bf16.msra.mxu0 0
      %365 = vmatprep.subr.bf16.mxu0 0
      %366 = vmatpush1.bf16.msra.mxu0 0
      %367 = vmatprep.subr.bf16.mxu0 0
      %368 = vmatpush1.bf16.msra.mxu0 0
      %369 = vmatprep.subr.bf16.mxu0 0
      %370 = vmatpush1.bf16.msra.mxu0 0
      %371 = vmatprep.subr.bf16.mxu0 0
      %372 = vmatpush1.bf16.msra.mxu0 0
      %373 = vmatprep.subr.bf16.mxu0 0
      %374 = vmatpush1.bf16.msra.mxu0 0
      %375 = vmatprep.subr.bf16.mxu0 0
      %376 = vmatpush1.bf16.msra.mxu0 0
      %377 = vmatprep.subr.bf16.mxu0 0
      %378 = vmatpush1.bf16.msra.mxu0 0
      %379 = vmatprep.subr.bf16.mxu0 0
      %380 = vmatpush1.bf16.msra.mxu0 0
      %381 = vmatprep.subr.bf16.mxu0 0
      %382 = vmatpush1.bf16.msra.mxu0 0
      %383 = vmatprep.subr.bf16.mxu0 0
      %384 = vmatpush1.bf16.msra.mxu0 0
      %385 = vmatprep.subr.bf16.mxu0 0
      %386 = vmatpush1.bf16.msra.mxu0 0
      %387 = vmatprep.mubr.bf16.mxu0 0
      %388 = vmatmul.mubr.bf16.gmra.mrb[0].mxu0 %v301
      %v389 = vpop.f32.mrb[0].mxu0
      %v390 = vadd.f32 0.0, %v389
      %v391 = vpop.f32.mrb[0].mxu0
      %v392 = vpop.f32.mrb[0].mxu0
      %v393 = vadd.f32 0.0, %v392
      %v394 = vpop.f32.mrb[0].mxu0
      %395 = vmatprep.mubr.bf16.mxu0 0
      %396 = vmatmul.mubr.bf16.gmra.mrb[0].mxu0 %v304
      %v397 = vpop.f32.mrb[0].mxu0
      %v398 = vadd.f32 0.0, %v397
      %v399 = vpop.f32.mrb[0].mxu0
      %v400 = vpop.f32.mrb[0].mxu0
      %v401 = vadd.f32 0.0, %v400
      %v402 = vpop.f32.mrb[0].mxu0
      %403 = vmatprep.mubr.bf16.mxu0 0
      %404 = vmatmul.mubr.bf16.gmra.mrb[0].mxu0 %v307
      %v405 = vpop.f32.mrb[0].mxu0
      %v406 = vadd.f32 0.0, %v405
      %v407 = vpop.f32.mrb[0].mxu0
      %v408 = vpop.f32.mrb[0].mxu0
      %v409 = vadd.f32 0.0, %v408
      %v410 = vpop.f32.mrb[0].mxu0
      %411 = vmatprep.mubr.bf16.mxu0 0
      %412 = vmatmul.mubr.bf16.gmra.mrb[0].mxu0 %v310
      %v413 = vpop.f32.mrb[0].mxu0
      %v414 = vadd.f32 0.0, %v413
      %v415 = vpop.f32.mrb[0].mxu0
      %v416 = vpop.f32.mrb[0].mxu0
      %v417 = vadd.f32 0.0, %v416
      %v418 = vpop.f32.mrb[0].mxu0
      %419 = vmatprep.mubr.bf16.mxu0 0
      %420 = vmatmul.mubr.bf16.gmra.mrb[0].mxu0 %v313
      %v421 = vpop.f32.mrb[0].mxu0
      %v422 = vadd.f32 0.0, %v421
      %v423 = vpop.f32.mrb[0].mxu0
      %v424 = vpop.f32.mrb[0].mxu0
      %v425 = vadd.f32 0.0, %v424
      %v426 = vpop.f32.mrb[0].mxu0
      %427 = vmatprep.mubr.bf16.mxu0 0
      %428 = vmatmul.mubr.bf16.gmra.mrb[0].mxu0 %v316
      %v429 = vpop.f32.mrb[0].mxu0
      %v430 = vadd.f32 0.0, %v429
      %v431 = vpop.f32.mrb[0].mxu0
      %v432 = vpop.f32.mrb[0].mxu0
      %v433 = vadd.f32 0.0, %v432
      %v434 = vpop.f32.mrb[0].mxu0
      %435 = vmatprep.mubr.bf16.mxu0 0
      %436 = vmatmul.mubr.bf16.gmra.mrb[0].mxu0 %v319
      %v437 = vpop.f32.mrb[0].mxu0
      %v438 = vadd.f32 0.0, %v437
      %v439 = vpop.f32.mrb[0].mxu0
      %v440 = vpop.f32.mrb[0].mxu0
      %v441 = vadd.f32 0.0, %v440
      %v442 = vpop.f32.mrb[0].mxu0
      %443 = vmatprep.mubr.bf16.mxu0 0
      %444 = vmatmul.mubr.bf16.gmra.mrb[0].mxu0 %v322
      %v445 = vpop.f32.mrb[0].mxu0
      %v446 = vadd.f32 0.0, %v445
      %v447 = vpop.f32.mrb[0].mxu0
      %v448 = vpop.f32.mrb[0].mxu0
      %v449 = vadd.f32 0.0, %v448
      %v450 = vpop.f32.mrb[0].mxu0
      %451 = vmatprep.mubr.bf16.mxu0 0
      %452 = vmatmul.mubr.bf16.gmra.mrb[0].mxu0 %v325
      %v453 = vpop.f32.mrb[0].mxu0
      %v454 = vadd.f32 0.0, %v453
      %v455 = vpop.f32.mrb[0].mxu0
      %v456 = vpop.f32.mrb[0].mxu0
      %v457 = vadd.f32 0.0, %v456
      %v458 = vpop.f32.mrb[0].mxu0
      %459 = vmatprep.mubr.bf16.mxu0 0
      %460 = vmatmul.mubr.bf16.gmra.mrb[0].mxu0 %v328
      %v461 = vpop.f32.mrb[0].mxu0
      %v462 = vadd.f32 0.0, %v461
      %v463 = vpop.f32.mrb[0].mxu0
      %v464 = vpop.f32.mrb[0].mxu0
      %v465 = vadd.f32 0.0, %v464
      %v466 = vpop.f32.mrb[0].mxu0
      %467 = vmatprep.mubr.bf16.mxu0 0
      %468 = vmatmul.mubr.bf16.gmra.mrb[0].mxu0 %v331
      %v469 = vpop.f32.mrb[0].mxu0
      %v470 = vadd.f32 0.0, %v469
      %v471 = vpop.f32.mrb[0].mxu0
      %v472 = vpop.f32.mrb[0].mxu0
      %v473 = vadd.f32 0.0, %v472
      %v474 = vpop.f32.mrb[0].mxu0
      %475 = vmatprep.mubr.bf16.mxu0 0
      %476 = vmatmul.mubr.bf16.gmra.mrb[0].mxu0 %v334
      %v477 = vpop.f32.mrb[0].mxu0
      %v478 = vadd.f32 0.0, %v477
      %v479 = vpop.f32.mrb[0].mxu0
      %v480 = vpop.f32.mrb[0].mxu0
      %v481 = vadd.f32 0.0, %v480
      %v482 = vpop.f32.mrb[0].mxu0
      %483 = vmatprep.mubr.bf16.mxu0 0
      %484 = vmatmul.mubr.bf16.gmra.mrb[0].mxu0 %v337
      %v485 = vpop.f32.mrb[0].mxu0
      %v486 = vadd.f32 0.0, %v485
      %v487 = vpop.f32.mrb[0].mxu0
      %v488 = vpop.f32.mrb[0].mxu0
      %v489 = vadd.f32 0.0, %v488
      %v490 = vpop.f32.mrb[0].mxu0
      %491 = vmatprep.mubr.bf16.mxu0 0
      %492 = vmatmul.mubr.bf16.gmra.mrb[0].mxu0 %v340
      %v493 = vpop.f32.mrb[0].mxu0
      %v494 = vadd.f32 0.0, %v493
      %v495 = vpop.f32.mrb[0].mxu0
      %v496 = vpop.f32.mrb[0].mxu0
      %v497 = vadd.f32 0.0, %v496
      %v498 = vpop.f32.mrb[0].mxu0
      %499 = vmatprep.mubr.bf16.mxu0 0
      %500 = vmatmul.mubr.bf16.gmra.mrb[0].mxu0 %v343
      %v501 = vpop.f32.mrb[0].mxu0
      %v502 = vadd.f32 0.0, %v501
      %v503 = vpop.f32.mrb[0].mxu0
      %v504 = vpop.f32.mrb[0].mxu0
      %v505 = vadd.f32 0.0, %v504
      %v506 = vpop.f32.mrb[0].mxu0
      %507 = vmatprep.mubr.bf16.mxu0 0
      %508 = vmatmul.mubr.bf16.gmra.mrb[0].mxu0 %v346
      %v509 = vpop.f32.mrb[0].mxu0
      %v510 = vadd.f32 0.0, %v509
      %v511 = vpop.f32.mrb[0].mxu0
      %v512 = vpop.f32.mrb[0].mxu0
      %v513 = vadd.f32 0.0, %v512
      %v514 = vpop.f32.mrb[0].mxu0
      %515 = vdwg.mxu0
      %s516 = scalar_lea.vmem %s165, 128
      %v517 = vld [vmem:[%s516] sm:$0xf]
      %v518 = vld [vmem:[%s516 + $0x4] sm:$0xf]
      %v519 = vld [vmem:[%s516 + $0x8] sm:$0xf]
      %v520 = vld [vmem:[%s516 + $0xc] sm:$0xf]
      %v521 = vld [vmem:[%s516 + $0x10] sm:$0xf]
      %v522 = vld [vmem:[%s516 + $0x14] sm:$0xf]
      %v523 = vld [vmem:[%s516 + $0x18] sm:$0xf]
      %v524 = vld [vmem:[%s516 + $0x1c] sm:$0xf]
      %v525 = vld [vmem:[%s516 + $0x20] sm:$0xf]
      %v526 = vld [vmem:[%s516 + $0x24] sm:$0xf]
      %v527 = vld [vmem:[%s516 + $0x28] sm:$0xf]
      %v528 = vld [vmem:[%s516 + $0x2c] sm:$0xf]
      %v529 = vld [vmem:[%s516 + $0x30] sm:$0xf]
      %v530 = vld [vmem:[%s516 + $0x34] sm:$0xf]
      %v531 = vld [vmem:[%s516 + $0x38] sm:$0xf]
      %v532 = vld [vmem:[%s516 + $0x3c] sm:$0xf]
      %v533 = vld [vmem:[%s516 + $0x40] sm:$0xf]
      %v534 = vld [vmem:[%s516 + $0x44] sm:$0xf]
      %v535 = vld [vmem:[%s516 + $0x48] sm:$0xf]
      %v536 = vld [vmem:[%s516 + $0x4c] sm:$0xf]
      %v537 = vld [vmem:[%s516 + $0x50] sm:$0xf]
      %v538 = vld [vmem:[%s516 + $0x54] sm:$0xf]
      %v539 = vld [vmem:[%s516 + $0x58] sm:$0xf]
      %v540 = vld [vmem:[%s516 + $0x5c] sm:$0xf]
      %v541 = vld [vmem:[%s516 + $0x60] sm:$0xf]
      %v542 = vld [vmem:[%s516 + $0x64] sm:$0xf]
      %v543 = vld [vmem:[%s516 + $0x68] sm:$0xf]
      %v544 = vld [vmem:[%s516 + $0x6c] sm:$0xf]
      %v545 = vld [vmem:[%s516 + $0x70] sm:$0xf]
      %v546 = vld [vmem:[%s516 + $0x74] sm:$0xf]
      %v547 = vld [vmem:[%s516 + $0x78] sm:$0xf]
      %v548 = vld [vmem:[%s516 + $0x7c] sm:$0xf]
      %v581 = vunpack.c.l.b16 %v517
      %v582 = vunpack.c.l.b16 %v518
      %v583 = vunpack.c.l.b16 %v519
      %v584 = vunpack.c.l.b16 %v520
      %v585 = vunpack.c.l.b16 %v521
      %v586 = vunpack.c.l.b16 %v522
      %v587 = vunpack.c.l.b16 %v523
      %v588 = vunpack.c.l.b16 %v524
      %v589 = vunpack.c.l.b16 %v525
      %v590 = vunpack.c.l.b16 %v526
      %v591 = vunpack.c.l.b16 %v527
      %v592 = vunpack.c.l.b16 %v528
      %v593 = vunpack.c.l.b16 %v529
      %v594 = vunpack.c.l.b16 %v530
      %v595 = vunpack.c.l.b16 %v531
      %v596 = vunpack.c.l.b16 %v532
      %v597 = vunpack.c.l.b16 %v533
      %v598 = vunpack.c.l.b16 %v534
      %v599 = vunpack.c.l.b16 %v535
      %v600 = vunpack.c.l.b16 %v536
      %v601 = vunpack.c.l.b16 %v537
      %v602 = vunpack.c.l.b16 %v538
      %v603 = vunpack.c.l.b16 %v539
      %v604 = vunpack.c.l.b16 %v540
      %v605 = vunpack.c.l.b16 %v541
      %v606 = vunpack.c.l.b16 %v542
      %v607 = vunpack.c.l.b16 %v543
      %v608 = vunpack.c.l.b16 %v544
      %v609 = vunpack.c.l.b16 %v545
      %v610 = vunpack.c.l.b16 %v546
      %v611 = vunpack.c.l.b16 %v547
      %v612 = vunpack.c.l.b16 %v548
      %v613 = vpack.c.b16 %v582, %v581
      %v614 = vpack.c.b16 %v584, %v583
      %v615 = vpack.c.b16 %v586, %v585
      %v616 = vpack.c.b16 %v588, %v587
      %v617 = vpack.c.b16 %v590, %v589
      %v618 = vpack.c.b16 %v592, %v591
      %v619 = vpack.c.b16 %v594, %v593
      %v620 = vpack.c.b16 %v596, %v595
      %v621 = vpack.c.b16 %v598, %v597
      %v622 = vpack.c.b16 %v600, %v599
      %v623 = vpack.c.b16 %v602, %v601
      %v624 = vpack.c.b16 %v604, %v603
      %v625 = vpack.c.b16 %v606, %v605
      %v626 = vpack.c.b16 %v608, %v607
      %v627 = vpack.c.b16 %v610, %v609
      %v628 = vpack.c.b16 %v612, %v611
      %v630 = vsel %vm299, %v613, 0
      %v633 = vsel %vm299, %v614, 0
      %v636 = vsel %vm299, %v615, 0
      %v639 = vsel %vm299, %v616, 0
      %v642 = vsel %vm299, %v617, 0
      %v645 = vsel %vm299, %v618, 0
      %v648 = vsel %vm299, %v619, 0
      %v651 = vsel %vm299, %v620, 0
      %v654 = vsel %vm299, %v621, 0
      %v657 = vsel %vm299, %v622, 0
      %v660 = vsel %vm299, %v623, 0
      %v663 = vsel %vm299, %v624, 0
      %v666 = vsel %vm299, %v625, 0
      %v669 = vsel %vm299, %v626, 0
      %v672 = vsel %vm299, %v627, 0
      %v675 = vsel %vm299, %v628, 0
      %677 = vmatprep.subr.bf16.mxu0 0
      %678 = vmatpush1.bf16.msra.mxu0 %v296
      %679 = vmatprep.subr.bf16.mxu0 0
      %680 = vmatpush1.bf16.msra.mxu0 %v353
      %681 = vmatprep.subr.bf16.mxu0 0
      %682 = vmatpush1.bf16.msra.mxu0 0
      %683 = vmatprep.subr.bf16.mxu0 0
      %684 = vmatpush1.bf16.msra.mxu0 0
      %685 = vmatprep.subr.bf16.mxu0 0
      %686 = vmatpush1.bf16.msra.mxu0 0
      %687 = vmatprep.subr.bf16.mxu0 0
      %688 = vmatpush1.bf16.msra.mxu0 0
      %689 = vmatprep.subr.bf16.mxu0 0
      %690 = vmatpush1.bf16.msra.mxu0 0
      %691 = vmatprep.subr.bf16.mxu0 0
      %692 = vmatpush1.bf16.msra.mxu0 0
      %693 = vmatprep.subr.bf16.mxu0 0
      %694 = vmatpush1.bf16.msra.mxu0 0
      %695 = vmatprep.subr.bf16.mxu0 0
      %696 = vmatpush1.bf16.msra.mxu0 0
      %697 = vmatprep.subr.bf16.mxu0 0
      %698 = vmatpush1.bf16.msra.mxu0 0
      %699 = vmatprep.subr.bf16.mxu0 0
      %700 = vmatpush1.bf16.msra.mxu0 0
      %701 = vmatprep.subr.bf16.mxu0 0
      %702 = vmatpush1.bf16.msra.mxu0 0
      %703 = vmatprep.subr.bf16.mxu0 0
      %704 = vmatpush1.bf16.msra.mxu0 0
      %705 = vmatprep.subr.bf16.mxu0 0
      %706 = vmatpush1.bf16.msra.mxu0 0
      %707 = vmatprep.subr.bf16.mxu0 0
      %708 = vmatpush1.bf16.msra.mxu0 0
      %709 = vmatprep.mubr.bf16.mxu0 0
      %710 = vmatmul.mubr.bf16.gmra.mrb[0].mxu0 %v630
      %v711 = vpop.f32.mrb[0].mxu0
      %v712 = vadd.f32 0.0, %v711
      %v713 = vpop.f32.mrb[0].mxu0
      %v714 = vpop.f32.mrb[0].mxu0
      %v715 = vadd.f32 0.0, %v714
      %v716 = vpop.f32.mrb[0].mxu0
      %717 = vmatprep.mubr.bf16.mxu0 0
      %718 = vmatmul.mubr.bf16.gmra.mrb[0].mxu0 %v633
      %v719 = vpop.f32.mrb[0].mxu0
      %v720 = vadd.f32 0.0, %v719
      %v721 = vpop.f32.mrb[0].mxu0
      %v722 = vpop.f32.mrb[0].mxu0
      %v723 = vadd.f32 0.0, %v722
      %v724 = vpop.f32.mrb[0].mxu0
      %725 = vmatprep.mubr.bf16.mxu0 0
      %726 = vmatmul.mubr.bf16.gmra.mrb[0].mxu0 %v636
      %v727 = vpop.f32.mrb[0].mxu0
      %v728 = vadd.f32 0.0, %v727
      %v729 = vpop.f32.mrb[0].mxu0
      %v730 = vpop.f32.mrb[0].mxu0
      %v731 = vadd.f32 0.0, %v730
      %v732 = vpop.f32.mrb[0].mxu0
      %733 = vmatprep.mubr.bf16.mxu0 0
      %734 = vmatmul.mubr.bf16.gmra.mrb[0].mxu0 %v639
      %v735 = vpop.f32.mrb[0].mxu0
      %v736 = vadd.f32 0.0, %v735
      %v737 = vpop.f32.mrb[0].mxu0
      %v738 = vpop.f32.mrb[0].mxu0
      %v739 = vadd.f32 0.0, %v738
      %v740 = vpop.f32.mrb[0].mxu0
      %741 = vmatprep.mubr.bf16.mxu0 0
      %742 = vmatmul.mubr.bf16.gmra.mrb[0].mxu0 %v642
      %v743 = vpop.f32.mrb[0].mxu0
      %v744 = vadd.f32 0.0, %v743
      %v745 = vpop.f32.mrb[0].mxu0
      %v746 = vpop.f32.mrb[0].mxu0
      %v747 = vadd.f32 0.0, %v746
      %v748 = vpop.f32.mrb[0].mxu0
      %749 = vmatprep.mubr.bf16.mxu0 0
      %750 = vmatmul.mubr.bf16.gmra.mrb[0].mxu0 %v645
      %v751 = vpop.f32.mrb[0].mxu0
      %v752 = vadd.f32 0.0, %v751
      %v753 = vpop.f32.mrb[0].mxu0
      %v754 = vpop.f32.mrb[0].mxu0
      %v755 = vadd.f32 0.0, %v754
      %v756 = vpop.f32.mrb[0].mxu0
      %757 = vmatprep.mubr.bf16.mxu0 0
      %758 = vmatmul.mubr.bf16.gmra.mrb[0].mxu0 %v648
      %v759 = vpop.f32.mrb[0].mxu0
      %v760 = vadd.f32 0.0, %v759
      %v761 = vpop.f32.mrb[0].mxu0
      %v762 = vpop.f32.mrb[0].mxu0
      %v763 = vadd.f32 0.0, %v762
      %v764 = vpop.f32.mrb[0].mxu0
      %765 = vmatprep.mubr.bf16.mxu0 0
      %766 = vmatmul.mubr.bf16.gmra.mrb[0].mxu0 %v651
      %v767 = vpop.f32.mrb[0].mxu0
      %v768 = vadd.f32 0.0, %v767
      %v769 = vpop.f32.mrb[0].mxu0
      %v770 = vpop.f32.mrb[0].mxu0
      %v771 = vadd.f32 0.0, %v770
      %v772 = vpop.f32.mrb[0].mxu0
      %773 = vmatprep.mubr.bf16.mxu0 0
      %774 = vmatmul.mubr.bf16.gmra.mrb[0].mxu0 %v654
      %v775 = vpop.f32.mrb[0].mxu0
      %v776 = vadd.f32 0.0, %v775
      %v777 = vpop.f32.mrb[0].mxu0
      %v778 = vpop.f32.mrb[0].mxu0
      %v779 = vadd.f32 0.0, %v778
      %v780 = vpop.f32.mrb[0].mxu0
      %781 = vmatprep.mubr.bf16.mxu0 0
      %782 = vmatmul.mubr.bf16.gmra.mrb[0].mxu0 %v657
      %v783 = vpop.f32.mrb[0].mxu0
      %v784 = vadd.f32 0.0, %v783
      %v785 = vpop.f32.mrb[0].mxu0
      %v786 = vpop.f32.mrb[0].mxu0
      %v787 = vadd.f32 0.0, %v786
      %v788 = vpop.f32.mrb[0].mxu0
      %789 = vmatprep.mubr.bf16.mxu0 0
      %790 = vmatmul.mubr.bf16.gmra.mrb[0].mxu0 %v660
      %v791 = vpop.f32.mrb[0].mxu0
      %v792 = vadd.f32 0.0, %v791
      %v793 = vpop.f32.mrb[0].mxu0
      %v794 = vpop.f32.mrb[0].mxu0
      %v795 = vadd.f32 0.0, %v794
      %v796 = vpop.f32.mrb[0].mxu0
      %797 = vmatprep.mubr.bf16.mxu0 0
      %798 = vmatmul.mubr.bf16.gmra.mrb[0].mxu0 %v663
      %v799 = vpop.f32.mrb[0].mxu0
      %v800 = vadd.f32 0.0, %v799
      %v801 = vpop.f32.mrb[0].mxu0
      %v802 = vpop.f32.mrb[0].mxu0
      %v803 = vadd.f32 0.0, %v802
      %v804 = vpop.f32.mrb[0].mxu0
      %805 = vmatprep.mubr.bf16.mxu0 0
      %806 = vmatmul.mubr.bf16.gmra.mrb[0].mxu0 %v666
      %v807 = vpop.f32.mrb[0].mxu0
      %v808 = vadd.f32 0.0, %v807
      %v809 = vpop.f32.mrb[0].mxu0
      %v810 = vpop.f32.mrb[0].mxu0
      %v811 = vadd.f32 0.0, %v810
      %v812 = vpop.f32.mrb[0].mxu0
      %813 = vmatprep.mubr.bf16.mxu0 0
      %814 = vmatmul.mubr.bf16.gmra.mrb[0].mxu0 %v669
      %v815 = vpop.f32.mrb[0].mxu0
      %v816 = vadd.f32 0.0, %v815
      %v817 = vpop.f32.mrb[0].mxu0
      %v818 = vpop.f32.mrb[0].mxu0
      %v819 = vadd.f32 0.0, %v818
      %v820 = vpop.f32.mrb[0].mxu0
      %821 = vmatprep.mubr.bf16.mxu0 0
      %822 = vmatmul.mubr.bf16.gmra.mrb[0].mxu0 %v672
      %v823 = vpop.f32.mrb[0].mxu0
      %v824 = vadd.f32 0.0, %v823
      %v825 = vpop.f32.mrb[0].mxu0
      %v826 = vpop.f32.mrb[0].mxu0
      %v827 = vadd.f32 0.0, %v826
      %v828 = vpop.f32.mrb[0].mxu0
      %829 = vmatprep.mubr.bf16.mxu0 0
      %830 = vmatmul.mubr.bf16.gmra.mrb[0].mxu0 %v675
      %v831 = vpop.f32.mrb[0].mxu0
      %v832 = vadd.f32 0.0, %v831
      %v833 = vpop.f32.mrb[0].mxu0
      %v834 = vpop.f32.mrb[0].mxu0
      %v835 = vadd.f32 0.0, %v834
      %v836 = vpop.f32.mrb[0].mxu0
      %837 = vdwg.mxu0
      %v838 = vmax.f32 %v390, %v712
      %v839 = vmax.f32 %v393, %v715
      %v840 = vmax.f32 %v398, %v720
      %v841 = vmax.f32 %v401, %v723
      %v842 = vmax.f32 %v406, %v728
      %v843 = vmax.f32 %v409, %v731
      %v844 = vmax.f32 %v414, %v736
      %v845 = vmax.f32 %v417, %v739
      %v846 = vmax.f32 %v422, %v744
      %v847 = vmax.f32 %v425, %v747
      %v848 = vmax.f32 %v430, %v752
      %v849 = vmax.f32 %v433, %v755
      %v850 = vmax.f32 %v438, %v760
      %v851 = vmax.f32 %v441, %v763
      %v852 = vmax.f32 %v446, %v768
      %v853 = vmax.f32 %v449, %v771
      %v854 = vmax.f32 %v454, %v776
      %v855 = vmax.f32 %v457, %v779
      %v856 = vmax.f32 %v462, %v784
      %v857 = vmax.f32 %v465, %v787
      %v858 = vmax.f32 %v470, %v792
      %v859 = vmax.f32 %v473, %v795
      %v860 = vmax.f32 %v478, %v800
      %v861 = vmax.f32 %v481, %v803
      %v862 = vmax.f32 %v486, %v808
      %v863 = vmax.f32 %v489, %v811
      %v864 = vmax.f32 %v494, %v816
      %v865 = vmax.f32 %v497, %v819
      %v866 = vmax.f32 %v502, %v824
      %v867 = vmax.f32 %v505, %v827
      %v868 = vmax.f32 %v510, %v832
      %v869 = vmax.f32 %v513, %v835
      %s870 = scalar_lea.vmem %s165, 256
      %v871 = vld [vmem:[%s870] sm:$0xf]
      %v872 = vld [vmem:[%s870 + $0x4] sm:$0xf]
      %v873 = vld [vmem:[%s870 + $0x8] sm:$0xf]
      %v874 = vld [vmem:[%s870 + $0xc] sm:$0xf]
      %v875 = vld [vmem:[%s870 + $0x10] sm:$0xf]
      %v876 = vld [vmem:[%s870 + $0x14] sm:$0xf]
      %v877 = vld [vmem:[%s870 + $0x18] sm:$0xf]
      %v878 = vld [vmem:[%s870 + $0x1c] sm:$0xf]
      %v879 = vld [vmem:[%s870 + $0x20] sm:$0xf]
      %v880 = vld [vmem:[%s870 + $0x24] sm:$0xf]
      %v881 = vld [vmem:[%s870 + $0x28] sm:$0xf]
      %v882 = vld [vmem:[%s870 + $0x2c] sm:$0xf]
      %v883 = vld [vmem:[%s870 + $0x30] sm:$0xf]
      %v884 = vld [vmem:[%s870 + $0x34] sm:$0xf]
      %v885 = vld [vmem:[%s870 + $0x38] sm:$0xf]
      %v886 = vld [vmem:[%s870 + $0x3c] sm:$0xf]
      %v887 = vld [vmem:[%s870 + $0x40] sm:$0xf]
      %v888 = vld [vmem:[%s870 + $0x44] sm:$0xf]
      %v889 = vld [vmem:[%s870 + $0x48] sm:$0xf]
      %v890 = vld [vmem:[%s870 + $0x4c] sm:$0xf]
      %v891 = vld [vmem:[%s870 + $0x50] sm:$0xf]
      %v892 = vld [vmem:[%s870 + $0x54] sm:$0xf]
      %v893 = vld [vmem:[%s870 + $0x58] sm:$0xf]
      %v894 = vld [vmem:[%s870 + $0x5c] sm:$0xf]
      %v895 = vld [vmem:[%s870 + $0x60] sm:$0xf]
      %v896 = vld [vmem:[%s870 + $0x64] sm:$0xf]
      %v897 = vld [vmem:[%s870 + $0x68] sm:$0xf]
      %v898 = vld [vmem:[%s870 + $0x6c] sm:$0xf]
      %v899 = vld [vmem:[%s870 + $0x70] sm:$0xf]
      %v900 = vld [vmem:[%s870 + $0x74] sm:$0xf]
      %v901 = vld [vmem:[%s870 + $0x78] sm:$0xf]
      %v902 = vld [vmem:[%s870 + $0x7c] sm:$0xf]
      %v935 = vunpack.c.l.b16 %v871
      %v936 = vunpack.c.l.b16 %v872
      %v937 = vunpack.c.l.b16 %v873
      %v938 = vunpack.c.l.b16 %v874
      %v939 = vunpack.c.l.b16 %v875
      %v940 = vunpack.c.l.b16 %v876
      %v941 = vunpack.c.l.b16 %v877
      %v942 = vunpack.c.l.b16 %v878
      %v943 = vunpack.c.l.b16 %v879
      %v944 = vunpack.c.l.b16 %v880
      %v945 = vunpack.c.l.b16 %v881
      %v946 = vunpack.c.l.b16 %v882
      %v947 = vunpack.c.l.b16 %v883
      %v948 = vunpack.c.l.b16 %v884
      %v949 = vunpack.c.l.b16 %v885
      %v950 = vunpack.c.l.b16 %v886
      %v951 = vunpack.c.l.b16 %v887
      %v952 = vunpack.c.l.b16 %v888
      %v953 = vunpack.c.l.b16 %v889
      %v954 = vunpack.c.l.b16 %v890
      %v955 = vunpack.c.l.b16 %v891
      %v956 = vunpack.c.l.b16 %v892
      %v957 = vunpack.c.l.b16 %v893
      %v958 = vunpack.c.l.b16 %v894
      %v959 = vunpack.c.l.b16 %v895
      %v960 = vunpack.c.l.b16 %v896
      %v961 = vunpack.c.l.b16 %v897
      %v962 = vunpack.c.l.b16 %v898
      %v963 = vunpack.c.l.b16 %v899
      %v964 = vunpack.c.l.b16 %v900
      %v965 = vunpack.c.l.b16 %v901
      %v966 = vunpack.c.l.b16 %v902
      %v967 = vpack.c.b16 %v936, %v935
      %v968 = vpack.c.b16 %v938, %v937
      %v969 = vpack.c.b16 %v940, %v939
      %v970 = vpack.c.b16 %v942, %v941
      %v971 = vpack.c.b16 %v944, %v943
      %v972 = vpack.c.b16 %v946, %v945
      %v973 = vpack.c.b16 %v948, %v947
      %v974 = vpack.c.b16 %v950, %v949
      %v975 = vpack.c.b16 %v952, %v951
      %v976 = vpack.c.b16 %v954, %v953
      %v977 = vpack.c.b16 %v956, %v955
      %v978 = vpack.c.b16 %v958, %v957
      %v979 = vpack.c.b16 %v960, %v959
      %v980 = vpack.c.b16 %v962, %v961
      %v981 = vpack.c.b16 %v964, %v963
      %v982 = vpack.c.b16 %v966, %v965
      %v984 = vsel %vm299, %v967, 0
      %v987 = vsel %vm299, %v968, 0
      %v990 = vsel %vm299, %v969, 0
      %v993 = vsel %vm299, %v970, 0
      %v996 = vsel %vm299, %v971, 0
      %v999 = vsel %vm299, %v972, 0
      %v1002 = vsel %vm299, %v973, 0
      %v1005 = vsel %vm299, %v974, 0
      %v1008 = vsel %vm299, %v975, 0
      %v1011 = vsel %vm299, %v976, 0
      %v1014 = vsel %vm299, %v977, 0
      %v1017 = vsel %vm299, %v978, 0
      %v1020 = vsel %vm299, %v979, 0
      %v1023 = vsel %vm299, %v980, 0
      %v1026 = vsel %vm299, %v981, 0
      %v1029 = vsel %vm299, %v982, 0
      %1031 = vmatprep.subr.bf16.mxu0 0
      %1032 = vmatpush1.bf16.msra.mxu0 %v296
      %1033 = vmatprep.subr.bf16.mxu0 0
      %1034 = vmatpush1.bf16.msra.mxu0 %v353
      %1035 = vmatprep.subr.bf16.mxu0 0
      %1036 = vmatpush1.bf16.msra.mxu0 0
      %1037 = vmatprep.subr.bf16.mxu0 0
      %1038 = vmatpush1.bf16.msra.mxu0 0
      %1039 = vmatprep.subr.bf16.mxu0 0
      %1040 = vmatpush1.bf16.msra.mxu0 0
      %1041 = vmatprep.subr.bf16.mxu0 0
      %1042 = vmatpush1.bf16.msra.mxu0 0
      %1043 = vmatprep.subr.bf16.mxu0 0
      %1044 = vmatpush1.bf16.msra.mxu0 0
      %1045 = vmatprep.subr.bf16.mxu0 0
      %1046 = vmatpush1.bf16.msra.mxu0 0
      %1047 = vmatprep.subr.bf16.mxu0 0
      %1048 = vmatpush1.bf16.msra.mxu0 0
      %1049 = vmatprep.subr.bf16.mxu0 0
      %1050 = vmatpush1.bf16.msra.mxu0 0
      %1051 = vmatprep.subr.bf16.mxu0 0
      %1052 = vmatpush1.bf16.msra.mxu0 0
      %1053 = vmatprep.subr.bf16.mxu0 0
      %1054 = vmatpush1.bf16.msra.mxu0 0
      %1055 = vmatprep.subr.bf16.mxu0 0
      %1056 = vmatpush1.bf16.msra.mxu0 0
      %1057 = vmatprep.subr.bf16.mxu0 0
      %1058 = vmatpush1.bf16.msra.mxu0 0
      %1059 = vmatprep.subr.bf16.mxu0 0
      %1060 = vmatpush1.bf16.msra.mxu0 0
      %1061 = vmatprep.subr.bf16.mxu0 0
      %1062 = vmatpush1.bf16.msra.mxu0 0
      %1063 = vmatprep.mubr.bf16.mxu0 0
      %1064 = vmatmul.mubr.bf16.gmra.mrb[0].mxu0 %v984
      %v1065 = vpop.f32.mrb[0].mxu0
      %v1066 = vadd.f32 0.0, %v1065
      %v1067 = vpop.f32.mrb[0].mxu0
      %v1068 = vpop.f32.mrb[0].mxu0
      %v1069 = vadd.f32 0.0, %v1068
      %v1070 = vpop.f32.mrb[0].mxu0
      %1071 = vmatprep.mubr.bf16.mxu0 0
      %1072 = vmatmul.mubr.bf16.gmra.mrb[0].mxu0 %v987
      %v1073 = vpop.f32.mrb[0].mxu0
      %v1074 = vadd.f32 0.0, %v1073
      %v1075 = vpop.f32.mrb[0].mxu0
      %v1076 = vpop.f32.mrb[0].mxu0
      %v1077 = vadd.f32 0.0, %v1076
      %v1078 = vpop.f32.mrb[0].mxu0
      %1079 = vmatprep.mubr.bf16.mxu0 0
      %1080 = vmatmul.mubr.bf16.gmra.mrb[0].mxu0 %v990
      %v1081 = vpop.f32.mrb[0].mxu0
      %v1082 = vadd.f32 0.0, %v1081
      %v1083 = vpop.f32.mrb[0].mxu0
      %v1084 = vpop.f32.mrb[0].mxu0
      %v1085 = vadd.f32 0.0, %v1084
      %v1086 = vpop.f32.mrb[0].mxu0
      %1087 = vmatprep.mubr.bf16.mxu0 0
      %1088 = vmatmul.mubr.bf16.gmra.mrb[0].mxu0 %v993
      %v1089 = vpop.f32.mrb[0].mxu0
      %v1090 = vadd.f32 0.0, %v1089
      %v1091 = vpop.f32.mrb[0].mxu0
      %v1092 = vpop.f32.mrb[0].mxu0
      %v1093 = vadd.f32 0.0, %v1092
      %v1094 = vpop.f32.mrb[0].mxu0
      %1095 = vmatprep.mubr.bf16.mxu0 0
      %1096 = vmatmul.mubr.bf16.gmra.mrb[0].mxu0 %v996
      %v1097 = vpop.f32.mrb[0].mxu0
      %v1098 = vadd.f32 0.0, %v1097
      %v1099 = vpop.f32.mrb[0].mxu0
      %v1100 = vpop.f32.mrb[0].mxu0
      %v1101 = vadd.f32 0.0, %v1100
      %v1102 = vpop.f32.mrb[0].mxu0
      %1103 = vmatprep.mubr.bf16.mxu0 0
      %1104 = vmatmul.mubr.bf16.gmra.mrb[0].mxu0 %v999
      %v1105 = vpop.f32.mrb[0].mxu0
      %v1106 = vadd.f32 0.0, %v1105
      %v1107 = vpop.f32.mrb[0].mxu0
      %v1108 = vpop.f32.mrb[0].mxu0
      %v1109 = vadd.f32 0.0, %v1108
      %v1110 = vpop.f32.mrb[0].mxu0
      %1111 = vmatprep.mubr.bf16.mxu0 0
      %1112 = vmatmul.mubr.bf16.gmra.mrb[0].mxu0 %v1002
      %v1113 = vpop.f32.mrb[0].mxu0
      %v1114 = vadd.f32 0.0, %v1113
      %v1115 = vpop.f32.mrb[0].mxu0
      %v1116 = vpop.f32.mrb[0].mxu0
      %v1117 = vadd.f32 0.0, %v1116
      %v1118 = vpop.f32.mrb[0].mxu0
      %1119 = vmatprep.mubr.bf16.mxu0 0
      %1120 = vmatmul.mubr.bf16.gmra.mrb[0].mxu0 %v1005
      %v1121 = vpop.f32.mrb[0].mxu0
      %v1122 = vadd.f32 0.0, %v1121
      %v1123 = vpop.f32.mrb[0].mxu0
      %v1124 = vpop.f32.mrb[0].mxu0
      %v1125 = vadd.f32 0.0, %v1124
      %v1126 = vpop.f32.mrb[0].mxu0
      %1127 = vmatprep.mubr.bf16.mxu0 0
      %1128 = vmatmul.mubr.bf16.gmra.mrb[0].mxu0 %v1008
      %v1129 = vpop.f32.mrb[0].mxu0
      %v1130 = vadd.f32 0.0, %v1129
      %v1131 = vpop.f32.mrb[0].mxu0
      %v1132 = vpop.f32.mrb[0].mxu0
      %v1133 = vadd.f32 0.0, %v1132
      %v1134 = vpop.f32.mrb[0].mxu0
      %1135 = vmatprep.mubr.bf16.mxu0 0
      %1136 = vmatmul.mubr.bf16.gmra.mrb[0].mxu0 %v1011
      %v1137 = vpop.f32.mrb[0].mxu0
      %v1138 = vadd.f32 0.0, %v1137
      %v1139 = vpop.f32.mrb[0].mxu0
      %v1140 = vpop.f32.mrb[0].mxu0
      %v1141 = vadd.f32 0.0, %v1140
      %v1142 = vpop.f32.mrb[0].mxu0
      %1143 = vmatprep.mubr.bf16.mxu0 0
      %1144 = vmatmul.mubr.bf16.gmra.mrb[0].mxu0 %v1014
      %v1145 = vpop.f32.mrb[0].mxu0
      %v1146 = vadd.f32 0.0, %v1145
      %v1147 = vpop.f32.mrb[0].mxu0
      %v1148 = vpop.f32.mrb[0].mxu0
      %v1149 = vadd.f32 0.0, %v1148
      %v1150 = vpop.f32.mrb[0].mxu0
      %1151 = vmatprep.mubr.bf16.mxu0 0
      %1152 = vmatmul.mubr.bf16.gmra.mrb[0].mxu0 %v1017
      %v1153 = vpop.f32.mrb[0].mxu0
      %v1154 = vadd.f32 0.0, %v1153
      %v1155 = vpop.f32.mrb[0].mxu0
      %v1156 = vpop.f32.mrb[0].mxu0
      %v1157 = vadd.f32 0.0, %v1156
      %v1158 = vpop.f32.mrb[0].mxu0
      %1159 = vmatprep.mubr.bf16.mxu0 0
      %1160 = vmatmul.mubr.bf16.gmra.mrb[0].mxu0 %v1020
      %v1161 = vpop.f32.mrb[0].mxu0
      %v1162 = vadd.f32 0.0, %v1161
      %v1163 = vpop.f32.mrb[0].mxu0
      %v1164 = vpop.f32.mrb[0].mxu0
      %v1165 = vadd.f32 0.0, %v1164
      %v1166 = vpop.f32.mrb[0].mxu0
      %1167 = vmatprep.mubr.bf16.mxu0 0
      %1168 = vmatmul.mubr.bf16.gmra.mrb[0].mxu0 %v1023
      %v1169 = vpop.f32.mrb[0].mxu0
      %v1170 = vadd.f32 0.0, %v1169
      %v1171 = vpop.f32.mrb[0].mxu0
      %v1172 = vpop.f32.mrb[0].mxu0
      %v1173 = vadd.f32 0.0, %v1172
      %v1174 = vpop.f32.mrb[0].mxu0
      %1175 = vmatprep.mubr.bf16.mxu0 0
      %1176 = vmatmul.mubr.bf16.gmra.mrb[0].mxu0 %v1026
      %v1177 = vpop.f32.mrb[0].mxu0
      %v1178 = vadd.f32 0.0, %v1177
      %v1179 = vpop.f32.mrb[0].mxu0
      %v1180 = vpop.f32.mrb[0].mxu0
      %v1181 = vadd.f32 0.0, %v1180
      %v1182 = vpop.f32.mrb[0].mxu0
      %1183 = vmatprep.mubr.bf16.mxu0 0
      %1184 = vmatmul.mubr.bf16.gmra.mrb[0].mxu0 %v1029
      %v1185 = vpop.f32.mrb[0].mxu0
      %v1186 = vadd.f32 0.0, %v1185
      %v1187 = vpop.f32.mrb[0].mxu0
      %v1188 = vpop.f32.mrb[0].mxu0
      %v1189 = vadd.f32 0.0, %v1188
      %v1190 = vpop.f32.mrb[0].mxu0
      %1191 = vdwg.mxu0
      %v1192 = vmax.f32 %v838, %v1066
      %v1193 = vmax.f32 %v839, %v1069
      %v1194 = vmax.f32 %v840, %v1074
      %v1195 = vmax.f32 %v841, %v1077
      %v1196 = vmax.f32 %v842, %v1082
      %v1197 = vmax.f32 %v843, %v1085
      %v1198 = vmax.f32 %v844, %v1090
      %v1199 = vmax.f32 %v845, %v1093
      %v1200 = vmax.f32 %v846, %v1098
      %v1201 = vmax.f32 %v847, %v1101
      %v1202 = vmax.f32 %v848, %v1106
      %v1203 = vmax.f32 %v849, %v1109
      %v1204 = vmax.f32 %v850, %v1114
      %v1205 = vmax.f32 %v851, %v1117
      %v1206 = vmax.f32 %v852, %v1122
      %v1207 = vmax.f32 %v853, %v1125
      %v1208 = vmax.f32 %v854, %v1130
      %v1209 = vmax.f32 %v855, %v1133
      %v1210 = vmax.f32 %v856, %v1138
      %v1211 = vmax.f32 %v857, %v1141
      %v1212 = vmax.f32 %v858, %v1146
      %v1213 = vmax.f32 %v859, %v1149
      %v1214 = vmax.f32 %v860, %v1154
      %v1215 = vmax.f32 %v861, %v1157
      %v1216 = vmax.f32 %v862, %v1162
      %v1217 = vmax.f32 %v863, %v1165
      %v1218 = vmax.f32 %v864, %v1170
      %v1219 = vmax.f32 %v865, %v1173
      %v1220 = vmax.f32 %v866, %v1178
      %v1221 = vmax.f32 %v867, %v1181
      %v1222 = vmax.f32 %v868, %v1186
      %v1223 = vmax.f32 %v869, %v1189
      %s1224 = scalar_lea.vmem %s165, 384
      %v1225 = vld [vmem:[%s1224] sm:$0xf]
      %v1226 = vld [vmem:[%s1224 + $0x4] sm:$0xf]
      %v1227 = vld [vmem:[%s1224 + $0x8] sm:$0xf]
      %v1228 = vld [vmem:[%s1224 + $0xc] sm:$0xf]
      %v1229 = vld [vmem:[%s1224 + $0x10] sm:$0xf]
      %v1230 = vld [vmem:[%s1224 + $0x14] sm:$0xf]
      %v1231 = vld [vmem:[%s1224 + $0x18] sm:$0xf]
      %v1232 = vld [vmem:[%s1224 + $0x1c] sm:$0xf]
      %v1233 = vld [vmem:[%s1224 + $0x20] sm:$0xf]
      %v1234 = vld [vmem:[%s1224 + $0x24] sm:$0xf]
      %v1235 = vld [vmem:[%s1224 + $0x28] sm:$0xf]
      %v1236 = vld [vmem:[%s1224 + $0x2c] sm:$0xf]
      %v1237 = vld [vmem:[%s1224 + $0x30] sm:$0xf]
      %v1238 = vld [vmem:[%s1224 + $0x34] sm:$0xf]
      %v1239 = vld [vmem:[%s1224 + $0x38] sm:$0xf]
      %v1240 = vld [vmem:[%s1224 + $0x3c] sm:$0xf]
      %v1241 = vld [vmem:[%s1224 + $0x40] sm:$0xf]
      %v1242 = vld [vmem:[%s1224 + $0x44] sm:$0xf]
      %v1243 = vld [vmem:[%s1224 + $0x48] sm:$0xf]
      %v1244 = vld [vmem:[%s1224 + $0x4c] sm:$0xf]
      %v1245 = vld [vmem:[%s1224 + $0x50] sm:$0xf]
      %v1246 = vld [vmem:[%s1224 + $0x54] sm:$0xf]
      %v1247 = vld [vmem:[%s1224 + $0x58] sm:$0xf]
      %v1248 = vld [vmem:[%s1224 + $0x5c] sm:$0xf]
      %v1249 = vld [vmem:[%s1224 + $0x60] sm:$0xf]
      %v1250 = vld [vmem:[%s1224 + $0x64] sm:$0xf]
      %v1251 = vld [vmem:[%s1224 + $0x68] sm:$0xf]
      %v1252 = vld [vmem:[%s1224 + $0x6c] sm:$0xf]
      %v1253 = vld [vmem:[%s1224 + $0x70] sm:$0xf]
      %v1254 = vld [vmem:[%s1224 + $0x74] sm:$0xf]
      %v1255 = vld [vmem:[%s1224 + $0x78] sm:$0xf]
      %v1256 = vld [vmem:[%s1224 + $0x7c] sm:$0xf]
      %v1289 = vunpack.c.l.b16 %v1225
      %v1290 = vunpack.c.l.b16 %v1226
      %v1291 = vunpack.c.l.b16 %v1227
      %v1292 = vunpack.c.l.b16 %v1228
      %v1293 = vunpack.c.l.b16 %v1229
      %v1294 = vunpack.c.l.b16 %v1230
      %v1295 = vunpack.c.l.b16 %v1231
      %v1296 = vunpack.c.l.b16 %v1232
      %v1297 = vunpack.c.l.b16 %v1233
      %v1298 = vunpack.c.l.b16 %v1234
      %v1299 = vunpack.c.l.b16 %v1235
      %v1300 = vunpack.c.l.b16 %v1236
      %v1301 = vunpack.c.l.b16 %v1237
      %v1302 = vunpack.c.l.b16 %v1238
      %v1303 = vunpack.c.l.b16 %v1239
      %v1304 = vunpack.c.l.b16 %v1240
      %v1305 = vunpack.c.l.b16 %v1241
      %v1306 = vunpack.c.l.b16 %v1242
      %v1307 = vunpack.c.l.b16 %v1243
      %v1308 = vunpack.c.l.b16 %v1244
      %v1309 = vunpack.c.l.b16 %v1245
      %v1310 = vunpack.c.l.b16 %v1246
      %v1311 = vunpack.c.l.b16 %v1247
      %v1312 = vunpack.c.l.b16 %v1248
      %v1313 = vunpack.c.l.b16 %v1249
      %v1314 = vunpack.c.l.b16 %v1250
      %v1315 = vunpack.c.l.b16 %v1251
      %v1316 = vunpack.c.l.b16 %v1252
      %v1317 = vunpack.c.l.b16 %v1253
      %v1318 = vunpack.c.l.b16 %v1254
      %v1319 = vunpack.c.l.b16 %v1255
      %v1320 = vunpack.c.l.b16 %v1256
      %v1321 = vpack.c.b16 %v1290, %v1289
      %v1322 = vpack.c.b16 %v1292, %v1291
      %v1323 = vpack.c.b16 %v1294, %v1293
      %v1324 = vpack.c.b16 %v1296, %v1295
      %v1325 = vpack.c.b16 %v1298, %v1297
      %v1326 = vpack.c.b16 %v1300, %v1299
      %v1327 = vpack.c.b16 %v1302, %v1301
      %v1328 = vpack.c.b16 %v1304, %v1303
      %v1329 = vpack.c.b16 %v1306, %v1305
      %v1330 = vpack.c.b16 %v1308, %v1307
      %v1331 = vpack.c.b16 %v1310, %v1309
      %v1332 = vpack.c.b16 %v1312, %v1311
      %v1333 = vpack.c.b16 %v1314, %v1313
      %v1334 = vpack.c.b16 %v1316, %v1315
      %v1335 = vpack.c.b16 %v1318, %v1317
      %v1336 = vpack.c.b16 %v1320, %v1319
      %v1338 = vsel %vm299, %v1321, 0
      %v1341 = vsel %vm299, %v1322, 0
      %v1344 = vsel %vm299, %v1323, 0
      %v1347 = vsel %vm299, %v1324, 0
      %v1350 = vsel %vm299, %v1325, 0
      %v1353 = vsel %vm299, %v1326, 0
      %v1356 = vsel %vm299, %v1327, 0
      %v1359 = vsel %vm299, %v1328, 0
      %v1362 = vsel %vm299, %v1329, 0
      %v1365 = vsel %vm299, %v1330, 0
      %v1368 = vsel %vm299, %v1331, 0
      %v1371 = vsel %vm299, %v1332, 0
      %v1374 = vsel %vm299, %v1333, 0
      %v1377 = vsel %vm299, %v1334, 0
      %v1380 = vsel %vm299, %v1335, 0
      %v1383 = vsel %vm299, %v1336, 0
      %1385 = vmatprep.subr.bf16.mxu0 0
      %1386 = vmatpush1.bf16.msra.mxu0 %v296
      %1387 = vmatprep.subr.bf16.mxu0 0
      %1388 = vmatpush1.bf16.msra.mxu0 %v353
      %1389 = vmatprep.subr.bf16.mxu0 0
      %1390 = vmatpush1.bf16.msra.mxu0 0
      %1391 = vmatprep.subr.bf16.mxu0 0
      %1392 = vmatpush1.bf16.msra.mxu0 0
      %1393 = vmatprep.subr.bf16.mxu0 0
      %1394 = vmatpush1.bf16.msra.mxu0 0
      %1395 = vmatprep.subr.bf16.mxu0 0
      %1396 = vmatpush1.bf16.msra.mxu0 0
      %1397 = vmatprep.subr.bf16.mxu0 0
      %1398 = vmatpush1.bf16.msra.mxu0 0
      %1399 = vmatprep.subr.bf16.mxu0 0
      %1400 = vmatpush1.bf16.msra.mxu0 0
      %1401 = vmatprep.subr.bf16.mxu0 0
      %1402 = vmatpush1.bf16.msra.mxu0 0
      %1403 = vmatprep.subr.bf16.mxu0 0
      %1404 = vmatpush1.bf16.msra.mxu0 0
      %1405 = vmatprep.subr.bf16.mxu0 0
      %1406 = vmatpush1.bf16.msra.mxu0 0
      %1407 = vmatprep.subr.bf16.mxu0 0
      %1408 = vmatpush1.bf16.msra.mxu0 0
      %1409 = vmatprep.subr.bf16.mxu0 0
      %1410 = vmatpush1.bf16.msra.mxu0 0
      %1411 = vmatprep.subr.bf16.mxu0 0
      %1412 = vmatpush1.bf16.msra.mxu0 0
      %1413 = vmatprep.subr.bf16.mxu0 0
      %1414 = vmatpush1.bf16.msra.mxu0 0
      %1415 = vmatprep.subr.bf16.mxu0 0
      %1416 = vmatpush1.bf16.msra.mxu0 0
      %1417 = vmatprep.mubr.bf16.mxu0 0
      %1418 = vmatmul.mubr.bf16.gmra.mrb[0].mxu0 %v1338
      %v1419 = vpop.f32.mrb[0].mxu0
      %v1420 = vadd.f32 0.0, %v1419
      %v1421 = vpop.f32.mrb[0].mxu0
      %v1422 = vpop.f32.mrb[0].mxu0
      %v1423 = vadd.f32 0.0, %v1422
      %v1424 = vpop.f32.mrb[0].mxu0
      %1425 = vmatprep.mubr.bf16.mxu0 0
      %1426 = vmatmul.mubr.bf16.gmra.mrb[0].mxu0 %v1341
      %v1427 = vpop.f32.mrb[0].mxu0
      %v1428 = vadd.f32 0.0, %v1427
      %v1429 = vpop.f32.mrb[0].mxu0
      %v1430 = vpop.f32.mrb[0].mxu0
      %v1431 = vadd.f32 0.0, %v1430
      %v1432 = vpop.f32.mrb[0].mxu0
      %1433 = vmatprep.mubr.bf16.mxu0 0
      %1434 = vmatmul.mubr.bf16.gmra.mrb[0].mxu0 %v1344
      %v1435 = vpop.f32.mrb[0].mxu0
      %v1436 = vadd.f32 0.0, %v1435
      %v1437 = vpop.f32.mrb[0].mxu0
      %v1438 = vpop.f32.mrb[0].mxu0
      %v1439 = vadd.f32 0.0, %v1438
      %v1440 = vpop.f32.mrb[0].mxu0
      %1441 = vmatprep.mubr.bf16.mxu0 0
      %1442 = vmatmul.mubr.bf16.gmra.mrb[0].mxu0 %v1347
      %v1443 = vpop.f32.mrb[0].mxu0
      %v1444 = vadd.f32 0.0, %v1443
      %v1445 = vpop.f32.mrb[0].mxu0
      %v1446 = vpop.f32.mrb[0].mxu0
      %v1447 = vadd.f32 0.0, %v1446
      %v1448 = vpop.f32.mrb[0].mxu0
      %1449 = vmatprep.mubr.bf16.mxu0 0
      %1450 = vmatmul.mubr.bf16.gmra.mrb[0].mxu0 %v1350
      %v1451 = vpop.f32.mrb[0].mxu0
      %v1452 = vadd.f32 0.0, %v1451
      %v1453 = vpop.f32.mrb[0].mxu0
      %v1454 = vpop.f32.mrb[0].mxu0
      %v1455 = vadd.f32 0.0, %v1454
      %v1456 = vpop.f32.mrb[0].mxu0
      %1457 = vmatprep.mubr.bf16.mxu0 0
      %1458 = vmatmul.mubr.bf16.gmra.mrb[0].mxu0 %v1353
      %v1459 = vpop.f32.mrb[0].mxu0
      %v1460 = vadd.f32 0.0, %v1459
      %v1461 = vpop.f32.mrb[0].mxu0
      %v1462 = vpop.f32.mrb[0].mxu0
      %v1463 = vadd.f32 0.0, %v1462
      %v1464 = vpop.f32.mrb[0].mxu0
      %1465 = vmatprep.mubr.bf16.mxu0 0
      %1466 = vmatmul.mubr.bf16.gmra.mrb[0].mxu0 %v1356
      %v1467 = vpop.f32.mrb[0].mxu0
      %v1468 = vadd.f32 0.0, %v1467
      %v1469 = vpop.f32.mrb[0].mxu0
      %v1470 = vpop.f32.mrb[0].mxu0
      %v1471 = vadd.f32 0.0, %v1470
      %v1472 = vpop.f32.mrb[0].mxu0
      %1473 = vmatprep.mubr.bf16.mxu0 0
      %1474 = vmatmul.mubr.bf16.gmra.mrb[0].mxu0 %v1359
      %v1475 = vpop.f32.mrb[0].mxu0
      %v1476 = vadd.f32 0.0, %v1475
      %v1477 = vpop.f32.mrb[0].mxu0
      %v1478 = vpop.f32.mrb[0].mxu0
      %v1479 = vadd.f32 0.0, %v1478
      %v1480 = vpop.f32.mrb[0].mxu0
      %1481 = vmatprep.mubr.bf16.mxu0 0
      %1482 = vmatmul.mubr.bf16.gmra.mrb[0].mxu0 %v1362
      %v1483 = vpop.f32.mrb[0].mxu0
      %v1484 = vadd.f32 0.0, %v1483
      %v1485 = vpop.f32.mrb[0].mxu0
      %v1486 = vpop.f32.mrb[0].mxu0
      %v1487 = vadd.f32 0.0, %v1486
      %v1488 = vpop.f32.mrb[0].mxu0
      %1489 = vmatprep.mubr.bf16.mxu0 0
      %1490 = vmatmul.mubr.bf16.gmra.mrb[0].mxu0 %v1365
      %v1491 = vpop.f32.mrb[0].mxu0
      %v1492 = vadd.f32 0.0, %v1491
      %v1493 = vpop.f32.mrb[0].mxu0
      %v1494 = vpop.f32.mrb[0].mxu0
      %v1495 = vadd.f32 0.0, %v1494
      %v1496 = vpop.f32.mrb[0].mxu0
      %1497 = vmatprep.mubr.bf16.mxu0 0
      %1498 = vmatmul.mubr.bf16.gmra.mrb[0].mxu0 %v1368
      %v1499 = vpop.f32.mrb[0].mxu0
      %v1500 = vadd.f32 0.0, %v1499
      %v1501 = vpop.f32.mrb[0].mxu0
      %v1502 = vpop.f32.mrb[0].mxu0
      %v1503 = vadd.f32 0.0, %v1502
      %v1504 = vpop.f32.mrb[0].mxu0
      %1505 = vmatprep.mubr.bf16.mxu0 0
      %1506 = vmatmul.mubr.bf16.gmra.mrb[0].mxu0 %v1371
      %v1507 = vpop.f32.mrb[0].mxu0
      %v1508 = vadd.f32 0.0, %v1507
      %v1509 = vpop.f32.mrb[0].mxu0
      %v1510 = vpop.f32.mrb[0].mxu0
      %v1511 = vadd.f32 0.0, %v1510
      %v1512 = vpop.f32.mrb[0].mxu0
      %1513 = vmatprep.mubr.bf16.mxu0 0
      %1514 = vmatmul.mubr.bf16.gmra.mrb[0].mxu0 %v1374
      %v1515 = vpop.f32.mrb[0].mxu0
      %v1516 = vadd.f32 0.0, %v1515
      %v1517 = vpop.f32.mrb[0].mxu0
      %v1518 = vpop.f32.mrb[0].mxu0
      %v1519 = vadd.f32 0.0, %v1518
      %v1520 = vpop.f32.mrb[0].mxu0
      %1521 = vmatprep.mubr.bf16.mxu0 0
      %1522 = vmatmul.mubr.bf16.gmra.mrb[0].mxu0 %v1377
      %v1523 = vpop.f32.mrb[0].mxu0
      %v1524 = vadd.f32 0.0, %v1523
      %v1525 = vpop.f32.mrb[0].mxu0
      %v1526 = vpop.f32.mrb[0].mxu0
      %v1527 = vadd.f32 0.0, %v1526
      %v1528 = vpop.f32.mrb[0].mxu0
      %1529 = vmatprep.mubr.bf16.mxu0 0
      %1530 = vmatmul.mubr.bf16.gmra.mrb[0].mxu0 %v1380
      %v1531 = vpop.f32.mrb[0].mxu0
      %v1532 = vadd.f32 0.0, %v1531
      %v1533 = vpop.f32.mrb[0].mxu0
      %v1534 = vpop.f32.mrb[0].mxu0
      %v1535 = vadd.f32 0.0, %v1534
      %v1536 = vpop.f32.mrb[0].mxu0
      %1537 = vmatprep.mubr.bf16.mxu0 0
      %1538 = vmatmul.mubr.bf16.gmra.mrb[0].mxu0 %v1383
      %v1539 = vpop.f32.mrb[0].mxu0
      %v1540 = vadd.f32 0.0, %v1539
      %v1541 = vpop.f32.mrb[0].mxu0
      %v1542 = vpop.f32.mrb[0].mxu0
      %v1543 = vadd.f32 0.0, %v1542
      %v1544 = vpop.f32.mrb[0].mxu0
      %1545 = vdwg.mxu0
      %v1546 = vmax.f32 %v1192, %v1420
      %v1547 = vmax.f32 %v1193, %v1423
      %v1548 = vmax.f32 %v1194, %v1428
      %v1549 = vmax.f32 %v1195, %v1431
      %v1550 = vmax.f32 %v1196, %v1436
      %v1551 = vmax.f32 %v1197, %v1439
      %v1552 = vmax.f32 %v1198, %v1444
      %v1553 = vmax.f32 %v1199, %v1447
      %v1554 = vmax.f32 %v1200, %v1452
      %v1555 = vmax.f32 %v1201, %v1455
      %v1556 = vmax.f32 %v1202, %v1460
      %v1557 = vmax.f32 %v1203, %v1463
      %v1558 = vmax.f32 %v1204, %v1468
      %v1559 = vmax.f32 %v1205, %v1471
      %v1560 = vmax.f32 %v1206, %v1476
      %v1561 = vmax.f32 %v1207, %v1479
      %v1562 = vmax.f32 %v1208, %v1484
      %v1563 = vmax.f32 %v1209, %v1487
      %v1564 = vmax.f32 %v1210, %v1492
      %v1565 = vmax.f32 %v1211, %v1495
      %v1566 = vmax.f32 %v1212, %v1500
      %v1567 = vmax.f32 %v1213, %v1503
      %v1568 = vmax.f32 %v1214, %v1508
      %v1569 = vmax.f32 %v1215, %v1511
      %v1570 = vmax.f32 %v1216, %v1516
      %v1571 = vmax.f32 %v1217, %v1519
      %v1572 = vmax.f32 %v1218, %v1524
      %v1573 = vmax.f32 %v1219, %v1527
      %v1574 = vmax.f32 %v1220, %v1532
      %v1575 = vmax.f32 %v1221, %v1535
      %v1576 = vmax.f32 %v1222, %v1540
      %v1577 = vmax.f32 %v1223, %v1543
      %v1578 = vld [vmem:[%s2] sm:$0x1]
      %v1580 = vlaneseq
      %v1581 = vshrl.u32 %v1580, 7
      %v1582 = vsub.s32 0, %v1581
      %v1583 = vrot.slane %v1578, %v1582
      %v1585 = vadd.f32 %v1546, %v1583
      %v1586 = vadd.f32 %v1547, %v1583
      %v1587 = vadd.f32 %v1548, %v1583
      %v1588 = vadd.f32 %v1549, %v1583
      %v1589 = vadd.f32 %v1550, %v1583
      %v1590 = vadd.f32 %v1551, %v1583
      %v1591 = vadd.f32 %v1552, %v1583
      %v1592 = vadd.f32 %v1553, %v1583
      %v1593 = vadd.f32 %v1554, %v1583
      %v1594 = vadd.f32 %v1555, %v1583
      %v1595 = vadd.f32 %v1556, %v1583
      %v1596 = vadd.f32 %v1557, %v1583
      %v1597 = vadd.f32 %v1558, %v1583
      %v1598 = vadd.f32 %v1559, %v1583
      %v1599 = vadd.f32 %v1560, %v1583
      %v1600 = vadd.f32 %v1561, %v1583
      %v1601 = vadd.f32 %v1562, %v1583
      %v1602 = vadd.f32 %v1563, %v1583
      %v1603 = vadd.f32 %v1564, %v1583
      %v1604 = vadd.f32 %v1565, %v1583
      %v1605 = vadd.f32 %v1566, %v1583
      %v1606 = vadd.f32 %v1567, %v1583
      %v1607 = vadd.f32 %v1568, %v1583
      %v1608 = vadd.f32 %v1569, %v1583
      %v1609 = vadd.f32 %v1570, %v1583
      %v1610 = vadd.f32 %v1571, %v1583
      %v1611 = vadd.f32 %v1572, %v1583
      %v1612 = vadd.f32 %v1573, %v1583
      %v1613 = vadd.f32 %v1574, %v1583
      %v1614 = vadd.f32 %v1575, %v1583
      %v1615 = vadd.f32 %v1576, %v1583
      %v1616 = vadd.f32 %v1577, %v1583
      %v1617 = vmax.f32 %v1585, 0.0
      %v1618 = vmax.f32 %v1586, 0.0
      %v1619 = vmax.f32 %v1587, 0.0
      %v1620 = vmax.f32 %v1588, 0.0
      %v1621 = vmax.f32 %v1589, 0.0
      %v1622 = vmax.f32 %v1590, 0.0
      %v1623 = vmax.f32 %v1591, 0.0
      %v1624 = vmax.f32 %v1592, 0.0
      %v1625 = vmax.f32 %v1593, 0.0
      %v1626 = vmax.f32 %v1594, 0.0
      %v1627 = vmax.f32 %v1595, 0.0
      %v1628 = vmax.f32 %v1596, 0.0
      %v1629 = vmax.f32 %v1597, 0.0
      %v1630 = vmax.f32 %v1598, 0.0
      %v1631 = vmax.f32 %v1599, 0.0
      %v1632 = vmax.f32 %v1600, 0.0
      %v1633 = vmax.f32 %v1601, 0.0
      %v1634 = vmax.f32 %v1602, 0.0
      %v1635 = vmax.f32 %v1603, 0.0
      %v1636 = vmax.f32 %v1604, 0.0
      %v1637 = vmax.f32 %v1605, 0.0
      %v1638 = vmax.f32 %v1606, 0.0
      %v1639 = vmax.f32 %v1607, 0.0
      %v1640 = vmax.f32 %v1608, 0.0
      %v1641 = vmax.f32 %v1609, 0.0
      %v1642 = vmax.f32 %v1610, 0.0
      %v1643 = vmax.f32 %v1611, 0.0
      %v1644 = vmax.f32 %v1612, 0.0
      %v1645 = vmax.f32 %v1613, 0.0
      %v1646 = vmax.f32 %v1614, 0.0
      %v1647 = vmax.f32 %v1615, 0.0
      %v1648 = vmax.f32 %v1616, 0.0
      %v1649 = vpack.c.bf16 %v1618, %v1617
      %v1650 = vpack.c.bf16 %v1620, %v1619
      %v1651 = vpack.c.bf16 %v1622, %v1621
      %v1652 = vpack.c.bf16 %v1624, %v1623
      %v1653 = vpack.c.bf16 %v1626, %v1625
      %v1654 = vpack.c.bf16 %v1628, %v1627
      %v1655 = vpack.c.bf16 %v1630, %v1629
      %v1656 = vpack.c.bf16 %v1632, %v1631
      %v1657 = vpack.c.bf16 %v1634, %v1633
      %v1658 = vpack.c.bf16 %v1636, %v1635
      %v1659 = vpack.c.bf16 %v1638, %v1637
      %v1660 = vpack.c.bf16 %v1640, %v1639
      %v1661 = vpack.c.bf16 %v1642, %v1641
      %v1662 = vpack.c.bf16 %v1644, %v1643
      %v1663 = vpack.c.bf16 %v1646, %v1645
      %v1664 = vpack.c.bf16 %v1648, %v1647
      %v1681 = vunpack.c.l.b16 %v1649
      %v1682 = vunpack.c.h.b16 %v1649
      %v1683 = vunpack.c.l.b16 %v1650
      %v1684 = vunpack.c.h.b16 %v1650
      %v1685 = vunpack.c.l.b16 %v1651
      %v1686 = vunpack.c.h.b16 %v1651
      %v1687 = vunpack.c.l.b16 %v1652
      %v1688 = vunpack.c.h.b16 %v1652
      %v1689 = vunpack.c.l.b16 %v1653
      %v1690 = vunpack.c.h.b16 %v1653
      %v1691 = vunpack.c.l.b16 %v1654
      %v1692 = vunpack.c.h.b16 %v1654
      %v1693 = vunpack.c.l.b16 %v1655
      %v1694 = vunpack.c.h.b16 %v1655
      %v1695 = vunpack.c.l.b16 %v1656
      %v1696 = vunpack.c.h.b16 %v1656
      %v1697 = vunpack.c.l.b16 %v1657
      %v1698 = vunpack.c.h.b16 %v1657
      %v1699 = vunpack.c.l.b16 %v1658
      %v1700 = vunpack.c.h.b16 %v1658
      %v1701 = vunpack.c.l.b16 %v1659
      %v1702 = vunpack.c.h.b16 %v1659
      %v1703 = vunpack.c.l.b16 %v1660
      %v1704 = vunpack.c.h.b16 %v1660
      %v1705 = vunpack.c.l.b16 %v1661
      %v1706 = vunpack.c.h.b16 %v1661
      %v1707 = vunpack.c.l.b16 %v1662
      %v1708 = vunpack.c.h.b16 %v1662
      %v1709 = vunpack.c.l.b16 %v1663
      %v1710 = vunpack.c.h.b16 %v1663
      %v1711 = vunpack.c.l.b16 %v1664
      %v1712 = vunpack.c.h.b16 %v1664
      %v1713 = vpack.c.b16 %v1681, %v1681
      %v1714 = vpack.c.b16 %v1682, %v1682
      %v1715 = vpack.c.b16 %v1683, %v1683
      %v1716 = vpack.c.b16 %v1684, %v1684
      %v1717 = vpack.c.b16 %v1685, %v1685
      %v1718 = vpack.c.b16 %v1686, %v1686
      %v1719 = vpack.c.b16 %v1687, %v1687
      %v1720 = vpack.c.b16 %v1688, %v1688
      %v1721 = vpack.c.b16 %v1689, %v1689
      %v1722 = vpack.c.b16 %v1690, %v1690
      %v1723 = vpack.c.b16 %v1691, %v1691
      %v1724 = vpack.c.b16 %v1692, %v1692
      %v1725 = vpack.c.b16 %v1693, %v1693
      %v1726 = vpack.c.b16 %v1694, %v1694
      %v1727 = vpack.c.b16 %v1695, %v1695
      %v1728 = vpack.c.b16 %v1696, %v1696
      %v1729 = vpack.c.b16 %v1697, %v1697
      %v1730 = vpack.c.b16 %v1698, %v1698
      %v1731 = vpack.c.b16 %v1699, %v1699
      %v1732 = vpack.c.b16 %v1700, %v1700
      %v1733 = vpack.c.b16 %v1701, %v1701
      %v1734 = vpack.c.b16 %v1702, %v1702
      %v1735 = vpack.c.b16 %v1703, %v1703
      %v1736 = vpack.c.b16 %v1704, %v1704
      %v1737 = vpack.c.b16 %v1705, %v1705
      %v1738 = vpack.c.b16 %v1706, %v1706
      %v1739 = vpack.c.b16 %v1707, %v1707
      %v1740 = vpack.c.b16 %v1708, %v1708
      %v1741 = vpack.c.b16 %v1709, %v1709
      %v1742 = vpack.c.b16 %v1710, %v1710
      %v1743 = vpack.c.b16 %v1711, %v1711
      %v1744 = vpack.c.b16 %v1712, %v1712
      %vm1777 = vcmask 519168
      %1778 = vst.msk [vmem:[%s170] sm:$0xf] %vm1777, %v1713
      %1779 = vst.msk [vmem:[%s170 + $0x4] sm:$0xf] %vm1777, %v1714
      %1780 = vst.msk [vmem:[%s170 + $0x8] sm:$0xf] %vm1777, %v1715
      %1781 = vst.msk [vmem:[%s170 + $0xc] sm:$0xf] %vm1777, %v1716
      %1782 = vst.msk [vmem:[%s170 + $0x10] sm:$0xf] %vm1777, %v1717
      %1783 = vst.msk [vmem:[%s170 + $0x14] sm:$0xf] %vm1777, %v1718
      %1784 = vst.msk [vmem:[%s170 + $0x18] sm:$0xf] %vm1777, %v1719
      %1785 = vst.msk [vmem:[%s170 + $0x1c] sm:$0xf] %vm1777, %v1720
      %1786 = vst.msk [vmem:[%s170 + $0x20] sm:$0xf] %vm1777, %v1721
      %1787 = vst.msk [vmem:[%s170 + $0x24] sm:$0xf] %vm1777, %v1722
      %1788 = vst.msk [vmem:[%s170 + $0x28] sm:$0xf] %vm1777, %v1723
      %1789 = vst.msk [vmem:[%s170 + $0x2c] sm:$0xf] %vm1777, %v1724
      %1790 = vst.msk [vmem:[%s170 + $0x30] sm:$0xf] %vm1777, %v1725
      %1791 = vst.msk [vmem:[%s170 + $0x34] sm:$0xf] %vm1777, %v1726
      %1792 = vst.msk [vmem:[%s170 + $0x38] sm:$0xf] %vm1777, %v1727
      %1793 = vst.msk [vmem:[%s170 + $0x3c] sm:$0xf] %vm1777, %v1728
      %1794 = vst.msk [vmem:[%s170 + $0x40] sm:$0xf] %vm1777, %v1729
      %1795 = vst.msk [vmem:[%s170 + $0x44] sm:$0xf] %vm1777, %v1730
      %1796 = vst.msk [vmem:[%s170 + $0x48] sm:$0xf] %vm1777, %v1731
      %1797 = vst.msk [vmem:[%s170 + $0x4c] sm:$0xf] %vm1777, %v1732
      %1798 = vst.msk [vmem:[%s170 + $0x50] sm:$0xf] %vm1777, %v1733
      %1799 = vst.msk [vmem:[%s170 + $0x54] sm:$0xf] %vm1777, %v1734
      %1800 = vst.msk [vmem:[%s170 + $0x58] sm:$0xf] %vm1777, %v1735
      %1801 = vst.msk [vmem:[%s170 + $0x5c] sm:$0xf] %vm1777, %v1736
      %1802 = vst.msk [vmem:[%s170 + $0x60] sm:$0xf] %vm1777, %v1737
      %1803 = vst.msk [vmem:[%s170 + $0x64] sm:$0xf] %vm1777, %v1738
      %1804 = vst.msk [vmem:[%s170 + $0x68] sm:$0xf] %vm1777, %v1739
      %1805 = vst.msk [vmem:[%s170 + $0x6c] sm:$0xf] %vm1777, %v1740
      %1806 = vst.msk [vmem:[%s170 + $0x70] sm:$0xf] %vm1777, %v1741
      %1807 = vst.msk [vmem:[%s170 + $0x74] sm:$0xf] %vm1777, %v1742
      %1808 = vst.msk [vmem:[%s170 + $0x78] sm:$0xf] %vm1777, %v1743
      %1809 = vst.msk [vmem:[%s170 + $0x7c] sm:$0xf] %vm1777, %v1744
      %p1810 = scmp.lt.s32.totalorder %s14, 1
      %s1811 = scalar_select %p1810, %s14, 1
      %s1812 = smul.addr %s1811, 32
      %s1813 = smul.addr %s1812, 4
      %s1814 = scalar_lea.vmem %s3, %s1813
      // Predicated region
      $region33: #{forward.4} parent=31 // pred_check
        %p1815 = pneg %p100
      $region34: #{forward.4} parent=31 // pred_check_branch
        %1817 = sbr.rel (%p1815) target = $region36
      $region35: #{forward.4} parent=31 // pred_region
        _
      $region36: #{forward.4} parent=31 // pred_fallthru
        _
    $region32: #{forward.4} parent=5 // pred_fallthru
      _
    %p1818 = scmp.le.s32.totalorder 2, %s9
    // Predicated region
    $region37: #{forward.4} parent=5 // pred_check
      %p1819 = pneg %p1818
    $region38: #{forward.4} parent=5 // pred_check_branch
      %1821 = sbr.rel (%p1819) target = $region40
    $region39: #{forward.4} parent=5 // pred_region
      %s1822 = ssub.s32 %s9, 2
      // Predicated region
      $region41: #{forward.4} parent=39 // pred_check
        %p1823 = pneg %p106
      $region42: #{forward.4} parent=39 // pred_check_branch
        %1825 = sbr.rel (%p1823) target = $region44
      $region43: #{forward.4} parent=39 // pred_region
        %p1826 = scmp.lt.s32.totalorder %s15, 1
        %s1827 = scalar_select %p1826, %s15, 1
        %s1828 = smul.addr %s1827, 32
        %s1829 = smul.addr %s1828, 4
        %s1830 = scalar_lea.vmem %s3, %s1829
      $region44: #{forward.4} parent=39 // pred_fallthru
        _
    $region40: #{forward.4} parent=5 // pred_fallthru
      _
  $region6: #{forward.4} parent=0 // loop_footer
    %s13 = sadd.s32 1, %s9
  $region7: #{forward.4} parent=0 // loop_footer_branch
    %8 = sbr.rel target = $region3
  $region8: #{forward.4} parent=0 // loop_exit
    _

// kernel: forward.5
$region0: #{forward.5}
  #allocation0 [shape = 'u32[]', space=smem, size = 0x4, offset = 0x4, fixed_abs, tag = 'smem constant byte address 0x4 - core index']
  #allocation1 [shape = 'u32[144,128]{1,0:T(1,128)}', space=vmem, size = 0x12000, scoped, tag = 'internal scratch']
  %s0 = inlined_call_operand.vmem [shape: bf16[2,4,64,576], index: 0, kind: input, shape index: {}]
  %s1 = inlined_call_operand.vmem [shape: bf16[576,128], index: 1, kind: input, shape index: {}]
  %s2 = inlined_call_operand.vmem [shape: f32[1,128], index: 2, kind: input, shape index: {}]
  %s3 = inlined_call_operand.vmem [shape: bf16[2,64,128], index: 3, kind: output, shape index: {}]
  %s4 = sld [smem:[#allocation0]]
  $region45: #{forward.5} parent=0
    _
  %s6 = ssub.s32 1, %s4
  %s7 = scalar_select 0, %s6, %s4
  loop: start=0, step=1, limit=4
  $region2: #{forward.5} parent=0 // loop_pre_header
    _
  $region3: #{forward.5} parent=0 // loop_header
    %s9 = sphi 0, %s13
    %p10 = scmp.ge.s32.totalorder %s9, 4
    %s19 = sphi 0, %s21
    %s22 = sphi 0, %s19
    %s23 = sphi 0, %s22
    %s39 = sphi 0, %s23
    %s43 = sphi 0, %s43
    %s45 = sphi 0, %s43
    %s46 = sphi 0, %s45
    %s60 = sphi 0, %s46
    %s64 = sphi 0, %s64
    %s66 = sphi 0, %s64
    %s67 = sphi 0, %s66
    %s81 = sphi 0, %s67
    %s87 = sphi 0, %s89
    %s90 = sphi 0, %s87
    %s91 = sphi 0, %s90
    %s107 = sphi 0, %s91
  $region4: #{forward.5} parent=0 // loop_header_branch
    %12 = sbr.rel (%p10) target = $region8
  $region5: #{forward.5} parent=0 // loop_body
    %s14 = ssub.s32 %s9, 1
    %s15 = ssub.s32 %s9, 2
    %s16 = sadd.s32 %s9, 1
    %s17 = ssub.s32 %s9, %s16
    %p18 = scmp.eq.s32.totalorder %s17, 0
    %s20 = sadd.s32 %s19, 1
    %s21 = scalar_select %p18, %s19, %s20
    %p24 = pneg %p18
    %p25 = scmp.eq.s32.totalorder %s9, 1
    %p26 = por %p24, %p25
    %p27 = scmp.ne.s32.totalorder %s19, %s22
    %p28 = scmp.eq.s32.totalorder %s9, 0
    %p29 = por %p27, %p28
    %p30 = scmp.ne.s32.totalorder %s19, %s22
    %p31 = scmp.eq.s32.totalorder %s14, 1
    %p32 = por %p30, %p31
    %p33 = scmp.ne.s32.totalorder %s22, %s23
    %p34 = scmp.eq.s32.totalorder %s14, 0
    %p35 = por %p33, %p34
    %p36 = scmp.ne.s32.totalorder %s22, %s23
    %p37 = scmp.eq.s32.totalorder %s15, 1
    %p38 = por %p36, %p37
    %p40 = scmp.ne.s32.totalorder %s23, %s39
    %p41 = scmp.eq.s32.totalorder %s15, 0
    %p42 = por %p40, %p41
    %s44 = sadd.s32 %s43, 1
    %p47 = scmp.eq.s32.totalorder %s9, 1
    %p48 = scmp.ne.s32.totalorder %s43, %s45
    %p49 = scmp.eq.s32.totalorder %s9, 0
    %p50 = por %p48, %p49
    %p51 = scmp.ne.s32.totalorder %s43, %s45
    %p52 = scmp.eq.s32.totalorder %s14, 1
    %p53 = por %p51, %p52
    %p54 = scmp.ne.s32.totalorder %s45, %s46
    %p55 = scmp.eq.s32.totalorder %s14, 0
    %p56 = por %p54, %p55
    %p57 = scmp.ne.s32.totalorder %s45, %s46
    %p58 = scmp.eq.s32.totalorder %s15, 1
    %p59 = por %p57, %p58
    %p61 = scmp.ne.s32.totalorder %s46, %s60
    %p62 = scmp.eq.s32.totalorder %s15, 0
    %p63 = por %p61, %p62
    %s65 = sadd.s32 %s64, 1
    %p68 = scmp.eq.s32.totalorder %s9, 1
    %p69 = scmp.ne.s32.totalorder %s64, %s66
    %p70 = scmp.eq.s32.totalorder %s9, 0
    %p71 = por %p69, %p70
    %p72 = scmp.ne.s32.totalorder %s64, %s66
    %p73 = scmp.eq.s32.totalorder %s14, 1
    %p74 = por %p72, %p73
    %p75 = scmp.ne.s32.totalorder %s66, %s67
    %p76 = scmp.eq.s32.totalorder %s14, 0
    %p77 = por %p75, %p76
    %p78 = scmp.ne.s32.totalorder %s66, %s67
    %p79 = scmp.eq.s32.totalorder %s15, 1
    %p80 = por %p78, %p79
    %p82 = scmp.ne.s32.totalorder %s67, %s81
    %p83 = scmp.eq.s32.totalorder %s15, 0
    %p84 = por %p82, %p83
    %s85 = ssub.s32 %s9, %s16
    %p86 = scmp.eq.s32.totalorder %s85, 0
    %s88 = sadd.s32 %s87, 1
    %s89 = scalar_select %p86, %s87, %s88
    %p92 = pneg %p86
    %p93 = scmp.eq.s32.totalorder %s9, 1
    %p94 = por %p92, %p93
    %p95 = scmp.ne.s32.totalorder %s87, %s90
    %p96 = scmp.eq.s32.totalorder %s9, 0
    %p97 = por %p95, %p96
    %p98 = scmp.ne.s32.totalorder %s87, %s90
    %p99 = scmp.eq.s32.totalorder %s14, 1
    %p100 = por %p98, %p99
    %p101 = scmp.ne.s32.totalorder %s90, %s91
    %p102 = scmp.eq.s32.totalorder %s14, 0
    %p103 = por %p101, %p102
    %p104 = scmp.ne.s32.totalorder %s90, %s91
    %p105 = scmp.eq.s32.totalorder %s15, 1
    %p106 = por %p104, %p105
    %p108 = scmp.ne.s32.totalorder %s91, %s107
    %p109 = scmp.eq.s32.totalorder %s15, 0
    %p110 = por %p108, %p109
    %p111 = scmp.le.s32.totalorder 1, %s9
    %p112 = scmp.lt.s32.totalorder %s9, 3
    %p113 = pnand %p111, %p112
    %p114 = pneg %p113
    // Predicated region
    $region9: #{forward.5} parent=5 // pred_check
      _
    $region10: #{forward.5} parent=5 // pred_check_branch
      %116 = sbr.rel (%p113) target = $region12
    $region11: #{forward.5} parent=5 // pred_region
      %s117 = ssub.s32 %s9, 1
      // Predicated region
      $region13: #{forward.5} parent=11 // pred_check
        %p118 = pneg %p56
      $region14: #{forward.5} parent=11 // pred_check_branch
        %120 = sbr.rel (%p118) target = $region16
      $region15: #{forward.5} parent=11 // pred_region
        _
      $region16: #{forward.5} parent=11 // pred_fallthru
        _
      // Predicated region
      $region17: #{forward.5} parent=11 // pred_check
        %p121 = pneg %p77
      $region18: #{forward.5} parent=11 // pred_check_branch
        %123 = sbr.rel (%p121) target = $region20
      $region19: #{forward.5} parent=11 // pred_region
        _
      $region20: #{forward.5} parent=11 // pred_fallthru
        _
    $region12: #{forward.5} parent=5 // pred_fallthru
      _
    %p124 = scmp.lt.s32.totalorder %s9, 2
    // Predicated region
    $region21: #{forward.5} parent=5 // pred_check
      %p125 = pneg %p124
    $region22: #{forward.5} parent=5 // pred_check_branch
      %127 = sbr.rel (%p125) target = $region24
    $region23: #{forward.5} parent=5 // pred_region
      // Predicated region
      $region25: #{forward.5} parent=23 // pred_check
        %p128 = pneg %p29
      $region26: #{forward.5} parent=23 // pred_check_branch
        %130 = sbr.rel (%p128) target = $region28
      $region27: #{forward.5} parent=23 // pred_region
        %p131 = scmp.lt.s32.totalorder %s9, 1
        %s132 = scalar_select %p131, %s9, 1
        %s133 = smul.addr %s132, 160
        %s134 = smul.addr %s133, 4
        %s135 = scalar_lea.vmem %s0, %s134
      $region28: #{forward.5} parent=23 // pred_fallthru
        _
    $region24: #{forward.5} parent=5 // pred_fallthru
      _
    %p136 = scmp.le.s32.totalorder 1, %s9
    %p137 = scmp.lt.s32.totalorder %s9, 3
    %p138 = pnand %p136, %p137
    %p139 = pneg %p138
    // Predicated region
    $region29: #{forward.5} parent=5 // pred_check
      _
    $region30: #{forward.5} parent=5 // pred_check_branch
      %141 = sbr.rel (%p138) target = $region32
    $region31: #{forward.5} parent=5 // pred_region
      %s142 = ssub.s32 %s9, 1
      %p143 = scmp.lt.s32.totalorder %s14, 1
      %s144 = scalar_select %p143, %s14, 1
      %s145 = smul.addr %s144, 160
      %s146 = smul.addr %s145, 4
      %s147 = scalar_lea.vmem %s0, %s146
      %p148 = pneg %p35
      %p149 = pneg %p32
      %p150 = pneg %p56
      %p151 = pneg %p53
      %p152 = pneg %p77
      %p153 = pneg %p74
      %p154 = pneg %p103
      %p155 = pneg %p100
      %p156 = scmp.lt.s32.totalorder %s14, 1
      %s157 = scalar_select %p156, %s14, 1
      %s158 = smul.addr %s157, 8
      %s159 = smul.addr %s158, 4
      %s160 = scalar_lea.vmem %s3, %s159
      %p161 = scmp.lt.s32.totalorder %s14, 1
      %s162 = scalar_select %p161, %s14, 1
      %s163 = smul.addr %s162, 160
      %s164 = smul.addr %s163, 4
      %s165 = scalar_lea.vmem %s0, %s164
      %p166 = scmp.lt.s32.totalorder %s14, 1
      %s167 = scalar_select %p166, %s14, 1
      %s168 = smul.addr %s167, 8
      %s169 = smul.addr %s168, 4
      %s170 = scalar_lea.vmem %s3, %s169
      %v172 = vld [vmem:[%s1] sm:$0xf]
      %v173 = vld [vmem:[%s1 + $0x4] sm:$0xf]
      %v174 = vld [vmem:[%s1 + $0x8] sm:$0xf]
      %v175 = vld [vmem:[%s1 + $0xc] sm:$0xf]
      %v176 = vld [vmem:[%s1 + $0x10] sm:$0xf]
      %v177 = vld [vmem:[%s1 + $0x14] sm:$0xf]
      %v178 = vld [vmem:[%s1 + $0x18] sm:$0xf]
      %v179 = vld [vmem:[%s1 + $0x1c] sm:$0xf]
      %v180 = vld [vmem:[%s1 + $0x20] sm:$0xf]
      %v181 = vld [vmem:[%s1 + $0x24] sm:$0xf]
      %v182 = vld [vmem:[%s1 + $0x28] sm:$0xf]
      %v183 = vld [vmem:[%s1 + $0x2c] sm:$0xf]
      %v184 = vld [vmem:[%s1 + $0x30] sm:$0xf]
      %v185 = vld [vmem:[%s1 + $0x34] sm:$0xf]
      %v186 = vld [vmem:[%s1 + $0x38] sm:$0xf]
      %v187 = vld [vmem:[%s1 + $0x3c] sm:$0xf]
      %v188 = vld [vmem:[%s1 + $0x40] sm:$0xf]
      %v189 = vld [vmem:[%s1 + $0x44] sm:$0xf]
      %v190 = vld [vmem:[%s1 + $0x48] sm:$0xf]
      %v191 = vld [vmem:[%s1 + $0x4c] sm:$0xf]
      %v192 = vld [vmem:[%s1 + $0x50] sm:$0xf]
      %v193 = vld [vmem:[%s1 + $0x54] sm:$0xf]
      %v194 = vld [vmem:[%s1 + $0x58] sm:$0xf]
      %v195 = vld [vmem:[%s1 + $0x5c] sm:$0xf]
      %v196 = vld [vmem:[%s1 + $0x60] sm:$0xf]
      %v197 = vld [vmem:[%s1 + $0x64] sm:$0xf]
      %v198 = vld [vmem:[%s1 + $0x68] sm:$0xf]
      %v199 = vld [vmem:[%s1 + $0x6c] sm:$0xf]
      %v200 = vld [vmem:[%s1 + $0x70] sm:$0xf]
      %v201 = vld [vmem:[%s1 + $0x74] sm:$0xf]
      %v202 = vld [vmem:[%s1 + $0x78] sm:$0xf]
      %v203 = vld [vmem:[%s1 + $0x7c] sm:$0xf]
      %v204 = vld [vmem:[%s1 + $0x80] sm:$0xf]
      %v205 = vld [vmem:[%s1 + $0x84] sm:$0xf]
      %v206 = vld [vmem:[%s1 + $0x88] sm:$0xf]
      %v207 = vld [vmem:[%s1 + $0x8c] sm:$0xf]
      %v208 = vld [vmem:[%s1 + $0x90] sm:$0xf]
      %v209 = vld [vmem:[%s1 + $0x94] sm:$0xf]
      %v210 = vld [vmem:[%s1 + $0x98] sm:$0xf]
      %v211 = vld [vmem:[%s1 + $0x9c] sm:$0xf]
      %v212 = vld [vmem:[%s1 + $0xa0] sm:$0xf]
      %v213 = vld [vmem:[%s1 + $0xa4] sm:$0xf]
      %v214 = vld [vmem:[%s1 + $0xa8] sm:$0xf]
      %v215 = vld [vmem:[%s1 + $0xac] sm:$0xf]
      %v216 = vld [vmem:[%s1 + $0xb0] sm:$0xf]
      %v217 = vld [vmem:[%s1 + $0xb4] sm:$0xf]
      %v218 = vld [vmem:[%s1 + $0xb8] sm:$0xf]
      %v219 = vld [vmem:[%s1 + $0xbc] sm:$0xf]
      %v220 = vld [vmem:[%s1 + $0xc0] sm:$0xf]
      %v221 = vld [vmem:[%s1 + $0xc4] sm:$0xf]
      %v222 = vld [vmem:[%s1 + $0xc8] sm:$0xf]
      %v223 = vld [vmem:[%s1 + $0xcc] sm:$0xf]
      %v224 = vld [vmem:[%s1 + $0xd0] sm:$0xf]
      %v225 = vld [vmem:[%s1 + $0xd4] sm:$0xf]
      %v226 = vld [vmem:[%s1 + $0xd8] sm:$0xf]
      %v227 = vld [vmem:[%s1 + $0xdc] sm:$0xf]
      %v228 = vld [vmem:[%s1 + $0xe0] sm:$0xf]
      %v229 = vld [vmem:[%s1 + $0xe4] sm:$0xf]
      %v230 = vld [vmem:[%s1 + $0xe8] sm:$0xf]
      %v231 = vld [vmem:[%s1 + $0xec] sm:$0xf]
      %v232 = vld [vmem:[%s1 + $0xf0] sm:$0xf]
      %v233 = vld [vmem:[%s1 + $0xf4] sm:$0xf]
      %v234 = vld [vmem:[%s1 + $0xf8] sm:$0xf]
      %v235 = vld [vmem:[%s1 + $0xfc] sm:$0xf]
      %v236 = vld [vmem:[%s1 + $0x100] sm:$0xf]
      %v237 = vld [vmem:[%s1 + $0x104] sm:$0xf]
      %v238 = vld [vmem:[%s1 + $0x108] sm:$0xf]
      %v239 = vld [vmem:[%s1 + $0x10c] sm:$0xf]
      %v240 = vld [vmem:[%s1 + $0x110] sm:$0xf]
      %v241 = vld [vmem:[%s1 + $0x114] sm:$0xf]
      %v242 = vld [vmem:[%s1 + $0x118] sm:$0xf]
      %v243 = vld [vmem:[%s1 + $0x11c] sm:$0xf]
      %v244 = vld [vmem:[%s165] sm:$0xff]
      %v245 = vld [vmem:[%s165 + $0x8] sm:$0xff]
      %v246 = vld [vmem:[%s165 + $0x10] sm:$0xf]
      %v247 = vld [vmem:[%s165 + $0x14] sm:$0xff]
      %v248 = vld [vmem:[%s165 + $0x1c] sm:$0xff]
      %v249 = vld [vmem:[%s165 + $0x24] sm:$0xf]
      %v250 = vld [vmem:[%s165 + $0x28] sm:$0xff]
      %v251 = vld [vmem:[%s165 + $0x30] sm:$0xff]
      %v252 = vld [vmem:[%s165 + $0x38] sm:$0xf]
      %v253 = vld [vmem:[%s165 + $0x3c] sm:$0xff]
      %v254 = vld [vmem:[%s165 + $0x44] sm:$0xff]
      %v255 = vld [vmem:[%s165 + $0x4c] sm:$0xf]
      %v256 = vld [vmem:[%s165 + $0x50] sm:$0xff]
      %v257 = vld [vmem:[%s165 + $0x58] sm:$0xff]
      %v258 = vld [vmem:[%s165 + $0x60] sm:$0xf]
      %v259 = vld [vmem:[%s165 + $0x64] sm:$0xff]
      %v260 = vld [vmem:[%s165 + $0x6c] sm:$0xff]
      %v261 = vld [vmem:[%s165 + $0x74] sm:$0xf]
      %v262 = vld [vmem:[%s165 + $0x78] sm:$0xff]
      %v263 = vld [vmem:[%s165 + $0x80] sm:$0xff]
      %v264 = vld [vmem:[%s165 + $0x88] sm:$0xf]
      %v265 = vld [vmem:[%s165 + $0x8c] sm:$0xff]
      %v266 = vld [vmem:[%s165 + $0x94] sm:$0xff]
      %v267 = vld [vmem:[%s165 + $0x9c] sm:$0xf]
      %v292 = vunpack.c.l.b16 %v244
      %v293 = vunpack.c.h.b16 %v244
      %v294 = vunpack.c.l.b16 %v245
      %v295 = vunpack.c.h.b16 %v245
      %v296 = vunpack.c.l.b16 %v246
      %v297 = vunpack.c.l.b16 %v247
      %v298 = vunpack.c.h.b16 %v247
      %v299 = vunpack.c.l.b16 %v248
      %v300 = vunpack.c.h.b16 %v248
      %v301 = vunpack.c.l.b16 %v249
      %v302 = vunpack.c.l.b16 %v250
      %v303 = vunpack.c.h.b16 %v250
      %v304 = vunpack.c.l.b16 %v251
      %v305 = vunpack.c.h.b16 %v251
      %v306 = vunpack.c.l.b16 %v252
      %v307 = vunpack.c.l.b16 %v253
      %v308 = vunpack.c.h.b16 %v253
      %v309 = vunpack.c.l.b16 %v254
      %v310 = vunpack.c.h.b16 %v254
      %v311 = vunpack.c.l.b16 %v255
      %v312 = vunpack.c.l.b16 %v256
      %v313 = vunpack.c.h.b16 %v256
      %v314 = vunpack.c.l.b16 %v257
      %v315 = vunpack.c.h.b16 %v257
      %v316 = vunpack.c.l.b16 %v258
      %v317 = vunpack.c.l.b16 %v259
      %v318 = vunpack.c.h.b16 %v259
      %v319 = vunpack.c.l.b16 %v260
      %v320 = vunpack.c.h.b16 %v260
      %v321 = vunpack.c.l.b16 %v261
      %v322 = vunpack.c.l.b16 %v262
      %v323 = vunpack.c.h.b16 %v262
      %v324 = vunpack.c.l.b16 %v263
      %v325 = vunpack.c.h.b16 %v263
      %v326 = vunpack.c.l.b16 %v264
      %v327 = vunpack.c.l.b16 %v265
      %v328 = vunpack.c.h.b16 %v265
      %v329 = vunpack.c.l.b16 %v266
      %v330 = vunpack.c.h.b16 %v266
      %v331 = vunpack.c.l.b16 %v267
      %v332 = vpack.c.b16 %v297, %v292
      %v333 = vpack.c.b16 %v298, %v293
      %v334 = vpack.c.b16 %v299, %v294
      %v335 = vpack.c.b16 %v300, %v295
      %v336 = vpack.c.b16 %v301, %v296
      %v337 = vpack.c.b16 %v307, %v302
      %v338 = vpack.c.b16 %v308, %v303
      %v339 = vpack.c.b16 %v309, %v304
      %v340 = vpack.c.b16 %v310, %v305
      %v341 = vpack.c.b16 %v311, %v306
      %v342 = vpack.c.b16 %v317, %v312
      %v343 = vpack.c.b16 %v318, %v313
      %v344 = vpack.c.b16 %v319, %v314
      %v345 = vpack.c.b16 %v320, %v315
      %v346 = vpack.c.b16 %v321, %v316
      %v347 = vpack.c.b16 %v327, %v322
      %v348 = vpack.c.b16 %v328, %v323
      %v349 = vpack.c.b16 %v329, %v324
      %v350 = vpack.c.b16 %v330, %v325
      %v351 = vpack.c.b16 %v331, %v326
      %v440 = vunpack.c.l.b16 %v172
      %v441 = vunpack.c.l.b16 %v173
      %v442 = vunpack.c.l.b16 %v174
      %v443 = vunpack.c.l.b16 %v175
      %v444 = vunpack.c.l.b16 %v176
      %v445 = vunpack.c.l.b16 %v177
      %v446 = vunpack.c.l.b16 %v178
      %v447 = vunpack.c.l.b16 %v179
      %v448 = vunpack.c.l.b16 %v180
      %v449 = vunpack.c.l.b16 %v181
      %v450 = vunpack.c.l.b16 %v182
      %v451 = vunpack.c.l.b16 %v183
      %v452 = vunpack.c.l.b16 %v184
      %v453 = vunpack.c.l.b16 %v185
      %v454 = vunpack.c.l.b16 %v186
      %v455 = vunpack.c.l.b16 %v187
      %v456 = vunpack.c.l.b16 %v188
      %v457 = vunpack.c.l.b16 %v189
      %v458 = vunpack.c.l.b16 %v190
      %v459 = vunpack.c.l.b16 %v191
      %v460 = vunpack.c.l.b16 %v192
      %v461 = vunpack.c.l.b16 %v193
      %v462 = vunpack.c.l.b16 %v194
      %v463 = vunpack.c.l.b16 %v195
      %v464 = vunpack.c.l.b16 %v196
      %v465 = vunpack.c.l.b16 %v197
      %v466 = vunpack.c.l.b16 %v198
      %v467 = vunpack.c.l.b16 %v199
      %v468 = vunpack.c.l.b16 %v200
      %v469 = vunpack.c.l.b16 %v201
      %v470 = vunpack.c.l.b16 %v202
      %v471 = vunpack.c.l.b16 %v203
      %v472 = vunpack.c.l.b16 %v204
      %v473 = vunpack.c.l.b16 %v205
      %v474 = vunpack.c.l.b16 %v206
      %v475 = vunpack.c.l.b16 %v207
      %v476 = vunpack.c.l.b16 %v208
      %v477 = vunpack.c.l.b16 %v209
      %v478 = vunpack.c.l.b16 %v210
      %v479 = vunpack.c.l.b16 %v211
      %v480 = vunpack.c.l.b16 %v212
      %v481 = vunpack.c.l.b16 %v213
      %v482 = vunpack.c.l.b16 %v214
      %v483 = vunpack.c.l.b16 %v215
      %v484 = vunpack.c.l.b16 %v216
      %v485 = vunpack.c.l.b16 %v217
      %v486 = vunpack.c.l.b16 %v218
      %v487 = vunpack.c.l.b16 %v219
      %v488 = vunpack.c.l.b16 %v220
      %v489 = vunpack.c.l.b16 %v221
      %v490 = vunpack.c.l.b16 %v222
      %v491 = vunpack.c.l.b16 %v223
      %v492 = vunpack.c.l.b16 %v224
      %v493 = vunpack.c.l.b16 %v225
      %v494 = vunpack.c.l.b16 %v226
      %v495 = vunpack.c.l.b16 %v227
      %v496 = vunpack.c.l.b16 %v228
      %v497 = vunpack.c.l.b16 %v229
      %v498 = vunpack.c.l.b16 %v230
      %v499 = vunpack.c.l.b16 %v231
      %v500 = vunpack.c.l.b16 %v232
      %v501 = vunpack.c.l.b16 %v233
      %v502 = vunpack.c.l.b16 %v234
      %v503 = vunpack.c.l.b16 %v235
      %v504 = vunpack.c.l.b16 %v236
      %v505 = vunpack.c.l.b16 %v237
      %v506 = vunpack.c.l.b16 %v238
      %v507 = vunpack.c.l.b16 %v239
      %v508 = vunpack.c.l.b16 %v240
      %v509 = vunpack.c.l.b16 %v241
      %v510 = vunpack.c.l.b16 %v242
      %v511 = vunpack.c.l.b16 %v243
      %v512 = vpack.c.b16 %v441, %v440
      %v513 = vpack.c.b16 %v443, %v442
      %v514 = vpack.c.b16 %v445, %v444
      %v515 = vpack.c.b16 %v447, %v446
      %v516 = vpack.c.b16 %v449, %v448
      %v517 = vpack.c.b16 %v451, %v450
      %v518 = vpack.c.b16 %v453, %v452
      %v519 = vpack.c.b16 %v455, %v454
      %v520 = vpack.c.b16 %v457, %v456
      %v521 = vpack.c.b16 %v459, %v458
      %v522 = vpack.c.b16 %v461, %v460
      %v523 = vpack.c.b16 %v463, %v462
      %v524 = vpack.c.b16 %v465, %v464
      %v525 = vpack.c.b16 %v467, %v466
      %v526 = vpack.c.b16 %v469, %v468
      %v527 = vpack.c.b16 %v471, %v470
      %v528 = vpack.c.b16 %v473, %v472
      %v529 = vpack.c.b16 %v475, %v474
      %v530 = vpack.c.b16 %v477, %v476
      %v531 = vpack.c.b16 %v479, %v478
      %v532 = vpack.c.b16 %v481, %v480
      %v533 = vpack.c.b16 %v483, %v482
      %v534 = vpack.c.b16 %v485, %v484
      %v535 = vpack.c.b16 %v487, %v486
      %v536 = vpack.c.b16 %v489, %v488
      %v537 = vpack.c.b16 %v491, %v490
      %v538 = vpack.c.b16 %v493, %v492
      %v539 = vpack.c.b16 %v495, %v494
      %v540 = vpack.c.b16 %v497, %v496
      %v541 = vpack.c.b16 %v499, %v498
      %v542 = vpack.c.b16 %v501, %v500
      %v543 = vpack.c.b16 %v503, %v502
      %v544 = vpack.c.b16 %v505, %v504
      %v545 = vpack.c.b16 %v507, %v506
      %v546 = vpack.c.b16 %v509, %v508
      %v547 = vpack.c.b16 %v511, %v510
      %vm584 = vcmask 523264
      %v586 = vsel %vm584, %v336, 0
      %v589 = vsel %vm584, %v341, 0
      %v592 = vsel %vm584, %v346, 0
      %v595 = vsel %vm584, %v351, 0
      %597 = vmatprep.subr.bf16.mxu0 0
      %598 = vmatpush1.bf16.msra.mxu0 %v512
      %599 = vmatprep.subr.bf16.mxu0 0
      %600 = vmatpush1.bf16.msra.mxu0 %v513
      %601 = vmatprep.subr.bf16.mxu0 0
      %602 = vmatpush1.bf16.msra.mxu0 %v514
      %603 = vmatprep.subr.bf16.mxu0 0
      %604 = vmatpush1.bf16.msra.mxu0 %v515
      %605 = vmatprep.subr.bf16.mxu0 0
      %606 = vmatpush1.bf16.msra.mxu0 %v516
      %607 = vmatprep.subr.bf16.mxu0 0
      %608 = vmatpush1.bf16.msra.mxu0 %v517
      %609 = vmatprep.subr.bf16.mxu0 0
      %610 = vmatpush1.bf16.msra.mxu0 %v518
      %611 = vmatprep.subr.bf16.mxu0 0
      %612 = vmatpush1.bf16.msra.mxu0 %v519
      %613 = vmatprep.subr.bf16.mxu0 0
      %614 = vmatpush1.bf16.msra.mxu0 %v520
      %615 = vmatprep.subr.bf16.mxu0 0
      %616 = vmatpush1.bf16.msra.mxu0 %v521
      %617 = vmatprep.subr.bf16.mxu0 0
      %618 = vmatpush1.bf16.msra.mxu0 %v522
      %619 = vmatprep.subr.bf16.mxu0 0
      %620 = vmatpush1.bf16.msra.mxu0 %v523
      %621 = vmatprep.subr.bf16.mxu0 0
      %622 = vmatpush1.bf16.msra.mxu0 %v524
      %623 = vmatprep.subr.bf16.mxu0 0
      %624 = vmatpush1.bf16.msra.mxu0 %v525
      %625 = vmatprep.subr.bf16.mxu0 0
      %626 = vmatpush1.bf16.msra.mxu0 %v526
      %627 = vmatprep.subr.bf16.mxu0 0
      %628 = vmatpush1.bf16.msra.mxu0 %v527
      %629 = vmatprep.mubr.bf16.mxu0 %v333
      %630 = vmatmul.mubr.bf16.gmra.mrb[0].mxu0 %v332
      %v631 = vpop.f32.mrb[0].mxu0
      %v632 = vadd.f32 0.0, %v631
      %v633 = vpop.f32.mrb[0].mxu0
      %v634 = vpop.f32.mrb[0].mxu0
      %v635 = vadd.f32 0.0, %v634
      %v636 = vpop.f32.mrb[0].mxu0
      %637 = vmatprep.mubr.bf16.mxu0 %v338
      %638 = vmatmul.mubr.bf16.gmra.mrb[0].mxu0 %v337
      %v639 = vpop.f32.mrb[0].mxu0
      %v640 = vadd.f32 0.0, %v639
      %v641 = vpop.f32.mrb[0].mxu0
      %v642 = vpop.f32.mrb[0].mxu0
      %v643 = vadd.f32 0.0, %v642
      %v644 = vpop.f32.mrb[0].mxu0
      %645 = vmatprep.mubr.bf16.mxu0 %v343
      %646 = vmatmul.mubr.bf16.gmra.mrb[0].mxu0 %v342
      %v647 = vpop.f32.mrb[0].mxu0
      %v648 = vadd.f32 0.0, %v647
      %v649 = vpop.f32.mrb[0].mxu0
      %v650 = vpop.f32.mrb[0].mxu0
      %v651 = vadd.f32 0.0, %v650
      %v652 = vpop.f32.mrb[0].mxu0
      %653 = vmatprep.mubr.bf16.mxu0 %v348
      %654 = vmatmul.mubr.bf16.gmra.mrb[0].mxu0 %v347
      %v655 = vpop.f32.mrb[0].mxu0
      %v656 = vadd.f32 0.0, %v655
      %v657 = vpop.f32.mrb[0].mxu0
      %v658 = vpop.f32.mrb[0].mxu0
      %v659 = vadd.f32 0.0, %v658
      %v660 = vpop.f32.mrb[0].mxu0
      %661 = vdwg.mxu0
      %662 = vmatprep.subr.bf16.mxu0 0
      %663 = vmatpush1.bf16.msra.mxu0 %v528
      %664 = vmatprep.subr.bf16.mxu0 0
      %665 = vmatpush1.bf16.msra.mxu0 %v529
      %666 = vmatprep.subr.bf16.mxu0 0
      %667 = vmatpush1.bf16.msra.mxu0 %v530
      %668 = vmatprep.subr.bf16.mxu0 0
      %669 = vmatpush1.bf16.msra.mxu0 %v531
      %670 = vmatprep.subr.bf16.mxu0 0
      %671 = vmatpush1.bf16.msra.mxu0 %v532
      %672 = vmatprep.subr.bf16.mxu0 0
      %673 = vmatpush1.bf16.msra.mxu0 %v533
      %674 = vmatprep.subr.bf16.mxu0 0
      %675 = vmatpush1.bf16.msra.mxu0 %v534
      %676 = vmatprep.subr.bf16.mxu0 0
      %677 = vmatpush1.bf16.msra.mxu0 %v535
      %678 = vmatprep.subr.bf16.mxu0 0
      %679 = vmatpush1.bf16.msra.mxu0 %v536
      %680 = vmatprep.subr.bf16.mxu0 0
      %681 = vmatpush1.bf16.msra.mxu0 %v537
      %682 = vmatprep.subr.bf16.mxu0 0
      %683 = vmatpush1.bf16.msra.mxu0 %v538
      %684 = vmatprep.subr.bf16.mxu0 0
      %685 = vmatpush1.bf16.msra.mxu0 %v539
      %686 = vmatprep.subr.bf16.mxu0 0
      %687 = vmatpush1.bf16.msra.mxu0 %v540
      %688 = vmatprep.subr.bf16.mxu0 0
      %689 = vmatpush1.bf16.msra.mxu0 %v541
      %690 = vmatprep.subr.bf16.mxu0 0
      %691 = vmatpush1.bf16.msra.mxu0 %v542
      %692 = vmatprep.subr.bf16.mxu0 0
      %693 = vmatpush1.bf16.msra.mxu0 %v543
      %694 = vmatprep.mubr.bf16.mxu0 %v335
      %695 = vmatmul.mubr.bf16.gmra.mrb[0].mxu0 %v334
      %v696 = vpop.f32.mrb[0].mxu0
      %v697 = vadd.f32 %v632, %v696
      %v698 = vpop.f32.mrb[0].mxu0
      %v699 = vpop.f32.mrb[0].mxu0
      %v700 = vadd.f32 %v635, %v699
      %v701 = vpop.f32.mrb[0].mxu0
      %702 = vmatprep.mubr.bf16.mxu0 %v340
      %703 = vmatmul.mubr.bf16.gmra.mrb[0].mxu0 %v339
      %v704 = vpop.f32.mrb[0].mxu0
      %v705 = vadd.f32 %v640, %v704
      %v706 = vpop.f32.mrb[0].mxu0
      %v707 = vpop.f32.mrb[0].mxu0
      %v708 = vadd.f32 %v643, %v707
      %v709 = vpop.f32.mrb[0].mxu0
      %710 = vmatprep.mubr.bf16.mxu0 %v345
      %711 = vmatmul.mubr.bf16.gmra.mrb[0].mxu0 %v344
      %v712 = vpop.f32.mrb[0].mxu0
      %v713 = vadd.f32 %v648, %v712
      %v714 = vpop.f32.mrb[0].mxu0
      %v715 = vpop.f32.mrb[0].mxu0
      %v716 = vadd.f32 %v651, %v715
      %v717 = vpop.f32.mrb[0].mxu0
      %718 = vmatprep.mubr.bf16.mxu0 %v350
      %719 = vmatmul.mubr.bf16.gmra.mrb[0].mxu0 %v349
      %v720 = vpop.f32.mrb[0].mxu0
      %v721 = vadd.f32 %v656, %v720
      %v722 = vpop.f32.mrb[0].mxu0
      %v723 = vpop.f32.mrb[0].mxu0
      %v724 = vadd.f32 %v659, %v723
      %v725 = vpop.f32.mrb[0].mxu0
      %726 = vdwg.mxu0
      %727 = vmatprep.subr.bf16.mxu0 0
      %728 = vmatpush1.bf16.msra.mxu0 %v544
      %729 = vmatprep.subr.bf16.mxu0 0
      %730 = vmatpush1.bf16.msra.mxu0 %v545
      %731 = vmatprep.subr.bf16.mxu0 0
      %732 = vmatpush1.bf16.msra.mxu0 %v546
      %733 = vmatprep.subr.bf16.mxu0 0
      %734 = vmatpush1.bf16.msra.mxu0 %v547
      %735 = vmatprep.subr.bf16.mxu0 0
      %736 = vmatpush1.bf16.msra.mxu0 0
      %737 = vmatprep.subr.bf16.mxu0 0
      %738 = vmatpush1.bf16.msra.mxu0 0
      %739 = vmatprep.subr.bf16.mxu0 0
      %740 = vmatpush1.bf16.msra.mxu0 0
      %741 = vmatprep.subr.bf16.mxu0 0
      %742 = vmatpush1.bf16.msra.mxu0 0
      %743 = vmatprep.subr.bf16.mxu0 0
      %744 = vmatpush1.bf16.msra.mxu0 0
      %745 = vmatprep.subr.bf16.mxu0 0
      %746 = vmatpush1.bf16.msra.mxu0 0
      %747 = vmatprep.subr.bf16.mxu0 0
      %748 = vmatpush1.bf16.msra.mxu0 0
      %749 = vmatprep.subr.bf16.mxu0 0
      %750 = vmatpush1.bf16.msra.mxu0 0
      %751 = vmatprep.subr.bf16.mxu0 0
      %752 = vmatpush1.bf16.msra.mxu0 0
      %753 = vmatprep.subr.bf16.mxu0 0
      %754 = vmatpush1.bf16.msra.mxu0 0
      %755 = vmatprep.subr.bf16.mxu0 0
      %756 = vmatpush1.bf16.msra.mxu0 0
      %757 = vmatprep.subr.bf16.mxu0 0
      %758 = vmatpush1.bf16.msra.mxu0 0
      %759 = vmatprep.mubr.bf16.mxu0 0
      %760 = vmatmul.mubr.bf16.gmra.mrb[0].mxu0 %v586
      %v761 = vpop.f32.mrb[0].mxu0
      %v762 = vadd.f32 %v697, %v761
      %v763 = vpop.f32.mrb[0].mxu0
      %v764 = vpop.f32.mrb[0].mxu0
      %v765 = vadd.f32 %v700, %v764
      %v766 = vpop.f32.mrb[0].mxu0
      %767 = vmatprep.mubr.bf16.mxu0 0
      %768 = vmatmul.mubr.bf16.gmra.mrb[0].mxu0 %v589
      %v769 = vpop.f32.mrb[0].mxu0
      %v770 = vadd.f32 %v705, %v769
      %v771 = vpop.f32.mrb[0].mxu0
      %v772 = vpop.f32.mrb[0].mxu0
      %v773 = vadd.f32 %v708, %v772
      %v774 = vpop.f32.mrb[0].mxu0
      %775 = vmatprep.mubr.bf16.mxu0 0
      %776 = vmatmul.mubr.bf16.gmra.mrb[0].mxu0 %v592
      %v777 = vpop.f32.mrb[0].mxu0
      %v778 = vadd.f32 %v713, %v777
      %v779 = vpop.f32.mrb[0].mxu0
      %v780 = vpop.f32.mrb[0].mxu0
      %v781 = vadd.f32 %v716, %v780
      %v782 = vpop.f32.mrb[0].mxu0
      %783 = vmatprep.mubr.bf16.mxu0 0
      %784 = vmatmul.mubr.bf16.gmra.mrb[0].mxu0 %v595
      %v785 = vpop.f32.mrb[0].mxu0
      %v786 = vadd.f32 %v721, %v785
      %v787 = vpop.f32.mrb[0].mxu0
      %v788 = vpop.f32.mrb[0].mxu0
      %v789 = vadd.f32 %v724, %v788
      %v790 = vpop.f32.mrb[0].mxu0
      %791 = vdwg.mxu0
      %s792 = scalar_lea.vmem %s165, 160
      %v793 = vld [vmem:[%s792] sm:$0xff]
      %v794 = vld [vmem:[%s792 + $0x8] sm:$0xff]
      %v795 = vld [vmem:[%s792 + $0x10] sm:$0xf]
      %v796 = vld [vmem:[%s792 + $0x14] sm:$0xff]
      %v797 = vld [vmem:[%s792 + $0x1c] sm:$0xff]
      %v798 = vld [vmem:[%s792 + $0x24] sm:$0xf]
      %v799 = vld [vmem:[%s792 + $0x28] sm:$0xff]
      %v800 = vld [vmem:[%s792 + $0x30] sm:$0xff]
      %v801 = vld [vmem:[%s792 + $0x38] sm:$0xf]
      %v802 = vld [vmem:[%s792 + $0x3c] sm:$0xff]
      %v803 = vld [vmem:[%s792 + $0x44] sm:$0xff]
      %v804 = vld [vmem:[%s792 + $0x4c] sm:$0xf]
      %v805 = vld [vmem:[%s792 + $0x50] sm:$0xff]
      %v806 = vld [vmem:[%s792 + $0x58] sm:$0xff]
      %v807 = vld [vmem:[%s792 + $0x60] sm:$0xf]
      %v808 = vld [vmem:[%s792 + $0x64] sm:$0xff]
      %v809 = vld [vmem:[%s792 + $0x6c] sm:$0xff]
      %v810 = vld [vmem:[%s792 + $0x74] sm:$0xf]
      %v811 = vld [vmem:[%s792 + $0x78] sm:$0xff]
      %v812 = vld [vmem:[%s792 + $0x80] sm:$0xff]
      %v813 = vld [vmem:[%s792 + $0x88] sm:$0xf]
      %v814 = vld [vmem:[%s792 + $0x8c] sm:$0xff]
      %v815 = vld [vmem:[%s792 + $0x94] sm:$0xff]
      %v816 = vld [vmem:[%s792 + $0x9c] sm:$0xf]
      %v841 = vunpack.c.l.b16 %v793
      %v842 = vunpack.c.h.b16 %v793
      %v843 = vunpack.c.l.b16 %v794
      %v844 = vunpack.c.h.b16 %v794
      %v845 = vunpack.c.l.b16 %v795
      %v846 = vunpack.c.l.b16 %v796
      %v847 = vunpack.c.h.b16 %v796
      %v848 = vunpack.c.l.b16 %v797
      %v849 = vunpack.c.h.b16 %v797
      %v850 = vunpack.c.l.b16 %v798
      %v851 = vunpack.c.l.b16 %v799
      %v852 = vunpack.c.h.b16 %v799
      %v853 = vunpack.c.l.b16 %v800
      %v854 = vunpack.c.h.b16 %v800
      %v855 = vunpack.c.l.b16 %v801
      %v856 = vunpack.c.l.b16 %v802
      %v857 = vunpack.c.h.b16 %v802
      %v858 = vunpack.c.l.b16 %v803
      %v859 = vunpack.c.h.b16 %v803
      %v860 = vunpack.c.l.b16 %v804
      %v861 = vunpack.c.l.b16 %v805
      %v862 = vunpack.c.h.b16 %v805
      %v863 = vunpack.c.l.b16 %v806
      %v864 = vunpack.c.h.b16 %v806
      %v865 = vunpack.c.l.b16 %v807
      %v866 = vunpack.c.l.b16 %v808
      %v867 = vunpack.c.h.b16 %v808
      %v868 = vunpack.c.l.b16 %v809
      %v869 = vunpack.c.h.b16 %v809
      %v870 = vunpack.c.l.b16 %v810
      %v871 = vunpack.c.l.b16 %v811
      %v872 = vunpack.c.h.b16 %v811
      %v873 = vunpack.c.l.b16 %v812
      %v874 = vunpack.c.h.b16 %v812
      %v875 = vunpack.c.l.b16 %v813
      %v876 = vunpack.c.l.b16 %v814
      %v877 = vunpack.c.h.b16 %v814
      %v878 = vunpack.c.l.b16 %v815
      %v879 = vunpack.c.h.b16 %v815
      %v880 = vunpack.c.l.b16 %v816
      %v881 = vpack.c.b16 %v846, %v841
      %v882 = vpack.c.b16 %v847, %v842
      %v883 = vpack.c.b16 %v848, %v843
      %v884 = vpack.c.b16 %v849, %v844
      %v885 = vpack.c.b16 %v850, %v845
      %v886 = vpack.c.b16 %v856, %v851
      %v887 = vpack.c.b16 %v857, %v852
      %v888 = vpack.c.b16 %v858, %v853
      %v889 = vpack.c.b16 %v859, %v854
      %v890 = vpack.c.b16 %v860, %v855
      %v891 = vpack.c.b16 %v866, %v861
      %v892 = vpack.c.b16 %v867, %v862
      %v893 = vpack.c.b16 %v868, %v863
      %v894 = vpack.c.b16 %v869, %v864
      %v895 = vpack.c.b16 %v870, %v865
      %v896 = vpack.c.b16 %v876, %v871
      %v897 = vpack.c.b16 %v877, %v872
      %v898 = vpack.c.b16 %v878, %v873
      %v899 = vpack.c.b16 %v879, %v874
      %v900 = vpack.c.b16 %v880, %v875
      %v918 = vsel %vm584, %v885, 0
      %v921 = vsel %vm584, %v890, 0
      %v924 = vsel %vm584, %v895, 0
      %v927 = vsel %vm584, %v900, 0
      %929 = vmatprep.subr.bf16.mxu0 0
      %930 = vmatpush1.bf16.msra.mxu0 %v512
      %931 = vmatprep.subr.bf16.mxu0 0
      %932 = vmatpush1.bf16.msra.mxu0 %v513
      %933 = vmatprep.subr.bf16.mxu0 0
      %934 = vmatpush1.bf16.msra.mxu0 %v514
      %935 = vmatprep.subr.bf16.mxu0 0
      %936 = vmatpush1.bf16.msra.mxu0 %v515
      %937 = vmatprep.subr.bf16.mxu0 0
      %938 = vmatpush1.bf16.msra.mxu0 %v516
      %939 = vmatprep.subr.bf16.mxu0 0
      %940 = vmatpush1.bf16.msra.mxu0 %v517
      %941 = vmatprep.subr.bf16.mxu0 0
      %942 = vmatpush1.bf16.msra.mxu0 %v518
      %943 = vmatprep.subr.bf16.mxu0 0
      %944 = vmatpush1.bf16.msra.mxu0 %v519
      %945 = vmatprep.subr.bf16.mxu0 0
      %946 = vmatpush1.bf16.msra.mxu0 %v520
      %947 = vmatprep.subr.bf16.mxu0 0
      %948 = vmatpush1.bf16.msra.mxu0 %v521
      %949 = vmatprep.subr.bf16.mxu0 0
      %950 = vmatpush1.bf16.msra.mxu0 %v522
      %951 = vmatprep.subr.bf16.mxu0 0
      %952 = vmatpush1.bf16.msra.mxu0 %v523
      %953 = vmatprep.subr.bf16.mxu0 0
      %954 = vmatpush1.bf16.msra.mxu0 %v524
      %955 = vmatprep.subr.bf16.mxu0 0
      %956 = vmatpush1.bf16.msra.mxu0 %v525
      %957 = vmatprep.subr.bf16.mxu0 0
      %958 = vmatpush1.bf16.msra.mxu0 %v526
      %959 = vmatprep.subr.bf16.mxu0 0
      %960 = vmatpush1.bf16.msra.mxu0 %v527
      %961 = vmatprep.mubr.bf16.mxu0 %v882
      %962 = vmatmul.mubr.bf16.gmra.mrb[0].mxu0 %v881
      %v963 = vpop.f32.mrb[0].mxu0
      %v964 = vadd.f32 0.0, %v963
      %v965 = vpop.f32.mrb[0].mxu0
      %v966 = vpop.f32.mrb[0].mxu0
      %v967 = vadd.f32 0.0, %v966
      %v968 = vpop.f32.mrb[0].mxu0
      %969 = vmatprep.mubr.bf16.mxu0 %v887
      %970 = vmatmul.mubr.bf16.gmra.mrb[0].mxu0 %v886
      %v971 = vpop.f32.mrb[0].mxu0
      %v972 = vadd.f32 0.0, %v971
      %v973 = vpop.f32.mrb[0].mxu0
      %v974 = vpop.f32.mrb[0].mxu0
      %v975 = vadd.f32 0.0, %v974
      %v976 = vpop.f32.mrb[0].mxu0
      %977 = vmatprep.mubr.bf16.mxu0 %v892
      %978 = vmatmul.mubr.bf16.gmra.mrb[0].mxu0 %v891
      %v979 = vpop.f32.mrb[0].mxu0
      %v980 = vadd.f32 0.0, %v979
      %v981 = vpop.f32.mrb[0].mxu0
      %v982 = vpop.f32.mrb[0].mxu0
      %v983 = vadd.f32 0.0, %v982
      %v984 = vpop.f32.mrb[0].mxu0
      %985 = vmatprep.mubr.bf16.mxu0 %v897
      %986 = vmatmul.mubr.bf16.gmra.mrb[0].mxu0 %v896
      %v987 = vpop.f32.mrb[0].mxu0
      %v988 = vadd.f32 0.0, %v987
      %v989 = vpop.f32.mrb[0].mxu0
      %v990 = vpop.f32.mrb[0].mxu0
      %v991 = vadd.f32 0.0, %v990
      %v992 = vpop.f32.mrb[0].mxu0
      %993 = vdwg.mxu0
      %994 = vmatprep.subr.bf16.mxu0 0
      %995 = vmatpush1.bf16.msra.mxu0 %v528
      %996 = vmatprep.subr.bf16.mxu0 0
      %997 = vmatpush1.bf16.msra.mxu0 %v529
      %998 = vmatprep.subr.bf16.mxu0 0
      %999 = vmatpush1.bf16.msra.mxu0 %v530
      %1000 = vmatprep.subr.bf16.mxu0 0
      %1001 = vmatpush1.bf16.msra.mxu0 %v531
      %1002 = vmatprep.subr.bf16.mxu0 0
      %1003 = vmatpush1.bf16.msra.mxu0 %v532
      %1004 = vmatprep.subr.bf16.mxu0 0
      %1005 = vmatpush1.bf16.msra.mxu0 %v533
      %1006 = vmatprep.subr.bf16.mxu0 0
      %1007 = vmatpush1.bf16.msra.mxu0 %v534
      %1008 = vmatprep.subr.bf16.mxu0 0
      %1009 = vmatpush1.bf16.msra.mxu0 %v535
      %1010 = vmatprep.subr.bf16.mxu0 0
      %1011 = vmatpush1.bf16.msra.mxu0 %v536
      %1012 = vmatprep.subr.bf16.mxu0 0
      %1013 = vmatpush1.bf16.msra.mxu0 %v537
      %1014 = vmatprep.subr.bf16.mxu0 0
      %1015 = vmatpush1.bf16.msra.mxu0 %v538
      %1016 = vmatprep.subr.bf16.mxu0 0
      %1017 = vmatpush1.bf16.msra.mxu0 %v539
      %1018 = vmatprep.subr.bf16.mxu0 0
      %1019 = vmatpush1.bf16.msra.mxu0 %v540
      %1020 = vmatprep.subr.bf16.mxu0 0
      %1021 = vmatpush1.bf16.msra.mxu0 %v541
      %1022 = vmatprep.subr.bf16.mxu0 0
      %1023 = vmatpush1.bf16.msra.mxu0 %v542
      %1024 = vmatprep.subr.bf16.mxu0 0
      %1025 = vmatpush1.bf16.msra.mxu0 %v543
      %1026 = vmatprep.mubr.bf16.mxu0 %v884
      %1027 = vmatmul.mubr.bf16.gmra.mrb[0].mxu0 %v883
      %v1028 = vpop.f32.mrb[0].mxu0
      %v1029 = vadd.f32 %v964, %v1028
      %v1030 = vpop.f32.mrb[0].mxu0
      %v1031 = vpop.f32.mrb[0].mxu0
      %v1032 = vadd.f32 %v967, %v1031
      %v1033 = vpop.f32.mrb[0].mxu0
      %1034 = vmatprep.mubr.bf16.mxu0 %v889
      %1035 = vmatmul.mubr.bf16.gmra.mrb[0].mxu0 %v888
      %v1036 = vpop.f32.mrb[0].mxu0
      %v1037 = vadd.f32 %v972, %v1036
      %v1038 = vpop.f32.mrb[0].mxu0
      %v1039 = vpop.f32.mrb[0].mxu0
      %v1040 = vadd.f32 %v975, %v1039
      %v1041 = vpop.f32.mrb[0].mxu0
      %1042 = vmatprep.mubr.bf16.mxu0 %v894
      %1043 = vmatmul.mubr.bf16.gmra.mrb[0].mxu0 %v893
      %v1044 = vpop.f32.mrb[0].mxu0
      %v1045 = vadd.f32 %v980, %v1044
      %v1046 = vpop.f32.mrb[0].mxu0
      %v1047 = vpop.f32.mrb[0].mxu0
      %v1048 = vadd.f32 %v983, %v1047
      %v1049 = vpop.f32.mrb[0].mxu0
      %1050 = vmatprep.mubr.bf16.mxu0 %v899
      %1051 = vmatmul.mubr.bf16.gmra.mrb[0].mxu0 %v898
      %v1052 = vpop.f32.mrb[0].mxu0
      %v1053 = vadd.f32 %v988, %v1052
      %v1054 = vpop.f32.mrb[0].mxu0
      %v1055 = vpop.f32.mrb[0].mxu0
      %v1056 = vadd.f32 %v991, %v1055
      %v1057 = vpop.f32.mrb[0].mxu0
      %1058 = vdwg.mxu0
      %1059 = vmatprep.subr.bf16.mxu0 0
      %1060 = vmatpush1.bf16.msra.mxu0 %v544
      %1061 = vmatprep.subr.bf16.mxu0 0
      %1062 = vmatpush1.bf16.msra.mxu0 %v545
      %1063 = vmatprep.subr.bf16.mxu0 0
      %1064 = vmatpush1.bf16.msra.mxu0 %v546
      %1065 = vmatprep.subr.bf16.mxu0 0
      %1066 = vmatpush1.bf16.msra.mxu0 %v547
      %1067 = vmatprep.subr.bf16.mxu0 0
      %1068 = vmatpush1.bf16.msra.mxu0 0
      %1069 = vmatprep.subr.bf16.mxu0 0
      %1070 = vmatpush1.bf16.msra.mxu0 0
      %1071 = vmatprep.subr.bf16.mxu0 0
      %1072 = vmatpush1.bf16.msra.mxu0 0
      %1073 = vmatprep.subr.bf16.mxu0 0
      %1074 = vmatpush1.bf16.msra.mxu0 0
      %1075 = vmatprep.subr.bf16.mxu0 0
      %1076 = vmatpush1.bf16.msra.mxu0 0
      %1077 = vmatprep.subr.bf16.mxu0 0
      %1078 = vmatpush1.bf16.msra.mxu0 0
      %1079 = vmatprep.subr.bf16.mxu0 0
      %1080 = vmatpush1.bf16.msra.mxu0 0
      %1081 = vmatprep.subr.bf16.mxu0 0
      %1082 = vmatpush1.bf16.msra.mxu0 0
      %1083 = vmatprep.subr.bf16.mxu0 0
      %1084 = vmatpush1.bf16.msra.mxu0 0
      %1085 = vmatprep.subr.bf16.mxu0 0
      %1086 = vmatpush1.bf16.msra.mxu0 0
      %1087 = vmatprep.subr.bf16.mxu0 0
      %1088 = vmatpush1.bf16.msra.mxu0 0
      %1089 = vmatprep.subr.bf16.mxu0 0
      %1090 = vmatpush1.bf16.msra.mxu0 0
      %1091 = vmatprep.mubr.bf16.mxu0 0
      %1092 = vmatmul.mubr.bf16.gmra.mrb[0].mxu0 %v918
      %v1093 = vpop.f32.mrb[0].mxu0
      %v1094 = vadd.f32 %v1029, %v1093
      %v1095 = vpop.f32.mrb[0].mxu0
      %v1096 = vpop.f32.mrb[0].mxu0
      %v1097 = vadd.f32 %v1032, %v1096
      %v1098 = vpop.f32.mrb[0].mxu0
      %1099 = vmatprep.mubr.bf16.mxu0 0
      %1100 = vmatmul.mubr.bf16.gmra.mrb[0].mxu0 %v921
      %v1101 = vpop.f32.mrb[0].mxu0
      %v1102 = vadd.f32 %v1037, %v1101
      %v1103 = vpop.f32.mrb[0].mxu0
      %v1104 = vpop.f32.mrb[0].mxu0
      %v1105 = vadd.f32 %v1040, %v1104
      %v1106 = vpop.f32.mrb[0].mxu0
      %1107 = vmatprep.mubr.bf16.mxu0 0
      %1108 = vmatmul.mubr.bf16.gmra.mrb[0].mxu0 %v924
      %v1109 = vpop.f32.mrb[0].mxu0
      %v1110 = vadd.f32 %v1045, %v1109
      %v1111 = vpop.f32.mrb[0].mxu0
      %v1112 = vpop.f32.mrb[0].mxu0
      %v1113 = vadd.f32 %v1048, %v1112
      %v1114 = vpop.f32.mrb[0].mxu0
      %1115 = vmatprep.mubr.bf16.mxu0 0
      %1116 = vmatmul.mubr.bf16.gmra.mrb[0].mxu0 %v927
      %v1117 = vpop.f32.mrb[0].mxu0
      %v1118 = vadd.f32 %v1053, %v1117
      %v1119 = vpop.f32.mrb[0].mxu0
      %v1120 = vpop.f32.mrb[0].mxu0
      %v1121 = vadd.f32 %v1056, %v1120
      %v1122 = vpop.f32.mrb[0].mxu0
      %1123 = vdwg.mxu0
      %v1124 = vmax.f32 %v762, %v1094
      %v1125 = vmax.f32 %v765, %v1097
      %v1126 = vmax.f32 %v770, %v1102
      %v1127 = vmax.f32 %v773, %v1105
      %v1128 = vmax.f32 %v778, %v1110
      %v1129 = vmax.f32 %v781, %v1113
      %v1130 = vmax.f32 %v786, %v1118
      %v1131 = vmax.f32 %v789, %v1121
      %s1132 = scalar_lea.vmem %s165, 320
      %v1133 = vld [vmem:[%s1132] sm:$0xff]
      %v1134 = vld [vmem:[%s1132 + $0x8] sm:$0xff]
      %v1135 = vld [vmem:[%s1132 + $0x10] sm:$0xf]
      %v1136 = vld [vmem:[%s1132 + $0x14] sm:$0xff]
      %v1137 = vld [vmem:[%s1132 + $0x1c] sm:$0xff]
      %v1138 = vld [vmem:[%s1132 + $0x24] sm:$0xf]
      %v1139 = vld [vmem:[%s1132 + $0x28] sm:$0xff]
      %v1140 = vld [vmem:[%s1132 + $0x30] sm:$0xff]
      %v1141 = vld [vmem:[%s1132 + $0x38] sm:$0xf]
      %v1142 = vld [vmem:[%s1132 + $0x3c] sm:$0xff]
      %v1143 = vld [vmem:[%s1132 + $0x44] sm:$0xff]
      %v1144 = vld [vmem:[%s1132 + $0x4c] sm:$0xf]
      %v1145 = vld [vmem:[%s1132 + $0x50] sm:$0xff]
      %v1146 = vld [vmem:[%s1132 + $0x58] sm:$0xff]
      %v1147 = vld [vmem:[%s1132 + $0x60] sm:$0xf]
      %v1148 = vld [vmem:[%s1132 + $0x64] sm:$0xff]
      %v1149 = vld [vmem:[%s1132 + $0x6c] sm:$0xff]
      %v1150 = vld [vmem:[%s1132 + $0x74] sm:$0xf]
      %v1151 = vld [vmem:[%s1132 + $0x78] sm:$0xff]
      %v1152 = vld [vmem:[%s1132 + $0x80] sm:$0xff]
      %v1153 = vld [vmem:[%s1132 + $0x88] sm:$0xf]
      %v1154 = vld [vmem:[%s1132 + $0x8c] sm:$0xff]
      %v1155 = vld [vmem:[%s1132 + $0x94] sm:$0xff]
      %v1156 = vld [vmem:[%s1132 + $0x9c] sm:$0xf]
      %v1181 = vunpack.c.l.b16 %v1133
      %v1182 = vunpack.c.h.b16 %v1133
      %v1183 = vunpack.c.l.b16 %v1134
      %v1184 = vunpack.c.h.b16 %v1134
      %v1185 = vunpack.c.l.b16 %v1135
      %v1186 = vunpack.c.l.b16 %v1136
      %v1187 = vunpack.c.h.b16 %v1136
      %v1188 = vunpack.c.l.b16 %v1137
      %v1189 = vunpack.c.h.b16 %v1137
      %v1190 = vunpack.c.l.b16 %v1138
      %v1191 = vunpack.c.l.b16 %v1139
      %v1192 = vunpack.c.h.b16 %v1139
      %v1193 = vunpack.c.l.b16 %v1140
      %v1194 = vunpack.c.h.b16 %v1140
      %v1195 = vunpack.c.l.b16 %v1141
      %v1196 = vunpack.c.l.b16 %v1142
      %v1197 = vunpack.c.h.b16 %v1142
      %v1198 = vunpack.c.l.b16 %v1143
      %v1199 = vunpack.c.h.b16 %v1143
      %v1200 = vunpack.c.l.b16 %v1144
      %v1201 = vunpack.c.l.b16 %v1145
      %v1202 = vunpack.c.h.b16 %v1145
      %v1203 = vunpack.c.l.b16 %v1146
      %v1204 = vunpack.c.h.b16 %v1146
      %v1205 = vunpack.c.l.b16 %v1147
      %v1206 = vunpack.c.l.b16 %v1148
      %v1207 = vunpack.c.h.b16 %v1148
      %v1208 = vunpack.c.l.b16 %v1149
      %v1209 = vunpack.c.h.b16 %v1149
      %v1210 = vunpack.c.l.b16 %v1150
      %v1211 = vunpack.c.l.b16 %v1151
      %v1212 = vunpack.c.h.b16 %v1151
      %v1213 = vunpack.c.l.b16 %v1152
      %v1214 = vunpack.c.h.b16 %v1152
      %v1215 = vunpack.c.l.b16 %v1153
      %v1216 = vunpack.c.l.b16 %v1154
      %v1217 = vunpack.c.h.b16 %v1154
      %v1218 = vunpack.c.l.b16 %v1155
      %v1219 = vunpack.c.h.b16 %v1155
      %v1220 = vunpack.c.l.b16 %v1156
      %v1221 = vpack.c.b16 %v1186, %v1181
      %v1222 = vpack.c.b16 %v1187, %v1182
      %v1223 = vpack.c.b16 %v1188, %v1183
      %v1224 = vpack.c.b16 %v1189, %v1184
      %v1225 = vpack.c.b16 %v1190, %v1185
      %v1226 = vpack.c.b16 %v1196, %v1191
      %v1227 = vpack.c.b16 %v1197, %v1192
      %v1228 = vpack.c.b16 %v1198, %v1193
      %v1229 = vpack.c.b16 %v1199, %v1194
      %v1230 = vpack.c.b16 %v1200, %v1195
      %v1231 = vpack.c.b16 %v1206, %v1201
      %v1232 = vpack.c.b16 %v1207, %v1202
      %v1233 = vpack.c.b16 %v1208, %v1203
      %v1234 = vpack.c.b16 %v1209, %v1204
      %v1235 = vpack.c.b16 %v1210, %v1205
      %v1236 = vpack.c.b16 %v1216, %v1211
      %v1237 = vpack.c.b16 %v1217, %v1212
      %v1238 = vpack.c.b16 %v1218, %v1213
      %v1239 = vpack.c.b16 %v1219, %v1214
      %v1240 = vpack.c.b16 %v1220, %v1215
      %v1258 = vsel %vm584, %v1225, 0
      %v1261 = vsel %vm584, %v1230, 0
      %v1264 = vsel %vm584, %v1235, 0
      %v1267 = vsel %vm584, %v1240, 0
      %1269 = vmatprep.subr.bf16.mxu0 0
      %1270 = vmatpush1.bf16.msra.mxu0 %v512
      %1271 = vmatprep.subr.bf16.mxu0 0
      %1272 = vmatpush1.bf16.msra.mxu0 %v513
      %1273 = vmatprep.subr.bf16.mxu0 0
      %1274 = vmatpush1.bf16.msra.mxu0 %v514
      %1275 = vmatprep.subr.bf16.mxu0 0
      %1276 = vmatpush1.bf16.msra.mxu0 %v515
      %1277 = vmatprep.subr.bf16.mxu0 0
      %1278 = vmatpush1.bf16.msra.mxu0 %v516
      %1279 = vmatprep.subr.bf16.mxu0 0
      %1280 = vmatpush1.bf16.msra.mxu0 %v517
      %1281 = vmatprep.subr.bf16.mxu0 0
      %1282 = vmatpush1.bf16.msra.mxu0 %v518
      %1283 = vmatprep.subr.bf16.mxu0 0
      %1284 = vmatpush1.bf16.msra.mxu0 %v519
      %1285 = vmatprep.subr.bf16.mxu0 0
      %1286 = vmatpush1.bf16.msra.mxu0 %v520
      %1287 = vmatprep.subr.bf16.mxu0 0
      %1288 = vmatpush1.bf16.msra.mxu0 %v521
      %1289 = vmatprep.subr.bf16.mxu0 0
      %1290 = vmatpush1.bf16.msra.mxu0 %v522
      %1291 = vmatprep.subr.bf16.mxu0 0
      %1292 = vmatpush1.bf16.msra.mxu0 %v523
      %1293 = vmatprep.subr.bf16.mxu0 0
      %1294 = vmatpush1.bf16.msra.mxu0 %v524
      %1295 = vmatprep.subr.bf16.mxu0 0
      %1296 = vmatpush1.bf16.msra.mxu0 %v525
      %1297 = vmatprep.subr.bf16.mxu0 0
      %1298 = vmatpush1.bf16.msra.mxu0 %v526
      %1299 = vmatprep.subr.bf16.mxu0 0
      %1300 = vmatpush1.bf16.msra.mxu0 %v527
      %1301 = vmatprep.mubr.bf16.mxu0 %v1222
      %1302 = vmatmul.mubr.bf16.gmra.mrb[0].mxu0 %v1221
      %v1303 = vpop.f32.mrb[0].mxu0
      %v1304 = vadd.f32 0.0, %v1303
      %v1305 = vpop.f32.mrb[0].mxu0
      %v1306 = vpop.f32.mrb[0].mxu0
      %v1307 = vadd.f32 0.0, %v1306
      %v1308 = vpop.f32.mrb[0].mxu0
      %1309 = vmatprep.mubr.bf16.mxu0 %v1227
      %1310 = vmatmul.mubr.bf16.gmra.mrb[0].mxu0 %v1226
      %v1311 = vpop.f32.mrb[0].mxu0
      %v1312 = vadd.f32 0.0, %v1311
      %v1313 = vpop.f32.mrb[0].mxu0
      %v1314 = vpop.f32.mrb[0].mxu0
      %v1315 = vadd.f32 0.0, %v1314
      %v1316 = vpop.f32.mrb[0].mxu0
      %1317 = vmatprep.mubr.bf16.mxu0 %v1232
      %1318 = vmatmul.mubr.bf16.gmra.mrb[0].mxu0 %v1231
      %v1319 = vpop.f32.mrb[0].mxu0
      %v1320 = vadd.f32 0.0, %v1319
      %v1321 = vpop.f32.mrb[0].mxu0
      %v1322 = vpop.f32.mrb[0].mxu0
      %v1323 = vadd.f32 0.0, %v1322
      %v1324 = vpop.f32.mrb[0].mxu0
      %1325 = vmatprep.mubr.bf16.mxu0 %v1237
      %1326 = vmatmul.mubr.bf16.gmra.mrb[0].mxu0 %v1236
      %v1327 = vpop.f32.mrb[0].mxu0
      %v1328 = vadd.f32 0.0, %v1327
      %v1329 = vpop.f32.mrb[0].mxu0
      %v1330 = vpop.f32.mrb[0].mxu0
      %v1331 = vadd.f32 0.0, %v1330
      %v1332 = vpop.f32.mrb[0].mxu0
      %1333 = vdwg.mxu0
      %1334 = vmatprep.subr.bf16.mxu0 0
      %1335 = vmatpush1.bf16.msra.mxu0 %v528
      %1336 = vmatprep.subr.bf16.mxu0 0
      %1337 = vmatpush1.bf16.msra.mxu0 %v529
      %1338 = vmatprep.subr.bf16.mxu0 0
      %1339 = vmatpush1.bf16.msra.mxu0 %v530
      %1340 = vmatprep.subr.bf16.mxu0 0
      %1341 = vmatpush1.bf16.msra.mxu0 %v531
      %1342 = vmatprep.subr.bf16.mxu0 0
      %1343 = vmatpush1.bf16.msra.mxu0 %v532
      %1344 = vmatprep.subr.bf16.mxu0 0
      %1345 = vmatpush1.bf16.msra.mxu0 %v533
      %1346 = vmatprep.subr.bf16.mxu0 0
      %1347 = vmatpush1.bf16.msra.mxu0 %v534
      %1348 = vmatprep.subr.bf16.mxu0 0
      %1349 = vmatpush1.bf16.msra.mxu0 %v535
      %1350 = vmatprep.subr.bf16.mxu0 0
      %1351 = vmatpush1.bf16.msra.mxu0 %v536
      %1352 = vmatprep.subr.bf16.mxu0 0
      %1353 = vmatpush1.bf16.msra.mxu0 %v537
      %1354 = vmatprep.subr.bf16.mxu0 0
      %1355 = vmatpush1.bf16.msra.mxu0 %v538
      %1356 = vmatprep.subr.bf16.mxu0 0
      %1357 = vmatpush1.bf16.msra.mxu0 %v539
      %1358 = vmatprep.subr.bf16.mxu0 0
      %1359 = vmatpush1.bf16.msra.mxu0 %v540
      %1360 = vmatprep.subr.bf16.mxu0 0
      %1361 = vmatpush1.bf16.msra.mxu0 %v541
      %1362 = vmatprep.subr.bf16.mxu0 0
      %1363 = vmatpush1.bf16.msra.mxu0 %v542
      %1364 = vmatprep.subr.bf16.mxu0 0
      %1365 = vmatpush1.bf16.msra.mxu0 %v543
      %1366 = vmatprep.mubr.bf16.mxu0 %v1224
      %1367 = vmatmul.mubr.bf16.gmra.mrb[0].mxu0 %v1223
      %v1368 = vpop.f32.mrb[0].mxu0
      %v1369 = vadd.f32 %v1304, %v1368
      %v1370 = vpop.f32.mrb[0].mxu0
      %v1371 = vpop.f32.mrb[0].mxu0
      %v1372 = vadd.f32 %v1307, %v1371
      %v1373 = vpop.f32.mrb[0].mxu0
      %1374 = vmatprep.mubr.bf16.mxu0 %v1229
      %1375 = vmatmul.mubr.bf16.gmra.mrb[0].mxu0 %v1228
      %v1376 = vpop.f32.mrb[0].mxu0
      %v1377 = vadd.f32 %v1312, %v1376
      %v1378 = vpop.f32.mrb[0].mxu0
      %v1379 = vpop.f32.mrb[0].mxu0
      %v1380 = vadd.f32 %v1315, %v1379
      %v1381 = vpop.f32.mrb[0].mxu0
      %1382 = vmatprep.mubr.bf16.mxu0 %v1234
      %1383 = vmatmul.mubr.bf16.gmra.mrb[0].mxu0 %v1233
      %v1384 = vpop.f32.mrb[0].mxu0
      %v1385 = vadd.f32 %v1320, %v1384
      %v1386 = vpop.f32.mrb[0].mxu0
      %v1387 = vpop.f32.mrb[0].mxu0
      %v1388 = vadd.f32 %v1323, %v1387
      %v1389 = vpop.f32.mrb[0].mxu0
      %1390 = vmatprep.mubr.bf16.mxu0 %v1239
      %1391 = vmatmul.mubr.bf16.gmra.mrb[0].mxu0 %v1238
      %v1392 = vpop.f32.mrb[0].mxu0
      %v1393 = vadd.f32 %v1328, %v1392
      %v1394 = vpop.f32.mrb[0].mxu0
      %v1395 = vpop.f32.mrb[0].mxu0
      %v1396 = vadd.f32 %v1331, %v1395
      %v1397 = vpop.f32.mrb[0].mxu0
      %1398 = vdwg.mxu0
      %1399 = vmatprep.subr.bf16.mxu0 0
      %1400 = vmatpush1.bf16.msra.mxu0 %v544
      %1401 = vmatprep.subr.bf16.mxu0 0
      %1402 = vmatpush1.bf16.msra.mxu0 %v545
      %1403 = vmatprep.subr.bf16.mxu0 0
      %1404 = vmatpush1.bf16.msra.mxu0 %v546
      %1405 = vmatprep.subr.bf16.mxu0 0
      %1406 = vmatpush1.bf16.msra.mxu0 %v547
      %1407 = vmatprep.subr.bf16.mxu0 0
      %1408 = vmatpush1.bf16.msra.mxu0 0
      %1409 = vmatprep.subr.bf16.mxu0 0
      %1410 = vmatpush1.bf16.msra.mxu0 0
      %1411 = vmatprep.subr.bf16.mxu0 0
      %1412 = vmatpush1.bf16.msra.mxu0 0
      %1413 = vmatprep.subr.bf16.mxu0 0
      %1414 = vmatpush1.bf16.msra.mxu0 0
      %1415 = vmatprep.subr.bf16.mxu0 0
      %1416 = vmatpush1.bf16.msra.mxu0 0
      %1417 = vmatprep.subr.bf16.mxu0 0
      %1418 = vmatpush1.bf16.msra.mxu0 0
      %1419 = vmatprep.subr.bf16.mxu0 0
      %1420 = vmatpush1.bf16.msra.mxu0 0
      %1421 = vmatprep.subr.bf16.mxu0 0
      %1422 = vmatpush1.bf16.msra.mxu0 0
      %1423 = vmatprep.subr.bf16.mxu0 0
      %1424 = vmatpush1.bf16.msra.mxu0 0
      %1425 = vmatprep.subr.bf16.mxu0 0
      %1426 = vmatpush1.bf16.msra.mxu0 0
      %1427 = vmatprep.subr.bf16.mxu0 0
      %1428 = vmatpush1.bf16.msra.mxu0 0
      %1429 = vmatprep.subr.bf16.mxu0 0
      %1430 = vmatpush1.bf16.msra.mxu0 0
      %1431 = vmatprep.mubr.bf16.mxu0 0
      %1432 = vmatmul.mubr.bf16.gmra.mrb[0].mxu0 %v1258
      %v1433 = vpop.f32.mrb[0].mxu0
      %v1434 = vadd.f32 %v1369, %v1433
      %v1435 = vpop.f32.mrb[0].mxu0
      %v1436 = vpop.f32.mrb[0].mxu0
      %v1437 = vadd.f32 %v1372, %v1436
      %v1438 = vpop.f32.mrb[0].mxu0
      %1439 = vmatprep.mubr.bf16.mxu0 0
      %1440 = vmatmul.mubr.bf16.gmra.mrb[0].mxu0 %v1261
      %v1441 = vpop.f32.mrb[0].mxu0
      %v1442 = vadd.f32 %v1377, %v1441
      %v1443 = vpop.f32.mrb[0].mxu0
      %v1444 = vpop.f32.mrb[0].mxu0
      %v1445 = vadd.f32 %v1380, %v1444
      %v1446 = vpop.f32.mrb[0].mxu0
      %1447 = vmatprep.mubr.bf16.mxu0 0
      %1448 = vmatmul.mubr.bf16.gmra.mrb[0].mxu0 %v1264
      %v1449 = vpop.f32.mrb[0].mxu0
      %v1450 = vadd.f32 %v1385, %v1449
      %v1451 = vpop.f32.mrb[0].mxu0
      %v1452 = vpop.f32.mrb[0].mxu0
      %v1453 = vadd.f32 %v1388, %v1452
      %v1454 = vpop.f32.mrb[0].mxu0
      %1455 = vmatprep.mubr.bf16.mxu0 0
      %1456 = vmatmul.mubr.bf16.gmra.mrb[0].mxu0 %v1267
      %v1457 = vpop.f32.mrb[0].mxu0
      %v1458 = vadd.f32 %v1393, %v1457
      %v1459 = vpop.f32.mrb[0].mxu0
      %v1460 = vpop.f32.mrb[0].mxu0
      %v1461 = vadd.f32 %v1396, %v1460
      %v1462 = vpop.f32.mrb[0].mxu0
      %1463 = vdwg.mxu0
      %v1464 = vmax.f32 %v1124, %v1434
      %v1465 = vmax.f32 %v1125, %v1437
      %v1466 = vmax.f32 %v1126, %v1442
      %v1467 = vmax.f32 %v1127, %v1445
      %v1468 = vmax.f32 %v1128, %v1450
      %v1469 = vmax.f32 %v1129, %v1453
      %v1470 = vmax.f32 %v1130, %v1458
      %v1471 = vmax.f32 %v1131, %v1461
      %s1472 = scalar_lea.vmem %s165, 480
      %v1473 = vld [vmem:[%s1472] sm:$0xff]
      %v1474 = vld [vmem:[%s1472 + $0x8] sm:$0xff]
      %v1475 = vld [vmem:[%s1472 + $0x10] sm:$0xf]
      %v1476 = vld [vmem:[%s1472 + $0x14] sm:$0xff]
      %v1477 = vld [vmem:[%s1472 + $0x1c] sm:$0xff]
      %v1478 = vld [vmem:[%s1472 + $0x24] sm:$0xf]
      %v1479 = vld [vmem:[%s1472 + $0x28] sm:$0xff]
      %v1480 = vld [vmem:[%s1472 + $0x30] sm:$0xff]
      %v1481 = vld [vmem:[%s1472 + $0x38] sm:$0xf]
      %v1482 = vld [vmem:[%s1472 + $0x3c] sm:$0xff]
      %v1483 = vld [vmem:[%s1472 + $0x44] sm:$0xff]
      %v1484 = vld [vmem:[%s1472 + $0x4c] sm:$0xf]
      %v1485 = vld [vmem:[%s1472 + $0x50] sm:$0xff]
      %v1486 = vld [vmem:[%s1472 + $0x58] sm:$0xff]
      %v1487 = vld [vmem:[%s1472 + $0x60] sm:$0xf]
      %v1488 = vld [vmem:[%s1472 + $0x64] sm:$0xff]
      %v1489 = vld [vmem:[%s1472 + $0x6c] sm:$0xff]
      %v1490 = vld [vmem:[%s1472 + $0x74] sm:$0xf]
      %v1491 = vld [vmem:[%s1472 + $0x78] sm:$0xff]
      %v1492 = vld [vmem:[%s1472 + $0x80] sm:$0xff]
      %v1493 = vld [vmem:[%s1472 + $0x88] sm:$0xf]
      %v1494 = vld [vmem:[%s1472 + $0x8c] sm:$0xff]
      %v1495 = vld [vmem:[%s1472 + $0x94] sm:$0xff]
      %v1496 = vld [vmem:[%s1472 + $0x9c] sm:$0xf]
      %v1521 = vunpack.c.l.b16 %v1473
      %v1522 = vunpack.c.h.b16 %v1473
      %v1523 = vunpack.c.l.b16 %v1474
      %v1524 = vunpack.c.h.b16 %v1474
      %v1525 = vunpack.c.l.b16 %v1475
      %v1526 = vunpack.c.l.b16 %v1476
      %v1527 = vunpack.c.h.b16 %v1476
      %v1528 = vunpack.c.l.b16 %v1477
      %v1529 = vunpack.c.h.b16 %v1477
      %v1530 = vunpack.c.l.b16 %v1478
      %v1531 = vunpack.c.l.b16 %v1479
      %v1532 = vunpack.c.h.b16 %v1479
      %v1533 = vunpack.c.l.b16 %v1480
      %v1534 = vunpack.c.h.b16 %v1480
      %v1535 = vunpack.c.l.b16 %v1481
      %v1536 = vunpack.c.l.b16 %v1482
      %v1537 = vunpack.c.h.b16 %v1482
      %v1538 = vunpack.c.l.b16 %v1483
      %v1539 = vunpack.c.h.b16 %v1483
      %v1540 = vunpack.c.l.b16 %v1484
      %v1541 = vunpack.c.l.b16 %v1485
      %v1542 = vunpack.c.h.b16 %v1485
      %v1543 = vunpack.c.l.b16 %v1486
      %v1544 = vunpack.c.h.b16 %v1486
      %v1545 = vunpack.c.l.b16 %v1487
      %v1546 = vunpack.c.l.b16 %v1488
      %v1547 = vunpack.c.h.b16 %v1488
      %v1548 = vunpack.c.l.b16 %v1489
      %v1549 = vunpack.c.h.b16 %v1489
      %v1550 = vunpack.c.l.b16 %v1490
      %v1551 = vunpack.c.l.b16 %v1491
      %v1552 = vunpack.c.h.b16 %v1491
      %v1553 = vunpack.c.l.b16 %v1492
      %v1554 = vunpack.c.h.b16 %v1492
      %v1555 = vunpack.c.l.b16 %v1493
      %v1556 = vunpack.c.l.b16 %v1494
      %v1557 = vunpack.c.h.b16 %v1494
      %v1558 = vunpack.c.l.b16 %v1495
      %v1559 = vunpack.c.h.b16 %v1495
      %v1560 = vunpack.c.l.b16 %v1496
      %v1561 = vpack.c.b16 %v1526, %v1521
      %v1562 = vpack.c.b16 %v1527, %v1522
      %v1563 = vpack.c.b16 %v1528, %v1523
      %v1564 = vpack.c.b16 %v1529, %v1524
      %v1565 = vpack.c.b16 %v1530, %v1525
      %v1566 = vpack.c.b16 %v1536, %v1531
      %v1567 = vpack.c.b16 %v1537, %v1532
      %v1568 = vpack.c.b16 %v1538, %v1533
      %v1569 = vpack.c.b16 %v1539, %v1534
      %v1570 = vpack.c.b16 %v1540, %v1535
      %v1571 = vpack.c.b16 %v1546, %v1541
      %v1572 = vpack.c.b16 %v1547, %v1542
      %v1573 = vpack.c.b16 %v1548, %v1543
      %v1574 = vpack.c.b16 %v1549, %v1544
      %v1575 = vpack.c.b16 %v1550, %v1545
      %v1576 = vpack.c.b16 %v1556, %v1551
      %v1577 = vpack.c.b16 %v1557, %v1552
      %v1578 = vpack.c.b16 %v1558, %v1553
      %v1579 = vpack.c.b16 %v1559, %v1554
      %v1580 = vpack.c.b16 %v1560, %v1555
      %v1598 = vsel %vm584, %v1565, 0
      %v1601 = vsel %vm584, %v1570, 0
      %v1604 = vsel %vm584, %v1575, 0
      %v1607 = vsel %vm584, %v1580, 0
      %1609 = vmatprep.subr.bf16.mxu0 0
      %1610 = vmatpush1.bf16.msra.mxu0 %v512
      %1611 = vmatprep.subr.bf16.mxu0 0
      %1612 = vmatpush1.bf16.msra.mxu0 %v513
      %1613 = vmatprep.subr.bf16.mxu0 0
      %1614 = vmatpush1.bf16.msra.mxu0 %v514
      %1615 = vmatprep.subr.bf16.mxu0 0
      %1616 = vmatpush1.bf16.msra.mxu0 %v515
      %1617 = vmatprep.subr.bf16.mxu0 0
      %1618 = vmatpush1.bf16.msra.mxu0 %v516
      %1619 = vmatprep.subr.bf16.mxu0 0
      %1620 = vmatpush1.bf16.msra.mxu0 %v517
      %1621 = vmatprep.subr.bf16.mxu0 0
      %1622 = vmatpush1.bf16.msra.mxu0 %v518
      %1623 = vmatprep.subr.bf16.mxu0 0
      %1624 = vmatpush1.bf16.msra.mxu0 %v519
      %1625 = vmatprep.subr.bf16.mxu0 0
      %1626 = vmatpush1.bf16.msra.mxu0 %v520
      %1627 = vmatprep.subr.bf16.mxu0 0
      %1628 = vmatpush1.bf16.msra.mxu0 %v521
      %1629 = vmatprep.subr.bf16.mxu0 0
      %1630 = vmatpush1.bf16.msra.mxu0 %v522
      %1631 = vmatprep.subr.bf16.mxu0 0
      %1632 = vmatpush1.bf16.msra.mxu0 %v523
      %1633 = vmatprep.subr.bf16.mxu0 0
      %1634 = vmatpush1.bf16.msra.mxu0 %v524
      %1635 = vmatprep.subr.bf16.mxu0 0
      %1636 = vmatpush1.bf16.msra.mxu0 %v525
      %1637 = vmatprep.subr.bf16.mxu0 0
      %1638 = vmatpush1.bf16.msra.mxu0 %v526
      %1639 = vmatprep.subr.bf16.mxu0 0
      %1640 = vmatpush1.bf16.msra.mxu0 %v527
      %1641 = vmatprep.mubr.bf16.mxu0 %v1562
      %1642 = vmatmul.mubr.bf16.gmra.mrb[0].mxu0 %v1561
      %v1643 = vpop.f32.mrb[0].mxu0
      %v1644 = vadd.f32 0.0, %v1643
      %v1645 = vpop.f32.mrb[0].mxu0
      %v1646 = vpop.f32.mrb[0].mxu0
      %v1647 = vadd.f32 0.0, %v1646
      %v1648 = vpop.f32.mrb[0].mxu0
      %1649 = vmatprep.mubr.bf16.mxu0 %v1567
      %1650 = vmatmul.mubr.bf16.gmra.mrb[0].mxu0 %v1566
      %v1651 = vpop.f32.mrb[0].mxu0
      %v1652 = vadd.f32 0.0, %v1651
      %v1653 = vpop.f32.mrb[0].mxu0
      %v1654 = vpop.f32.mrb[0].mxu0
      %v1655 = vadd.f32 0.0, %v1654
      %v1656 = vpop.f32.mrb[0].mxu0
      %1657 = vmatprep.mubr.bf16.mxu0 %v1572
      %1658 = vmatmul.mubr.bf16.gmra.mrb[0].mxu0 %v1571
      %v1659 = vpop.f32.mrb[0].mxu0
      %v1660 = vadd.f32 0.0, %v1659
      %v1661 = vpop.f32.mrb[0].mxu0
      %v1662 = vpop.f32.mrb[0].mxu0
      %v1663 = vadd.f32 0.0, %v1662
      %v1664 = vpop.f32.mrb[0].mxu0
      %1665 = vmatprep.mubr.bf16.mxu0 %v1577
      %1666 = vmatmul.mubr.bf16.gmra.mrb[0].mxu0 %v1576
      %v1667 = vpop.f32.mrb[0].mxu0
      %v1668 = vadd.f32 0.0, %v1667
      %v1669 = vpop.f32.mrb[0].mxu0
      %v1670 = vpop.f32.mrb[0].mxu0
      %v1671 = vadd.f32 0.0, %v1670
      %v1672 = vpop.f32.mrb[0].mxu0
      %1673 = vdwg.mxu0
      %1674 = vmatprep.subr.bf16.mxu0 0
      %1675 = vmatpush1.bf16.msra.mxu0 %v528
      %1676 = vmatprep.subr.bf16.mxu0 0
      %1677 = vmatpush1.bf16.msra.mxu0 %v529
      %1678 = vmatprep.subr.bf16.mxu0 0
      %1679 = vmatpush1.bf16.msra.mxu0 %v530
      %1680 = vmatprep.subr.bf16.mxu0 0
      %1681 = vmatpush1.bf16.msra.mxu0 %v531
      %1682 = vmatprep.subr.bf16.mxu0 0
      %1683 = vmatpush1.bf16.msra.mxu0 %v532
      %1684 = vmatprep.subr.bf16.mxu0 0
      %1685 = vmatpush1.bf16.msra.mxu0 %v533
      %1686 = vmatprep.subr.bf16.mxu0 0
      %1687 = vmatpush1.bf16.msra.mxu0 %v534
      %1688 = vmatprep.subr.bf16.mxu0 0
      %1689 = vmatpush1.bf16.msra.mxu0 %v535
      %1690 = vmatprep.subr.bf16.mxu0 0
      %1691 = vmatpush1.bf16.msra.mxu0 %v536
      %1692 = vmatprep.subr.bf16.mxu0 0
      %1693 = vmatpush1.bf16.msra.mxu0 %v537
      %1694 = vmatprep.subr.bf16.mxu0 0
      %1695 = vmatpush1.bf16.msra.mxu0 %v538
      %1696 = vmatprep.subr.bf16.mxu0 0
      %1697 = vmatpush1.bf16.msra.mxu0 %v539
      %1698 = vmatprep.subr.bf16.mxu0 0
      %1699 = vmatpush1.bf16.msra.mxu0 %v540
      %1700 = vmatprep.subr.bf16.mxu0 0
      %1701 = vmatpush1.bf16.msra.mxu0 %v541
      %1702 = vmatprep.subr.bf16.mxu0 0
      %1703 = vmatpush1.bf16.msra.mxu0 %v542
      %1704 = vmatprep.subr.bf16.mxu0 0
      %1705 = vmatpush1.bf16.msra.mxu0 %v543
      %1706 = vmatprep.mubr.bf16.mxu0 %v1564
      %1707 = vmatmul.mubr.bf16.gmra.mrb[0].mxu0 %v1563
      %v1708 = vpop.f32.mrb[0].mxu0
      %v1709 = vadd.f32 %v1644, %v1708
      %v1710 = vpop.f32.mrb[0].mxu0
      %v1711 = vpop.f32.mrb[0].mxu0
      %v1712 = vadd.f32 %v1647, %v1711
      %v1713 = vpop.f32.mrb[0].mxu0
      %1714 = vmatprep.mubr.bf16.mxu0 %v1569
      %1715 = vmatmul.mubr.bf16.gmra.mrb[0].mxu0 %v1568
      %v1716 = vpop.f32.mrb[0].mxu0
      %v1717 = vadd.f32 %v1652, %v1716
      %v1718 = vpop.f32.mrb[0].mxu0
      %v1719 = vpop.f32.mrb[0].mxu0
      %v1720 = vadd.f32 %v1655, %v1719
      %v1721 = vpop.f32.mrb[0].mxu0
      %1722 = vmatprep.mubr.bf16.mxu0 %v1574
      %1723 = vmatmul.mubr.bf16.gmra.mrb[0].mxu0 %v1573
      %v1724 = vpop.f32.mrb[0].mxu0
      %v1725 = vadd.f32 %v1660, %v1724
      %v1726 = vpop.f32.mrb[0].mxu0
      %v1727 = vpop.f32.mrb[0].mxu0
      %v1728 = vadd.f32 %v1663, %v1727
      %v1729 = vpop.f32.mrb[0].mxu0
      %1730 = vmatprep.mubr.bf16.mxu0 %v1579
      %1731 = vmatmul.mubr.bf16.gmra.mrb[0].mxu0 %v1578
      %v1732 = vpop.f32.mrb[0].mxu0
      %v1733 = vadd.f32 %v1668, %v1732
      %v1734 = vpop.f32.mrb[0].mxu0
      %v1735 = vpop.f32.mrb[0].mxu0
      %v1736 = vadd.f32 %v1671, %v1735
      %v1737 = vpop.f32.mrb[0].mxu0
      %1738 = vdwg.mxu0
      %1739 = vmatprep.subr.bf16.mxu0 0
      %1740 = vmatpush1.bf16.msra.mxu0 %v544
      %1741 = vmatprep.subr.bf16.mxu0 0
      %1742 = vmatpush1.bf16.msra.mxu0 %v545
      %1743 = vmatprep.subr.bf16.mxu0 0
      %1744 = vmatpush1.bf16.msra.mxu0 %v546
      %1745 = vmatprep.subr.bf16.mxu0 0
      %1746 = vmatpush1.bf16.msra.mxu0 %v547
      %1747 = vmatprep.subr.bf16.mxu0 0
      %1748 = vmatpush1.bf16.msra.mxu0 0
      %1749 = vmatprep.subr.bf16.mxu0 0
      %1750 = vmatpush1.bf16.msra.mxu0 0
      %1751 = vmatprep.subr.bf16.mxu0 0
      %1752 = vmatpush1.bf16.msra.mxu0 0
      %1753 = vmatprep.subr.bf16.mxu0 0
      %1754 = vmatpush1.bf16.msra.mxu0 0
      %1755 = vmatprep.subr.bf16.mxu0 0
      %1756 = vmatpush1.bf16.msra.mxu0 0
      %1757 = vmatprep.subr.bf16.mxu0 0
      %1758 = vmatpush1.bf16.msra.mxu0 0
      %1759 = vmatprep.subr.bf16.mxu0 0
      %1760 = vmatpush1.bf16.msra.mxu0 0
      %1761 = vmatprep.subr.bf16.mxu0 0
      %1762 = vmatpush1.bf16.msra.mxu0 0
      %1763 = vmatprep.subr.bf16.mxu0 0
      %1764 = vmatpush1.bf16.msra.mxu0 0
      %1765 = vmatprep.subr.bf16.mxu0 0
      %1766 = vmatpush1.bf16.msra.mxu0 0
      %1767 = vmatprep.subr.bf16.mxu0 0
      %1768 = vmatpush1.bf16.msra.mxu0 0
      %1769 = vmatprep.subr.bf16.mxu0 0
      %1770 = vmatpush1.bf16.msra.mxu0 0
      %1771 = vmatprep.mubr.bf16.mxu0 0
      %1772 = vmatmul.mubr.bf16.gmra.mrb[0].mxu0 %v1598
      %v1773 = vpop.f32.mrb[0].mxu0
      %v1774 = vadd.f32 %v1709, %v1773
      %v1775 = vpop.f32.mrb[0].mxu0
      %v1776 = vpop.f32.mrb[0].mxu0
      %v1777 = vadd.f32 %v1712, %v1776
      %v1778 = vpop.f32.mrb[0].mxu0
      %1779 = vmatprep.mubr.bf16.mxu0 0
      %1780 = vmatmul.mubr.bf16.gmra.mrb[0].mxu0 %v1601
      %v1781 = vpop.f32.mrb[0].mxu0
      %v1782 = vadd.f32 %v1717, %v1781
      %v1783 = vpop.f32.mrb[0].mxu0
      %v1784 = vpop.f32.mrb[0].mxu0
      %v1785 = vadd.f32 %v1720, %v1784
      %v1786 = vpop.f32.mrb[0].mxu0
      %1787 = vmatprep.mubr.bf16.mxu0 0
      %1788 = vmatmul.mubr.bf16.gmra.mrb[0].mxu0 %v1604
      %v1789 = vpop.f32.mrb[0].mxu0
      %v1790 = vadd.f32 %v1725, %v1789
      %v1791 = vpop.f32.mrb[0].mxu0
      %v1792 = vpop.f32.mrb[0].mxu0
      %v1793 = vadd.f32 %v1728, %v1792
      %v1794 = vpop.f32.mrb[0].mxu0
      %1795 = vmatprep.mubr.bf16.mxu0 0
      %1796 = vmatmul.mubr.bf16.gmra.mrb[0].mxu0 %v1607
      %v1797 = vpop.f32.mrb[0].mxu0
      %v1798 = vadd.f32 %v1733, %v1797
      %v1799 = vpop.f32.mrb[0].mxu0
      %v1800 = vpop.f32.mrb[0].mxu0
      %v1801 = vadd.f32 %v1736, %v1800
      %v1802 = vpop.f32.mrb[0].mxu0
      %1803 = vdwg.mxu0
      %v1804 = vmax.f32 %v1464, %v1774
      %v1805 = vmax.f32 %v1465, %v1777
      %v1806 = vmax.f32 %v1466, %v1782
      %v1807 = vmax.f32 %v1467, %v1785
      %v1808 = vmax.f32 %v1468, %v1790
      %v1809 = vmax.f32 %v1469, %v1793
      %v1810 = vmax.f32 %v1470, %v1798
      %v1811 = vmax.f32 %v1471, %v1801
      %v1812 = vld [vmem:[%s2] sm:$0x1]
      %v1814 = vlaneseq
      %v1815 = vshrl.u32 %v1814, 7
      %v1816 = vsub.s32 0, %v1815
      %v1817 = vrot.slane %v1812, %v1816
      %v1819 = vadd.f32 %v1804, %v1817
      %v1820 = vadd.f32 %v1805, %v1817
      %v1821 = vadd.f32 %v1806, %v1817
      %v1822 = vadd.f32 %v1807, %v1817
      %v1823 = vadd.f32 %v1808, %v1817
      %v1824 = vadd.f32 %v1809, %v1817
      %v1825 = vadd.f32 %v1810, %v1817
      %v1826 = vadd.f32 %v1811, %v1817
      %v1827 = vmax.f32 %v1819, 0.0
      %v1828 = vmax.f32 %v1820, 0.0
      %v1829 = vmax.f32 %v1821, 0.0
      %v1830 = vmax.f32 %v1822, 0.0
      %v1831 = vmax.f32 %v1823, 0.0
      %v1832 = vmax.f32 %v1824, 0.0
      %v1833 = vmax.f32 %v1825, 0.0
      %v1834 = vmax.f32 %v1826, 0.0
      %v1835 = vpack.c.bf16 %v1828, %v1827
      %v1836 = vpack.c.bf16 %v1830, %v1829
      %v1837 = vpack.c.bf16 %v1832, %v1831
      %v1838 = vpack.c.bf16 %v1834, %v1833
      %v1843 = vunpack.c.l.b16 %v1835
      %v1844 = vunpack.c.h.b16 %v1835
      %v1845 = vunpack.c.l.b16 %v1836
      %v1846 = vunpack.c.h.b16 %v1836
      %v1847 = vunpack.c.l.b16 %v1837
      %v1848 = vunpack.c.h.b16 %v1837
      %v1849 = vunpack.c.l.b16 %v1838
      %v1850 = vunpack.c.h.b16 %v1838
      %v1851 = vpack.c.b16 %v1843, %v1843
      %v1852 = vpack.c.b16 %v1844, %v1844
      %v1853 = vpack.c.b16 %v1845, %v1845
      %v1854 = vpack.c.b16 %v1846, %v1846
      %v1855 = vpack.c.b16 %v1847, %v1847
      %v1856 = vpack.c.b16 %v1848, %v1848
      %v1857 = vpack.c.b16 %v1849, %v1849
      %v1858 = vpack.c.b16 %v1850, %v1850
      %1867 = vst [vmem:[%s170] sm:$0xf] %v1851
      %1868 = vst [vmem:[%s170 + $0x4] sm:$0xf] %v1852
      %1869 = vst [vmem:[%s170 + $0x8] sm:$0xf] %v1853
      %1870 = vst [vmem:[%s170 + $0xc] sm:$0xf] %v1854
      %1871 = vst [vmem:[%s170 + $0x10] sm:$0xf] %v1855
      %1872 = vst [vmem:[%s170 + $0x14] sm:$0xf] %v1856
      %1873 = vst [vmem:[%s170 + $0x18] sm:$0xf] %v1857
      %1874 = vst [vmem:[%s170 + $0x1c] sm:$0xf] %v1858
      %p1875 = scmp.lt.s32.totalorder %s14, 1
      %s1876 = scalar_select %p1875, %s14, 1
      %s1877 = smul.addr %s1876, 8
      %s1878 = smul.addr %s1877, 4
      %s1879 = scalar_lea.vmem %s3, %s1878
      // Predicated region
      $region33: #{forward.5} parent=31 // pred_check
        %p1880 = pneg %p100
      $region34: #{forward.5} parent=31 // pred_check_branch
        %1882 = sbr.rel (%p1880) target = $region36
      $region35: #{forward.5} parent=31 // pred_region
        _
      $region36: #{forward.5} parent=31 // pred_fallthru
        _
    $region32: #{forward.5} parent=5 // pred_fallthru
      _
    %p1883 = scmp.le.s32.totalorder 2, %s9
    // Predicated region
    $region37: #{forward.5} parent=5 // pred_check
      %p1884 = pneg %p1883
    $region38: #{forward.5} parent=5 // pred_check_branch
      %1886 = sbr.rel (%p1884) target = $region40
    $region39: #{forward.5} parent=5 // pred_region
      %s1887 = ssub.s32 %s9, 2
      // Predicated region
      $region41: #{forward.5} parent=39 // pred_check
        %p1888 = pneg %p106
      $region42: #{forward.5} parent=39 // pred_check_branch
        %1890 = sbr.rel (%p1888) target = $region44
      $region43: #{forward.5} parent=39 // pred_region
        %p1891 = scmp.lt.s32.totalorder %s15, 1
        %s1892 = scalar_select %p1891, %s15, 1
        %s1893 = smul.addr %s1892, 8
        %s1894 = smul.addr %s1893, 4
        %s1895 = scalar_lea.vmem %s3, %s1894
      $region44: #{forward.5} parent=39 // pred_fallthru
        _
    $region40: #{forward.5} parent=5 // pred_fallthru
      _
  $region6: #{forward.5} parent=0 // loop_footer
    %s13 = sadd.s32 1, %s9
  $region7: #{forward.5} parent=0 // loop_footer_branch
    %8 = sbr.rel target = $region3
  $region8: #{forward.5} parent=0 // loop_exit
    _

// kernel: forward.6
$region0: #{forward.6}
  #allocation0 [shape = 'u32[]', space=smem, size = 0x4, offset = 0x4, fixed_abs, tag = 'smem constant byte address 0x4 - core index']
  #allocation1 [shape = 'u32[144,128]{1,0:T(1,128)}', space=vmem, size = 0x12000, scoped, tag = 'internal scratch']
  %s0 = inlined_call_operand.vmem [shape: bf16[2,4,16,1152], index: 0, kind: input, shape index: {}]
  %s1 = inlined_call_operand.vmem [shape: bf16[1152,256], index: 1, kind: input, shape index: {}]
  %s2 = inlined_call_operand.vmem [shape: f32[1,256], index: 2, kind: input, shape index: {}]
  %s3 = inlined_call_operand.vmem [shape: bf16[2,16,256], index: 3, kind: output, shape index: {}]
  %s4 = sld [smem:[#allocation0]]
  $region45: #{forward.6} parent=0
    _
  %s6 = ssub.s32 1, %s4
  %s7 = scalar_select 0, %s6, %s4
  loop: start=0, step=1, limit=4
  $region2: #{forward.6} parent=0 // loop_pre_header
    _
  $region3: #{forward.6} parent=0 // loop_header
    %s9 = sphi 0, %s13
    %p10 = scmp.ge.s32.totalorder %s9, 4
    %s19 = sphi 0, %s21
    %s22 = sphi 0, %s19
    %s23 = sphi 0, %s22
    %s39 = sphi 0, %s23
    %s43 = sphi 0, %s43
    %s45 = sphi 0, %s43
    %s46 = sphi 0, %s45
    %s60 = sphi 0, %s46
    %s64 = sphi 0, %s64
    %s66 = sphi 0, %s64
    %s67 = sphi 0, %s66
    %s81 = sphi 0, %s67
    %s87 = sphi 0, %s89
    %s90 = sphi 0, %s87
    %s91 = sphi 0, %s90
    %s107 = sphi 0, %s91
  $region4: #{forward.6} parent=0 // loop_header_branch
    %12 = sbr.rel (%p10) target = $region8
  $region5: #{forward.6} parent=0 // loop_body
    %s14 = ssub.s32 %s9, 1
    %s15 = ssub.s32 %s9, 2
    %s16 = sadd.s32 %s9, 1
    %s17 = ssub.s32 %s9, %s16
    %p18 = scmp.eq.s32.totalorder %s17, 0
    %s20 = sadd.s32 %s19, 1
    %s21 = scalar_select %p18, %s19, %s20
    %p24 = pneg %p18
    %p25 = scmp.eq.s32.totalorder %s9, 1
    %p26 = por %p24, %p25
    %p27 = scmp.ne.s32.totalorder %s19, %s22
    %p28 = scmp.eq.s32.totalorder %s9, 0
    %p29 = por %p27, %p28
    %p30 = scmp.ne.s32.totalorder %s19, %s22
    %p31 = scmp.eq.s32.totalorder %s14, 1
    %p32 = por %p30, %p31
    %p33 = scmp.ne.s32.totalorder %s22, %s23
    %p34 = scmp.eq.s32.totalorder %s14, 0
    %p35 = por %p33, %p34
    %p36 = scmp.ne.s32.totalorder %s22, %s23
    %p37 = scmp.eq.s32.totalorder %s15, 1
    %p38 = por %p36, %p37
    %p40 = scmp.ne.s32.totalorder %s23, %s39
    %p41 = scmp.eq.s32.totalorder %s15, 0
    %p42 = por %p40, %p41
    %s44 = sadd.s32 %s43, 1
    %p47 = scmp.eq.s32.totalorder %s9, 1
    %p48 = scmp.ne.s32.totalorder %s43, %s45
    %p49 = scmp.eq.s32.totalorder %s9, 0
    %p50 = por %p48, %p49
    %p51 = scmp.ne.s32.totalorder %s43, %s45
    %p52 = scmp.eq.s32.totalorder %s14, 1
    %p53 = por %p51, %p52
    %p54 = scmp.ne.s32.totalorder %s45, %s46
    %p55 = scmp.eq.s32.totalorder %s14, 0
    %p56 = por %p54, %p55
    %p57 = scmp.ne.s32.totalorder %s45, %s46
    %p58 = scmp.eq.s32.totalorder %s15, 1
    %p59 = por %p57, %p58
    %p61 = scmp.ne.s32.totalorder %s46, %s60
    %p62 = scmp.eq.s32.totalorder %s15, 0
    %p63 = por %p61, %p62
    %s65 = sadd.s32 %s64, 1
    %p68 = scmp.eq.s32.totalorder %s9, 1
    %p69 = scmp.ne.s32.totalorder %s64, %s66
    %p70 = scmp.eq.s32.totalorder %s9, 0
    %p71 = por %p69, %p70
    %p72 = scmp.ne.s32.totalorder %s64, %s66
    %p73 = scmp.eq.s32.totalorder %s14, 1
    %p74 = por %p72, %p73
    %p75 = scmp.ne.s32.totalorder %s66, %s67
    %p76 = scmp.eq.s32.totalorder %s14, 0
    %p77 = por %p75, %p76
    %p78 = scmp.ne.s32.totalorder %s66, %s67
    %p79 = scmp.eq.s32.totalorder %s15, 1
    %p80 = por %p78, %p79
    %p82 = scmp.ne.s32.totalorder %s67, %s81
    %p83 = scmp.eq.s32.totalorder %s15, 0
    %p84 = por %p82, %p83
    %s85 = ssub.s32 %s9, %s16
    %p86 = scmp.eq.s32.totalorder %s85, 0
    %s88 = sadd.s32 %s87, 1
    %s89 = scalar_select %p86, %s87, %s88
    %p92 = pneg %p86
    %p93 = scmp.eq.s32.totalorder %s9, 1
    %p94 = por %p92, %p93
    %p95 = scmp.ne.s32.totalorder %s87, %s90
    %p96 = scmp.eq.s32.totalorder %s9, 0
    %p97 = por %p95, %p96
    %p98 = scmp.ne.s32.totalorder %s87, %s90
    %p99 = scmp.eq.s32.totalorder %s14, 1
    %p100 = por %p98, %p99
    %p101 = scmp.ne.s32.totalorder %s90, %s91
    %p102 = scmp.eq.s32.totalorder %s14, 0
    %p103 = por %p101, %p102
    %p104 = scmp.ne.s32.totalorder %s90, %s91
    %p105 = scmp.eq.s32.totalorder %s15, 1
    %p106 = por %p104, %p105
    %p108 = scmp.ne.s32.totalorder %s91, %s107
    %p109 = scmp.eq.s32.totalorder %s15, 0
    %p110 = por %p108, %p109
    %p111 = scmp.le.s32.totalorder 1, %s9
    %p112 = scmp.lt.s32.totalorder %s9, 3
    %p113 = pnand %p111, %p112
    %p114 = pneg %p113
    // Predicated region
    $region9: #{forward.6} parent=5 // pred_check
      _
    $region10: #{forward.6} parent=5 // pred_check_branch
      %116 = sbr.rel (%p113) target = $region12
    $region11: #{forward.6} parent=5 // pred_region
      %s117 = ssub.s32 %s9, 1
      // Predicated region
      $region13: #{forward.6} parent=11 // pred_check
        %p118 = pneg %p56
      $region14: #{forward.6} parent=11 // pred_check_branch
        %120 = sbr.rel (%p118) target = $region16
      $region15: #{forward.6} parent=11 // pred_region
        _
      $region16: #{forward.6} parent=11 // pred_fallthru
        _
      // Predicated region
      $region17: #{forward.6} parent=11 // pred_check
        %p121 = pneg %p77
      $region18: #{forward.6} parent=11 // pred_check_branch
        %123 = sbr.rel (%p121) target = $region20
      $region19: #{forward.6} parent=11 // pred_region
        _
      $region20: #{forward.6} parent=11 // pred_fallthru
        _
    $region12: #{forward.6} parent=5 // pred_fallthru
      _
    %p124 = scmp.lt.s32.totalorder %s9, 2
    // Predicated region
    $region21: #{forward.6} parent=5 // pred_check
      %p125 = pneg %p124
    $region22: #{forward.6} parent=5 // pred_check_branch
      %127 = sbr.rel (%p125) target = $region24
    $region23: #{forward.6} parent=5 // pred_region
      // Predicated region
      $region25: #{forward.6} parent=23 // pred_check
        %p128 = pneg %p29
      $region26: #{forward.6} parent=23 // pred_check_branch
        %130 = sbr.rel (%p128) target = $region28
      $region27: #{forward.6} parent=23 // pred_region
        %p131 = scmp.lt.s32.totalorder %s9, 1
        %s132 = scalar_select %p131, %s9, 1
        %s133 = smul.addr %s132, 72
        %s134 = smul.addr %s133, 4
        %s135 = scalar_lea.vmem %s0, %s134
      $region28: #{forward.6} parent=23 // pred_fallthru
        _
    $region24: #{forward.6} parent=5 // pred_fallthru
      _
    %p136 = scmp.le.s32.totalorder 1, %s9
    %p137 = scmp.lt.s32.totalorder %s9, 3
    %p138 = pnand %p136, %p137
    %p139 = pneg %p138
    // Predicated region
    $region29: #{forward.6} parent=5 // pred_check
      _
    $region30: #{forward.6} parent=5 // pred_check_branch
      %141 = sbr.rel (%p138) target = $region32
    $region31: #{forward.6} parent=5 // pred_region
      %s142 = ssub.s32 %s9, 1
      %p143 = scmp.lt.s32.totalorder %s14, 1
      %s144 = scalar_select %p143, %s14, 1
      %s145 = smul.addr %s144, 72
      %s146 = smul.addr %s145, 4
      %s147 = scalar_lea.vmem %s0, %s146
      %p148 = pneg %p35
      %p149 = pneg %p32
      %p150 = pneg %p56
      %p151 = pneg %p53
      %p152 = pneg %p77
      %p153 = pneg %p74
      %p154 = pneg %p103
      %p155 = pneg %p100
      %p156 = scmp.lt.s32.totalorder %s14, 1
      %s157 = scalar_select %p156, %s14, 1
      %s158 = smul.addr %s157, 4
      %s159 = smul.addr %s158, 4
      %s160 = scalar_lea.vmem %s3, %s159
      %p161 = scmp.lt.s32.totalorder %s14, 1
      %s162 = scalar_select %p161, %s14, 1
      %s163 = smul.addr %s162, 72
      %s164 = smul.addr %s163, 4
      %s165 = scalar_lea.vmem %s0, %s164
      %p166 = scmp.lt.s32.totalorder %s14, 1
      %s167 = scalar_select %p166, %s14, 1
      %s168 = smul.addr %s167, 4
      %s169 = smul.addr %s168, 4
      %s170 = scalar_lea.vmem %s3, %s169
      %v172 = vld [vmem:[%s1] sm:$0xff]
      %v173 = vld [vmem:[%s1 + $0x8] sm:$0xff]
      %v174 = vld [vmem:[%s1 + $0x10] sm:$0xff]
      %v175 = vld [vmem:[%s1 + $0x18] sm:$0xff]
      %v176 = vld [vmem:[%s1 + $0x20] sm:$0xff]
      %v177 = vld [vmem:[%s1 + $0x28] sm:$0xff]
      %v178 = vld [vmem:[%s1 + $0x30] sm:$0xff]
      %v179 = vld [vmem:[%s1 + $0x38] sm:$0xff]
      %v180 = vld [vmem:[%s1 + $0x40] sm:$0xff]
      %v181 = vld [vmem:[%s1 + $0x48] sm:$0xff]
      %v182 = vld [vmem:[%s1 + $0x50] sm:$0xff]
      %v183 = vld [vmem:[%s1 + $0x58] sm:$0xff]
      %v184 = vld [vmem:[%s1 + $0x60] sm:$0xff]
      %v185 = vld [vmem:[%s1 + $0x68] sm:$0xff]
      %v186 = vld [vmem:[%s1 + $0x70] sm:$0xff]
      %v187 = vld [vmem:[%s1 + $0x78] sm:$0xff]
      %v188 = vld [vmem:[%s1 + $0x80] sm:$0xff]
      %v189 = vld [vmem:[%s1 + $0x88] sm:$0xff]
      %v190 = vld [vmem:[%s1 + $0x90] sm:$0xff]
      %v191 = vld [vmem:[%s1 + $0x98] sm:$0xff]
      %v192 = vld [vmem:[%s1 + $0xa0] sm:$0xff]
      %v193 = vld [vmem:[%s1 + $0xa8] sm:$0xff]
      %v194 = vld [vmem:[%s1 + $0xb0] sm:$0xff]
      %v195 = vld [vmem:[%s1 + $0xb8] sm:$0xff]
      %v196 = vld [vmem:[%s1 + $0xc0] sm:$0xff]
      %v197 = vld [vmem:[%s1 + $0xc8] sm:$0xff]
      %v198 = vld [vmem:[%s1 + $0xd0] sm:$0xff]
      %v199 = vld [vmem:[%s1 + $0xd8] sm:$0xff]
      %v200 = vld [vmem:[%s1 + $0xe0] sm:$0xff]
      %v201 = vld [vmem:[%s1 + $0xe8] sm:$0xff]
      %v202 = vld [vmem:[%s1 + $0xf0] sm:$0xff]
      %v203 = vld [vmem:[%s1 + $0xf8] sm:$0xff]
      %v204 = vld [vmem:[%s1 + $0x100] sm:$0xff]
      %v205 = vld [vmem:[%s1 + $0x108] sm:$0xff]
      %v206 = vld [vmem:[%s1 + $0x110] sm:$0xff]
      %v207 = vld [vmem:[%s1 + $0x118] sm:$0xff]
      %v208 = vld [vmem:[%s1 + $0x120] sm:$0xff]
      %v209 = vld [vmem:[%s1 + $0x128] sm:$0xff]
      %v210 = vld [vmem:[%s1 + $0x130] sm:$0xff]
      %v211 = vld [vmem:[%s1 + $0x138] sm:$0xff]
      %v212 = vld [vmem:[%s1 + $0x140] sm:$0xff]
      %v213 = vld [vmem:[%s1 + $0x148] sm:$0xff]
      %v214 = vld [vmem:[%s1 + $0x150] sm:$0xff]
      %v215 = vld [vmem:[%s1 + $0x158] sm:$0xff]
      %v216 = vld [vmem:[%s1 + $0x160] sm:$0xff]
      %v217 = vld [vmem:[%s1 + $0x168] sm:$0xff]
      %v218 = vld [vmem:[%s1 + $0x170] sm:$0xff]
      %v219 = vld [vmem:[%s1 + $0x178] sm:$0xff]
      %v220 = vld [vmem:[%s1 + $0x180] sm:$0xff]
      %v221 = vld [vmem:[%s1 + $0x188] sm:$0xff]
      %v222 = vld [vmem:[%s1 + $0x190] sm:$0xff]
      %v223 = vld [vmem:[%s1 + $0x198] sm:$0xff]
      %v224 = vld [vmem:[%s1 + $0x1a0] sm:$0xff]
      %v225 = vld [vmem:[%s1 + $0x1a8] sm:$0xff]
      %v226 = vld [vmem:[%s1 + $0x1b0] sm:$0xff]
      %v227 = vld [vmem:[%s1 + $0x1b8] sm:$0xff]
      %v228 = vld [vmem:[%s1 + $0x1c0] sm:$0xff]
      %v229 = vld [vmem:[%s1 + $0x1c8] sm:$0xff]
      %v230 = vld [vmem:[%s1 + $0x1d0] sm:$0xff]
      %v231 = vld [vmem:[%s1 + $0x1d8] sm:$0xff]
      %v232 = vld [vmem:[%s1 + $0x1e0] sm:$0xff]
      %v233 = vld [vmem:[%s1 + $0x1e8] sm:$0xff]
      %v234 = vld [vmem:[%s1 + $0x1f0] sm:$0xff]
      %v235 = vld [vmem:[%s1 + $0x1f8] sm:$0xff]
      %v236 = vld [vmem:[%s1 + $0x200] sm:$0xff]
      %v237 = vld [vmem:[%s1 + $0x208] sm:$0xff]
      %v238 = vld [vmem:[%s1 + $0x210] sm:$0xff]
      %v239 = vld [vmem:[%s1 + $0x218] sm:$0xff]
      %v240 = vld [vmem:[%s1 + $0x220] sm:$0xff]
      %v241 = vld [vmem:[%s1 + $0x228] sm:$0xff]
      %v242 = vld [vmem:[%s1 + $0x230] sm:$0xff]
      %v243 = vld [vmem:[%s1 + $0x238] sm:$0xff]
      %v244 = vld [vmem:[%s1 + $0x240] sm:$0xff]
      %v245 = vld [vmem:[%s1 + $0x248] sm:$0xff]
      %v246 = vld [vmem:[%s1 + $0x250] sm:$0xff]
      %v247 = vld [vmem:[%s1 + $0x258] sm:$0xff]
      %v248 = vld [vmem:[%s1 + $0x260] sm:$0xff]
      %v249 = vld [vmem:[%s1 + $0x268] sm:$0xff]
      %v250 = vld [vmem:[%s1 + $0x270] sm:$0xff]
      %v251 = vld [vmem:[%s1 + $0x278] sm:$0xff]
      %v252 = vld [vmem:[%s1 + $0x280] sm:$0xff]
      %v253 = vld [vmem:[%s1 + $0x288] sm:$0xff]
      %v254 = vld [vmem:[%s1 + $0x290] sm:$0xff]
      %v255 = vld [vmem:[%s1 + $0x298] sm:$0xff]
      %v256 = vld [vmem:[%s1 + $0x2a0] sm:$0xff]
      %v257 = vld [vmem:[%s1 + $0x2a8] sm:$0xff]
      %v258 = vld [vmem:[%s1 + $0x2b0] sm:$0xff]
      %v259 = vld [vmem:[%s1 + $0x2b8] sm:$0xff]
      %v260 = vld [vmem:[%s1 + $0x2c0] sm:$0xff]
      %v261 = vld [vmem:[%s1 + $0x2c8] sm:$0xff]
      %v262 = vld [vmem:[%s1 + $0x2d0] sm:$0xff]
      %v263 = vld [vmem:[%s1 + $0x2d8] sm:$0xff]
      %v264 = vld [vmem:[%s1 + $0x2e0] sm:$0xff]
      %v265 = vld [vmem:[%s1 + $0x2e8] sm:$0xff]
      %v266 = vld [vmem:[%s1 + $0x2f0] sm:$0xff]
      %v267 = vld [vmem:[%s1 + $0x2f8] sm:$0xff]
      %v268 = vld [vmem:[%s1 + $0x300] sm:$0xff]
      %v269 = vld [vmem:[%s1 + $0x308] sm:$0xff]
      %v270 = vld [vmem:[%s1 + $0x310] sm:$0xff]
      %v271 = vld [vmem:[%s1 + $0x318] sm:$0xff]
      %v272 = vld [vmem:[%s1 + $0x320] sm:$0xff]
      %v273 = vld [vmem:[%s1 + $0x328] sm:$0xff]
      %v274 = vld [vmem:[%s1 + $0x330] sm:$0xff]
      %v275 = vld [vmem:[%s1 + $0x338] sm:$0xff]
      %v276 = vld [vmem:[%s1 + $0x340] sm:$0xff]
      %v277 = vld [vmem:[%s1 + $0x348] sm:$0xff]
      %v278 = vld [vmem:[%s1 + $0x350] sm:$0xff]
      %v279 = vld [vmem:[%s1 + $0x358] sm:$0xff]
      %v280 = vld [vmem:[%s1 + $0x360] sm:$0xff]
      %v281 = vld [vmem:[%s1 + $0x368] sm:$0xff]
      %v282 = vld [vmem:[%s1 + $0x370] sm:$0xff]
      %v283 = vld [vmem:[%s1 + $0x378] sm:$0xff]
      %v284 = vld [vmem:[%s1 + $0x380] sm:$0xff]
      %v285 = vld [vmem:[%s1 + $0x388] sm:$0xff]
      %v286 = vld [vmem:[%s1 + $0x390] sm:$0xff]
      %v287 = vld [vmem:[%s1 + $0x398] sm:$0xff]
      %v288 = vld [vmem:[%s1 + $0x3a0] sm:$0xff]
      %v289 = vld [vmem:[%s1 + $0x3a8] sm:$0xff]
      %v290 = vld [vmem:[%s1 + $0x3b0] sm:$0xff]
      %v291 = vld [vmem:[%s1 + $0x3b8] sm:$0xff]
      %v292 = vld [vmem:[%s1 + $0x3c0] sm:$0xff]
      %v293 = vld [vmem:[%s1 + $0x3c8] sm:$0xff]
      %v294 = vld [vmem:[%s1 + $0x3d0] sm:$0xff]
      %v295 = vld [vmem:[%s1 + $0x3d8] sm:$0xff]
      %v296 = vld [vmem:[%s1 + $0x3e0] sm:$0xff]
      %v297 = vld [vmem:[%s1 + $0x3e8] sm:$0xff]
      %v298 = vld [vmem:[%s1 + $0x3f0] sm:$0xff]
      %v299 = vld [vmem:[%s1 + $0x3f8] sm:$0xff]
      %v300 = vld [vmem:[%s1 + $0x400] sm:$0xff]
      %v301 = vld [vmem:[%s1 + $0x408] sm:$0xff]
      %v302 = vld [vmem:[%s1 + $0x410] sm:$0xff]
      %v303 = vld [vmem:[%s1 + $0x418] sm:$0xff]
      %v304 = vld [vmem:[%s1 + $0x420] sm:$0xff]
      %v305 = vld [vmem:[%s1 + $0x428] sm:$0xff]
      %v306 = vld [vmem:[%s1 + $0x430] sm:$0xff]
      %v307 = vld [vmem:[%s1 + $0x438] sm:$0xff]
      %v308 = vld [vmem:[%s1 + $0x440] sm:$0xff]
      %v309 = vld [vmem:[%s1 + $0x448] sm:$0xff]
      %v310 = vld [vmem:[%s1 + $0x450] sm:$0xff]
      %v311 = vld [vmem:[%s1 + $0x458] sm:$0xff]
      %v312 = vld [vmem:[%s1 + $0x460] sm:$0xff]
      %v313 = vld [vmem:[%s1 + $0x468] sm:$0xff]
      %v314 = vld [vmem:[%s1 + $0x470] sm:$0xff]
      %v315 = vld [vmem:[%s1 + $0x478] sm:$0xff]
      %v316 = vld [vmem:[%s165] sm:$0xff]
      %v317 = vld [vmem:[%s165 + $0x8] sm:$0xff]
      %v318 = vld [vmem:[%s165 + $0x10] sm:$0xff]
      %v319 = vld [vmem:[%s165 + $0x18] sm:$0xff]
      %v320 = vld [vmem:[%s165 + $0x20] sm:$0xf]
      %v321 = vld [vmem:[%s165 + $0x24] sm:$0xff]
      %v322 = vld [vmem:[%s165 + $0x2c] sm:$0xff]
      %v323 = vld [vmem:[%s165 + $0x34] sm:$0xff]
      %v324 = vld [vmem:[%s165 + $0x3c] sm:$0xff]
      %v325 = vld [vmem:[%s165 + $0x44] sm:$0xf]
      %v336 = vunpack.c.l.b16 %v316
      %v337 = vunpack.c.h.b16 %v316
      %v338 = vunpack.c.l.b16 %v317
      %v339 = vunpack.c.h.b16 %v317
      %v340 = vunpack.c.l.b16 %v318
      %v341 = vunpack.c.h.b16 %v318
      %v342 = vunpack.c.l.b16 %v319
      %v343 = vunpack.c.h.b16 %v319
      %v344 = vunpack.c.l.b16 %v320
      %v345 = vunpack.c.l.b16 %v321
      %v346 = vunpack.c.h.b16 %v321
      %v347 = vunpack.c.l.b16 %v322
      %v348 = vunpack.c.h.b16 %v322
      %v349 = vunpack.c.l.b16 %v323
      %v350 = vunpack.c.h.b16 %v323
      %v351 = vunpack.c.l.b16 %v324
      %v352 = vunpack.c.h.b16 %v324
      %v353 = vunpack.c.l.b16 %v325
      %v354 = vpack.c.b16 %v345, %v336
      %v355 = vpack.c.b16 %v346, %v337
      %v356 = vpack.c.b16 %v347, %v338
      %v357 = vpack.c.b16 %v348, %v339
      %v358 = vpack.c.b16 %v349, %v340
      %v359 = vpack.c.b16 %v350, %v341
      %v360 = vpack.c.b16 %v351, %v342
      %v361 = vpack.c.b16 %v352, %v343
      %v362 = vpack.c.b16 %v353, %v344
      %v516 = vunpack.c.l.b16 %v172
      %v517 = vunpack.c.h.b16 %v172
      %v518 = vunpack.c.l.b16 %v173
      %v519 = vunpack.c.h.b16 %v173
      %v520 = vunpack.c.l.b16 %v174
      %v521 = vunpack.c.h.b16 %v174
      %v522 = vunpack.c.l.b16 %v175
      %v523 = vunpack.c.h.b16 %v175
      %v524 = vunpack.c.l.b16 %v176
      %v525 = vunpack.c.h.b16 %v176
      %v526 = vunpack.c.l.b16 %v177
      %v527 = vunpack.c.h.b16 %v177
      %v528 = vunpack.c.l.b16 %v178
      %v529 = vunpack.c.h.b16 %v178
      %v530 = vunpack.c.l.b16 %v179
      %v531 = vunpack.c.h.b16 %v179
      %v532 = vunpack.c.l.b16 %v180
      %v533 = vunpack.c.h.b16 %v180
      %v534 = vunpack.c.l.b16 %v181
      %v535 = vunpack.c.h.b16 %v181
      %v536 = vunpack.c.l.b16 %v182
      %v537 = vunpack.c.h.b16 %v182
      %v538 = vunpack.c.l.b16 %v183
      %v539 = vunpack.c.h.b16 %v183
      %v540 = vunpack.c.l.b16 %v184
      %v541 = vunpack.c.h.b16 %v184
      %v542 = vunpack.c.l.b16 %v185
      %v543 = vunpack.c.h.b16 %v185
      %v544 = vunpack.c.l.b16 %v186
      %v545 = vunpack.c.h.b16 %v186
      %v546 = vunpack.c.l.b16 %v187
      %v547 = vunpack.c.h.b16 %v187
      %v548 = vunpack.c.l.b16 %v188
      %v549 = vunpack.c.h.b16 %v188
      %v550 = vunpack.c.l.b16 %v189
      %v551 = vunpack.c.h.b16 %v189
      %v552 = vunpack.c.l.b16 %v190
      %v553 = vunpack.c.h.b16 %v190
      %v554 = vunpack.c.l.b16 %v191
      %v555 = vunpack.c.h.b16 %v191
      %v556 = vunpack.c.l.b16 %v192
      %v557 = vunpack.c.h.b16 %v192
      %v558 = vunpack.c.l.b16 %v193
      %v559 = vunpack.c.h.b16 %v193
      %v560 = vunpack.c.l.b16 %v194
      %v561 = vunpack.c.h.b16 %v194
      %v562 = vunpack.c.l.b16 %v195
      %v563 = vunpack.c.h.b16 %v195
      %v564 = vunpack.c.l.b16 %v196
      %v565 = vunpack.c.h.b16 %v196
      %v566 = vunpack.c.l.b16 %v197
      %v567 = vunpack.c.h.b16 %v197
      %v568 = vunpack.c.l.b16 %v198
      %v569 = vunpack.c.h.b16 %v198
      %v570 = vunpack.c.l.b16 %v199
      %v571 = vunpack.c.h.b16 %v199
      %v572 = vunpack.c.l.b16 %v200
      %v573 = vunpack.c.h.b16 %v200
      %v574 = vunpack.c.l.b16 %v201
      %v575 = vunpack.c.h.b16 %v201
      %v576 = vunpack.c.l.b16 %v202
      %v577 = vunpack.c.h.b16 %v202
      %v578 = vunpack.c.l.b16 %v203
      %v579 = vunpack.c.h.b16 %v203
      %v580 = vunpack.c.l.b16 %v204
      %v581 = vunpack.c.h.b16 %v204
      %v582 = vunpack.c.l.b16 %v205
      %v583 = vunpack.c.h.b16 %v205
      %v584 = vunpack.c.l.b16 %v206
      %v585 = vunpack.c.h.b16 %v206
      %v586 = vunpack.c.l.b16 %v207
      %v587 = vunpack.c.h.b16 %v207
      %v588 = vunpack.c.l.b16 %v208
      %v589 = vunpack.c.h.b16 %v208
      %v590 = vunpack.c.l.b16 %v209
      %v591 = vunpack.c.h.b16 %v209
      %v592 = vunpack.c.l.b16 %v210
      %v593 = vunpack.c.h.b16 %v210
      %v594 = vunpack.c.l.b16 %v211
      %v595 = vunpack.c.h.b16 %v211
      %v596 = vunpack.c.l.b16 %v212
      %v597 = vunpack.c.h.b16 %v212
      %v598 = vunpack.c.l.b16 %v213
      %v599 = vunpack.c.h.b16 %v213
      %v600 = vunpack.c.l.b16 %v214
      %v601 = vunpack.c.h.b16 %v214
      %v602 = vunpack.c.l.b16 %v215
      %v603 = vunpack.c.h.b16 %v215
      %v604 = vunpack.c.l.b16 %v216
      %v605 = vunpack.c.h.b16 %v216
      %v606 = vunpack.c.l.b16 %v217
      %v607 = vunpack.c.h.b16 %v217
      %v608 = vunpack.c.l.b16 %v218
      %v609 = vunpack.c.h.b16 %v218
      %v610 = vunpack.c.l.b16 %v219
      %v611 = vunpack.c.h.b16 %v219
      %v612 = vunpack.c.l.b16 %v220
      %v613 = vunpack.c.h.b16 %v220
      %v614 = vunpack.c.l.b16 %v221
      %v615 = vunpack.c.h.b16 %v221
      %v616 = vunpack.c.l.b16 %v222
      %v617 = vunpack.c.h.b16 %v222
      %v618 = vunpack.c.l.b16 %v223
      %v619 = vunpack.c.h.b16 %v223
      %v620 = vunpack.c.l.b16 %v224
      %v621 = vunpack.c.h.b16 %v224
      %v622 = vunpack.c.l.b16 %v225
      %v623 = vunpack.c.h.b16 %v225
      %v624 = vunpack.c.l.b16 %v226
      %v625 = vunpack.c.h.b16 %v226
      %v626 = vunpack.c.l.b16 %v227
      %v627 = vunpack.c.h.b16 %v227
      %v628 = vunpack.c.l.b16 %v228
      %v629 = vunpack.c.h.b16 %v228
      %v630 = vunpack.c.l.b16 %v229
      %v631 = vunpack.c.h.b16 %v229
      %v632 = vunpack.c.l.b16 %v230
      %v633 = vunpack.c.h.b16 %v230
      %v634 = vunpack.c.l.b16 %v231
      %v635 = vunpack.c.h.b16 %v231
      %v636 = vunpack.c.l.b16 %v232
      %v637 = vunpack.c.h.b16 %v232
      %v638 = vunpack.c.l.b16 %v233
      %v639 = vunpack.c.h.b16 %v233
      %v640 = vunpack.c.l.b16 %v234
      %v641 = vunpack.c.h.b16 %v234
      %v642 = vunpack.c.l.b16 %v235
      %v643 = vunpack.c.h.b16 %v235
      %v644 = vunpack.c.l.b16 %v236
      %v645 = vunpack.c.h.b16 %v236
      %v646 = vunpack.c.l.b16 %v237
      %v647 = vunpack.c.h.b16 %v237
      %v648 = vunpack.c.l.b16 %v238
      %v649 = vunpack.c.h.b16 %v238
      %v650 = vunpack.c.l.b16 %v239
      %v651 = vunpack.c.h.b16 %v239
      %v652 = vunpack.c.l.b16 %v240
      %v653 = vunpack.c.h.b16 %v240
      %v654 = vunpack.c.l.b16 %v241
      %v655 = vunpack.c.h.b16 %v241
      %v656 = vunpack.c.l.b16 %v242
      %v657 = vunpack.c.h.b16 %v242
      %v658 = vunpack.c.l.b16 %v243
      %v659 = vunpack.c.h.b16 %v243
      %v660 = vunpack.c.l.b16 %v244
      %v661 = vunpack.c.h.b16 %v244
      %v662 = vunpack.c.l.b16 %v245
      %v663 = vunpack.c.h.b16 %v245
      %v664 = vunpack.c.l.b16 %v246
      %v665 = vunpack.c.h.b16 %v246
      %v666 = vunpack.c.l.b16 %v247
      %v667 = vunpack.c.h.b16 %v247
      %v668 = vunpack.c.l.b16 %v248
      %v669 = vunpack.c.h.b16 %v248
      %v670 = vunpack.c.l.b16 %v249
      %v671 = vunpack.c.h.b16 %v249
      %v672 = vunpack.c.l.b16 %v250
      %v673 = vunpack.c.h.b16 %v250
      %v674 = vunpack.c.l.b16 %v251
      %v675 = vunpack.c.h.b16 %v251
      %v676 = vunpack.c.l.b16 %v252
      %v677 = vunpack.c.h.b16 %v252
      %v678 = vunpack.c.l.b16 %v253
      %v679 = vunpack.c.h.b16 %v253
      %v680 = vunpack.c.l.b16 %v254
      %v681 = vunpack.c.h.b16 %v254
      %v682 = vunpack.c.l.b16 %v255
      %v683 = vunpack.c.h.b16 %v255
      %v684 = vunpack.c.l.b16 %v256
      %v685 = vunpack.c.h.b16 %v256
      %v686 = vunpack.c.l.b16 %v257
      %v687 = vunpack.c.h.b16 %v257
      %v688 = vunpack.c.l.b16 %v258
      %v689 = vunpack.c.h.b16 %v258
      %v690 = vunpack.c.l.b16 %v259
      %v691 = vunpack.c.h.b16 %v259
      %v692 = vunpack.c.l.b16 %v260
      %v693 = vunpack.c.h.b16 %v260
      %v694 = vunpack.c.l.b16 %v261
      %v695 = vunpack.c.h.b16 %v261
      %v696 = vunpack.c.l.b16 %v262
      %v697 = vunpack.c.h.b16 %v262
      %v698 = vunpack.c.l.b16 %v263
      %v699 = vunpack.c.h.b16 %v263
      %v700 = vunpack.c.l.b16 %v264
      %v701 = vunpack.c.h.b16 %v264
      %v702 = vunpack.c.l.b16 %v265
      %v703 = vunpack.c.h.b16 %v265
      %v704 = vunpack.c.l.b16 %v266
      %v705 = vunpack.c.h.b16 %v266
      %v706 = vunpack.c.l.b16 %v267
      %v707 = vunpack.c.h.b16 %v267
      %v708 = vunpack.c.l.b16 %v268
      %v709 = vunpack.c.h.b16 %v268
      %v710 = vunpack.c.l.b16 %v269
      %v711 = vunpack.c.h.b16 %v269
      %v712 = vunpack.c.l.b16 %v270
      %v713 = vunpack.c.h.b16 %v270
      %v714 = vunpack.c.l.b16 %v271
      %v715 = vunpack.c.h.b16 %v271
      %v716 = vunpack.c.l.b16 %v272
      %v717 = vunpack.c.h.b16 %v272
      %v718 = vunpack.c.l.b16 %v273
      %v719 = vunpack.c.h.b16 %v273
      %v720 = vunpack.c.l.b16 %v274
      %v721 = vunpack.c.h.b16 %v274
      %v722 = vunpack.c.l.b16 %v275
      %v723 = vunpack.c.h.b16 %v275
      %v724 = vunpack.c.l.b16 %v276
      %v725 = vunpack.c.h.b16 %v276
      %v726 = vunpack.c.l.b16 %v277
      %v727 = vunpack.c.h.b16 %v277
      %v728 = vunpack.c.l.b16 %v278
      %v729 = vunpack.c.h.b16 %v278
      %v730 = vunpack.c.l.b16 %v279
      %v731 = vunpack.c.h.b16 %v279
      %v732 = vunpack.c.l.b16 %v280
      %v733 = vunpack.c.h.b16 %v280
      %v734 = vunpack.c.l.b16 %v281
      %v735 = vunpack.c.h.b16 %v281
      %v736 = vunpack.c.l.b16 %v282
      %v737 = vunpack.c.h.b16 %v282
      %v738 = vunpack.c.l.b16 %v283
      %v739 = vunpack.c.h.b16 %v283
      %v740 = vunpack.c.l.b16 %v284
      %v741 = vunpack.c.h.b16 %v284
      %v742 = vunpack.c.l.b16 %v285
      %v743 = vunpack.c.h.b16 %v285
      %v744 = vunpack.c.l.b16 %v286
      %v745 = vunpack.c.h.b16 %v286
      %v746 = vunpack.c.l.b16 %v287
      %v747 = vunpack.c.h.b16 %v287
      %v748 = vunpack.c.l.b16 %v288
      %v749 = vunpack.c.h.b16 %v288
      %v750 = vunpack.c.l.b16 %v289
      %v751 = vunpack.c.h.b16 %v289
      %v752 = vunpack.c.l.b16 %v290
      %v753 = vunpack.c.h.b16 %v290
      %v754 = vunpack.c.l.b16 %v291
      %v755 = vunpack.c.h.b16 %v291
      %v756 = vunpack.c.l.b16 %v292
      %v757 = vunpack.c.h.b16 %v292
      %v758 = vunpack.c.l.b16 %v293
      %v759 = vunpack.c.h.b16 %v293
      %v760 = vunpack.c.l.b16 %v294
      %v761 = vunpack.c.h.b16 %v294
      %v762 = vunpack.c.l.b16 %v295
      %v763 = vunpack.c.h.b16 %v295
      %v764 = vunpack.c.l.b16 %v296
      %v765 = vunpack.c.h.b16 %v296
      %v766 = vunpack.c.l.b16 %v297
      %v767 = vunpack.c.h.b16 %v297
      %v768 = vunpack.c.l.b16 %v298
      %v769 = vunpack.c.h.b16 %v298
      %v770 = vunpack.c.l.b16 %v299
      %v771 = vunpack.c.h.b16 %v299
      %v772 = vunpack.c.l.b16 %v300
      %v773 = vunpack.c.h.b16 %v300
      %v774 = vunpack.c.l.b16 %v301
      %v775 = vunpack.c.h.b16 %v301
      %v776 = vunpack.c.l.b16 %v302
      %v777 = vunpack.c.h.b16 %v302
      %v778 = vunpack.c.l.b16 %v303
      %v779 = vunpack.c.h.b16 %v303
      %v780 = vunpack.c.l.b16 %v304
      %v781 = vunpack.c.h.b16 %v304
      %v782 = vunpack.c.l.b16 %v305
      %v783 = vunpack.c.h.b16 %v305
      %v784 = vunpack.c.l.b16 %v306
      %v785 = vunpack.c.h.b16 %v306
      %v786 = vunpack.c.l.b16 %v307
      %v787 = vunpack.c.h.b16 %v307
      %v788 = vunpack.c.l.b16 %v308
      %v789 = vunpack.c.h.b16 %v308
      %v790 = vunpack.c.l.b16 %v309
      %v791 = vunpack.c.h.b16 %v309
      %v792 = vunpack.c.l.b16 %v310
      %v793 = vunpack.c.h.b16 %v310
      %v794 = vunpack.c.l.b16 %v311
      %v795 = vunpack.c.h.b16 %v311
      %v796 = vunpack.c.l.b16 %v312
      %v797 = vunpack.c.h.b16 %v312
      %v798 = vunpack.c.l.b16 %v313
      %v799 = vunpack.c.h.b16 %v313
      %v800 = vunpack.c.l.b16 %v314
      %v801 = vunpack.c.h.b16 %v314
      %v802 = vunpack.c.l.b16 %v315
      %v803 = vunpack.c.h.b16 %v315
      %v804 = vpack.c.b16 %v518, %v516
      %v805 = vpack.c.b16 %v519, %v517
      %v806 = vpack.c.b16 %v522, %v520
      %v807 = vpack.c.b16 %v523, %v521
      %v808 = vpack.c.b16 %v526, %v524
      %v809 = vpack.c.b16 %v527, %v525
      %v810 = vpack.c.b16 %v530, %v528
      %v811 = vpack.c.b16 %v531, %v529
      %v812 = vpack.c.b16 %v534, %v532
      %v813 = vpack.c.b16 %v535, %v533
      %v814 = vpack.c.b16 %v538, %v536
      %v815 = vpack.c.b16 %v539, %v537
      %v816 = vpack.c.b16 %v542, %v540
      %v817 = vpack.c.b16 %v543, %v541
      %v818 = vpack.c.b16 %v546, %v544
      %v819 = vpack.c.b16 %v547, %v545
      %v820 = vpack.c.b16 %v550, %v548
      %v821 = vpack.c.b16 %v551, %v549
      %v822 = vpack.c.b16 %v554, %v552
      %v823 = vpack.c.b16 %v555, %v553
      %v824 = vpack.c.b16 %v558, %v556
      %v825 = vpack.c.b16 %v559, %v557
      %v826 = vpack.c.b16 %v562, %v560
      %v827 = vpack.c.b16 %v563, %v561
      %v828 = vpack.c.b16 %v566, %v564
      %v829 = vpack.c.b16 %v567, %v565
      %v830 = vpack.c.b16 %v570, %v568
      %v831 = vpack.c.b16 %v571, %v569
      %v832 = vpack.c.b16 %v574, %v572
      %v833 = vpack.c.b16 %v575, %v573
      %v834 = vpack.c.b16 %v578, %v576
      %v835 = vpack.c.b16 %v579, %v577
      %v836 = vpack.c.b16 %v582, %v580
      %v837 = vpack.c.b16 %v583, %v581
      %v838 = vpack.c.b16 %v586, %v584
      %v839 = vpack.c.b16 %v587, %v585
      %v840 = vpack.c.b16 %v590, %v588
      %v841 = vpack.c.b16 %v591, %v589
      %v842 = vpack.c.b16 %v594, %v592
      %v843 = vpack.c.b16 %v595, %v593
      %v844 = vpack.c.b16 %v598, %v596
      %v845 = vpack.c.b16 %v599, %v597
      %v846 = vpack.c.b16 %v602, %v600
      %v847 = vpack.c.b16 %v603, %v601
      %v848 = vpack.c.b16 %v606, %v604
      %v849 = vpack.c.b16 %v607, %v605
      %v850 = vpack.c.b16 %v610, %v608
      %v851 = vpack.c.b16 %v611, %v609
      %v852 = vpack.c.b16 %v614, %v612
      %v853 = vpack.c.b16 %v615, %v613
      %v854 = vpack.c.b16 %v618, %v616
      %v855 = vpack.c.b16 %v619, %v617
      %v856 = vpack.c.b16 %v622, %v620
      %v857 = vpack.c.b16 %v623, %v621
      %v858 = vpack.c.b16 %v626, %v624
      %v859 = vpack.c.b16 %v627, %v625
      %v860 = vpack.c.b16 %v630, %v628
      %v861 = vpack.c.b16 %v631, %v629
      %v862 = vpack.c.b16 %v634, %v632
      %v863 = vpack.c.b16 %v635, %v633
      %v864 = vpack.c.b16 %v638, %v636
      %v865 = vpack.c.b16 %v639, %v637
      %v866 = vpack.c.b16 %v642, %v640
      %v867 = vpack.c.b16 %v643, %v641
      %v868 = vpack.c.b16 %v646, %v644
      %v869 = vpack.c.b16 %v647, %v645
      %v870 = vpack.c.b16 %v650, %v648
      %v871 = vpack.c.b16 %v651, %v649
      %v872 = vpack.c.b16 %v654, %v652
      %v873 = vpack.c.b16 %v655, %v653
      %v874 = vpack.c.b16 %v658, %v656
      %v875 = vpack.c.b16 %v659, %v657
      %v876 = vpack.c.b16 %v662, %v660
      %v877 = vpack.c.b16 %v663, %v661
      %v878 = vpack.c.b16 %v666, %v664
      %v879 = vpack.c.b16 %v667, %v665
      %v880 = vpack.c.b16 %v670, %v668
      %v881 = vpack.c.b16 %v671, %v669
      %v882 = vpack.c.b16 %v674, %v672
      %v883 = vpack.c.b16 %v675, %v673
      %v884 = vpack.c.b16 %v678, %v676
      %v885 = vpack.c.b16 %v679, %v677
      %v886 = vpack.c.b16 %v682, %v680
      %v887 = vpack.c.b16 %v683, %v681
      %v888 = vpack.c.b16 %v686, %v684
      %v889 = vpack.c.b16 %v687, %v685
      %v890 = vpack.c.b16 %v690, %v688
      %v891 = vpack.c.b16 %v691, %v689
      %v892 = vpack.c.b16 %v694, %v692
      %v893 = vpack.c.b16 %v695, %v693
      %v894 = vpack.c.b16 %v698, %v696
      %v895 = vpack.c.b16 %v699, %v697
      %v896 = vpack.c.b16 %v702, %v700
      %v897 = vpack.c.b16 %v703, %v701
      %v898 = vpack.c.b16 %v706, %v704
      %v899 = vpack.c.b16 %v707, %v705
      %v900 = vpack.c.b16 %v710, %v708
      %v901 = vpack.c.b16 %v711, %v709
      %v902 = vpack.c.b16 %v714, %v712
      %v903 = vpack.c.b16 %v715, %v713
      %v904 = vpack.c.b16 %v718, %v716
      %v905 = vpack.c.b16 %v719, %v717
      %v906 = vpack.c.b16 %v722, %v720
      %v907 = vpack.c.b16 %v723, %v721
      %v908 = vpack.c.b16 %v726, %v724
      %v909 = vpack.c.b16 %v727, %v725
      %v910 = vpack.c.b16 %v730, %v728
      %v911 = vpack.c.b16 %v731, %v729
      %v912 = vpack.c.b16 %v734, %v732
      %v913 = vpack.c.b16 %v735, %v733
      %v914 = vpack.c.b16 %v738, %v736
      %v915 = vpack.c.b16 %v739, %v737
      %v916 = vpack.c.b16 %v742, %v740
      %v917 = vpack.c.b16 %v743, %v741
      %v918 = vpack.c.b16 %v746, %v744
      %v919 = vpack.c.b16 %v747, %v745
      %v920 = vpack.c.b16 %v750, %v748
      %v921 = vpack.c.b16 %v751, %v749
      %v922 = vpack.c.b16 %v754, %v752
      %v923 = vpack.c.b16 %v755, %v753
      %v924 = vpack.c.b16 %v758, %v756
      %v925 = vpack.c.b16 %v759, %v757
      %v926 = vpack.c.b16 %v762, %v760
      %v927 = vpack.c.b16 %v763, %v761
      %v928 = vpack.c.b16 %v766, %v764
      %v929 = vpack.c.b16 %v767, %v765
      %v930 = vpack.c.b16 %v770, %v768
      %v931 = vpack.c.b16 %v771, %v769
      %v932 = vpack.c.b16 %v774, %v772
      %v933 = vpack.c.b16 %v775, %v773
      %v934 = vpack.c.b16 %v778, %v776
      %v935 = vpack.c.b16 %v779, %v777
      %v936 = vpack.c.b16 %v782, %v780
      %v937 = vpack.c.b16 %v783, %v781
      %v938 = vpack.c.b16 %v786, %v784
      %v939 = vpack.c.b16 %v787, %v785
      %v940 = vpack.c.b16 %v790, %v788
      %v941 = vpack.c.b16 %v791, %v789
      %v942 = vpack.c.b16 %v794, %v792
      %v943 = vpack.c.b16 %v795, %v793
      %v944 = vpack.c.b16 %v798, %v796
      %v945 = vpack.c.b16 %v799, %v797
      %v946 = vpack.c.b16 %v802, %v800
      %v947 = vpack.c.b16 %v803, %v801
      %1092 = vmatprep.subr.bf16.mxu0 %v805
      %1093 = vmatpush1.bf16.msra.mxu0 %v804
      %1094 = vmatprep.subr.bf16.mxu0 %v807
      %1095 = vmatpush1.bf16.msra.mxu0 %v806
      %1096 = vmatprep.subr.bf16.mxu0 %v809
      %1097 = vmatpush1.bf16.msra.mxu0 %v808
      %1098 = vmatprep.subr.bf16.mxu0 %v811
      %1099 = vmatpush1.bf16.msra.mxu0 %v810
      %1100 = vmatprep.subr.bf16.mxu0 %v813
      %1101 = vmatpush1.bf16.msra.mxu0 %v812
      %1102 = vmatprep.subr.bf16.mxu0 %v815
      %1103 = vmatpush1.bf16.msra.mxu0 %v814
      %1104 = vmatprep.subr.bf16.mxu0 %v817
      %1105 = vmatpush1.bf16.msra.mxu0 %v816
      %1106 = vmatprep.subr.bf16.mxu0 %v819
      %1107 = vmatpush1.bf16.msra.mxu0 %v818
      %1108 = vmatprep.subr.bf16.mxu0 %v821
      %1109 = vmatpush1.bf16.msra.mxu0 %v820
      %1110 = vmatprep.subr.bf16.mxu0 %v823
      %1111 = vmatpush1.bf16.msra.mxu0 %v822
      %1112 = vmatprep.subr.bf16.mxu0 %v825
      %1113 = vmatpush1.bf16.msra.mxu0 %v824
      %1114 = vmatprep.subr.bf16.mxu0 %v827
      %1115 = vmatpush1.bf16.msra.mxu0 %v826
      %1116 = vmatprep.subr.bf16.mxu0 %v829
      %1117 = vmatpush1.bf16.msra.mxu0 %v828
      %1118 = vmatprep.subr.bf16.mxu0 %v831
      %1119 = vmatpush1.bf16.msra.mxu0 %v830
      %1120 = vmatprep.subr.bf16.mxu0 %v833
      %1121 = vmatpush1.bf16.msra.mxu0 %v832
      %1122 = vmatprep.subr.bf16.mxu0 %v835
      %1123 = vmatpush1.bf16.msra.mxu0 %v834
      %1124 = vmatprep.mubr.bf16.mxu0 %v355
      %1125 = vmatmul.mubr.bf16.gmra.mrb[0].mxu0 %v354
      %v1126 = vpop.f32.mrb[0].mxu0
      %v1127 = vadd.f32 0.0, %v1126
      %v1128 = vpop.f32.mrb[0].mxu0
      %v1129 = vadd.f32 0.0, %v1128
      %v1130 = vpop.f32.mrb[0].mxu0
      %v1131 = vadd.f32 0.0, %v1130
      %v1132 = vpop.f32.mrb[0].mxu0
      %v1133 = vadd.f32 0.0, %v1132
      %1134 = vdwg.mxu0
      %1135 = vmatprep.subr.bf16.mxu0 %v837
      %1136 = vmatpush1.bf16.msra.mxu0 %v836
      %1137 = vmatprep.subr.bf16.mxu0 %v839
      %1138 = vmatpush1.bf16.msra.mxu0 %v838
      %1139 = vmatprep.subr.bf16.mxu0 %v841
      %1140 = vmatpush1.bf16.msra.mxu0 %v840
      %1141 = vmatprep.subr.bf16.mxu0 %v843
      %1142 = vmatpush1.bf16.msra.mxu0 %v842
      %1143 = vmatprep.subr.bf16.mxu0 %v845
      %1144 = vmatpush1.bf16.msra.mxu0 %v844
      %1145 = vmatprep.subr.bf16.mxu0 %v847
      %1146 = vmatpush1.bf16.msra.mxu0 %v846
      %1147 = vmatprep.subr.bf16.mxu0 %v849
      %1148 = vmatpush1.bf16.msra.mxu0 %v848
      %1149 = vmatprep.subr.bf16.mxu0 %v851
      %1150 = vmatpush1.bf16.msra.mxu0 %v850
      %1151 = vmatprep.subr.bf16.mxu0 %v853
      %1152 = vmatpush1.bf16.msra.mxu0 %v852
      %1153 = vmatprep.subr.bf16.mxu0 %v855
      %1154 = vmatpush1.bf16.msra.mxu0 %v854
      %1155 = vmatprep.subr.bf16.mxu0 %v857
      %1156 = vmatpush1.bf16.msra.mxu0 %v856
      %1157 = vmatprep.subr.bf16.mxu0 %v859
      %1158 = vmatpush1.bf16.msra.mxu0 %v858
      %1159 = vmatprep.subr.bf16.mxu0 %v861
      %1160 = vmatpush1.bf16.msra.mxu0 %v860
      %1161 = vmatprep.subr.bf16.mxu0 %v863
      %1162 = vmatpush1.bf16.msra.mxu0 %v862
      %1163 = vmatprep.subr.bf16.mxu0 %v865
      %1164 = vmatpush1.bf16.msra.mxu0 %v864
      %1165 = vmatprep.subr.bf16.mxu0 %v867
      %1166 = vmatpush1.bf16.msra.mxu0 %v866
      %1167 = vmatprep.mubr.bf16.mxu0 %v357
      %1168 = vmatmul.mubr.bf16.gmra.mrb[0].mxu0 %v356
      %v1169 = vpop.f32.mrb[0].mxu0
      %v1170 = vadd.f32 %v1127, %v1169
      %v1171 = vpop.f32.mrb[0].mxu0
      %v1172 = vadd.f32 %v1129, %v1171
      %v1173 = vpop.f32.mrb[0].mxu0
      %v1174 = vadd.f32 %v1131, %v1173
      %v1175 = vpop.f32.mrb[0].mxu0
      %v1176 = vadd.f32 %v1133, %v1175
      %1177 = vdwg.mxu0
      %1178 = vmatprep.subr.bf16.mxu0 %v869
      %1179 = vmatpush1.bf16.msra.mxu0 %v868
      %1180 = vmatprep.subr.bf16.mxu0 %v871
      %1181 = vmatpush1.bf16.msra.mxu0 %v870
      %1182 = vmatprep.subr.bf16.mxu0 %v873
      %1183 = vmatpush1.bf16.msra.mxu0 %v872
      %1184 = vmatprep.subr.bf16.mxu0 %v875
      %1185 = vmatpush1.bf16.msra.mxu0 %v874
      %1186 = vmatprep.subr.bf16.mxu0 %v877
      %1187 = vmatpush1.bf16.msra.mxu0 %v876
      %1188 = vmatprep.subr.bf16.mxu0 %v879
      %1189 = vmatpush1.bf16.msra.mxu0 %v878
      %1190 = vmatprep.subr.bf16.mxu0 %v881
      %1191 = vmatpush1.bf16.msra.mxu0 %v880
      %1192 = vmatprep.subr.bf16.mxu0 %v883
      %1193 = vmatpush1.bf16.msra.mxu0 %v882
      %1194 = vmatprep.subr.bf16.mxu0 %v885
      %1195 = vmatpush1.bf16.msra.mxu0 %v884
      %1196 = vmatprep.subr.bf16.mxu0 %v887
      %1197 = vmatpush1.bf16.msra.mxu0 %v886
      %1198 = vmatprep.subr.bf16.mxu0 %v889
      %1199 = vmatpush1.bf16.msra.mxu0 %v888
      %1200 = vmatprep.subr.bf16.mxu0 %v891
      %1201 = vmatpush1.bf16.msra.mxu0 %v890
      %1202 = vmatprep.subr.bf16.mxu0 %v893
      %1203 = vmatpush1.bf16.msra.mxu0 %v892
      %1204 = vmatprep.subr.bf16.mxu0 %v895
      %1205 = vmatpush1.bf16.msra.mxu0 %v894
      %1206 = vmatprep.subr.bf16.mxu0 %v897
      %1207 = vmatpush1.bf16.msra.mxu0 %v896
      %1208 = vmatprep.subr.bf16.mxu0 %v899
      %1209 = vmatpush1.bf16.msra.mxu0 %v898
      %1210 = vmatprep.mubr.bf16.mxu0 %v359
      %1211 = vmatmul.mubr.bf16.gmra.mrb[0].mxu0 %v358
      %v1212 = vpop.f32.mrb[0].mxu0
      %v1213 = vadd.f32 %v1170, %v1212
      %v1214 = vpop.f32.mrb[0].mxu0
      %v1215 = vadd.f32 %v1172, %v1214
      %v1216 = vpop.f32.mrb[0].mxu0
      %v1217 = vadd.f32 %v1174, %v1216
      %v1218 = vpop.f32.mrb[0].mxu0
      %v1219 = vadd.f32 %v1176, %v1218
      %1220 = vdwg.mxu0
      %1221 = vmatprep.subr.bf16.mxu0 %v901
      %1222 = vmatpush1.bf16.msra.mxu0 %v900
      %1223 = vmatprep.subr.bf16.mxu0 %v903
      %1224 = vmatpush1.bf16.msra.mxu0 %v902
      %1225 = vmatprep.subr.bf16.mxu0 %v905
      %1226 = vmatpush1.bf16.msra.mxu0 %v904
      %1227 = vmatprep.subr.bf16.mxu0 %v907
      %1228 = vmatpush1.bf16.msra.mxu0 %v906
      %1229 = vmatprep.subr.bf16.mxu0 %v909
      %1230 = vmatpush1.bf16.msra.mxu0 %v908
      %1231 = vmatprep.subr.bf16.mxu0 %v911
      %1232 = vmatpush1.bf16.msra.mxu0 %v910
      %1233 = vmatprep.subr.bf16.mxu0 %v913
      %1234 = vmatpush1.bf16.msra.mxu0 %v912
      %1235 = vmatprep.subr.bf16.mxu0 %v915
      %1236 = vmatpush1.bf16.msra.mxu0 %v914
      %1237 = vmatprep.subr.bf16.mxu0 %v917
      %1238 = vmatpush1.bf16.msra.mxu0 %v916
      %1239 = vmatprep.subr.bf16.mxu0 %v919
      %1240 = vmatpush1.bf16.msra.mxu0 %v918
      %1241 = vmatprep.subr.bf16.mxu0 %v921
      %1242 = vmatpush1.bf16.msra.mxu0 %v920
      %1243 = vmatprep.subr.bf16.mxu0 %v923
      %1244 = vmatpush1.bf16.msra.mxu0 %v922
      %1245 = vmatprep.subr.bf16.mxu0 %v925
      %1246 = vmatpush1.bf16.msra.mxu0 %v924
      %1247 = vmatprep.subr.bf16.mxu0 %v927
      %1248 = vmatpush1.bf16.msra.mxu0 %v926
      %1249 = vmatprep.subr.bf16.mxu0 %v929
      %1250 = vmatpush1.bf16.msra.mxu0 %v928
      %1251 = vmatprep.subr.bf16.mxu0 %v931
      %1252 = vmatpush1.bf16.msra.mxu0 %v930
      %1253 = vmatprep.mubr.bf16.mxu0 %v361
      %1254 = vmatmul.mubr.bf16.gmra.mrb[0].mxu0 %v360
      %v1255 = vpop.f32.mrb[0].mxu0
      %v1256 = vadd.f32 %v1213, %v1255
      %v1257 = vpop.f32.mrb[0].mxu0
      %v1258 = vadd.f32 %v1215, %v1257
      %v1259 = vpop.f32.mrb[0].mxu0
      %v1260 = vadd.f32 %v1217, %v1259
      %v1261 = vpop.f32.mrb[0].mxu0
      %v1262 = vadd.f32 %v1219, %v1261
      %1263 = vdwg.mxu0
      %1264 = vmatprep.subr.bf16.mxu0 %v933
      %1265 = vmatpush1.bf16.msra.mxu0 %v932
      %1266 = vmatprep.subr.bf16.mxu0 %v935
      %1267 = vmatpush1.bf16.msra.mxu0 %v934
      %1268 = vmatprep.subr.bf16.mxu0 %v937
      %1269 = vmatpush1.bf16.msra.mxu0 %v936
      %1270 = vmatprep.subr.bf16.mxu0 %v939
      %1271 = vmatpush1.bf16.msra.mxu0 %v938
      %1272 = vmatprep.subr.bf16.mxu0 %v941
      %1273 = vmatpush1.bf16.msra.mxu0 %v940
      %1274 = vmatprep.subr.bf16.mxu0 %v943
      %1275 = vmatpush1.bf16.msra.mxu0 %v942
      %1276 = vmatprep.subr.bf16.mxu0 %v945
      %1277 = vmatpush1.bf16.msra.mxu0 %v944
      %1278 = vmatprep.subr.bf16.mxu0 %v947
      %1279 = vmatpush1.bf16.msra.mxu0 %v946
      %1280 = vmatprep.subr.bf16.mxu0 0
      %1281 = vmatpush1.bf16.msra.mxu0 0
      %1282 = vmatprep.subr.bf16.mxu0 0
      %1283 = vmatpush1.bf16.msra.mxu0 0
      %1284 = vmatprep.subr.bf16.mxu0 0
      %1285 = vmatpush1.bf16.msra.mxu0 0
      %1286 = vmatprep.subr.bf16.mxu0 0
      %1287 = vmatpush1.bf16.msra.mxu0 0
      %1288 = vmatprep.subr.bf16.mxu0 0
      %1289 = vmatpush1.bf16.msra.mxu0 0
      %1290 = vmatprep.subr.bf16.mxu0 0
      %1291 = vmatpush1.bf16.msra.mxu0 0
      %1292 = vmatprep.subr.bf16.mxu0 0
      %1293 = vmatpush1.bf16.msra.mxu0 0
      %1294 = vmatprep.subr.bf16.mxu0 0
      %1295 = vmatpush1.bf16.msra.mxu0 0
      %1296 = vmatprep.mubr.bf16.mxu0 0
      %1297 = vmatmul.mubr.bf16.gmra.mrb[0].mxu0 %v362
      %v1298 = vpop.f32.mrb[0].mxu0
      %v1299 = vadd.f32 %v1256, %v1298
      %v1300 = vpop.f32.mrb[0].mxu0
      %v1301 = vadd.f32 %v1258, %v1300
      %v1302 = vpop.f32.mrb[0].mxu0
      %v1303 = vadd.f32 %v1260, %v1302
      %v1304 = vpop.f32.mrb[0].mxu0
      %v1305 = vadd.f32 %v1262, %v1304
      %1306 = vdwg.mxu0
      %s1307 = scalar_lea.vmem %s165, 72
      %v1308 = vld [vmem:[%s1307] sm:$0xff]
      %v1309 = vld [vmem:[%s1307 + $0x8] sm:$0xff]
      %v1310 = vld [vmem:[%s1307 + $0x10] sm:$0xff]
      %v1311 = vld [vmem:[%s1307 + $0x18] sm:$0xff]
      %v1312 = vld [vmem:[%s1307 + $0x20] sm:$0xf]
      %v1313 = vld [vmem:[%s1307 + $0x24] sm:$0xff]
      %v1314 = vld [vmem:[%s1307 + $0x2c] sm:$0xff]
      %v1315 = vld [vmem:[%s1307 + $0x34] sm:$0xff]
      %v1316 = vld [vmem:[%s1307 + $0x3c] sm:$0xff]
      %v1317 = vld [vmem:[%s1307 + $0x44] sm:$0xf]
      %v1328 = vunpack.c.l.b16 %v1308
      %v1329 = vunpack.c.h.b16 %v1308
      %v1330 = vunpack.c.l.b16 %v1309
      %v1331 = vunpack.c.h.b16 %v1309
      %v1332 = vunpack.c.l.b16 %v1310
      %v1333 = vunpack.c.h.b16 %v1310
      %v1334 = vunpack.c.l.b16 %v1311
      %v1335 = vunpack.c.h.b16 %v1311
      %v1336 = vunpack.c.l.b16 %v1312
      %v1337 = vunpack.c.l.b16 %v1313
      %v1338 = vunpack.c.h.b16 %v1313
      %v1339 = vunpack.c.l.b16 %v1314
      %v1340 = vunpack.c.h.b16 %v1314
      %v1341 = vunpack.c.l.b16 %v1315
      %v1342 = vunpack.c.h.b16 %v1315
      %v1343 = vunpack.c.l.b16 %v1316
      %v1344 = vunpack.c.h.b16 %v1316
      %v1345 = vunpack.c.l.b16 %v1317
      %v1346 = vpack.c.b16 %v1337, %v1328
      %v1347 = vpack.c.b16 %v1338, %v1329
      %v1348 = vpack.c.b16 %v1339, %v1330
      %v1349 = vpack.c.b16 %v1340, %v1331
      %v1350 = vpack.c.b16 %v1341, %v1332
      %v1351 = vpack.c.b16 %v1342, %v1333
      %v1352 = vpack.c.b16 %v1343, %v1334
      %v1353 = vpack.c.b16 %v1344, %v1335
      %v1354 = vpack.c.b16 %v1345, %v1336
      %1364 = vmatprep.subr.bf16.mxu0 %v805
      %1365 = vmatpush1.bf16.msra.mxu0 %v804
      %1366 = vmatprep.subr.bf16.mxu0 %v807
      %1367 = vmatpush1.bf16.msra.mxu0 %v806
      %1368 = vmatprep.subr.bf16.mxu0 %v809
      %1369 = vmatpush1.bf16.msra.mxu0 %v808
      %1370 = vmatprep.subr.bf16.mxu0 %v811
      %1371 = vmatpush1.bf16.msra.mxu0 %v810
      %1372 = vmatprep.subr.bf16.mxu0 %v813
      %1373 = vmatpush1.bf16.msra.mxu0 %v812
      %1374 = vmatprep.subr.bf16.mxu0 %v815
      %1375 = vmatpush1.bf16.msra.mxu0 %v814
      %1376 = vmatprep.subr.bf16.mxu0 %v817
      %1377 = vmatpush1.bf16.msra.mxu0 %v816
      %1378 = vmatprep.subr.bf16.mxu0 %v819
      %1379 = vmatpush1.bf16.msra.mxu0 %v818
      %1380 = vmatprep.subr.bf16.mxu0 %v821
      %1381 = vmatpush1.bf16.msra.mxu0 %v820
      %1382 = vmatprep.subr.bf16.mxu0 %v823
      %1383 = vmatpush1.bf16.msra.mxu0 %v822
      %1384 = vmatprep.subr.bf16.mxu0 %v825
      %1385 = vmatpush1.bf16.msra.mxu0 %v824
      %1386 = vmatprep.subr.bf16.mxu0 %v827
      %1387 = vmatpush1.bf16.msra.mxu0 %v826
      %1388 = vmatprep.subr.bf16.mxu0 %v829
      %1389 = vmatpush1.bf16.msra.mxu0 %v828
      %1390 = vmatprep.subr.bf16.mxu0 %v831
      %1391 = vmatpush1.bf16.msra.mxu0 %v830
      %1392 = vmatprep.subr.bf16.mxu0 %v833
      %1393 = vmatpush1.bf16.msra.mxu0 %v832
      %1394 = vmatprep.subr.bf16.mxu0 %v835
      %1395 = vmatpush1.bf16.msra.mxu0 %v834
      %1396 = vmatprep.mubr.bf16.mxu0 %v1347
      %1397 = vmatmul.mubr.bf16.gmra.mrb[0].mxu0 %v1346
      %v1398 = vpop.f32.mrb[0].mxu0
      %v1399 = vadd.f32 0.0, %v1398
      %v1400 = vpop.f32.mrb[0].mxu0
      %v1401 = vadd.f32 0.0, %v1400
      %v1402 = vpop.f32.mrb[0].mxu0
      %v1403 = vadd.f32 0.0, %v1402
      %v1404 = vpop.f32.mrb[0].mxu0
      %v1405 = vadd.f32 0.0, %v1404
      %1406 = vdwg.mxu0
      %1407 = vmatprep.subr.bf16.mxu0 %v837
      %1408 = vmatpush1.bf16.msra.mxu0 %v836
      %1409 = vmatprep.subr.bf16.mxu0 %v839
      %1410 = vmatpush1.bf16.msra.mxu0 %v838
      %1411 = vmatprep.subr.bf16.mxu0 %v841
      %1412 = vmatpush1.bf16.msra.mxu0 %v840
      %1413 = vmatprep.subr.bf16.mxu0 %v843
      %1414 = vmatpush1.bf16.msra.mxu0 %v842
      %1415 = vmatprep.subr.bf16.mxu0 %v845
      %1416 = vmatpush1.bf16.msra.mxu0 %v844
      %1417 = vmatprep.subr.bf16.mxu0 %v847
      %1418 = vmatpush1.bf16.msra.mxu0 %v846
      %1419 = vmatprep.subr.bf16.mxu0 %v849
      %1420 = vmatpush1.bf16.msra.mxu0 %v848
      %1421 = vmatprep.subr.bf16.mxu0 %v851
      %1422 = vmatpush1.bf16.msra.mxu0 %v850
      %1423 = vmatprep.subr.bf16.mxu0 %v853
      %1424 = vmatpush1.bf16.msra.mxu0 %v852
      %1425 = vmatprep.subr.bf16.mxu0 %v855
      %1426 = vmatpush1.bf16.msra.mxu0 %v854
      %1427 = vmatprep.subr.bf16.mxu0 %v857
      %1428 = vmatpush1.bf16.msra.mxu0 %v856
      %1429 = vmatprep.subr.bf16.mxu0 %v859
      %1430 = vmatpush1.bf16.msra.mxu0 %v858
      %1431 = vmatprep.subr.bf16.mxu0 %v861
      %1432 = vmatpush1.bf16.msra.mxu0 %v860
      %1433 = vmatprep.subr.bf16.mxu0 %v863
      %1434 = vmatpush1.bf16.msra.mxu0 %v862
      %1435 = vmatprep.subr.bf16.mxu0 %v865
      %1436 = vmatpush1.bf16.msra.mxu0 %v864
      %1437 = vmatprep.subr.bf16.mxu0 %v867
      %1438 = vmatpush1.bf16.msra.mxu0 %v866
      %1439 = vmatprep.mubr.bf16.mxu0 %v1349
      %1440 = vmatmul.mubr.bf16.gmra.mrb[0].mxu0 %v1348
      %v1441 = vpop.f32.mrb[0].mxu0
      %v1442 = vadd.f32 %v1399, %v1441
      %v1443 = vpop.f32.mrb[0].mxu0
      %v1444 = vadd.f32 %v1401, %v1443
      %v1445 = vpop.f32.mrb[0].mxu0
      %v1446 = vadd.f32 %v1403, %v1445
      %v1447 = vpop.f32.mrb[0].mxu0
      %v1448 = vadd.f32 %v1405, %v1447
      %1449 = vdwg.mxu0
      %1450 = vmatprep.subr.bf16.mxu0 %v869
      %1451 = vmatpush1.bf16.msra.mxu0 %v868
      %1452 = vmatprep.subr.bf16.mxu0 %v871
      %1453 = vmatpush1.bf16.msra.mxu0 %v870
      %1454 = vmatprep.subr.bf16.mxu0 %v873
      %1455 = vmatpush1.bf16.msra.mxu0 %v872
      %1456 = vmatprep.subr.bf16.mxu0 %v875
      %1457 = vmatpush1.bf16.msra.mxu0 %v874
      %1458 = vmatprep.subr.bf16.mxu0 %v877
      %1459 = vmatpush1.bf16.msra.mxu0 %v876
      %1460 = vmatprep.subr.bf16.mxu0 %v879
      %1461 = vmatpush1.bf16.msra.mxu0 %v878
      %1462 = vmatprep.subr.bf16.mxu0 %v881
      %1463 = vmatpush1.bf16.msra.mxu0 %v880
      %1464 = vmatprep.subr.bf16.mxu0 %v883
      %1465 = vmatpush1.bf16.msra.mxu0 %v882
      %1466 = vmatprep.subr.bf16.mxu0 %v885
      %1467 = vmatpush1.bf16.msra.mxu0 %v884
      %1468 = vmatprep.subr.bf16.mxu0 %v887
      %1469 = vmatpush1.bf16.msra.mxu0 %v886
      %1470 = vmatprep.subr.bf16.mxu0 %v889
      %1471 = vmatpush1.bf16.msra.mxu0 %v888
      %1472 = vmatprep.subr.bf16.mxu0 %v891
      %1473 = vmatpush1.bf16.msra.mxu0 %v890
      %1474 = vmatprep.subr.bf16.mxu0 %v893
      %1475 = vmatpush1.bf16.msra.mxu0 %v892
      %1476 = vmatprep.subr.bf16.mxu0 %v895
      %1477 = vmatpush1.bf16.msra.mxu0 %v894
      %1478 = vmatprep.subr.bf16.mxu0 %v897
      %1479 = vmatpush1.bf16.msra.mxu0 %v896
      %1480 = vmatprep.subr.bf16.mxu0 %v899
      %1481 = vmatpush1.bf16.msra.mxu0 %v898
      %1482 = vmatprep.mubr.bf16.mxu0 %v1351
      %1483 = vmatmul.mubr.bf16.gmra.mrb[0].mxu0 %v1350
      %v1484 = vpop.f32.mrb[0].mxu0
      %v1485 = vadd.f32 %v1442, %v1484
      %v1486 = vpop.f32.mrb[0].mxu0
      %v1487 = vadd.f32 %v1444, %v1486
      %v1488 = vpop.f32.mrb[0].mxu0
      %v1489 = vadd.f32 %v1446, %v1488
      %v1490 = vpop.f32.mrb[0].mxu0
      %v1491 = vadd.f32 %v1448, %v1490
      %1492 = vdwg.mxu0
      %1493 = vmatprep.subr.bf16.mxu0 %v901
      %1494 = vmatpush1.bf16.msra.mxu0 %v900
      %1495 = vmatprep.subr.bf16.mxu0 %v903
      %1496 = vmatpush1.bf16.msra.mxu0 %v902
      %1497 = vmatprep.subr.bf16.mxu0 %v905
      %1498 = vmatpush1.bf16.msra.mxu0 %v904
      %1499 = vmatprep.subr.bf16.mxu0 %v907
      %1500 = vmatpush1.bf16.msra.mxu0 %v906
      %1501 = vmatprep.subr.bf16.mxu0 %v909
      %1502 = vmatpush1.bf16.msra.mxu0 %v908
      %1503 = vmatprep.subr.bf16.mxu0 %v911
      %1504 = vmatpush1.bf16.msra.mxu0 %v910
      %1505 = vmatprep.subr.bf16.mxu0 %v913
      %1506 = vmatpush1.bf16.msra.mxu0 %v912
      %1507 = vmatprep.subr.bf16.mxu0 %v915
      %1508 = vmatpush1.bf16.msra.mxu0 %v914
      %1509 = vmatprep.subr.bf16.mxu0 %v917
      %1510 = vmatpush1.bf16.msra.mxu0 %v916
      %1511 = vmatprep.subr.bf16.mxu0 %v919
      %1512 = vmatpush1.bf16.msra.mxu0 %v918
      %1513 = vmatprep.subr.bf16.mxu0 %v921
      %1514 = vmatpush1.bf16.msra.mxu0 %v920
      %1515 = vmatprep.subr.bf16.mxu0 %v923
      %1516 = vmatpush1.bf16.msra.mxu0 %v922
      %1517 = vmatprep.subr.bf16.mxu0 %v925
      %1518 = vmatpush1.bf16.msra.mxu0 %v924
      %1519 = vmatprep.subr.bf16.mxu0 %v927
      %1520 = vmatpush1.bf16.msra.mxu0 %v926
      %1521 = vmatprep.subr.bf16.mxu0 %v929
      %1522 = vmatpush1.bf16.msra.mxu0 %v928
      %1523 = vmatprep.subr.bf16.mxu0 %v931
      %1524 = vmatpush1.bf16.msra.mxu0 %v930
      %1525 = vmatprep.mubr.bf16.mxu0 %v1353
      %1526 = vmatmul.mubr.bf16.gmra.mrb[0].mxu0 %v1352
      %v1527 = vpop.f32.mrb[0].mxu0
      %v1528 = vadd.f32 %v1485, %v1527
      %v1529 = vpop.f32.mrb[0].mxu0
      %v1530 = vadd.f32 %v1487, %v1529
      %v1531 = vpop.f32.mrb[0].mxu0
      %v1532 = vadd.f32 %v1489, %v1531
      %v1533 = vpop.f32.mrb[0].mxu0
      %v1534 = vadd.f32 %v1491, %v1533
      %1535 = vdwg.mxu0
      %1536 = vmatprep.subr.bf16.mxu0 %v933
      %1537 = vmatpush1.bf16.msra.mxu0 %v932
      %1538 = vmatprep.subr.bf16.mxu0 %v935
      %1539 = vmatpush1.bf16.msra.mxu0 %v934
      %1540 = vmatprep.subr.bf16.mxu0 %v937
      %1541 = vmatpush1.bf16.msra.mxu0 %v936
      %1542 = vmatprep.subr.bf16.mxu0 %v939
      %1543 = vmatpush1.bf16.msra.mxu0 %v938
      %1544 = vmatprep.subr.bf16.mxu0 %v941
      %1545 = vmatpush1.bf16.msra.mxu0 %v940
      %1546 = vmatprep.subr.bf16.mxu0 %v943
      %1547 = vmatpush1.bf16.msra.mxu0 %v942
      %1548 = vmatprep.subr.bf16.mxu0 %v945
      %1549 = vmatpush1.bf16.msra.mxu0 %v944
      %1550 = vmatprep.subr.bf16.mxu0 %v947
      %1551 = vmatpush1.bf16.msra.mxu0 %v946
      %1552 = vmatprep.subr.bf16.mxu0 0
      %1553 = vmatpush1.bf16.msra.mxu0 0
      %1554 = vmatprep.subr.bf16.mxu0 0
      %1555 = vmatpush1.bf16.msra.mxu0 0
      %1556 = vmatprep.subr.bf16.mxu0 0
      %1557 = vmatpush1.bf16.msra.mxu0 0
      %1558 = vmatprep.subr.bf16.mxu0 0
      %1559 = vmatpush1.bf16.msra.mxu0 0
      %1560 = vmatprep.subr.bf16.mxu0 0
      %1561 = vmatpush1.bf16.msra.mxu0 0
      %1562 = vmatprep.subr.bf16.mxu0 0
      %1563 = vmatpush1.bf16.msra.mxu0 0
      %1564 = vmatprep.subr.bf16.mxu0 0
      %1565 = vmatpush1.bf16.msra.mxu0 0
      %1566 = vmatprep.subr.bf16.mxu0 0
      %1567 = vmatpush1.bf16.msra.mxu0 0
      %1568 = vmatprep.mubr.bf16.mxu0 0
      %1569 = vmatmul.mubr.bf16.gmra.mrb[0].mxu0 %v1354
      %v1570 = vpop.f32.mrb[0].mxu0
      %v1571 = vadd.f32 %v1528, %v1570
      %v1572 = vpop.f32.mrb[0].mxu0
      %v1573 = vadd.f32 %v1530, %v1572
      %v1574 = vpop.f32.mrb[0].mxu0
      %v1575 = vadd.f32 %v1532, %v1574
      %v1576 = vpop.f32.mrb[0].mxu0
      %v1577 = vadd.f32 %v1534, %v1576
      %1578 = vdwg.mxu0
      %v1579 = vmax.f32 %v1299, %v1571
      %v1580 = vmax.f32 %v1301, %v1573
      %v1581 = vmax.f32 %v1303, %v1575
      %v1582 = vmax.f32 %v1305, %v1577
      %s1583 = scalar_lea.vmem %s165, 144
      %v1584 = vld [vmem:[%s1583] sm:$0xff]
      %v1585 = vld [vmem:[%s1583 + $0x8] sm:$0xff]
      %v1586 = vld [vmem:[%s1583 + $0x10] sm:$0xff]
      %v1587 = vld [vmem:[%s1583 + $0x18] sm:$0xff]
      %v1588 = vld [vmem:[%s1583 + $0x20] sm:$0xf]
      %v1589 = vld [vmem:[%s1583 + $0x24] sm:$0xff]
      %v1590 = vld [vmem:[%s1583 + $0x2c] sm:$0xff]
      %v1591 = vld [vmem:[%s1583 + $0x34] sm:$0xff]
      %v1592 = vld [vmem:[%s1583 + $0x3c] sm:$0xff]
      %v1593 = vld [vmem:[%s1583 + $0x44] sm:$0xf]
      %v1604 = vunpack.c.l.b16 %v1584
      %v1605 = vunpack.c.h.b16 %v1584
      %v1606 = vunpack.c.l.b16 %v1585
      %v1607 = vunpack.c.h.b16 %v1585
      %v1608 = vunpack.c.l.b16 %v1586
      %v1609 = vunpack.c.h.b16 %v1586
      %v1610 = vunpack.c.l.b16 %v1587
      %v1611 = vunpack.c.h.b16 %v1587
      %v1612 = vunpack.c.l.b16 %v1588
      %v1613 = vunpack.c.l.b16 %v1589
      %v1614 = vunpack.c.h.b16 %v1589
      %v1615 = vunpack.c.l.b16 %v1590
      %v1616 = vunpack.c.h.b16 %v1590
      %v1617 = vunpack.c.l.b16 %v1591
      %v1618 = vunpack.c.h.b16 %v1591
      %v1619 = vunpack.c.l.b16 %v1592
      %v1620 = vunpack.c.h.b16 %v1592
      %v1621 = vunpack.c.l.b16 %v1593
      %v1622 = vpack.c.b16 %v1613, %v1604
      %v1623 = vpack.c.b16 %v1614, %v1605
      %v1624 = vpack.c.b16 %v1615, %v1606
      %v1625 = vpack.c.b16 %v1616, %v1607
      %v1626 = vpack.c.b16 %v1617, %v1608
      %v1627 = vpack.c.b16 %v1618, %v1609
      %v1628 = vpack.c.b16 %v1619, %v1610
      %v1629 = vpack.c.b16 %v1620, %v1611
      %v1630 = vpack.c.b16 %v1621, %v1612
      %1640 = vmatprep.subr.bf16.mxu0 %v805
      %1641 = vmatpush1.bf16.msra.mxu0 %v804
      %1642 = vmatprep.subr.bf16.mxu0 %v807
      %1643 = vmatpush1.bf16.msra.mxu0 %v806
      %1644 = vmatprep.subr.bf16.mxu0 %v809
      %1645 = vmatpush1.bf16.msra.mxu0 %v808
      %1646 = vmatprep.subr.bf16.mxu0 %v811
      %1647 = vmatpush1.bf16.msra.mxu0 %v810
      %1648 = vmatprep.subr.bf16.mxu0 %v813
      %1649 = vmatpush1.bf16.msra.mxu0 %v812
      %1650 = vmatprep.subr.bf16.mxu0 %v815
      %1651 = vmatpush1.bf16.msra.mxu0 %v814
      %1652 = vmatprep.subr.bf16.mxu0 %v817
      %1653 = vmatpush1.bf16.msra.mxu0 %v816
      %1654 = vmatprep.subr.bf16.mxu0 %v819
      %1655 = vmatpush1.bf16.msra.mxu0 %v818
      %1656 = vmatprep.subr.bf16.mxu0 %v821
      %1657 = vmatpush1.bf16.msra.mxu0 %v820
      %1658 = vmatprep.subr.bf16.mxu0 %v823
      %1659 = vmatpush1.bf16.msra.mxu0 %v822
      %1660 = vmatprep.subr.bf16.mxu0 %v825
      %1661 = vmatpush1.bf16.msra.mxu0 %v824
      %1662 = vmatprep.subr.bf16.mxu0 %v827
      %1663 = vmatpush1.bf16.msra.mxu0 %v826
      %1664 = vmatprep.subr.bf16.mxu0 %v829
      %1665 = vmatpush1.bf16.msra.mxu0 %v828
      %1666 = vmatprep.subr.bf16.mxu0 %v831
      %1667 = vmatpush1.bf16.msra.mxu0 %v830
      %1668 = vmatprep.subr.bf16.mxu0 %v833
      %1669 = vmatpush1.bf16.msra.mxu0 %v832
      %1670 = vmatprep.subr.bf16.mxu0 %v835
      %1671 = vmatpush1.bf16.msra.mxu0 %v834
      %1672 = vmatprep.mubr.bf16.mxu0 %v1623
      %1673 = vmatmul.mubr.bf16.gmra.mrb[0].mxu0 %v1622
      %v1674 = vpop.f32.mrb[0].mxu0
      %v1675 = vadd.f32 0.0, %v1674
      %v1676 = vpop.f32.mrb[0].mxu0
      %v1677 = vadd.f32 0.0, %v1676
      %v1678 = vpop.f32.mrb[0].mxu0
      %v1679 = vadd.f32 0.0, %v1678
      %v1680 = vpop.f32.mrb[0].mxu0
      %v1681 = vadd.f32 0.0, %v1680
      %1682 = vdwg.mxu0
      %1683 = vmatprep.subr.bf16.mxu0 %v837
      %1684 = vmatpush1.bf16.msra.mxu0 %v836
      %1685 = vmatprep.subr.bf16.mxu0 %v839
      %1686 = vmatpush1.bf16.msra.mxu0 %v838
      %1687 = vmatprep.subr.bf16.mxu0 %v841
      %1688 = vmatpush1.bf16.msra.mxu0 %v840
      %1689 = vmatprep.subr.bf16.mxu0 %v843
      %1690 = vmatpush1.bf16.msra.mxu0 %v842
      %1691 = vmatprep.subr.bf16.mxu0 %v845
      %1692 = vmatpush1.bf16.msra.mxu0 %v844
      %1693 = vmatprep.subr.bf16.mxu0 %v847
      %1694 = vmatpush1.bf16.msra.mxu0 %v846
      %1695 = vmatprep.subr.bf16.mxu0 %v849
      %1696 = vmatpush1.bf16.msra.mxu0 %v848
      %1697 = vmatprep.subr.bf16.mxu0 %v851
      %1698 = vmatpush1.bf16.msra.mxu0 %v850
      %1699 = vmatprep.subr.bf16.mxu0 %v853
      %1700 = vmatpush1.bf16.msra.mxu0 %v852
      %1701 = vmatprep.subr.bf16.mxu0 %v855
      %1702 = vmatpush1.bf16.msra.mxu0 %v854
      %1703 = vmatprep.subr.bf16.mxu0 %v857
      %1704 = vmatpush1.bf16.msra.mxu0 %v856
      %1705 = vmatprep.subr.bf16.mxu0 %v859
      %1706 = vmatpush1.bf16.msra.mxu0 %v858
      %1707 = vmatprep.subr.bf16.mxu0 %v861
      %1708 = vmatpush1.bf16.msra.mxu0 %v860
      %1709 = vmatprep.subr.bf16.mxu0 %v863
      %1710 = vmatpush1.bf16.msra.mxu0 %v862
      %1711 = vmatprep.subr.bf16.mxu0 %v865
      %1712 = vmatpush1.bf16.msra.mxu0 %v864
      %1713 = vmatprep.subr.bf16.mxu0 %v867
      %1714 = vmatpush1.bf16.msra.mxu0 %v866
      %1715 = vmatprep.mubr.bf16.mxu0 %v1625
      %1716 = vmatmul.mubr.bf16.gmra.mrb[0].mxu0 %v1624
      %v1717 = vpop.f32.mrb[0].mxu0
      %v1718 = vadd.f32 %v1675, %v1717
      %v1719 = vpop.f32.mrb[0].mxu0
      %v1720 = vadd.f32 %v1677, %v1719
      %v1721 = vpop.f32.mrb[0].mxu0
      %v1722 = vadd.f32 %v1679, %v1721
      %v1723 = vpop.f32.mrb[0].mxu0
      %v1724 = vadd.f32 %v1681, %v1723
      %1725 = vdwg.mxu0
      %1726 = vmatprep.subr.bf16.mxu0 %v869
      %1727 = vmatpush1.bf16.msra.mxu0 %v868
      %1728 = vmatprep.subr.bf16.mxu0 %v871
      %1729 = vmatpush1.bf16.msra.mxu0 %v870
      %1730 = vmatprep.subr.bf16.mxu0 %v873
      %1731 = vmatpush1.bf16.msra.mxu0 %v872
      %1732 = vmatprep.subr.bf16.mxu0 %v875
      %1733 = vmatpush1.bf16.msra.mxu0 %v874
      %1734 = vmatprep.subr.bf16.mxu0 %v877
      %1735 = vmatpush1.bf16.msra.mxu0 %v876
      %1736 = vmatprep.subr.bf16.mxu0 %v879
      %1737 = vmatpush1.bf16.msra.mxu0 %v878
      %1738 = vmatprep.subr.bf16.mxu0 %v881
      %1739 = vmatpush1.bf16.msra.mxu0 %v880
      %1740 = vmatprep.subr.bf16.mxu0 %v883
      %1741 = vmatpush1.bf16.msra.mxu0 %v882
      %1742 = vmatprep.subr.bf16.mxu0 %v885
      %1743 = vmatpush1.bf16.msra.mxu0 %v884
      %1744 = vmatprep.subr.bf16.mxu0 %v887
      %1745 = vmatpush1.bf16.msra.mxu0 %v886
      %1746 = vmatprep.subr.bf16.mxu0 %v889
      %1747 = vmatpush1.bf16.msra.mxu0 %v888
      %1748 = vmatprep.subr.bf16.mxu0 %v891
      %1749 = vmatpush1.bf16.msra.mxu0 %v890
      %1750 = vmatprep.subr.bf16.mxu0 %v893
      %1751 = vmatpush1.bf16.msra.mxu0 %v892
      %1752 = vmatprep.subr.bf16.mxu0 %v895
      %1753 = vmatpush1.bf16.msra.mxu0 %v894
      %1754 = vmatprep.subr.bf16.mxu0 %v897
      %1755 = vmatpush1.bf16.msra.mxu0 %v896
      %1756 = vmatprep.subr.bf16.mxu0 %v899
      %1757 = vmatpush1.bf16.msra.mxu0 %v898
      %1758 = vmatprep.mubr.bf16.mxu0 %v1627
      %1759 = vmatmul.mubr.bf16.gmra.mrb[0].mxu0 %v1626
      %v1760 = vpop.f32.mrb[0].mxu0
      %v1761 = vadd.f32 %v1718, %v1760
      %v1762 = vpop.f32.mrb[0].mxu0
      %v1763 = vadd.f32 %v1720, %v1762
      %v1764 = vpop.f32.mrb[0].mxu0
      %v1765 = vadd.f32 %v1722, %v1764
      %v1766 = vpop.f32.mrb[0].mxu0
      %v1767 = vadd.f32 %v1724, %v1766
      %1768 = vdwg.mxu0
      %1769 = vmatprep.subr.bf16.mxu0 %v901
      %1770 = vmatpush1.bf16.msra.mxu0 %v900
      %1771 = vmatprep.subr.bf16.mxu0 %v903
      %1772 = vmatpush1.bf16.msra.mxu0 %v902
      %1773 = vmatprep.subr.bf16.mxu0 %v905
      %1774 = vmatpush1.bf16.msra.mxu0 %v904
      %1775 = vmatprep.subr.bf16.mxu0 %v907
      %1776 = vmatpush1.bf16.msra.mxu0 %v906
      %1777 = vmatprep.subr.bf16.mxu0 %v909
      %1778 = vmatpush1.bf16.msra.mxu0 %v908
      %1779 = vmatprep.subr.bf16.mxu0 %v911
      %1780 = vmatpush1.bf16.msra.mxu0 %v910
      %1781 = vmatprep.subr.bf16.mxu0 %v913
      %1782 = vmatpush1.bf16.msra.mxu0 %v912
      %1783 = vmatprep.subr.bf16.mxu0 %v915
      %1784 = vmatpush1.bf16.msra.mxu0 %v914
      %1785 = vmatprep.subr.bf16.mxu0 %v917
      %1786 = vmatpush1.bf16.msra.mxu0 %v916
      %1787 = vmatprep.subr.bf16.mxu0 %v919
      %1788 = vmatpush1.bf16.msra.mxu0 %v918
      %1789 = vmatprep.subr.bf16.mxu0 %v921
      %1790 = vmatpush1.bf16.msra.mxu0 %v920
      %1791 = vmatprep.subr.bf16.mxu0 %v923
      %1792 = vmatpush1.bf16.msra.mxu0 %v922
      %1793 = vmatprep.subr.bf16.mxu0 %v925
      %1794 = vmatpush1.bf16.msra.mxu0 %v924
      %1795 = vmatprep.subr.bf16.mxu0 %v927
      %1796 = vmatpush1.bf16.msra.mxu0 %v926
      %1797 = vmatprep.subr.bf16.mxu0 %v929
      %1798 = vmatpush1.bf16.msra.mxu0 %v928
      %1799 = vmatprep.subr.bf16.mxu0 %v931
      %1800 = vmatpush1.bf16.msra.mxu0 %v930
      %1801 = vmatprep.mubr.bf16.mxu0 %v1629
      %1802 = vmatmul.mubr.bf16.gmra.mrb[0].mxu0 %v1628
      %v1803 = vpop.f32.mrb[0].mxu0
      %v1804 = vadd.f32 %v1761, %v1803
      %v1805 = vpop.f32.mrb[0].mxu0
      %v1806 = vadd.f32 %v1763, %v1805
      %v1807 = vpop.f32.mrb[0].mxu0
      %v1808 = vadd.f32 %v1765, %v1807
      %v1809 = vpop.f32.mrb[0].mxu0
      %v1810 = vadd.f32 %v1767, %v1809
      %1811 = vdwg.mxu0
      %1812 = vmatprep.subr.bf16.mxu0 %v933
      %1813 = vmatpush1.bf16.msra.mxu0 %v932
      %1814 = vmatprep.subr.bf16.mxu0 %v935
      %1815 = vmatpush1.bf16.msra.mxu0 %v934
      %1816 = vmatprep.subr.bf16.mxu0 %v937
      %1817 = vmatpush1.bf16.msra.mxu0 %v936
      %1818 = vmatprep.subr.bf16.mxu0 %v939
      %1819 = vmatpush1.bf16.msra.mxu0 %v938
      %1820 = vmatprep.subr.bf16.mxu0 %v941
      %1821 = vmatpush1.bf16.msra.mxu0 %v940
      %1822 = vmatprep.subr.bf16.mxu0 %v943
      %1823 = vmatpush1.bf16.msra.mxu0 %v942
      %1824 = vmatprep.subr.bf16.mxu0 %v945
      %1825 = vmatpush1.bf16.msra.mxu0 %v944
      %1826 = vmatprep.subr.bf16.mxu0 %v947
      %1827 = vmatpush1.bf16.msra.mxu0 %v946
      %1828 = vmatprep.subr.bf16.mxu0 0
      %1829 = vmatpush1.bf16.msra.mxu0 0
      %1830 = vmatprep.subr.bf16.mxu0 0
      %1831 = vmatpush1.bf16.msra.mxu0 0
      %1832 = vmatprep.subr.bf16.mxu0 0
      %1833 = vmatpush1.bf16.msra.mxu0 0
      %1834 = vmatprep.subr.bf16.mxu0 0
      %1835 = vmatpush1.bf16.msra.mxu0 0
      %1836 = vmatprep.subr.bf16.mxu0 0
      %1837 = vmatpush1.bf16.msra.mxu0 0
      %1838 = vmatprep.subr.bf16.mxu0 0
      %1839 = vmatpush1.bf16.msra.mxu0 0
      %1840 = vmatprep.subr.bf16.mxu0 0
      %1841 = vmatpush1.bf16.msra.mxu0 0
      %1842 = vmatprep.subr.bf16.mxu0 0
      %1843 = vmatpush1.bf16.msra.mxu0 0
      %1844 = vmatprep.mubr.bf16.mxu0 0
      %1845 = vmatmul.mubr.bf16.gmra.mrb[0].mxu0 %v1630
      %v1846 = vpop.f32.mrb[0].mxu0
      %v1847 = vadd.f32 %v1804, %v1846
      %v1848 = vpop.f32.mrb[0].mxu0
      %v1849 = vadd.f32 %v1806, %v1848
      %v1850 = vpop.f32.mrb[0].mxu0
      %v1851 = vadd.f32 %v1808, %v1850
      %v1852 = vpop.f32.mrb[0].mxu0
      %v1853 = vadd.f32 %v1810, %v1852
      %1854 = vdwg.mxu0
      %v1855 = vmax.f32 %v1579, %v1847
      %v1856 = vmax.f32 %v1580, %v1849
      %v1857 = vmax.f32 %v1581, %v1851
      %v1858 = vmax.f32 %v1582, %v1853
      %s1859 = scalar_lea.vmem %s165, 216
      %v1860 = vld [vmem:[%s1859] sm:$0xff]
      %v1861 = vld [vmem:[%s1859 + $0x8] sm:$0xff]
      %v1862 = vld [vmem:[%s1859 + $0x10] sm:$0xff]
      %v1863 = vld [vmem:[%s1859 + $0x18] sm:$0xff]
      %v1864 = vld [vmem:[%s1859 + $0x20] sm:$0xf]
      %v1865 = vld [vmem:[%s1859 + $0x24] sm:$0xff]
      %v1866 = vld [vmem:[%s1859 + $0x2c] sm:$0xff]
      %v1867 = vld [vmem:[%s1859 + $0x34] sm:$0xff]
      %v1868 = vld [vmem:[%s1859 + $0x3c] sm:$0xff]
      %v1869 = vld [vmem:[%s1859 + $0x44] sm:$0xf]
      %v1880 = vunpack.c.l.b16 %v1860
      %v1881 = vunpack.c.h.b16 %v1860
      %v1882 = vunpack.c.l.b16 %v1861
      %v1883 = vunpack.c.h.b16 %v1861
      %v1884 = vunpack.c.l.b16 %v1862
      %v1885 = vunpack.c.h.b16 %v1862
      %v1886 = vunpack.c.l.b16 %v1863
      %v1887 = vunpack.c.h.b16 %v1863
      %v1888 = vunpack.c.l.b16 %v1864
      %v1889 = vunpack.c.l.b16 %v1865
      %v1890 = vunpack.c.h.b16 %v1865
      %v1891 = vunpack.c.l.b16 %v1866
      %v1892 = vunpack.c.h.b16 %v1866
      %v1893 = vunpack.c.l.b16 %v1867
      %v1894 = vunpack.c.h.b16 %v1867
      %v1895 = vunpack.c.l.b16 %v1868
      %v1896 = vunpack.c.h.b16 %v1868
      %v1897 = vunpack.c.l.b16 %v1869
      %v1898 = vpack.c.b16 %v1889, %v1880
      %v1899 = vpack.c.b16 %v1890, %v1881
      %v1900 = vpack.c.b16 %v1891, %v1882
      %v1901 = vpack.c.b16 %v1892, %v1883
      %v1902 = vpack.c.b16 %v1893, %v1884
      %v1903 = vpack.c.b16 %v1894, %v1885
      %v1904 = vpack.c.b16 %v1895, %v1886
      %v1905 = vpack.c.b16 %v1896, %v1887
      %v1906 = vpack.c.b16 %v1897, %v1888
      %1916 = vmatprep.subr.bf16.mxu0 %v805
      %1917 = vmatpush1.bf16.msra.mxu0 %v804
      %1918 = vmatprep.subr.bf16.mxu0 %v807
      %1919 = vmatpush1.bf16.msra.mxu0 %v806
      %1920 = vmatprep.subr.bf16.mxu0 %v809
      %1921 = vmatpush1.bf16.msra.mxu0 %v808
      %1922 = vmatprep.subr.bf16.mxu0 %v811
      %1923 = vmatpush1.bf16.msra.mxu0 %v810
      %1924 = vmatprep.subr.bf16.mxu0 %v813
      %1925 = vmatpush1.bf16.msra.mxu0 %v812
      %1926 = vmatprep.subr.bf16.mxu0 %v815
      %1927 = vmatpush1.bf16.msra.mxu0 %v814
      %1928 = vmatprep.subr.bf16.mxu0 %v817
      %1929 = vmatpush1.bf16.msra.mxu0 %v816
      %1930 = vmatprep.subr.bf16.mxu0 %v819
      %1931 = vmatpush1.bf16.msra.mxu0 %v818
      %1932 = vmatprep.subr.bf16.mxu0 %v821
      %1933 = vmatpush1.bf16.msra.mxu0 %v820
      %1934 = vmatprep.subr.bf16.mxu0 %v823
      %1935 = vmatpush1.bf16.msra.mxu0 %v822
      %1936 = vmatprep.subr.bf16.mxu0 %v825
      %1937 = vmatpush1.bf16.msra.mxu0 %v824
      %1938 = vmatprep.subr.bf16.mxu0 %v827
      %1939 = vmatpush1.bf16.msra.mxu0 %v826
      %1940 = vmatprep.subr.bf16.mxu0 %v829
      %1941 = vmatpush1.bf16.msra.mxu0 %v828
      %1942 = vmatprep.subr.bf16.mxu0 %v831
      %1943 = vmatpush1.bf16.msra.mxu0 %v830
      %1944 = vmatprep.subr.bf16.mxu0 %v833
      %1945 = vmatpush1.bf16.msra.mxu0 %v832
      %1946 = vmatprep.subr.bf16.mxu0 %v835
      %1947 = vmatpush1.bf16.msra.mxu0 %v834
      %1948 = vmatprep.mubr.bf16.mxu0 %v1899
      %1949 = vmatmul.mubr.bf16.gmra.mrb[0].mxu0 %v1898
      %v1950 = vpop.f32.mrb[0].mxu0
      %v1951 = vadd.f32 0.0, %v1950
      %v1952 = vpop.f32.mrb[0].mxu0
      %v1953 = vadd.f32 0.0, %v1952
      %v1954 = vpop.f32.mrb[0].mxu0
      %v1955 = vadd.f32 0.0, %v1954
      %v1956 = vpop.f32.mrb[0].mxu0
      %v1957 = vadd.f32 0.0, %v1956
      %1958 = vdwg.mxu0
      %1959 = vmatprep.subr.bf16.mxu0 %v837
      %1960 = vmatpush1.bf16.msra.mxu0 %v836
      %1961 = vmatprep.subr.bf16.mxu0 %v839
      %1962 = vmatpush1.bf16.msra.mxu0 %v838
      %1963 = vmatprep.subr.bf16.mxu0 %v841
      %1964 = vmatpush1.bf16.msra.mxu0 %v840
      %1965 = vmatprep.subr.bf16.mxu0 %v843
      %1966 = vmatpush1.bf16.msra.mxu0 %v842
      %1967 = vmatprep.subr.bf16.mxu0 %v845
      %1968 = vmatpush1.bf16.msra.mxu0 %v844
      %1969 = vmatprep.subr.bf16.mxu0 %v847
      %1970 = vmatpush1.bf16.msra.mxu0 %v846
      %1971 = vmatprep.subr.bf16.mxu0 %v849
      %1972 = vmatpush1.bf16.msra.mxu0 %v848
      %1973 = vmatprep.subr.bf16.mxu0 %v851
      %1974 = vmatpush1.bf16.msra.mxu0 %v850
      %1975 = vmatprep.subr.bf16.mxu0 %v853
      %1976 = vmatpush1.bf16.msra.mxu0 %v852
      %1977 = vmatprep.subr.bf16.mxu0 %v855
      %1978 = vmatpush1.bf16.msra.mxu0 %v854
      %1979 = vmatprep.subr.bf16.mxu0 %v857
      %1980 = vmatpush1.bf16.msra.mxu0 %v856
      %1981 = vmatprep.subr.bf16.mxu0 %v859
      %1982 = vmatpush1.bf16.msra.mxu0 %v858
      %1983 = vmatprep.subr.bf16.mxu0 %v861
      %1984 = vmatpush1.bf16.msra.mxu0 %v860
      %1985 = vmatprep.subr.bf16.mxu0 %v863
      %1986 = vmatpush1.bf16.msra.mxu0 %v862
      %1987 = vmatprep.subr.bf16.mxu0 %v865
      %1988 = vmatpush1.bf16.msra.mxu0 %v864
      %1989 = vmatprep.subr.bf16.mxu0 %v867
      %1990 = vmatpush1.bf16.msra.mxu0 %v866
      %1991 = vmatprep.mubr.bf16.mxu0 %v1901
      %1992 = vmatmul.mubr.bf16.gmra.mrb[0].mxu0 %v1900
      %v1993 = vpop.f32.mrb[0].mxu0
      %v1994 = vadd.f32 %v1951, %v1993
      %v1995 = vpop.f32.mrb[0].mxu0
      %v1996 = vadd.f32 %v1953, %v1995
      %v1997 = vpop.f32.mrb[0].mxu0
      %v1998 = vadd.f32 %v1955, %v1997
      %v1999 = vpop.f32.mrb[0].mxu0
      %v2000 = vadd.f32 %v1957, %v1999
      %2001 = vdwg.mxu0
      %2002 = vmatprep.subr.bf16.mxu0 %v869
      %2003 = vmatpush1.bf16.msra.mxu0 %v868
      %2004 = vmatprep.subr.bf16.mxu0 %v871
      %2005 = vmatpush1.bf16.msra.mxu0 %v870
      %2006 = vmatprep.subr.bf16.mxu0 %v873
      %2007 = vmatpush1.bf16.msra.mxu0 %v872
      %2008 = vmatprep.subr.bf16.mxu0 %v875
      %2009 = vmatpush1.bf16.msra.mxu0 %v874
      %2010 = vmatprep.subr.bf16.mxu0 %v877
      %2011 = vmatpush1.bf16.msra.mxu0 %v876
      %2012 = vmatprep.subr.bf16.mxu0 %v879
      %2013 = vmatpush1.bf16.msra.mxu0 %v878
      %2014 = vmatprep.subr.bf16.mxu0 %v881
      %2015 = vmatpush1.bf16.msra.mxu0 %v880
      %2016 = vmatprep.subr.bf16.mxu0 %v883
      %2017 = vmatpush1.bf16.msra.mxu0 %v882
      %2018 = vmatprep.subr.bf16.mxu0 %v885
      %2019 = vmatpush1.bf16.msra.mxu0 %v884
      %2020 = vmatprep.subr.bf16.mxu0 %v887
      %2021 = vmatpush1.bf16.msra.mxu0 %v886
      %2022 = vmatprep.subr.bf16.mxu0 %v889
      %2023 = vmatpush1.bf16.msra.mxu0 %v888
      %2024 = vmatprep.subr.bf16.mxu0 %v891
      %2025 = vmatpush1.bf16.msra.mxu0 %v890
      %2026 = vmatprep.subr.bf16.mxu0 %v893
      %2027 = vmatpush1.bf16.msra.mxu0 %v892
      %2028 = vmatprep.subr.bf16.mxu0 %v895
      %2029 = vmatpush1.bf16.msra.mxu0 %v894
      %2030 = vmatprep.subr.bf16.mxu0 %v897
      %2031 = vmatpush1.bf16.msra.mxu0 %v896
      %2032 = vmatprep.subr.bf16.mxu0 %v899
      %2033 = vmatpush1.bf16.msra.mxu0 %v898
      %2034 = vmatprep.mubr.bf16.mxu0 %v1903
      %2035 = vmatmul.mubr.bf16.gmra.mrb[0].mxu0 %v1902
      %v2036 = vpop.f32.mrb[0].mxu0
      %v2037 = vadd.f32 %v1994, %v2036
      %v2038 = vpop.f32.mrb[0].mxu0
      %v2039 = vadd.f32 %v1996, %v2038
      %v2040 = vpop.f32.mrb[0].mxu0
      %v2041 = vadd.f32 %v1998, %v2040
      %v2042 = vpop.f32.mrb[0].mxu0
      %v2043 = vadd.f32 %v2000, %v2042
      %2044 = vdwg.mxu0
      %2045 = vmatprep.subr.bf16.mxu0 %v901
      %2046 = vmatpush1.bf16.msra.mxu0 %v900
      %2047 = vmatprep.subr.bf16.mxu0 %v903
      %2048 = vmatpush1.bf16.msra.mxu0 %v902
      %2049 = vmatprep.subr.bf16.mxu0 %v905
      %2050 = vmatpush1.bf16.msra.mxu0 %v904
      %2051 = vmatprep.subr.bf16.mxu0 %v907
      %2052 = vmatpush1.bf16.msra.mxu0 %v906
      %2053 = vmatprep.subr.bf16.mxu0 %v909
      %2054 = vmatpush1.bf16.msra.mxu0 %v908
      %2055 = vmatprep.subr.bf16.mxu0 %v911
      %2056 = vmatpush1.bf16.msra.mxu0 %v910
      %2057 = vmatprep.subr.bf16.mxu0 %v913
      %2058 = vmatpush1.bf16.msra.mxu0 %v912
      %2059 = vmatprep.subr.bf16.mxu0 %v915
      %2060 = vmatpush1.bf16.msra.mxu0 %v914
      %2061 = vmatprep.subr.bf16.mxu0 %v917
      %2062 = vmatpush1.bf16.msra.mxu0 %v916
      %2063 = vmatprep.subr.bf16.mxu0 %v919
      %2064 = vmatpush1.bf16.msra.mxu0 %v918
      %2065 = vmatprep.subr.bf16.mxu0 %v921
      %2066 = vmatpush1.bf16.msra.mxu0 %v920
      %2067 = vmatprep.subr.bf16.mxu0 %v923
      %2068 = vmatpush1.bf16.msra.mxu0 %v922
      %2069 = vmatprep.subr.bf16.mxu0 %v925
      %2070 = vmatpush1.bf16.msra.mxu0 %v924
      %2071 = vmatprep.subr.bf16.mxu0 %v927
      %2072 = vmatpush1.bf16.msra.mxu0 %v926
      %2073 = vmatprep.subr.bf16.mxu0 %v929
      %2074 = vmatpush1.bf16.msra.mxu0 %v928
      %2075 = vmatprep.subr.bf16.mxu0 %v931
      %2076 = vmatpush1.bf16.msra.mxu0 %v930
      %2077 = vmatprep.mubr.bf16.mxu0 %v1905
      %2078 = vmatmul.mubr.bf16.gmra.mrb[0].mxu0 %v1904
      %v2079 = vpop.f32.mrb[0].mxu0
      %v2080 = vadd.f32 %v2037, %v2079
      %v2081 = vpop.f32.mrb[0].mxu0
      %v2082 = vadd.f32 %v2039, %v2081
      %v2083 = vpop.f32.mrb[0].mxu0
      %v2084 = vadd.f32 %v2041, %v2083
      %v2085 = vpop.f32.mrb[0].mxu0
      %v2086 = vadd.f32 %v2043, %v2085
      %2087 = vdwg.mxu0
      %2088 = vmatprep.subr.bf16.mxu0 %v933
      %2089 = vmatpush1.bf16.msra.mxu0 %v932
      %2090 = vmatprep.subr.bf16.mxu0 %v935
      %2091 = vmatpush1.bf16.msra.mxu0 %v934
      %2092 = vmatprep.subr.bf16.mxu0 %v937
      %2093 = vmatpush1.bf16.msra.mxu0 %v936
      %2094 = vmatprep.subr.bf16.mxu0 %v939
      %2095 = vmatpush1.bf16.msra.mxu0 %v938
      %2096 = vmatprep.subr.bf16.mxu0 %v941
      %2097 = vmatpush1.bf16.msra.mxu0 %v940
      %2098 = vmatprep.subr.bf16.mxu0 %v943
      %2099 = vmatpush1.bf16.msra.mxu0 %v942
      %2100 = vmatprep.subr.bf16.mxu0 %v945
      %2101 = vmatpush1.bf16.msra.mxu0 %v944
      %2102 = vmatprep.subr.bf16.mxu0 %v947
      %2103 = vmatpush1.bf16.msra.mxu0 %v946
      %2104 = vmatprep.subr.bf16.mxu0 0
      %2105 = vmatpush1.bf16.msra.mxu0 0
      %2106 = vmatprep.subr.bf16.mxu0 0
      %2107 = vmatpush1.bf16.msra.mxu0 0
      %2108 = vmatprep.subr.bf16.mxu0 0
      %2109 = vmatpush1.bf16.msra.mxu0 0
      %2110 = vmatprep.subr.bf16.mxu0 0
      %2111 = vmatpush1.bf16.msra.mxu0 0
      %2112 = vmatprep.subr.bf16.mxu0 0
      %2113 = vmatpush1.bf16.msra.mxu0 0
      %2114 = vmatprep.subr.bf16.mxu0 0
      %2115 = vmatpush1.bf16.msra.mxu0 0
      %2116 = vmatprep.subr.bf16.mxu0 0
      %2117 = vmatpush1.bf16.msra.mxu0 0
      %2118 = vmatprep.subr.bf16.mxu0 0
      %2119 = vmatpush1.bf16.msra.mxu0 0
      %2120 = vmatprep.mubr.bf16.mxu0 0
      %2121 = vmatmul.mubr.bf16.gmra.mrb[0].mxu0 %v1906
      %v2122 = vpop.f32.mrb[0].mxu0
      %v2123 = vadd.f32 %v2080, %v2122
      %v2124 = vpop.f32.mrb[0].mxu0
      %v2125 = vadd.f32 %v2082, %v2124
      %v2126 = vpop.f32.mrb[0].mxu0
      %v2127 = vadd.f32 %v2084, %v2126
      %v2128 = vpop.f32.mrb[0].mxu0
      %v2129 = vadd.f32 %v2086, %v2128
      %2130 = vdwg.mxu0
      %v2131 = vmax.f32 %v1855, %v2123
      %v2132 = vmax.f32 %v1856, %v2125
      %v2133 = vmax.f32 %v1857, %v2127
      %v2134 = vmax.f32 %v1858, %v2129
      %v2135 = vld [vmem:[%s2] sm:$0x3]
      %v2137 = vlaneseq
      %v2138 = vshrl.u32 %v2137, 7
      %v2139 = vsub.s32 0, %v2138
      %v2140 = vrot.slane %v2135, %v2139
      %v2141 = vlaneseq
      %v2142 = vshrl.u32 %v2141, 7
      %v2143 = vsub.s32 1, %v2142
      %v2144 = vrot.slane %v2135, %v2143
      %v2147 = vadd.f32 %v2131, %v2140
      %v2148 = vadd.f32 %v2132, %v2144
      %v2149 = vadd.f32 %v2133, %v2140
      %v2150 = vadd.f32 %v2134, %v2144
      %v2151 = vmax.f32 %v2147, 0.0
      %v2152 = vmax.f32 %v2148, 0.0
      %v2153 = vmax.f32 %v2149, 0.0
      %v2154 = vmax.f32 %v2150, 0.0
      %v2155 = vpack.c.bf16 %v2153, %v2151
      %v2156 = vpack.c.bf16 %v2154, %v2152
      %v2159 = vunpack.c.l.b16 %v2155
      %v2160 = vunpack.c.l.b16 %v2156
      %v2161 = vunpack.c.h.b16 %v2155
      %v2162 = vunpack.c.h.b16 %v2156
      %v2163 = vpack.c.b16 %v2160, %v2159
      %v2164 = vpack.c.b16 %v2162, %v2161
      %2167 = vst [vmem:[%s170] sm:$0xff] %v2163
      %2168 = vst [vmem:[%s170 + $0x8] sm:$0xff] %v2164
      %p2169 = scmp.lt.s32.totalorder %s14, 1
      %s2170 = scalar_select %p2169, %s14, 1
      %s2171 = smul.addr %s2170, 4
      %s2172 = smul.addr %s2171, 4
      %s2173 = scalar_lea.vmem %s3, %s2172
      // Predicated region
      $region33: #{forward.6} parent=31 // pred_check
        %p2174 = pneg %p100
      $region34: #{forward.6} parent=31 // pred_check_branch
        %2176 = sbr.rel (%p2174) target = $region36
      $region35: #{forward.6} parent=31 // pred_region
        _
      $region36: #{forward.6} parent=31 // pred_fallthru
        _
    $region32: #{forward.6} parent=5 // pred_fallthru
      _
    %p2177 = scmp.le.s32.totalorder 2, %s9
    // Predicated region
    $region37: #{forward.6} parent=5 // pred_check
      %p2178 = pneg %p2177
    $region38: #{forward.6} parent=5 // pred_check_branch
      %2180 = sbr.rel (%p2178) target = $region40
    $region39: #{forward.6} parent=5 // pred_region
      %s2181 = ssub.s32 %s9, 2
      // Predicated region
      $region41: #{forward.6} parent=39 // pred_check
        %p2182 = pneg %p106
      $region42: #{forward.6} parent=39 // pred_check_branch
        %2184 = sbr.rel (%p2182) target = $region44
      $region43: #{forward.6} parent=39 // pred_region
        %p2185 = scmp.lt.s32.totalorder %s15, 1
        %s2186 = scalar_select %p2185, %s15, 1
        %s2187 = smul.addr %s2186, 4
        %s2188 = smul.addr %s2187, 4
        %s2189 = scalar_lea.vmem %s3, %s2188
      $region44: #{forward.6} parent=39 // pred_fallthru
        _
    $region40: #{forward.6} parent=5 // pred_fallthru
      _
  $region6: #{forward.6} parent=0 // loop_footer
    %s13 = sadd.s32 1, %s9
  $region7: #{forward.6} parent=0 // loop_footer_branch
    %8 = sbr.rel target = $region3
  $region8: #{forward.6} parent=0 // loop_exit
    _

// kernel: forward.7
$region0: #{forward.7}
  #allocation0 [shape = 'u32[]', space=smem, size = 0x4, offset = 0x4, fixed_abs, tag = 'smem constant byte address 0x4 - core index']
  #allocation1 [shape = 'u32[144,128]{1,0:T(1,128)}', space=vmem, size = 0x12000, scoped, tag = 'internal scratch']
  #allocation2 [shape = 'f32[2,256]{1,0:T(2,128)}', space=vmem, size = 0x800, scoped, tag = 'scratch operand']
  %s0 = inlined_call_operand.vmem [shape: bf16[2,4096], index: 0, kind: input, shape index: {}]
  %s1 = inlined_call_operand.vmem [shape: bf16[4096,512], index: 1, kind: input, shape index: {}]
  %s2 = inlined_call_operand.vmem [shape: f32[1,512], index: 2, kind: input, shape index: {}]
  %s3 = inlined_call_operand.vmem [shape: bf16[512,1024], index: 3, kind: input, shape index: {}]
  %s4 = inlined_call_operand.vmem [shape: f32[2,2,1024], index: 4, kind: output, shape index: {}]
  %s5 = sld [smem:[#allocation0]]
  $region95: #{forward.7} parent=0
    _
  %s7 = ssub.s32 1, %s5
  %s8 = scalar_select 0, %s7, %s5
  $region1: #{forward.7} parent=0
    #allocation3 [shape = 'u8[1048576]{0}', space=vmem, size = 0x100000, scoped, tag = 'input window, operand 1']
    loop: start=0, step=1, limit=10
    $region2: #{forward.7} parent=1 // loop_pre_header
      _
    $region3: #{forward.7} parent=1 // loop_header
      %s10 = sphi 0, %s14
      %p11 = scmp.ge.s32.totalorder %s10, 10
      %s17 = sphi 0, %s29
      %s18 = sphi 0, %s25
      %s19 = sphi 0, %s17
      %s20 = sphi 0, %s18
      %s21 = sphi 0, %s19
      %s22 = sphi 0, %s20
      %s32 = sphi 0, %s34
      %s35 = sphi 0, %s32
      %s36 = sphi 0, %s35
      %s52 = sphi 0, %s36
      %s60 = sphi 0, %s62
      %s63 = sphi 0, %s60
      %s64 = sphi 0, %s63
      %s80 = sphi 0, %s64
      %s86 = sphi 0, %s88
      %s89 = sphi 0, %s86
      %s90 = sphi 0, %s89
      %s106 = sphi 0, %s90
      %s112 = sphi 0, %s114
      %s115 = sphi 0, %s112
      %s116 = sphi 0, %s115
      %s132 = sphi 0, %s116
      %s138 = sphi 0, %s140
      %s141 = sphi 0, %s138
      %s142 = sphi 0, %s141
      %s158 = sphi 0, %s142
    $region4: #{forward.7} parent=1 // loop_header_branch
      %13 = sbr.rel (%p11) target = $region8
    $region5: #{forward.7} parent=1 // loop_body
      %s15 = ssub.s32 %s10, 1
      %s16 = ssub.s32 %s10, 2
      %s23 = sadd.s32 1, %s18
      %p24 = scmp.ge.s32.totalorder %s23, 4
      %s25 = scalar_select %p24, 0, %s23
      %s26 = sadd.s32 1, %s17
      %s27 = scalar_select %p24, %s26, %s17
      %p28 = scmp.ge.s32.totalorder %s27, 2
      %s29 = scalar_select %p28, 0, %s27
      %s30 = ssub.s32 %s18, %s25
      %p31 = scmp.eq.s32.totalorder %s30, 0
      %s33 = sadd.s32 %s32, 1
      %s34 = scalar_select %p31, %s32, %s33
      %p37 = pneg %p31
      %p38 = scmp.eq.s32.totalorder %s10, 7
      %p39 = por %p37, %p38
      %p40 = scmp.ne.s32.totalorder %s32, %s35
      %p41 = scmp.eq.s32.totalorder %s10, 0
      %p42 = por %p40, %p41
      %p43 = scmp.ne.s32.totalorder %s32, %s35
      %p44 = scmp.eq.s32.totalorder %s15, 7
      %p45 = por %p43, %p44
      %p46 = scmp.ne.s32.totalorder %s35, %s36
      %p47 = scmp.eq.s32.totalorder %s15, 0
      %p48 = por %p46, %p47
      %p49 = scmp.ne.s32.totalorder %s35, %s36
      %p50 = scmp.eq.s32.totalorder %s16, 7
      %p51 = por %p49, %p50
      %p53 = scmp.ne.s32.totalorder %s36, %s52
      %p54 = scmp.eq.s32.totalorder %s16, 0
      %p55 = por %p53, %p54
      %s56 = ssub.s32 %s18, %s25
      %s57 = ssub.s32 %s17, %s29
      %s58 = sor.u32 %s56, %s57
      %p59 = scmp.eq.s32.totalorder %s58, 0
      %s61 = sadd.s32 %s60, 1
      %s62 = scalar_select %p59, %s60, %s61
      %p65 = pneg %p59
      %p66 = scmp.eq.s32.totalorder %s10, 7
      %p67 = por %p65, %p66
      %p68 = scmp.ne.s32.totalorder %s60, %s63
      %p69 = scmp.eq.s32.totalorder %s10, 0
      %p70 = por %p68, %p69
      %p71 = scmp.ne.s32.totalorder %s60, %s63
      %p72 = scmp.eq.s32.totalorder %s15, 7
      %p73 = por %p71, %p72
      %p74 = scmp.ne.s32.totalorder %s63, %s64
      %p75 = scmp.eq.s32.totalorder %s15, 0
      %p76 = por %p74, %p75
      %p77 = scmp.ne.s32.totalorder %s63, %s64
      %p78 = scmp.eq.s32.totalorder %s16, 7
      %p79 = por %p77, %p78
      %p81 = scmp.ne.s32.totalorder %s64, %s80
      %p82 = scmp.eq.s32.totalorder %s16, 0
      %p83 = por %p81, %p82
      %s84 = ssub.s32 %s17, %s29
      %p85 = scmp.eq.s32.totalorder %s84, 0
      %s87 = sadd.s32 %s86, 1
      %s88 = scalar_select %p85, %s86, %s87
      %p91 = pneg %p85
      %p92 = scmp.eq.s32.totalorder %s10, 7
      %p93 = por %p91, %p92
      %p94 = scmp.ne.s32.totalorder %s86, %s89
      %p95 = scmp.eq.s32.totalorder %s10, 0
      %p96 = por %p94, %p95
      %p97 = scmp.ne.s32.totalorder %s86, %s89
      %p98 = scmp.eq.s32.totalorder %s15, 7
      %p99 = por %p97, %p98
      %p100 = scmp.ne.s32.totalorder %s89, %s90
      %p101 = scmp.eq.s32.totalorder %s15, 0
      %p102 = por %p100, %p101
      %p103 = scmp.ne.s32.totalorder %s89, %s90
      %p104 = scmp.eq.s32.totalorder %s16, 7
      %p105 = por %p103, %p104
      %p107 = scmp.ne.s32.totalorder %s90, %s106
      %p108 = scmp.eq.s32.totalorder %s16, 0
      %p109 = por %p107, %p108
      %s110 = ssub.s32 %s17, %s29
      %p111 = scmp.eq.s32.totalorder %s110, 0
      %s113 = sadd.s32 %s112, 1
      %s114 = scalar_select %p111, %s112, %s113
      %p117 = pneg %p111
      %p118 = scmp.eq.s32.totalorder %s10, 7
      %p119 = por %p117, %p118
      %p120 = scmp.ne.s32.totalorder %s112, %s115
      %p121 = scmp.eq.s32.totalorder %s10, 0
      %p122 = por %p120, %p121
      %p123 = scmp.ne.s32.totalorder %s112, %s115
      %p124 = scmp.eq.s32.totalorder %s15, 7
      %p125 = por %p123, %p124
      %p126 = scmp.ne.s32.totalorder %s115, %s116
      %p127 = scmp.eq.s32.totalorder %s15, 0
      %p128 = por %p126, %p127
      %p129 = scmp.ne.s32.totalorder %s115, %s116
      %p130 = scmp.eq.s32.totalorder %s16, 7
      %p131 = por %p129, %p130
      %p133 = scmp.ne.s32.totalorder %s116, %s132
      %p134 = scmp.eq.s32.totalorder %s16, 0
      %p135 = por %p133, %p134
      %s136 = ssub.s32 %s17, %s29
      %p137 = scmp.eq.s32.totalorder %s136, 0
      %s139 = sadd.s32 %s138, 1
      %s140 = scalar_select %p137, %s138, %s139
      %p143 = pneg %p137
      %p144 = scmp.eq.s32.totalorder %s10, 7
      %p145 = por %p143, %p144
      %p146 = scmp.ne.s32.totalorder %s138, %s141
      %p147 = scmp.eq.s32.totalorder %s10, 0
      %p148 = por %p146, %p147
      %p149 = scmp.ne.s32.totalorder %s138, %s141
      %p150 = scmp.eq.s32.totalorder %s15, 7
      %p151 = por %p149, %p150
      %p152 = scmp.ne.s32.totalorder %s141, %s142
      %p153 = scmp.eq.s32.totalorder %s15, 0
      %p154 = por %p152, %p153
      %p155 = scmp.ne.s32.totalorder %s141, %s142
      %p156 = scmp.eq.s32.totalorder %s16, 7
      %p157 = por %p155, %p156
      %p159 = scmp.ne.s32.totalorder %s142, %s158
      %p160 = scmp.eq.s32.totalorder %s16, 0
      %p161 = por %p159, %p160
      %p162 = scmp.le.s32.totalorder 1, %s10
      %p163 = scmp.lt.s32.totalorder %s10, 9
      %p164 = pnand %p162, %p163
      %p165 = pneg %p164
      // Predicated region
      $region9: #{forward.7} parent=5 // pred_check
        _
      $region10: #{forward.7} parent=5 // pred_check_branch
        %167 = sbr.rel (%p164) target = $region12
      $region11: #{forward.7} parent=5 // pred_region
        %s168 = ssub.s32 %s10, 1
      $region12: #{forward.7} parent=5 // pred_fallthru
        _
      %p169 = scmp.lt.s32.totalorder %s10, 8
      // Predicated region
      $region13: #{forward.7} parent=5 // pred_check
        %p170 = pneg %p169
      $region14: #{forward.7} parent=5 // pred_check_branch
        %172 = sbr.rel (%p170) target = $region16
      $region15: #{forward.7} parent=5 // pred_region
        // Predicated region
        $region17: #{forward.7} parent=15 // pred_check
          %p173 = pneg %p42
        $region18: #{forward.7} parent=15 // pred_check_branch
          %175 = sbr.rel (%p173) target = $region20
        $region19: #{forward.7} parent=15 // pred_region
          %s176 = smul.u32 8, %s18
          %p177 = scmp.lt.s32.totalorder %s176, 31
          %s178 = scalar_select %p177, %s176, 31
          %s179 = scalar_lea.vmem %s0, %s178
          %s180 = smul.u32 8, %s18
        $region20: #{forward.7} parent=15 // pred_fallthru
          _
        // Predicated region
        $region21: #{forward.7} parent=15 // pred_check
          %p181 = pneg %p70
        $region22: #{forward.7} parent=15 // pred_check_branch
          %183 = sbr.rel (%p181) target = $region24
        $region23: #{forward.7} parent=15 // pred_region
          %s184 = sand.u32 %s60, 1
          %s185 = sand.u32 %s60, 1
          %s186 = smul.addr %s185, 1024
          %s187 = scalar_lea.vmem [#allocation3], %s186
          %s188 = smul.u32 128, %s18
          %s189 = smul.u32 2, %s17
          %s190 = smul.addr %s188, 4
          %s191 = sadd.s32 %s189, %s190
          %s192 = smul.addr %s191, 4
          %s193 = scalar_lea.vmem %s1, %s192
          // Predicated region
          $region25: #{forward.7} parent=23 // pred_check
            _
          $region26: #{forward.7} parent=23 // pred_check_branch
            %195 = sbr.rel (0) target = $region28
          $region27: #{forward.7} parent=23 // pred_region
            // Predicated region
            $region29: #{forward.7} parent=27 // pred_check
              _
            $region30: #{forward.7} parent=27 // pred_check_branch
              %197 = sbr.rel (0) target = $region32
            $region31: #{forward.7} parent=27 // pred_region
              // Predicated region
              $region44: #{forward.7} parent=31 // pred_check
                _
              $region45: #{forward.7} parent=31 // pred_check_branch
                %466 = sbr.rel (0) target = $region47
              $region46: #{forward.7} parent=31 // pred_region
                loop: start=0, step=1, limit=1
                $region48: #{forward.7} parent=46 // loop_pre_header
                  _
                $region49: #{forward.7} parent=46 // loop_header
                  %s468 = sphi 0, %s472
                  %p469 = scmp.ge.s32.totalorder %s468, 1
                  %s473 = sphi %s193, %s193
                  %s474 = sphi %s187, %s187
                $region50: #{forward.7} parent=46 // loop_header_branch
                  %471 = sbr.rel (%p469) target = $region54
                $region51: #{forward.7} parent=46 // loop_body
                  %v475 = vld [vmem:[%s473] sm:$0xff]
                  %476 = vst [vmem:[%s474] sm:$0xff] %v475
                  %v477 = vld [vmem:[%s473 + $0x10] sm:$0xff]
                  %478 = vst [vmem:[%s474 + $0x8] sm:$0xff] %v477
                  %v479 = vld [vmem:[%s473 + $0x20] sm:$0xff]
                  %480 = vst [vmem:[%s474 + $0x10] sm:$0xff] %v479
                  %v481 = vld [vmem:[%s473 + $0x30] sm:$0xff]
                  %482 = vst [vmem:[%s474 + $0x18] sm:$0xff] %v481
                  %v483 = vld [vmem:[%s473 + $0x40] sm:$0xff]
                  %484 = vst [vmem:[%s474 + $0x20] sm:$0xff] %v483
                  %v485 = vld [vmem:[%s473 + $0x50] sm:$0xff]
                  %486 = vst [vmem:[%s474 + $0x28] sm:$0xff] %v485
                  %v487 = vld [vmem:[%s473 + $0x60] sm:$0xff]
                  %488 = vst [vmem:[%s474 + $0x30] sm:$0xff] %v487
                  %v489 = vld [vmem:[%s473 + $0x70] sm:$0xff]
                  %490 = vst [vmem:[%s474 + $0x38] sm:$0xff] %v489
                  %v491 = vld [vmem:[%s473 + $0x80] sm:$0xff]
                  %492 = vst [vmem:[%s474 + $0x40] sm:$0xff] %v491
                  %v493 = vld [vmem:[%s473 + $0x90] sm:$0xff]
                  %494 = vst [vmem:[%s474 + $0x48] sm:$0xff] %v493
                  %v495 = vld [vmem:[%s473 + $0xa0] sm:$0xff]
                  %496 = vst [vmem:[%s474 + $0x50] sm:$0xff] %v495
                  %v497 = vld [vmem:[%s473 + $0xb0] sm:$0xff]
                  %498 = vst [vmem:[%s474 + $0x58] sm:$0xff] %v497
                  %v499 = vld [vmem:[%s473 + $0xc0] sm:$0xff]
                  %500 = vst [vmem:[%s474 + $0x60] sm:$0xff] %v499
                  %v501 = vld [vmem:[%s473 + $0xd0] sm:$0xff]
                  %502 = vst [vmem:[%s474 + $0x68] sm:$0xff] %v501
                  %v503 = vld [vmem:[%s473 + $0xe0] sm:$0xff]
                  %504 = vst [vmem:[%s474 + $0x70] sm:$0xff] %v503
                  %v505 = vld [vmem:[%s473 + $0xf0] sm:$0xff]
                  %506 = vst [vmem:[%s474 + $0x78] sm:$0xff] %v505
                  %v507 = vld [vmem:[%s473 + $0x100] sm:$0xff]
                  %508 = vst [vmem:[%s474 + $0x80] sm:$0xff] %v507
                  %v509 = vld [vmem:[%s473 + $0x110] sm:$0xff]
                  %510 = vst [vmem:[%s474 + $0x88] sm:$0xff] %v509
                  %v511 = vld [vmem:[%s473 + $0x120] sm:$0xff]
                  %512 = vst [vmem:[%s474 + $0x90] sm:$0xff] %v511
                  %v513 = vld [vmem:[%s473 + $0x130] sm:$0xff]
                  %514 = vst [vmem:[%s474 + $0x98] sm:$0xff] %v513
                  %v515 = vld [vmem:[%s473 + $0x140] sm:$0xff]
                  %516 = vst [vmem:[%s474 + $0xa0] sm:$0xff] %v515
                  %v517 = vld [vmem:[%s473 + $0x150] sm:$0xff]
                  %518 = vst [vmem:[%s474 + $0xa8] sm:$0xff] %v517
                  %v519 = vld [vmem:[%s473 + $0x160] sm:$0xff]
                  %520 = vst [vmem:[%s474 + $0xb0] sm:$0xff] %v519
                  %v521 = vld [vmem:[%s473 + $0x170] sm:$0xff]
                  %522 = vst [vmem:[%s474 + $0xb8] sm:$0xff] %v521
                  %v523 = vld [vmem:[%s473 + $0x180] sm:$0xff]
                  %524 = vst [vmem:[%s474 + $0xc0] sm:$0xff] %v523
                  %v525 = vld [vmem:[%s473 + $0x190] sm:$0xff]
                  %526 = vst [vmem:[%s474 + $0xc8] sm:$0xff] %v525
                  %v527 = vld [vmem:[%s473 + $0x1a0] sm:$0xff]
                  %528 = vst [vmem:[%s474 + $0xd0] sm:$0xff] %v527
                  %v529 = vld [vmem:[%s473 + $0x1b0] sm:$0xff]
                  %530 = vst [vmem:[%s474 + $0xd8] sm:$0xff] %v529
                  %v531 = vld [vmem:[%s473 + $0x1c0] sm:$0xff]
                  %532 = vst [vmem:[%s474 + $0xe0] sm:$0xff] %v531
                  %v533 = vld [vmem:[%s473 + $0x1d0] sm:$0xff]
                  %534 = vst [vmem:[%s474 + $0xe8] sm:$0xff] %v533
                  %v535 = vld [vmem:[%s473 + $0x1e0] sm:$0xff]
                  %536 = vst [vmem:[%s474 + $0xf0] sm:$0xff] %v535
                  %v537 = vld [vmem:[%s473 + $0x1f0] sm:$0xff]
                  %538 = vst [vmem:[%s474 + $0xf8] sm:$0xff] %v537
                  %v539 = vld [vmem:[%s473 + $0x200] sm:$0xff]
                  %540 = vst [vmem:[%s474 + $0x100] sm:$0xff] %v539
                  %v541 = vld [vmem:[%s473 + $0x210] sm:$0xff]
                  %542 = vst [vmem:[%s474 + $0x108] sm:$0xff] %v541
                  %v543 = vld [vmem:[%s473 + $0x220] sm:$0xff]
                  %544 = vst [vmem:[%s474 + $0x110] sm:$0xff] %v543
                  %v545 = vld [vmem:[%s473 + $0x230] sm:$0xff]
                  %546 = vst [vmem:[%s474 + $0x118] sm:$0xff] %v545
                  %v547 = vld [vmem:[%s473 + $0x240] sm:$0xff]
                  %548 = vst [vmem:[%s474 + $0x120] sm:$0xff] %v547
                  %v549 = vld [vmem:[%s473 + $0x250] sm:$0xff]
                  %550 = vst [vmem:[%s474 + $0x128] sm:$0xff] %v549
                  %v551 = vld [vmem:[%s473 + $0x260] sm:$0xff]
                  %552 = vst [vmem:[%s474 + $0x130] sm:$0xff] %v551
                  %v553 = vld [vmem:[%s473 + $0x270] sm:$0xff]
                  %554 = vst [vmem:[%s474 + $0x138] sm:$0xff] %v553
                  %v555 = vld [vmem:[%s473 + $0x280] sm:$0xff]
                  %556 = vst [vmem:[%s474 + $0x140] sm:$0xff] %v555
                  %v557 = vld [vmem:[%s473 + $0x290] sm:$0xff]
                  %558 = vst [vmem:[%s474 + $0x148] sm:$0xff] %v557
                  %v559 = vld [vmem:[%s473 + $0x2a0] sm:$0xff]
                  %560 = vst [vmem:[%s474 + $0x150] sm:$0xff] %v559
                  %v561 = vld [vmem:[%s473 + $0x2b0] sm:$0xff]
                  %562 = vst [vmem:[%s474 + $0x158] sm:$0xff] %v561
                  %v563 = vld [vmem:[%s473 + $0x2c0] sm:$0xff]
                  %564 = vst [vmem:[%s474 + $0x160] sm:$0xff] %v563
                  %v565 = vld [vmem:[%s473 + $0x2d0] sm:$0xff]
                  %566 = vst [vmem:[%s474 + $0x168] sm:$0xff] %v565
                  %v567 = vld [vmem:[%s473 + $0x2e0] sm:$0xff]
                  %568 = vst [vmem:[%s474 + $0x170] sm:$0xff] %v567
                  %v569 = vld [vmem:[%s473 + $0x2f0] sm:$0xff]
                  %570 = vst [vmem:[%s474 + $0x178] sm:$0xff] %v569
                  %v571 = vld [vmem:[%s473 + $0x300] sm:$0xff]
                  %572 = vst [vmem:[%s474 + $0x180] sm:$0xff] %v571
                  %v573 = vld [vmem:[%s473 + $0x310] sm:$0xff]
                  %574 = vst [vmem:[%s474 + $0x188] sm:$0xff] %v573
                  %v575 = vld [vmem:[%s473 + $0x320] sm:$0xff]
                  %576 = vst [vmem:[%s474 + $0x190] sm:$0xff] %v575
                  %v577 = vld [vmem:[%s473 + $0x330] sm:$0xff]
                  %578 = vst [vmem:[%s474 + $0x198] sm:$0xff] %v577
                  %v579 = vld [vmem:[%s473 + $0x340] sm:$0xff]
                  %580 = vst [vmem:[%s474 + $0x1a0] sm:$0xff] %v579
                  %v581 = vld [vmem:[%s473 + $0x350] sm:$0xff]
                  %582 = vst [vmem:[%s474 + $0x1a8] sm:$0xff] %v581
                  %v583 = vld [vmem:[%s473 + $0x360] sm:$0xff]
                  %584 = vst [vmem:[%s474 + $0x1b0] sm:$0xff] %v583
                  %v585 = vld [vmem:[%s473 + $0x370] sm:$0xff]
                  %586 = vst [vmem:[%s474 + $0x1b8] sm:$0xff] %v585
                  %v587 = vld [vmem:[%s473 + $0x380] sm:$0xff]
                  %588 = vst [vmem:[%s474 + $0x1c0] sm:$0xff] %v587
                  %v589 = vld [vmem:[%s473 + $0x390] sm:$0xff]
                  %590 = vst [vmem:[%s474 + $0x1c8] sm:$0xff] %v589
                  %v591 = vld [vmem:[%s473 + $0x3a0] sm:$0xff]
                  %592 = vst [vmem:[%s474 + $0x1d0] sm:$0xff] %v591
                  %v593 = vld [vmem:[%s473 + $0x3b0] sm:$0xff]
                  %594 = vst [vmem:[%s474 + $0x1d8] sm:$0xff] %v593
                  %v595 = vld [vmem:[%s473 + $0x3c0] sm:$0xff]
                  %596 = vst [vmem:[%s474 + $0x1e0] sm:$0xff] %v595
                  %v597 = vld [vmem:[%s473 + $0x3d0] sm:$0xff]
                  %598 = vst [vmem:[%s474 + $0x1e8] sm:$0xff] %v597
                  %v599 = vld [vmem:[%s473 + $0x3e0] sm:$0xff]
                  %600 = vst [vmem:[%s474 + $0x1f0] sm:$0xff] %v599
                  %v601 = vld [vmem:[%s473 + $0x3f0] sm:$0xff]
                  %602 = vst [vmem:[%s474 + $0x1f8] sm:$0xff] %v601
                  %v603 = vld [vmem:[%s473 + $0x400] sm:$0xff]
                  %604 = vst [vmem:[%s474 + $0x200] sm:$0xff] %v603
                  %v605 = vld [vmem:[%s473 + $0x410] sm:$0xff]
                  %606 = vst [vmem:[%s474 + $0x208] sm:$0xff] %v605
                  %v607 = vld [vmem:[%s473 + $0x420] sm:$0xff]
                  %608 = vst [vmem:[%s474 + $0x210] sm:$0xff] %v607
                  %v609 = vld [vmem:[%s473 + $0x430] sm:$0xff]
                  %610 = vst [vmem:[%s474 + $0x218] sm:$0xff] %v609
                  %v611 = vld [vmem:[%s473 + $0x440] sm:$0xff]
                  %612 = vst [vmem:[%s474 + $0x220] sm:$0xff] %v611
                  %v613 = vld [vmem:[%s473 + $0x450] sm:$0xff]
                  %614 = vst [vmem:[%s474 + $0x228] sm:$0xff] %v613
                  %v615 = vld [vmem:[%s473 + $0x460] sm:$0xff]
                  %616 = vst [vmem:[%s474 + $0x230] sm:$0xff] %v615
                  %v617 = vld [vmem:[%s473 + $0x470] sm:$0xff]
                  %618 = vst [vmem:[%s474 + $0x238] sm:$0xff] %v617
                  %v619 = vld [vmem:[%s473 + $0x480] sm:$0xff]
                  %620 = vst [vmem:[%s474 + $0x240] sm:$0xff] %v619
                  %v621 = vld [vmem:[%s473 + $0x490] sm:$0xff]
                  %622 = vst [vmem:[%s474 + $0x248] sm:$0xff] %v621
                  %v623 = vld [vmem:[%s473 + $0x4a0] sm:$0xff]
                  %624 = vst [vmem:[%s474 + $0x250] sm:$0xff] %v623
                  %v625 = vld [vmem:[%s473 + $0x4b0] sm:$0xff]
                  %626 = vst [vmem:[%s474 + $0x258] sm:$0xff] %v625
                  %v627 = vld [vmem:[%s473 + $0x4c0] sm:$0xff]
                  %628 = vst [vmem:[%s474 + $0x260] sm:$0xff] %v627
                  %v629 = vld [vmem:[%s473 + $0x4d0] sm:$0xff]
                  %630 = vst [vmem:[%s474 + $0x268] sm:$0xff] %v629
                  %v631 = vld [vmem:[%s473 + $0x4e0] sm:$0xff]
                  %632 = vst [vmem:[%s474 + $0x270] sm:$0xff] %v631
                  %v633 = vld [vmem:[%s473 + $0x4f0] sm:$0xff]
                  %634 = vst [vmem:[%s474 + $0x278] sm:$0xff] %v633
                  %v635 = vld [vmem:[%s473 + $0x500] sm:$0xff]
                  %636 = vst [vmem:[%s474 + $0x280] sm:$0xff] %v635
                  %v637 = vld [vmem:[%s473 + $0x510] sm:$0xff]
                  %638 = vst [vmem:[%s474 + $0x288] sm:$0xff] %v637
                  %v639 = vld [vmem:[%s473 + $0x520] sm:$0xff]
                  %640 = vst [vmem:[%s474 + $0x290] sm:$0xff] %v639
                  %v641 = vld [vmem:[%s473 + $0x530] sm:$0xff]
                  %642 = vst [vmem:[%s474 + $0x298] sm:$0xff] %v641
                  %v643 = vld [vmem:[%s473 + $0x540] sm:$0xff]
                  %644 = vst [vmem:[%s474 + $0x2a0] sm:$0xff] %v643
                  %v645 = vld [vmem:[%s473 + $0x550] sm:$0xff]
                  %646 = vst [vmem:[%s474 + $0x2a8] sm:$0xff] %v645
                  %v647 = vld [vmem:[%s473 + $0x560] sm:$0xff]
                  %648 = vst [vmem:[%s474 + $0x2b0] sm:$0xff] %v647
                  %v649 = vld [vmem:[%s473 + $0x570] sm:$0xff]
                  %650 = vst [vmem:[%s474 + $0x2b8] sm:$0xff] %v649
                  %v651 = vld [vmem:[%s473 + $0x580] sm:$0xff]
                  %652 = vst [vmem:[%s474 + $0x2c0] sm:$0xff] %v651
                  %v653 = vld [vmem:[%s473 + $0x590] sm:$0xff]
                  %654 = vst [vmem:[%s474 + $0x2c8] sm:$0xff] %v653
                  %v655 = vld [vmem:[%s473 + $0x5a0] sm:$0xff]
                  %656 = vst [vmem:[%s474 + $0x2d0] sm:$0xff] %v655
                  %v657 = vld [vmem:[%s473 + $0x5b0] sm:$0xff]
                  %658 = vst [vmem:[%s474 + $0x2d8] sm:$0xff] %v657
                  %v659 = vld [vmem:[%s473 + $0x5c0] sm:$0xff]
                  %660 = vst [vmem:[%s474 + $0x2e0] sm:$0xff] %v659
                  %v661 = vld [vmem:[%s473 + $0x5d0] sm:$0xff]
                  %662 = vst [vmem:[%s474 + $0x2e8] sm:$0xff] %v661
                  %v663 = vld [vmem:[%s473 + $0x5e0] sm:$0xff]
                  %664 = vst [vmem:[%s474 + $0x2f0] sm:$0xff] %v663
                  %v665 = vld [vmem:[%s473 + $0x5f0] sm:$0xff]
                  %666 = vst [vmem:[%s474 + $0x2f8] sm:$0xff] %v665
                  %v667 = vld [vmem:[%s473 + $0x600] sm:$0xff]
                  %668 = vst [vmem:[%s474 + $0x300] sm:$0xff] %v667
                  %v669 = vld [vmem:[%s473 + $0x610] sm:$0xff]
                  %670 = vst [vmem:[%s474 + $0x308] sm:$0xff] %v669
                  %v671 = vld [vmem:[%s473 + $0x620] sm:$0xff]
                  %672 = vst [vmem:[%s474 + $0x310] sm:$0xff] %v671
                  %v673 = vld [vmem:[%s473 + $0x630] sm:$0xff]
                  %674 = vst [vmem:[%s474 + $0x318] sm:$0xff] %v673
                  %v675 = vld [vmem:[%s473 + $0x640] sm:$0xff]
                  %676 = vst [vmem:[%s474 + $0x320] sm:$0xff] %v675
                  %v677 = vld [vmem:[%s473 + $0x650] sm:$0xff]
                  %678 = vst [vmem:[%s474 + $0x328] sm:$0xff] %v677
                  %v679 = vld [vmem:[%s473 + $0x660] sm:$0xff]
                  %680 = vst [vmem:[%s474 + $0x330] sm:$0xff] %v679
                  %v681 = vld [vmem:[%s473 + $0x670] sm:$0xff]
                  %682 = vst [vmem:[%s474 + $0x338] sm:$0xff] %v681
                  %v683 = vld [vmem:[%s473 + $0x680] sm:$0xff]
                  %684 = vst [vmem:[%s474 + $0x340] sm:$0xff] %v683
                  %v685 = vld [vmem:[%s473 + $0x690] sm:$0xff]
                  %686 = vst [vmem:[%s474 + $0x348] sm:$0xff] %v685
                  %v687 = vld [vmem:[%s473 + $0x6a0] sm:$0xff]
                  %688 = vst [vmem:[%s474 + $0x350] sm:$0xff] %v687
                  %v689 = vld [vmem:[%s473 + $0x6b0] sm:$0xff]
                  %690 = vst [vmem:[%s474 + $0x358] sm:$0xff] %v689
                  %v691 = vld [vmem:[%s473 + $0x6c0] sm:$0xff]
                  %692 = vst [vmem:[%s474 + $0x360] sm:$0xff] %v691
                  %v693 = vld [vmem:[%s473 + $0x6d0] sm:$0xff]
                  %694 = vst [vmem:[%s474 + $0x368] sm:$0xff] %v693
                  %v695 = vld [vmem:[%s473 + $0x6e0] sm:$0xff]
                  %696 = vst [vmem:[%s474 + $0x370] sm:$0xff] %v695
                  %v697 = vld [vmem:[%s473 + $0x6f0] sm:$0xff]
                  %698 = vst [vmem:[%s474 + $0x378] sm:$0xff] %v697
                  %v699 = vld [vmem:[%s473 + $0x700] sm:$0xff]
                  %700 = vst [vmem:[%s474 + $0x380] sm:$0xff] %v699
                  %v701 = vld [vmem:[%s473 + $0x710] sm:$0xff]
                  %702 = vst [vmem:[%s474 + $0x388] sm:$0xff] %v701
                  %v703 = vld [vmem:[%s473 + $0x720] sm:$0xff]
                  %704 = vst [vmem:[%s474 + $0x390] sm:$0xff] %v703
                  %v705 = vld [vmem:[%s473 + $0x730] sm:$0xff]
                  %706 = vst [vmem:[%s474 + $0x398] sm:$0xff] %v705
                  %v707 = vld [vmem:[%s473 + $0x740] sm:$0xff]
                  %708 = vst [vmem:[%s474 + $0x3a0] sm:$0xff] %v707
                  %v709 = vld [vmem:[%s473 + $0x750] sm:$0xff]
                  %710 = vst [vmem:[%s474 + $0x3a8] sm:$0xff] %v709
                  %v711 = vld [vmem:[%s473 + $0x760] sm:$0xff]
                  %712 = vst [vmem:[%s474 + $0x3b0] sm:$0xff] %v711
                  %v713 = vld [vmem:[%s473 + $0x770] sm:$0xff]
                  %714 = vst [vmem:[%s474 + $0x3b8] sm:$0xff] %v713
                  %v715 = vld [vmem:[%s473 + $0x780] sm:$0xff]
                  %716 = vst [vmem:[%s474 + $0x3c0] sm:$0xff] %v715
                  %v717 = vld [vmem:[%s473 + $0x790] sm:$0xff]
                  %718 = vst [vmem:[%s474 + $0x3c8] sm:$0xff] %v717
                  %v719 = vld [vmem:[%s473 + $0x7a0] sm:$0xff]
                  %720 = vst [vmem:[%s474 + $0x3d0] sm:$0xff] %v719
                  %v721 = vld [vmem:[%s473 + $0x7b0] sm:$0xff]
                  %722 = vst [vmem:[%s474 + $0x3d8] sm:$0xff] %v721
                  %v723 = vld [vmem:[%s473 + $0x7c0] sm:$0xff]
                  %724 = vst [vmem:[%s474 + $0x3e0] sm:$0xff] %v723
                  %v725 = vld [vmem:[%s473 + $0x7d0] sm:$0xff]
                  %726 = vst [vmem:[%s474 + $0x3e8] sm:$0xff] %v725
                  %v727 = vld [vmem:[%s473 + $0x7e0] sm:$0xff]
                  %728 = vst [vmem:[%s474 + $0x3f0] sm:$0xff] %v727
                  %v729 = vld [vmem:[%s473 + $0x7f0] sm:$0xff]
                  %730 = vst [vmem:[%s474 + $0x3f8] sm:$0xff] %v729
                $region52: #{forward.7} parent=46 // loop_footer
                  %s472 = sadd.s32 1, %s468
                $region53: #{forward.7} parent=46 // loop_footer_branch
                  %467 = sbr.rel target = $region49
                $region54: #{forward.7} parent=46 // loop_exit
                  _
              $region47: #{forward.7} parent=31 // pred_fallthru
                _
              // Predicated region
              $region55: #{forward.7} parent=31 // pred_check
                _
              $region56: #{forward.7} parent=31 // pred_check_branch
                %732 = sbr.rel target = $region58
              $region57: #{forward.7} parent=31 // pred_region
                _
              $region58: #{forward.7} parent=31 // pred_fallthru
                _
            $region32: #{forward.7} parent=27 // pred_fallthru
              _
            // Predicated region
            $region33: #{forward.7} parent=27 // pred_check
              _
            $region34: #{forward.7} parent=27 // pred_check_branch
              %199 = sbr.rel target = $region36
            $region35: #{forward.7} parent=27 // pred_region
              loop: start=0, step=1, limit=1
              $region37: #{forward.7} parent=35 // loop_pre_header
                _
              $region38: #{forward.7} parent=35 // loop_header
                %s202 = sphi 0, %s206
                %p203 = scmp.ge.s32.totalorder %s202, 1
                %s207 = sphi %s193, %s193
                %s208 = sphi %s187, %s187
              $region39: #{forward.7} parent=35 // loop_header_branch
                %205 = sbr.rel (%p203) target = $region43
              $region40: #{forward.7} parent=35 // loop_body
                %v209 = vld [vmem:[%s207] sm:$0xff]
                %210 = vst [vmem:[%s208] sm:$0xff] %v209
                %v211 = vld [vmem:[%s207 + $0x10] sm:$0xff]
                %212 = vst [vmem:[%s208 + $0x8] sm:$0xff] %v211
                %v213 = vld [vmem:[%s207 + $0x20] sm:$0xff]
                %214 = vst [vmem:[%s208 + $0x10] sm:$0xff] %v213
                %v215 = vld [vmem:[%s207 + $0x30] sm:$0xff]
                %216 = vst [vmem:[%s208 + $0x18] sm:$0xff] %v215
                %v217 = vld [vmem:[%s207 + $0x40] sm:$0xff]
                %218 = vst [vmem:[%s208 + $0x20] sm:$0xff] %v217
                %v219 = vld [vmem:[%s207 + $0x50] sm:$0xff]
                %220 = vst [vmem:[%s208 + $0x28] sm:$0xff] %v219
                %v221 = vld [vmem:[%s207 + $0x60] sm:$0xff]
                %222 = vst [vmem:[%s208 + $0x30] sm:$0xff] %v221
                %v223 = vld [vmem:[%s207 + $0x70] sm:$0xff]
                %224 = vst [vmem:[%s208 + $0x38] sm:$0xff] %v223
                %v225 = vld [vmem:[%s207 + $0x80] sm:$0xff]
                %226 = vst [vmem:[%s208 + $0x40] sm:$0xff] %v225
                %v227 = vld [vmem:[%s207 + $0x90] sm:$0xff]
                %228 = vst [vmem:[%s208 + $0x48] sm:$0xff] %v227
                %v229 = vld [vmem:[%s207 + $0xa0] sm:$0xff]
                %230 = vst [vmem:[%s208 + $0x50] sm:$0xff] %v229
                %v231 = vld [vmem:[%s207 + $0xb0] sm:$0xff]
                %232 = vst [vmem:[%s208 + $0x58] sm:$0xff] %v231
                %v233 = vld [vmem:[%s207 + $0xc0] sm:$0xff]
                %234 = vst [vmem:[%s208 + $0x60] sm:$0xff] %v233
                %v235 = vld [vmem:[%s207 + $0xd0] sm:$0xff]
                %236 = vst [vmem:[%s208 + $0x68] sm:$0xff] %v235
                %v237 = vld [vmem:[%s207 + $0xe0] sm:$0xff]
                %238 = vst [vmem:[%s208 + $0x70] sm:$0xff] %v237
                %v239 = vld [vmem:[%s207 + $0xf0] sm:$0xff]
                %240 = vst [vmem:[%s208 + $0x78] sm:$0xff] %v239
                %v241 = vld [vmem:[%s207 + $0x100] sm:$0xff]
                %242 = vst [vmem:[%s208 + $0x80] sm:$0xff] %v241
                %v243 = vld [vmem:[%s207 + $0x110] sm:$0xff]
                %244 = vst [vmem:[%s208 + $0x88] sm:$0xff] %v243
                %v245 = vld [vmem:[%s207 + $0x120] sm:$0xff]
                %246 = vst [vmem:[%s208 + $0x90] sm:$0xff] %v245
                %v247 = vld [vmem:[%s207 + $0x130] sm:$0xff]
                %248 = vst [vmem:[%s208 + $0x98] sm:$0xff] %v247
                %v249 = vld [vmem:[%s207 + $0x140] sm:$0xff]
                %250 = vst [vmem:[%s208 + $0xa0] sm:$0xff] %v249
                %v251 = vld [vmem:[%s207 + $0x150] sm:$0xff]
                %252 = vst [vmem:[%s208 + $0xa8] sm:$0xff] %v251
                %v253 = vld [vmem:[%s207 + $0x160] sm:$0xff]
                %254 = vst [vmem:[%s208 + $0xb0] sm:$0xff] %v253
                %v255 = vld [vmem:[%s207 + $0x170] sm:$0xff]
                %256 = vst [vmem:[%s208 + $0xb8] sm:$0xff] %v255
                %v257 = vld [vmem:[%s207 + $0x180] sm:$0xff]
                %258 = vst [vmem:[%s208 + $0xc0] sm:$0xff] %v257
                %v259 = vld [vmem:[%s207 + $0x190] sm:$0xff]
                %260 = vst [vmem:[%s208 + $0xc8] sm:$0xff] %v259
                %v261 = vld [vmem:[%s207 + $0x1a0] sm:$0xff]
                %262 = vst [vmem:[%s208 + $0xd0] sm:$0xff] %v261
                %v263 = vld [vmem:[%s207 + $0x1b0] sm:$0xff]
                %264 = vst [vmem:[%s208 + $0xd8] sm:$0xff] %v263
                %v265 = vld [vmem:[%s207 + $0x1c0] sm:$0xff]
                %266 = vst [vmem:[%s208 + $0xe0] sm:$0xff] %v265
                %v267 = vld [vmem:[%s207 + $0x1d0] sm:$0xff]
                %268 = vst [vmem:[%s208 + $0xe8] sm:$0xff] %v267
                %v269 = vld [vmem:[%s207 + $0x1e0] sm:$0xff]
                %270 = vst [vmem:[%s208 + $0xf0] sm:$0xff] %v269
                %v271 = vld [vmem:[%s207 + $0x1f0] sm:$0xff]
                %272 = vst [vmem:[%s208 + $0xf8] sm:$0xff] %v271
                %v273 = vld [vmem:[%s207 + $0x200] sm:$0xff]
                %274 = vst [vmem:[%s208 + $0x100] sm:$0xff] %v273
                %v275 = vld [vmem:[%s207 + $0x210] sm:$0xff]
                %276 = vst [vmem:[%s208 + $0x108] sm:$0xff] %v275
                %v277 = vld [vmem:[%s207 + $0x220] sm:$0xff]
                %278 = vst [vmem:[%s208 + $0x110] sm:$0xff] %v277
                %v279 = vld [vmem:[%s207 + $0x230] sm:$0xff]
                %280 = vst [vmem:[%s208 + $0x118] sm:$0xff] %v279
                %v281 = vld [vmem:[%s207 + $0x240] sm:$0xff]
                %282 = vst [vmem:[%s208 + $0x120] sm:$0xff] %v281
                %v283 = vld [vmem:[%s207 + $0x250] sm:$0xff]
                %284 = vst [vmem:[%s208 + $0x128] sm:$0xff] %v283
                %v285 = vld [vmem:[%s207 + $0x260] sm:$0xff]
                %286 = vst [vmem:[%s208 + $0x130] sm:$0xff] %v285
                %v287 = vld [vmem:[%s207 + $0x270] sm:$0xff]
                %288 = vst [vmem:[%s208 + $0x138] sm:$0xff] %v287
                %v289 = vld [vmem:[%s207 + $0x280] sm:$0xff]
                %290 = vst [vmem:[%s208 + $0x140] sm:$0xff] %v289
                %v291 = vld [vmem:[%s207 + $0x290] sm:$0xff]
                %292 = vst [vmem:[%s208 + $0x148] sm:$0xff] %v291
                %v293 = vld [vmem:[%s207 + $0x2a0] sm:$0xff]
                %294 = vst [vmem:[%s208 + $0x150] sm:$0xff] %v293
                %v295 = vld [vmem:[%s207 + $0x2b0] sm:$0xff]
                %296 = vst [vmem:[%s208 + $0x158] sm:$0xff] %v295
                %v297 = vld [vmem:[%s207 + $0x2c0] sm:$0xff]
                %298 = vst [vmem:[%s208 + $0x160] sm:$0xff] %v297
                %v299 = vld [vmem:[%s207 + $0x2d0] sm:$0xff]
                %300 = vst [vmem:[%s208 + $0x168] sm:$0xff] %v299
                %v301 = vld [vmem:[%s207 + $0x2e0] sm:$0xff]
                %302 = vst [vmem:[%s208 + $0x170] sm:$0xff] %v301
                %v303 = vld [vmem:[%s207 + $0x2f0] sm:$0xff]
                %304 = vst [vmem:[%s208 + $0x178] sm:$0xff] %v303
                %v305 = vld [vmem:[%s207 + $0x300] sm:$0xff]
                %306 = vst [vmem:[%s208 + $0x180] sm:$0xff] %v305
                %v307 = vld [vmem:[%s207 + $0x310] sm:$0xff]
                %308 = vst [vmem:[%s208 + $0x188] sm:$0xff] %v307
                %v309 = vld [vmem:[%s207 + $0x320] sm:$0xff]
                %310 = vst [vmem:[%s208 + $0x190] sm:$0xff] %v309
                %v311 = vld [vmem:[%s207 + $0x330] sm:$0xff]
                %312 = vst [vmem:[%s208 + $0x198] sm:$0xff] %v311
                %v313 = vld [vmem:[%s207 + $0x340] sm:$0xff]
                %314 = vst [vmem:[%s208 + $0x1a0] sm:$0xff] %v313
                %v315 = vld [vmem:[%s207 + $0x350] sm:$0xff]
                %316 = vst [vmem:[%s208 + $0x1a8] sm:$0xff] %v315
                %v317 = vld [vmem:[%s207 + $0x360] sm:$0xff]
                %318 = vst [vmem:[%s208 + $0x1b0] sm:$0xff] %v317
                %v319 = vld [vmem:[%s207 + $0x370] sm:$0xff]
                %320 = vst [vmem:[%s208 + $0x1b8] sm:$0xff] %v319
                %v321 = vld [vmem:[%s207 + $0x380] sm:$0xff]
                %322 = vst [vmem:[%s208 + $0x1c0] sm:$0xff] %v321
                %v323 = vld [vmem:[%s207 + $0x390] sm:$0xff]
                %324 = vst [vmem:[%s208 + $0x1c8] sm:$0xff] %v323
                %v325 = vld [vmem:[%s207 + $0x3a0] sm:$0xff]
                %326 = vst [vmem:[%s208 + $0x1d0] sm:$0xff] %v325
                %v327 = vld [vmem:[%s207 + $0x3b0] sm:$0xff]
                %328 = vst [vmem:[%s208 + $0x1d8] sm:$0xff] %v327
                %v329 = vld [vmem:[%s207 + $0x3c0] sm:$0xff]
                %330 = vst [vmem:[%s208 + $0x1e0] sm:$0xff] %v329
                %v331 = vld [vmem:[%s207 + $0x3d0] sm:$0xff]
                %332 = vst [vmem:[%s208 + $0x1e8] sm:$0xff] %v331
                %v333 = vld [vmem:[%s207 + $0x3e0] sm:$0xff]
                %334 = vst [vmem:[%s208 + $0x1f0] sm:$0xff] %v333
                %v335 = vld [vmem:[%s207 + $0x3f0] sm:$0xff]
                %336 = vst [vmem:[%s208 + $0x1f8] sm:$0xff] %v335
                %v337 = vld [vmem:[%s207 + $0x400] sm:$0xff]
                %338 = vst [vmem:[%s208 + $0x200] sm:$0xff] %v337
                %v339 = vld [vmem:[%s207 + $0x410] sm:$0xff]
                %340 = vst [vmem:[%s208 + $0x208] sm:$0xff] %v339
                %v341 = vld [vmem:[%s207 + $0x420] sm:$0xff]
                %342 = vst [vmem:[%s208 + $0x210] sm:$0xff] %v341
                %v343 = vld [vmem:[%s207 + $0x430] sm:$0xff]
                %344 = vst [vmem:[%s208 + $0x218] sm:$0xff] %v343
                %v345 = vld [vmem:[%s207 + $0x440] sm:$0xff]
                %346 = vst [vmem:[%s208 + $0x220] sm:$0xff] %v345
                %v347 = vld [vmem:[%s207 + $0x450] sm:$0xff]
                %348 = vst [vmem:[%s208 + $0x228] sm:$0xff] %v347
                %v349 = vld [vmem:[%s207 + $0x460] sm:$0xff]
                %350 = vst [vmem:[%s208 + $0x230] sm:$0xff] %v349
                %v351 = vld [vmem:[%s207 + $0x470] sm:$0xff]
                %352 = vst [vmem:[%s208 + $0x238] sm:$0xff] %v351
                %v353 = vld [vmem:[%s207 + $0x480] sm:$0xff]
                %354 = vst [vmem:[%s208 + $0x240] sm:$0xff] %v353
                %v355 = vld [vmem:[%s207 + $0x490] sm:$0xff]
                %356 = vst [vmem:[%s208 + $0x248] sm:$0xff] %v355
                %v357 = vld [vmem:[%s207 + $0x4a0] sm:$0xff]
                %358 = vst [vmem:[%s208 + $0x250] sm:$0xff] %v357
                %v359 = vld [vmem:[%s207 + $0x4b0] sm:$0xff]
                %360 = vst [vmem:[%s208 + $0x258] sm:$0xff] %v359
                %v361 = vld [vmem:[%s207 + $0x4c0] sm:$0xff]
                %362 = vst [vmem:[%s208 + $0x260] sm:$0xff] %v361
                %v363 = vld [vmem:[%s207 + $0x4d0] sm:$0xff]
                %364 = vst [vmem:[%s208 + $0x268] sm:$0xff] %v363
                %v365 = vld [vmem:[%s207 + $0x4e0] sm:$0xff]
                %366 = vst [vmem:[%s208 + $0x270] sm:$0xff] %v365
                %v367 = vld [vmem:[%s207 + $0x4f0] sm:$0xff]
                %368 = vst [vmem:[%s208 + $0x278] sm:$0xff] %v367
                %v369 = vld [vmem:[%s207 + $0x500] sm:$0xff]
                %370 = vst [vmem:[%s208 + $0x280] sm:$0xff] %v369
                %v371 = vld [vmem:[%s207 + $0x510] sm:$0xff]
                %372 = vst [vmem:[%s208 + $0x288] sm:$0xff] %v371
                %v373 = vld [vmem:[%s207 + $0x520] sm:$0xff]
                %374 = vst [vmem:[%s208 + $0x290] sm:$0xff] %v373
                %v375 = vld [vmem:[%s207 + $0x530] sm:$0xff]
                %376 = vst [vmem:[%s208 + $0x298] sm:$0xff] %v375
                %v377 = vld [vmem:[%s207 + $0x540] sm:$0xff]
                %378 = vst [vmem:[%s208 + $0x2a0] sm:$0xff] %v377
                %v379 = vld [vmem:[%s207 + $0x550] sm:$0xff]
                %380 = vst [vmem:[%s208 + $0x2a8] sm:$0xff] %v379
                %v381 = vld [vmem:[%s207 + $0x560] sm:$0xff]
                %382 = vst [vmem:[%s208 + $0x2b0] sm:$0xff] %v381
                %v383 = vld [vmem:[%s207 + $0x570] sm:$0xff]
                %384 = vst [vmem:[%s208 + $0x2b8] sm:$0xff] %v383
                %v385 = vld [vmem:[%s207 + $0x580] sm:$0xff]
                %386 = vst [vmem:[%s208 + $0x2c0] sm:$0xff] %v385
                %v387 = vld [vmem:[%s207 + $0x590] sm:$0xff]
                %388 = vst [vmem:[%s208 + $0x2c8] sm:$0xff] %v387
                %v389 = vld [vmem:[%s207 + $0x5a0] sm:$0xff]
                %390 = vst [vmem:[%s208 + $0x2d0] sm:$0xff] %v389
                %v391 = vld [vmem:[%s207 + $0x5b0] sm:$0xff]
                %392 = vst [vmem:[%s208 + $0x2d8] sm:$0xff] %v391
                %v393 = vld [vmem:[%s207 + $0x5c0] sm:$0xff]
                %394 = vst [vmem:[%s208 + $0x2e0] sm:$0xff] %v393
                %v395 = vld [vmem:[%s207 + $0x5d0] sm:$0xff]
                %396 = vst [vmem:[%s208 + $0x2e8] sm:$0xff] %v395
                %v397 = vld [vmem:[%s207 + $0x5e0] sm:$0xff]
                %398 = vst [vmem:[%s208 + $0x2f0] sm:$0xff] %v397
                %v399 = vld [vmem:[%s207 + $0x5f0] sm:$0xff]
                %400 = vst [vmem:[%s208 + $0x2f8] sm:$0xff] %v399
                %v401 = vld [vmem:[%s207 + $0x600] sm:$0xff]
                %402 = vst [vmem:[%s208 + $0x300] sm:$0xff] %v401
                %v403 = vld [vmem:[%s207 + $0x610] sm:$0xff]
                %404 = vst [vmem:[%s208 + $0x308] sm:$0xff] %v403
                %v405 = vld [vmem:[%s207 + $0x620] sm:$0xff]
                %406 = vst [vmem:[%s208 + $0x310] sm:$0xff] %v405
                %v407 = vld [vmem:[%s207 + $0x630] sm:$0xff]
                %408 = vst [vmem:[%s208 + $0x318] sm:$0xff] %v407
                %v409 = vld [vmem:[%s207 + $0x640] sm:$0xff]
                %410 = vst [vmem:[%s208 + $0x320] sm:$0xff] %v409
                %v411 = vld [vmem:[%s207 + $0x650] sm:$0xff]
                %412 = vst [vmem:[%s208 + $0x328] sm:$0xff] %v411
                %v413 = vld [vmem:[%s207 + $0x660] sm:$0xff]
                %414 = vst [vmem:[%s208 + $0x330] sm:$0xff] %v413
                %v415 = vld [vmem:[%s207 + $0x670] sm:$0xff]
                %416 = vst [vmem:[%s208 + $0x338] sm:$0xff] %v415
                %v417 = vld [vmem:[%s207 + $0x680] sm:$0xff]
                %418 = vst [vmem:[%s208 + $0x340] sm:$0xff] %v417
                %v419 = vld [vmem:[%s207 + $0x690] sm:$0xff]
                %420 = vst [vmem:[%s208 + $0x348] sm:$0xff] %v419
                %v421 = vld [vmem:[%s207 + $0x6a0] sm:$0xff]
                %422 = vst [vmem:[%s208 + $0x350] sm:$0xff] %v421
                %v423 = vld [vmem:[%s207 + $0x6b0] sm:$0xff]
                %424 = vst [vmem:[%s208 + $0x358] sm:$0xff] %v423
                %v425 = vld [vmem:[%s207 + $0x6c0] sm:$0xff]
                %426 = vst [vmem:[%s208 + $0x360] sm:$0xff] %v425
                %v427 = vld [vmem:[%s207 + $0x6d0] sm:$0xff]
                %428 = vst [vmem:[%s208 + $0x368] sm:$0xff] %v427
                %v429 = vld [vmem:[%s207 + $0x6e0] sm:$0xff]
                %430 = vst [vmem:[%s208 + $0x370] sm:$0xff] %v429
                %v431 = vld [vmem:[%s207 + $0x6f0] sm:$0xff]
                %432 = vst [vmem:[%s208 + $0x378] sm:$0xff] %v431
                %v433 = vld [vmem:[%s207 + $0x700] sm:$0xff]
                %434 = vst [vmem:[%s208 + $0x380] sm:$0xff] %v433
                %v435 = vld [vmem:[%s207 + $0x710] sm:$0xff]
                %436 = vst [vmem:[%s208 + $0x388] sm:$0xff] %v435
                %v437 = vld [vmem:[%s207 + $0x720] sm:$0xff]
                %438 = vst [vmem:[%s208 + $0x390] sm:$0xff] %v437
                %v439 = vld [vmem:[%s207 + $0x730] sm:$0xff]
                %440 = vst [vmem:[%s208 + $0x398] sm:$0xff] %v439
                %v441 = vld [vmem:[%s207 + $0x740] sm:$0xff]
                %442 = vst [vmem:[%s208 + $0x3a0] sm:$0xff] %v441
                %v443 = vld [vmem:[%s207 + $0x750] sm:$0xff]
                %444 = vst [vmem:[%s208 + $0x3a8] sm:$0xff] %v443
                %v445 = vld [vmem:[%s207 + $0x760] sm:$0xff]
                %446 = vst [vmem:[%s208 + $0x3b0] sm:$0xff] %v445
                %v447 = vld [vmem:[%s207 + $0x770] sm:$0xff]
                %448 = vst [vmem:[%s208 + $0x3b8] sm:$0xff] %v447
                %v449 = vld [vmem:[%s207 + $0x780] sm:$0xff]
                %450 = vst [vmem:[%s208 + $0x3c0] sm:$0xff] %v449
                %v451 = vld [vmem:[%s207 + $0x790] sm:$0xff]
                %452 = vst [vmem:[%s208 + $0x3c8] sm:$0xff] %v451
                %v453 = vld [vmem:[%s207 + $0x7a0] sm:$0xff]
                %454 = vst [vmem:[%s208 + $0x3d0] sm:$0xff] %v453
                %v455 = vld [vmem:[%s207 + $0x7b0] sm:$0xff]
                %456 = vst [vmem:[%s208 + $0x3d8] sm:$0xff] %v455
                %v457 = vld [vmem:[%s207 + $0x7c0] sm:$0xff]
                %458 = vst [vmem:[%s208 + $0x3e0] sm:$0xff] %v457
                %v459 = vld [vmem:[%s207 + $0x7d0] sm:$0xff]
                %460 = vst [vmem:[%s208 + $0x3e8] sm:$0xff] %v459
                %v461 = vld [vmem:[%s207 + $0x7e0] sm:$0xff]
                %462 = vst [vmem:[%s208 + $0x3f0] sm:$0xff] %v461
                %v463 = vld [vmem:[%s207 + $0x7f0] sm:$0xff]
                %464 = vst [vmem:[%s208 + $0x3f8] sm:$0xff] %v463
              $region41: #{forward.7} parent=35 // loop_footer
                %s206 = sadd.s32 1, %s202
              $region42: #{forward.7} parent=35 // loop_footer_branch
                %201 = sbr.rel target = $region38
              $region43: #{forward.7} parent=35 // loop_exit
                _
            $region36: #{forward.7} parent=27 // pred_fallthru
              _
          $region28: #{forward.7} parent=23 // pred_fallthru
            _
          %733 = vnop
        $region24: #{forward.7} parent=15 // pred_fallthru
          _
        // Predicated region
        $region59: #{forward.7} parent=15 // pred_check
          %p734 = pneg %p96
        $region60: #{forward.7} parent=15 // pred_check_branch
          %736 = sbr.rel (%p734) target = $region62
        $region61: #{forward.7} parent=15 // pred_region
          %s737 = smul.u32 2, %s17
          %p738 = scmp.lt.s32.totalorder %s737, 3
          %s739 = scalar_select %p738, %s737, 3
          %s740 = scalar_lea.vmem %s2, %s739
          %s741 = smul.u32 2, %s17
        $region62: #{forward.7} parent=15 // pred_fallthru
          _
        // Predicated region
        $region63: #{forward.7} parent=15 // pred_check
          %p742 = pneg %p122
        $region64: #{forward.7} parent=15 // pred_check_branch
          %744 = sbr.rel (%p742) target = $region66
        $region65: #{forward.7} parent=15 // pred_region
          %s745 = smul.u32 32, %s17
          %p746 = scmp.lt.s32.totalorder %s745, 63
          %s747 = scalar_select %p746, %s745, 63
          %s748 = smul.addr %s747, 8
          %s749 = smul.addr %s748, 4
          %s750 = scalar_lea.vmem %s3, %s749
          %s751 = smul.u32 32, %s17
        $region66: #{forward.7} parent=15 // pred_fallthru
          _
      $region16: #{forward.7} parent=5 // pred_fallthru
        _
      %p752 = scmp.le.s32.totalorder 1, %s10
      %p753 = scmp.lt.s32.totalorder %s10, 9
      %p754 = pnand %p752, %p753
      %p755 = pneg %p754
      // Predicated region
      $region67: #{forward.7} parent=5 // pred_check
        _
      $region68: #{forward.7} parent=5 // pred_check_branch
        %757 = sbr.rel (%p754) target = $region70
      $region69: #{forward.7} parent=5 // pred_region
        %s758 = ssub.s32 %s10, 1
        %s759 = sand.u32 %s63, 1
        %s760 = sand.u32 %s63, 1
        %s761 = smul.addr %s760, 1024
        %s762 = scalar_lea.vmem [#allocation3], %s761
        // Predicated region
        $region71: #{forward.7} parent=69 // pred_check
          %p763 = pneg %p76
        $region72: #{forward.7} parent=69 // pred_check_branch
          %765 = sbr.rel (%p763) target = $region74
        $region73: #{forward.7} parent=69 // pred_region
          _
        $region74: #{forward.7} parent=69 // pred_fallthru
          _
        %s766 = smul.u32 8, %s20
        %p767 = scmp.lt.s32.totalorder %s766, 31
        %s768 = scalar_select %p767, %s766, 31
        %s769 = scalar_lea.vmem %s0, %s768
        %p770 = pneg %p48
        %p771 = pneg %p45
        %s772 = sand.u32 %s63, 1
        %s773 = sand.u32 %s63, 1
        %s774 = smul.addr %s773, 1024
        %s775 = scalar_lea.vmem [#allocation3], %s774
        %p776 = pneg %p76
        %p777 = pneg %p73
        %s778 = smul.u32 2, %s19
        %p779 = scmp.lt.s32.totalorder %s778, 3
        %s780 = scalar_select %p779, %s778, 3
        %s781 = scalar_lea.vmem %s2, %s780
        %p782 = pneg %p102
        %p783 = pneg %p99
        %s784 = smul.u32 32, %s19
        %p785 = scmp.lt.s32.totalorder %s784, 63
        %s786 = scalar_select %p785, %s784, 63
        %s787 = smul.addr %s786, 8
        %s788 = smul.addr %s787, 4
        %s789 = scalar_lea.vmem %s3, %s788
        %p790 = pneg %p128
        %p791 = pneg %p125
        %p792 = pneg %p154
        %p793 = pneg %p151
        %p794 = scmp.lt.s32.totalorder %s19, 1
        %s795 = scalar_select %p794, %s19, 1
        %s796 = smul.addr %s795, 8
        %s797 = smul.addr %s796, 2
        %s798 = scalar_lea.vmem %s4, %s797
        %s799 = smul.u32 8, %s20
        %p800 = scmp.lt.s32.totalorder %s799, 31
        %s801 = scalar_select %p800, %s799, 31
        %s802 = scalar_lea.vmem %s0, %s801
        %s803 = smul.u32 8, %s20
        %s804 = smul.u32 128, %s20
        %s805 = smul.u32 2, %s19
        %s806 = smul.u32 2, %s19
        %p807 = scmp.lt.s32.totalorder %s806, 3
        %s808 = scalar_select %p807, %s806, 3
        %s809 = scalar_lea.vmem %s2, %s808
        %s810 = smul.u32 2, %s19
        %s811 = smul.u32 32, %s19
        %p812 = scmp.lt.s32.totalorder %s811, 63
        %s813 = scalar_select %p812, %s811, 63
        %s814 = smul.addr %s813, 8
        %s815 = smul.addr %s814, 4
        %s816 = scalar_lea.vmem %s3, %s815
        %s817 = smul.u32 32, %s19
        %p818 = scmp.lt.s32.totalorder %s19, 1
        %s819 = scalar_select %p818, %s19, 1
        %s820 = smul.addr %s819, 8
        %s821 = smul.addr %s820, 2
        %s822 = scalar_lea.vmem %s4, %s821
        %p823 = scmp.eq.s32.totalorder %s20, 0
        // Predicated region
        $region75: #{forward.7} parent=69 // pred_check
          %p824 = pneg %p823
        $region76: #{forward.7} parent=69 // pred_check_branch
          %826 = sbr.rel (%p824) target = $region78
        $region77: #{forward.7} parent=69 // pred_region
          %827 = vst [vmem:[#allocation2] sm:$0xf] 0.0
        $region78: #{forward.7} parent=69 // pred_fallthru
          _
        %v828 = vld [vmem:[#allocation2] sm:$0xf]
        %v829 = vld [vmem:[%s802] sm:$0xff]
        %v830 = vld [vmem:[%s762] sm:$0xff]
        %v831 = vld [vmem:[%s762 + $0x8] sm:$0xff]
        %v832 = vld [vmem:[%s762 + $0x10] sm:$0xff]
        %v833 = vld [vmem:[%s762 + $0x18] sm:$0xff]
        %v834 = vld [vmem:[%s762 + $0x20] sm:$0xff]
        %v835 = vld [vmem:[%s762 + $0x28] sm:$0xff]
        %v836 = vld [vmem:[%s762 + $0x30] sm:$0xff]
        %v837 = vld [vmem:[%s762 + $0x38] sm:$0xff]
        %v838 = vld [vmem:[%s762 + $0x40] sm:$0xff]
        %v839 = vld [vmem:[%s762 + $0x48] sm:$0xff]
        %v840 = vld [vmem:[%s762 + $0x50] sm:$0xff]
        %v841 = vld [vmem:[%s762 + $0x58] sm:$0xff]
        %v842 = vld [vmem:[%s762 + $0x60] sm:$0xff]
        %v843 = vld [vmem:[%s762 + $0x68] sm:$0xff]
        %v844 = vld [vmem:[%s762 + $0x70] sm:$0xff]
        %v845 = vld [vmem:[%s762 + $0x78] sm:$0xff]
        %v846 = vld [vmem:[%s762 + $0x80] sm:$0xff]
        %v847 = vld [vmem:[%s762 + $0x88] sm:$0xff]
        %v848 = vld [vmem:[%s762 + $0x90] sm:$0xff]
        %v849 = vld [vmem:[%s762 + $0x98] sm:$0xff]
        %v850 = vld [vmem:[%s762 + $0xa0] sm:$0xff]
        %v851 = vld [vmem:[%s762 + $0xa8] sm:$0xff]
        %v852 = vld [vmem:[%s762 + $0xb0] sm:$0xff]
        %v853 = vld [vmem:[%s762 + $0xb8] sm:$0xff]
        %v854 = vld [vmem:[%s762 + $0xc0] sm:$0xff]
        %v855 = vld [vmem:[%s762 + $0xc8] sm:$0xff]
        %v856 = vld [vmem:[%s762 + $0xd0] sm:$0xff]
        %v857 = vld [vmem:[%s762 + $0xd8] sm:$0xff]
        %v858 = vld [vmem:[%s762 + $0xe0] sm:$0xff]
        %v859 = vld [vmem:[%s762 + $0xe8] sm:$0xff]
        %v860 = vld [vmem:[%s762 + $0xf0] sm:$0xff]
        %v861 = vld [vmem:[%s762 + $0xf8] sm:$0xff]
        %v862 = vld [vmem:[%s762 + $0x100] sm:$0xff]
        %v863 = vld [vmem:[%s762 + $0x108] sm:$0xff]
        %v864 = vld [vmem:[%s762 + $0x110] sm:$0xff]
        %v865 = vld [vmem:[%s762 + $0x118] sm:$0xff]
        %v866 = vld [vmem:[%s762 + $0x120] sm:$0xff]
        %v867 = vld [vmem:[%s762 + $0x128] sm:$0xff]
        %v868 = vld [vmem:[%s762 + $0x130] sm:$0xff]
        %v869 = vld [vmem:[%s762 + $0x138] sm:$0xff]
        %v870 = vld [vmem:[%s762 + $0x140] sm:$0xff]
        %v871 = vld [vmem:[%s762 + $0x148] sm:$0xff]
        %v872 = vld [vmem:[%s762 + $0x150] sm:$0xff]
        %v873 = vld [vmem:[%s762 + $0x158] sm:$0xff]
        %v874 = vld [vmem:[%s762 + $0x160] sm:$0xff]
        %v875 = vld [vmem:[%s762 + $0x168] sm:$0xff]
        %v876 = vld [vmem:[%s762 + $0x170] sm:$0xff]
        %v877 = vld [vmem:[%s762 + $0x178] sm:$0xff]
        %v878 = vld [vmem:[%s762 + $0x180] sm:$0xff]
        %v879 = vld [vmem:[%s762 + $0x188] sm:$0xff]
        %v880 = vld [vmem:[%s762 + $0x190] sm:$0xff]
        %v881 = vld [vmem:[%s762 + $0x198] sm:$0xff]
        %v882 = vld [vmem:[%s762 + $0x1a0] sm:$0xff]
        %v883 = vld [vmem:[%s762 + $0x1a8] sm:$0xff]
        %v884 = vld [vmem:[%s762 + $0x1b0] sm:$0xff]
        %v885 = vld [vmem:[%s762 + $0x1b8] sm:$0xff]
        %v886 = vld [vmem:[%s762 + $0x1c0] sm:$0xff]
        %v887 = vld [vmem:[%s762 + $0x1c8] sm:$0xff]
        %v888 = vld [vmem:[%s762 + $0x1d0] sm:$0xff]
        %v889 = vld [vmem:[%s762 + $0x1d8] sm:$0xff]
        %v890 = vld [vmem:[%s762 + $0x1e0] sm:$0xff]
        %v891 = vld [vmem:[%s762 + $0x1e8] sm:$0xff]
        %v892 = vld [vmem:[%s762 + $0x1f0] sm:$0xff]
        %v893 = vld [vmem:[%s762 + $0x1f8] sm:$0xff]
        %v894 = vld [vmem:[%s762 + $0x200] sm:$0xff]
        %v895 = vld [vmem:[%s762 + $0x208] sm:$0xff]
        %v896 = vld [vmem:[%s762 + $0x210] sm:$0xff]
        %v897 = vld [vmem:[%s762 + $0x218] sm:$0xff]
        %v898 = vld [vmem:[%s762 + $0x220] sm:$0xff]
        %v899 = vld [vmem:[%s762 + $0x228] sm:$0xff]
        %v900 = vld [vmem:[%s762 + $0x230] sm:$0xff]
        %v901 = vld [vmem:[%s762 + $0x238] sm:$0xff]
        %v902 = vld [vmem:[%s762 + $0x240] sm:$0xff]
        %v903 = vld [vmem:[%s762 + $0x248] sm:$0xff]
        %v904 = vld [vmem:[%s762 + $0x250] sm:$0xff]
        %v905 = vld [vmem:[%s762 + $0x258] sm:$0xff]
        %v906 = vld [vmem:[%s762 + $0x260] sm:$0xff]
        %v907 = vld [vmem:[%s762 + $0x268] sm:$0xff]
        %v908 = vld [vmem:[%s762 + $0x270] sm:$0xff]
        %v909 = vld [vmem:[%s762 + $0x278] sm:$0xff]
        %v910 = vld [vmem:[%s762 + $0x280] sm:$0xff]
        %v911 = vld [vmem:[%s762 + $0x288] sm:$0xff]
        %v912 = vld [vmem:[%s762 + $0x290] sm:$0xff]
        %v913 = vld [vmem:[%s762 + $0x298] sm:$0xff]
        %v914 = vld [vmem:[%s762 + $0x2a0] sm:$0xff]
        %v915 = vld [vmem:[%s762 + $0x2a8] sm:$0xff]
        %v916 = vld [vmem:[%s762 + $0x2b0] sm:$0xff]
        %v917 = vld [vmem:[%s762 + $0x2b8] sm:$0xff]
        %v918 = vld [vmem:[%s762 + $0x2c0] sm:$0xff]
        %v919 = vld [vmem:[%s762 + $0x2c8] sm:$0xff]
        %v920 = vld [vmem:[%s762 + $0x2d0] sm:$0xff]
        %v921 = vld [vmem:[%s762 + $0x2d8] sm:$0xff]
        %v922 = vld [vmem:[%s762 + $0x2e0] sm:$0xff]
        %v923 = vld [vmem:[%s762 + $0x2e8] sm:$0xff]
        %v924 = vld [vmem:[%s762 + $0x2f0] sm:$0xff]
        %v925 = vld [vmem:[%s762 + $0x2f8] sm:$0xff]
        %v926 = vld [vmem:[%s762 + $0x300] sm:$0xff]
        %v927 = vld [vmem:[%s762 + $0x308] sm:$0xff]
        %v928 = vld [vmem:[%s762 + $0x310] sm:$0xff]
        %v929 = vld [vmem:[%s762 + $0x318] sm:$0xff]
        %v930 = vld [vmem:[%s762 + $0x320] sm:$0xff]
        %v931 = vld [vmem:[%s762 + $0x328] sm:$0xff]
        %v932 = vld [vmem:[%s762 + $0x330] sm:$0xff]
        %v933 = vld [vmem:[%s762 + $0x338] sm:$0xff]
        %v934 = vld [vmem:[%s762 + $0x340] sm:$0xff]
        %v935 = vld [vmem:[%s762 + $0x348] sm:$0xff]
        %v936 = vld [vmem:[%s762 + $0x350] sm:$0xff]
        %v937 = vld [vmem:[%s762 + $0x358] sm:$0xff]
        %v938 = vld [vmem:[%s762 + $0x360] sm:$0xff]
        %v939 = vld [vmem:[%s762 + $0x368] sm:$0xff]
        %v940 = vld [vmem:[%s762 + $0x370] sm:$0xff]
        %v941 = vld [vmem:[%s762 + $0x378] sm:$0xff]
        %v942 = vld [vmem:[%s762 + $0x380] sm:$0xff]
        %v943 = vld [vmem:[%s762 + $0x388] sm:$0xff]
        %v944 = vld [vmem:[%s762 + $0x390] sm:$0xff]
        %v945 = vld [vmem:[%s762 + $0x398] sm:$0xff]
        %v946 = vld [vmem:[%s762 + $0x3a0] sm:$0xff]
        %v947 = vld [vmem:[%s762 + $0x3a8] sm:$0xff]
        %v948 = vld [vmem:[%s762 + $0x3b0] sm:$0xff]
        %v949 = vld [vmem:[%s762 + $0x3b8] sm:$0xff]
        %v950 = vld [vmem:[%s762 + $0x3c0] sm:$0xff]
        %v951 = vld [vmem:[%s762 + $0x3c8] sm:$0xff]
        %v952 = vld [vmem:[%s762 + $0x3d0] sm:$0xff]
        %v953 = vld [vmem:[%s762 + $0x3d8] sm:$0xff]
        %v954 = vld [vmem:[%s762 + $0x3e0] sm:$0xff]
        %v955 = vld [vmem:[%s762 + $0x3e8] sm:$0xff]
        %v956 = vld [vmem:[%s762 + $0x3f0] sm:$0xff]
        %v957 = vld [vmem:[%s762 + $0x3f8] sm:$0xff]
        %v959 = vcombine.high %v829, %v829
        %v961 = vunpack.c.l.s4 1966171168
        %v962 = vunpack.c.0.s8 %v961
        %v963 = vlaneseq
        %v964 = vshrl.u32 %v963, 7
        %v965 = vsub.s32 %v962, %v964
        %v966 = vrot.slane %v829, %v965
        %v968 = vunpack.c.l.s4 1966171168
        %v969 = vunpack.c.0.s8 %v968
        %v970 = vlaneseq
        %v971 = vshrl.u32 %v970, 7
        %v972 = vsub.s32 %v969, %v971
        %v973 = vrot.slane %v959, %v972
        %v974 = vcombine.high %v966, %v966
        %v975 = vcombine.high %v973, %v973
        %v977 = vunpack.c.l.s4 1966171168
        %v978 = vunpack.c.0.s8 %v977
        %v979 = vlaneseq
        %v980 = vshrl.u32 %v979, 7
        %v981 = vsub.s32 %v978, %v980
        %v982 = vrot.slane %v966, %v981
        %v984 = vunpack.c.l.s4 1966171168
        %v985 = vunpack.c.0.s8 %v984
        %v986 = vlaneseq
        %v987 = vshrl.u32 %v986, 7
        %v988 = vsub.s32 %v985, %v987
        %v989 = vrot.slane %v973, %v988
        %v991 = vunpack.c.l.s4 1966171168
        %v992 = vunpack.c.0.s8 %v991
        %v993 = vlaneseq
        %v994 = vshrl.u32 %v993, 7
        %v995 = vsub.s32 %v992, %v994
        %v996 = vrot.slane %v974, %v995
        %v998 = vunpack.c.l.s4 1966171168
        %v999 = vunpack.c.0.s8 %v998
        %v1000 = vlaneseq
        %v1001 = vshrl.u32 %v1000, 7
        %v1002 = vsub.s32 %v999, %v1001
        %v1003 = vrot.slane %v975, %v1002
        %v1004 = vcombine.high %v982, %v982
        %v1005 = vcombine.high %v989, %v989
        %v1006 = vcombine.high %v996, %v996
        %v1007 = vcombine.high %v1003, %v1003
        %v1144 = vunpack.c.l.b16 %v830
        %v1145 = vunpack.c.h.b16 %v830
        %v1146 = vunpack.c.l.b16 %v831
        %v1147 = vunpack.c.h.b16 %v831
        %v1148 = vunpack.c.l.b16 %v832
        %v1149 = vunpack.c.h.b16 %v832
        %v1150 = vunpack.c.l.b16 %v833
        %v1151 = vunpack.c.h.b16 %v833
        %v1152 = vunpack.c.l.b16 %v834
        %v1153 = vunpack.c.h.b16 %v834
        %v1154 = vunpack.c.l.b16 %v835
        %v1155 = vunpack.c.h.b16 %v835
        %v1156 = vunpack.c.l.b16 %v836
        %v1157 = vunpack.c.h.b16 %v836
        %v1158 = vunpack.c.l.b16 %v837
        %v1159 = vunpack.c.h.b16 %v837
        %v1160 = vunpack.c.l.b16 %v838
        %v1161 = vunpack.c.h.b16 %v838
        %v1162 = vunpack.c.l.b16 %v839
        %v1163 = vunpack.c.h.b16 %v839
        %v1164 = vunpack.c.l.b16 %v840
        %v1165 = vunpack.c.h.b16 %v840
        %v1166 = vunpack.c.l.b16 %v841
        %v1167 = vunpack.c.h.b16 %v841
        %v1168 = vunpack.c.l.b16 %v842
        %v1169 = vunpack.c.h.b16 %v842
        %v1170 = vunpack.c.l.b16 %v843
        %v1171 = vunpack.c.h.b16 %v843
        %v1172 = vunpack.c.l.b16 %v844
        %v1173 = vunpack.c.h.b16 %v844
        %v1174 = vunpack.c.l.b16 %v845
        %v1175 = vunpack.c.h.b16 %v845
        %v1176 = vunpack.c.l.b16 %v846
        %v1177 = vunpack.c.h.b16 %v846
        %v1178 = vunpack.c.l.b16 %v847
        %v1179 = vunpack.c.h.b16 %v847
        %v1180 = vunpack.c.l.b16 %v848
        %v1181 = vunpack.c.h.b16 %v848
        %v1182 = vunpack.c.l.b16 %v849
        %v1183 = vunpack.c.h.b16 %v849
        %v1184 = vunpack.c.l.b16 %v850
        %v1185 = vunpack.c.h.b16 %v850
        %v1186 = vunpack.c.l.b16 %v851
        %v1187 = vunpack.c.h.b16 %v851
        %v1188 = vunpack.c.l.b16 %v852
        %v1189 = vunpack.c.h.b16 %v852
        %v1190 = vunpack.c.l.b16 %v853
        %v1191 = vunpack.c.h.b16 %v853
        %v1192 = vunpack.c.l.b16 %v854
        %v1193 = vunpack.c.h.b16 %v854
        %v1194 = vunpack.c.l.b16 %v855
        %v1195 = vunpack.c.h.b16 %v855
        %v1196 = vunpack.c.l.b16 %v856
        %v1197 = vunpack.c.h.b16 %v856
        %v1198 = vunpack.c.l.b16 %v857
        %v1199 = vunpack.c.h.b16 %v857
        %v1200 = vunpack.c.l.b16 %v858
        %v1201 = vunpack.c.h.b16 %v858
        %v1202 = vunpack.c.l.b16 %v859
        %v1203 = vunpack.c.h.b16 %v859
        %v1204 = vunpack.c.l.b16 %v860
        %v1205 = vunpack.c.h.b16 %v860
        %v1206 = vunpack.c.l.b16 %v861
        %v1207 = vunpack.c.h.b16 %v861
        %v1208 = vunpack.c.l.b16 %v862
        %v1209 = vunpack.c.h.b16 %v862
        %v1210 = vunpack.c.l.b16 %v863
        %v1211 = vunpack.c.h.b16 %v863
        %v1212 = vunpack.c.l.b16 %v864
        %v1213 = vunpack.c.h.b16 %v864
        %v1214 = vunpack.c.l.b16 %v865
        %v1215 = vunpack.c.h.b16 %v865
        %v1216 = vunpack.c.l.b16 %v866
        %v1217 = vunpack.c.h.b16 %v866
        %v1218 = vunpack.c.l.b16 %v867
        %v1219 = vunpack.c.h.b16 %v867
        %v1220 = vunpack.c.l.b16 %v868
        %v1221 = vunpack.c.h.b16 %v868
        %v1222 = vunpack.c.l.b16 %v869
        %v1223 = vunpack.c.h.b16 %v869
        %v1224 = vunpack.c.l.b16 %v870
        %v1225 = vunpack.c.h.b16 %v870
        %v1226 = vunpack.c.l.b16 %v871
        %v1227 = vunpack.c.h.b16 %v871
        %v1228 = vunpack.c.l.b16 %v872
        %v1229 = vunpack.c.h.b16 %v872
        %v1230 = vunpack.c.l.b16 %v873
        %v1231 = vunpack.c.h.b16 %v873
        %v1232 = vunpack.c.l.b16 %v874
        %v1233 = vunpack.c.h.b16 %v874
        %v1234 = vunpack.c.l.b16 %v875
        %v1235 = vunpack.c.h.b16 %v875
        %v1236 = vunpack.c.l.b16 %v876
        %v1237 = vunpack.c.h.b16 %v876
        %v1238 = vunpack.c.l.b16 %v877
        %v1239 = vunpack.c.h.b16 %v877
        %v1240 = vunpack.c.l.b16 %v878
        %v1241 = vunpack.c.h.b16 %v878
        %v1242 = vunpack.c.l.b16 %v879
        %v1243 = vunpack.c.h.b16 %v879
        %v1244 = vunpack.c.l.b16 %v880
        %v1245 = vunpack.c.h.b16 %v880
        %v1246 = vunpack.c.l.b16 %v881
        %v1247 = vunpack.c.h.b16 %v881
        %v1248 = vunpack.c.l.b16 %v882
        %v1249 = vunpack.c.h.b16 %v882
        %v1250 = vunpack.c.l.b16 %v883
        %v1251 = vunpack.c.h.b16 %v883
        %v1252 = vunpack.c.l.b16 %v884
        %v1253 = vunpack.c.h.b16 %v884
        %v1254 = vunpack.c.l.b16 %v885
        %v1255 = vunpack.c.h.b16 %v885
        %v1256 = vunpack.c.l.b16 %v886
        %v1257 = vunpack.c.h.b16 %v886
        %v1258 = vunpack.c.l.b16 %v887
        %v1259 = vunpack.c.h.b16 %v887
        %v1260 = vunpack.c.l.b16 %v888
        %v1261 = vunpack.c.h.b16 %v888
        %v1262 = vunpack.c.l.b16 %v889
        %v1263 = vunpack.c.h.b16 %v889
        %v1264 = vunpack.c.l.b16 %v890
        %v1265 = vunpack.c.h.b16 %v890
        %v1266 = vunpack.c.l.b16 %v891
        %v1267 = vunpack.c.h.b16 %v891
        %v1268 = vunpack.c.l.b16 %v892
        %v1269 = vunpack.c.h.b16 %v892
        %v1270 = vunpack.c.l.b16 %v893
        %v1271 = vunpack.c.h.b16 %v893
        %v1272 = vunpack.c.l.b16 %v894
        %v1273 = vunpack.c.h.b16 %v894
        %v1274 = vunpack.c.l.b16 %v895
        %v1275 = vunpack.c.h.b16 %v895
        %v1276 = vunpack.c.l.b16 %v896
        %v1277 = vunpack.c.h.b16 %v896
        %v1278 = vunpack.c.l.b16 %v897
        %v1279 = vunpack.c.h.b16 %v897
        %v1280 = vunpack.c.l.b16 %v898
        %v1281 = vunpack.c.h.b16 %v898
        %v1282 = vunpack.c.l.b16 %v899
        %v1283 = vunpack.c.h.b16 %v899
        %v1284 = vunpack.c.l.b16 %v900
        %v1285 = vunpack.c.h.b16 %v900
        %v1286 = vunpack.c.l.b16 %v901
        %v1287 = vunpack.c.h.b16 %v901
        %v1288 = vunpack.c.l.b16 %v902
        %v1289 = vunpack.c.h.b16 %v902
        %v1290 = vunpack.c.l.b16 %v903
        %v1291 = vunpack.c.h.b16 %v903
        %v1292 = vunpack.c.l.b16 %v904
        %v1293 = vunpack.c.h.b16 %v904
        %v1294 = vunpack.c.l.b16 %v905
        %v1295 = vunpack.c.h.b16 %v905
        %v1296 = vunpack.c.l.b16 %v906
        %v1297 = vunpack.c.h.b16 %v906
        %v1298 = vunpack.c.l.b16 %v907
        %v1299 = vunpack.c.h.b16 %v907
        %v1300 = vunpack.c.l.b16 %v908
        %v1301 = vunpack.c.h.b16 %v908
        %v1302 = vunpack.c.l.b16 %v909
        %v1303 = vunpack.c.h.b16 %v909
        %v1304 = vunpack.c.l.b16 %v910
        %v1305 = vunpack.c.h.b16 %v910
        %v1306 = vunpack.c.l.b16 %v911
        %v1307 = vunpack.c.h.b16 %v911
        %v1308 = vunpack.c.l.b16 %v912
        %v1309 = vunpack.c.h.b16 %v912
        %v1310 = vunpack.c.l.b16 %v913
        %v1311 = vunpack.c.h.b16 %v913
        %v1312 = vunpack.c.l.b16 %v914
        %v1313 = vunpack.c.h.b16 %v914
        %v1314 = vunpack.c.l.b16 %v915
        %v1315 = vunpack.c.h.b16 %v915
        %v1316 = vunpack.c.l.b16 %v916
        %v1317 = vunpack.c.h.b16 %v916
        %v1318 = vunpack.c.l.b16 %v917
        %v1319 = vunpack.c.h.b16 %v917
        %v1320 = vunpack.c.l.b16 %v918
        %v1321 = vunpack.c.h.b16 %v918
        %v1322 = vunpack.c.l.b16 %v919
        %v1323 = vunpack.c.h.b16 %v919
        %v1324 = vunpack.c.l.b16 %v920
        %v1325 = vunpack.c.h.b16 %v920
        %v1326 = vunpack.c.l.b16 %v921
        %v1327 = vunpack.c.h.b16 %v921
        %v1328 = vunpack.c.l.b16 %v922
        %v1329 = vunpack.c.h.b16 %v922
        %v1330 = vunpack.c.l.b16 %v923
        %v1331 = vunpack.c.h.b16 %v923
        %v1332 = vunpack.c.l.b16 %v924
        %v1333 = vunpack.c.h.b16 %v924
        %v1334 = vunpack.c.l.b16 %v925
        %v1335 = vunpack.c.h.b16 %v925
        %v1336 = vunpack.c.l.b16 %v926
        %v1337 = vunpack.c.h.b16 %v926
        %v1338 = vunpack.c.l.b16 %v927
        %v1339 = vunpack.c.h.b16 %v927
        %v1340 = vunpack.c.l.b16 %v928
        %v1341 = vunpack.c.h.b16 %v928
        %v1342 = vunpack.c.l.b16 %v929
        %v1343 = vunpack.c.h.b16 %v929
        %v1344 = vunpack.c.l.b16 %v930
        %v1345 = vunpack.c.h.b16 %v930
        %v1346 = vunpack.c.l.b16 %v931
        %v1347 = vunpack.c.h.b16 %v931
        %v1348 = vunpack.c.l.b16 %v932
        %v1349 = vunpack.c.h.b16 %v932
        %v1350 = vunpack.c.l.b16 %v933
        %v1351 = vunpack.c.h.b16 %v933
        %v1352 = vunpack.c.l.b16 %v934
        %v1353 = vunpack.c.h.b16 %v934
        %v1354 = vunpack.c.l.b16 %v935
        %v1355 = vunpack.c.h.b16 %v935
        %v1356 = vunpack.c.l.b16 %v936
        %v1357 = vunpack.c.h.b16 %v936
        %v1358 = vunpack.c.l.b16 %v937
        %v1359 = vunpack.c.h.b16 %v937
        %v1360 = vunpack.c.l.b16 %v938
        %v1361 = vunpack.c.h.b16 %v938
        %v1362 = vunpack.c.l.b16 %v939
        %v1363 = vunpack.c.h.b16 %v939
        %v1364 = vunpack.c.l.b16 %v940
        %v1365 = vunpack.c.h.b16 %v940
        %v1366 = vunpack.c.l.b16 %v941
        %v1367 = vunpack.c.h.b16 %v941
        %v1368 = vunpack.c.l.b16 %v942
        %v1369 = vunpack.c.h.b16 %v942
        %v1370 = vunpack.c.l.b16 %v943
        %v1371 = vunpack.c.h.b16 %v943
        %v1372 = vunpack.c.l.b16 %v944
        %v1373 = vunpack.c.h.b16 %v944
        %v1374 = vunpack.c.l.b16 %v945
        %v1375 = vunpack.c.h.b16 %v945
        %v1376 = vunpack.c.l.b16 %v946
        %v1377 = vunpack.c.h.b16 %v946
        %v1378 = vunpack.c.l.b16 %v947
        %v1379 = vunpack.c.h.b16 %v947
        %v1380 = vunpack.c.l.b16 %v948
        %v1381 = vunpack.c.h.b16 %v948
        %v1382 = vunpack.c.l.b16 %v949
        %v1383 = vunpack.c.h.b16 %v949
        %v1384 = vunpack.c.l.b16 %v950
        %v1385 = vunpack.c.h.b16 %v950
        %v1386 = vunpack.c.l.b16 %v951
        %v1387 = vunpack.c.h.b16 %v951
        %v1388 = vunpack.c.l.b16 %v952
        %v1389 = vunpack.c.h.b16 %v952
        %v1390 = vunpack.c.l.b16 %v953
        %v1391 = vunpack.c.h.b16 %v953
        %v1392 = vunpack.c.l.b16 %v954
        %v1393 = vunpack.c.h.b16 %v954
        %v1394 = vunpack.c.l.b16 %v955
        %v1395 = vunpack.c.h.b16 %v955
        %v1396 = vunpack.c.l.b16 %v956
        %v1397 = vunpack.c.h.b16 %v956
        %v1398 = vunpack.c.l.b16 %v957
        %v1399 = vunpack.c.h.b16 %v957
        %v1400 = vpack.c.b16 %v1146, %v1144
        %v1401 = vpack.c.b16 %v1147, %v1145
        %v1402 = vpack.c.b16 %v1150, %v1148
        %v1403 = vpack.c.b16 %v1151, %v1149
        %v1404 = vpack.c.b16 %v1154, %v1152
        %v1405 = vpack.c.b16 %v1155, %v1153
        %v1406 = vpack.c.b16 %v1158, %v1156
        %v1407 = vpack.c.b16 %v1159, %v1157
        %v1408 = vpack.c.b16 %v1162, %v1160
        %v1409 = vpack.c.b16 %v1163, %v1161
        %v1410 = vpack.c.b16 %v1166, %v1164
        %v1411 = vpack.c.b16 %v1167, %v1165
        %v1412 = vpack.c.b16 %v1170, %v1168
        %v1413 = vpack.c.b16 %v1171, %v1169
        %v1414 = vpack.c.b16 %v1174, %v1172
        %v1415 = vpack.c.b16 %v1175, %v1173
        %v1416 = vpack.c.b16 %v1178, %v1176
        %v1417 = vpack.c.b16 %v1179, %v1177
        %v1418 = vpack.c.b16 %v1182, %v1180
        %v1419 = vpack.c.b16 %v1183, %v1181
        %v1420 = vpack.c.b16 %v1186, %v1184
        %v1421 = vpack.c.b16 %v1187, %v1185
        %v1422 = vpack.c.b16 %v1190, %v1188
        %v1423 = vpack.c.b16 %v1191, %v1189
        %v1424 = vpack.c.b16 %v1194, %v1192
        %v1425 = vpack.c.b16 %v1195, %v1193
        %v1426 = vpack.c.b16 %v1198, %v1196
        %v1427 = vpack.c.b16 %v1199, %v1197
        %v1428 = vpack.c.b16 %v1202, %v1200
        %v1429 = vpack.c.b16 %v1203, %v1201
        %v1430 = vpack.c.b16 %v1206, %v1204
        %v1431 = vpack.c.b16 %v1207, %v1205
        %v1432 = vpack.c.b16 %v1210, %v1208
        %v1433 = vpack.c.b16 %v1211, %v1209
        %v1434 = vpack.c.b16 %v1214, %v1212
        %v1435 = vpack.c.b16 %v1215, %v1213
        %v1436 = vpack.c.b16 %v1218, %v1216
        %v1437 = vpack.c.b16 %v1219, %v1217
        %v1438 = vpack.c.b16 %v1222, %v1220
        %v1439 = vpack.c.b16 %v1223, %v1221
        %v1440 = vpack.c.b16 %v1226, %v1224
        %v1441 = vpack.c.b16 %v1227, %v1225
        %v1442 = vpack.c.b16 %v1230, %v1228
        %v1443 = vpack.c.b16 %v1231, %v1229
        %v1444 = vpack.c.b16 %v1234, %v1232
        %v1445 = vpack.c.b16 %v1235, %v1233
        %v1446 = vpack.c.b16 %v1238, %v1236
        %v1447 = vpack.c.b16 %v1239, %v1237
        %v1448 = vpack.c.b16 %v1242, %v1240
        %v1449 = vpack.c.b16 %v1243, %v1241
        %v1450 = vpack.c.b16 %v1246, %v1244
        %v1451 = vpack.c.b16 %v1247, %v1245
        %v1452 = vpack.c.b16 %v1250, %v1248
        %v1453 = vpack.c.b16 %v1251, %v1249
        %v1454 = vpack.c.b16 %v1254, %v1252
        %v1455 = vpack.c.b16 %v1255, %v1253
        %v1456 = vpack.c.b16 %v1258, %v1256
        %v1457 = vpack.c.b16 %v1259, %v1257
        %v1458 = vpack.c.b16 %v1262, %v1260
        %v1459 = vpack.c.b16 %v1263, %v1261
        %v1460 = vpack.c.b16 %v1266, %v1264
        %v1461 = vpack.c.b16 %v1267, %v1265
        %v1462 = vpack.c.b16 %v1270, %v1268
        %v1463 = vpack.c.b16 %v1271, %v1269
        %v1464 = vpack.c.b16 %v1274, %v1272
        %v1465 = vpack.c.b16 %v1275, %v1273
        %v1466 = vpack.c.b16 %v1278, %v1276
        %v1467 = vpack.c.b16 %v1279, %v1277
        %v1468 = vpack.c.b16 %v1282, %v1280
        %v1469 = vpack.c.b16 %v1283, %v1281
        %v1470 = vpack.c.b16 %v1286, %v1284
        %v1471 = vpack.c.b16 %v1287, %v1285
        %v1472 = vpack.c.b16 %v1290, %v1288
        %v1473 = vpack.c.b16 %v1291, %v1289
        %v1474 = vpack.c.b16 %v1294, %v1292
        %v1475 = vpack.c.b16 %v1295, %v1293
        %v1476 = vpack.c.b16 %v1298, %v1296
        %v1477 = vpack.c.b16 %v1299, %v1297
        %v1478 = vpack.c.b16 %v1302, %v1300
        %v1479 = vpack.c.b16 %v1303, %v1301
        %v1480 = vpack.c.b16 %v1306, %v1304
        %v1481 = vpack.c.b16 %v1307, %v1305
        %v1482 = vpack.c.b16 %v1310, %v1308
        %v1483 = vpack.c.b16 %v1311, %v1309
        %v1484 = vpack.c.b16 %v1314, %v1312
        %v1485 = vpack.c.b16 %v1315, %v1313
        %v1486 = vpack.c.b16 %v1318, %v1316
        %v1487 = vpack.c.b16 %v1319, %v1317
        %v1488 = vpack.c.b16 %v1322, %v1320
        %v1489 = vpack.c.b16 %v1323, %v1321
        %v1490 = vpack.c.b16 %v1326, %v1324
        %v1491 = vpack.c.b16 %v1327, %v1325
        %v1492 = vpack.c.b16 %v1330, %v1328
        %v1493 = vpack.c.b16 %v1331, %v1329
        %v1494 = vpack.c.b16 %v1334, %v1332
        %v1495 = vpack.c.b16 %v1335, %v1333
        %v1496 = vpack.c.b16 %v1338, %v1336
        %v1497 = vpack.c.b16 %v1339, %v1337
        %v1498 = vpack.c.b16 %v1342, %v1340
        %v1499 = vpack.c.b16 %v1343, %v1341
        %v1500 = vpack.c.b16 %v1346, %v1344
        %v1501 = vpack.c.b16 %v1347, %v1345
        %v1502 = vpack.c.b16 %v1350, %v1348
        %v1503 = vpack.c.b16 %v1351, %v1349
        %v1504 = vpack.c.b16 %v1354, %v1352
        %v1505 = vpack.c.b16 %v1355, %v1353
        %v1506 = vpack.c.b16 %v1358, %v1356
        %v1507 = vpack.c.b16 %v1359, %v1357
        %v1508 = vpack.c.b16 %v1362, %v1360
        %v1509 = vpack.c.b16 %v1363, %v1361
        %v1510 = vpack.c.b16 %v1366, %v1364
        %v1511 = vpack.c.b16 %v1367, %v1365
        %v1512 = vpack.c.b16 %v1370, %v1368
        %v1513 = vpack.c.b16 %v1371, %v1369
        %v1514 = vpack.c.b16 %v1374, %v1372
        %v1515 = vpack.c.b16 %v1375, %v1373
        %v1516 = vpack.c.b16 %v1378, %v1376
        %v1517 = vpack.c.b16 %v1379, %v1377
        %v1518 = vpack.c.b16 %v1382, %v1380
        %v1519 = vpack.c.b16 %v1383, %v1381
        %v1520 = vpack.c.b16 %v1386, %v1384
        %v1521 = vpack.c.b16 %v1387, %v1385
        %v1522 = vpack.c.b16 %v1390, %v1388
        %v1523 = vpack.c.b16 %v1391, %v1389
        %v1524 = vpack.c.b16 %v1394, %v1392
        %v1525 = vpack.c.b16 %v1395, %v1393
        %v1526 = vpack.c.b16 %v1398, %v1396
        %v1527 = vpack.c.b16 %v1399, %v1397
        %1656 = vmatprep.subr.bf16.mxu0 %v1401
        %1657 = vmatpush1.bf16.msra.mxu0 %v1400
        %1658 = vmatprep.subr.bf16.mxu0 %v1403
        %1659 = vmatpush1.bf16.msra.mxu0 %v1402
        %1660 = vmatprep.subr.bf16.mxu0 %v1405
        %1661 = vmatpush1.bf16.msra.mxu0 %v1404
        %1662 = vmatprep.subr.bf16.mxu0 %v1407
        %1663 = vmatpush1.bf16.msra.mxu0 %v1406
        %1664 = vmatprep.subr.bf16.mxu0 %v1409
        %1665 = vmatpush1.bf16.msra.mxu0 %v1408
        %1666 = vmatprep.subr.bf16.mxu0 %v1411
        %1667 = vmatpush1.bf16.msra.mxu0 %v1410
        %1668 = vmatprep.subr.bf16.mxu0 %v1413
        %1669 = vmatpush1.bf16.msra.mxu0 %v1412
        %1670 = vmatprep.subr.bf16.mxu0 %v1415
        %1671 = vmatpush1.bf16.msra.mxu0 %v1414
        %1672 = vmatprep.subr.bf16.mxu0 %v1417
        %1673 = vmatpush1.bf16.msra.mxu0 %v1416
        %1674 = vmatprep.subr.bf16.mxu0 %v1419
        %1675 = vmatpush1.bf16.msra.mxu0 %v1418
        %1676 = vmatprep.subr.bf16.mxu0 %v1421
        %1677 = vmatpush1.bf16.msra.mxu0 %v1420
        %1678 = vmatprep.subr.bf16.mxu0 %v1423
        %1679 = vmatpush1.bf16.msra.mxu0 %v1422
        %1680 = vmatprep.subr.bf16.mxu0 %v1425
        %1681 = vmatpush1.bf16.msra.mxu0 %v1424
        %1682 = vmatprep.subr.bf16.mxu0 %v1427
        %1683 = vmatpush1.bf16.msra.mxu0 %v1426
        %1684 = vmatprep.subr.bf16.mxu0 %v1429
        %1685 = vmatpush1.bf16.msra.mxu0 %v1428
        %1686 = vmatprep.subr.bf16.mxu0 %v1431
        %1687 = vmatpush1.bf16.msra.mxu0 %v1430
        %1688 = vmatprep.mubr.bf16.mxu0 %v996
        %1689 = vmatmul.mubr.bf16.gmra.mrb[0].mxu0 %v982
        %v1690 = vpop.f32.mrb[0].mxu0
        %v1691 = vadd.f32 0.0, %v1690
        %v1692 = vpop.f32.mrb[0].mxu0
        %v1693 = vadd.f32 0.0, %v1692
        %v1694 = vpop.f32.mrb[0].mxu0
        %v1695 = vpop.f32.mrb[0].mxu0
        %1696 = vdwg.mxu0
        %1697 = vmatprep.subr.bf16.mxu0 %v1433
        %1698 = vmatpush1.bf16.msra.mxu0 %v1432
        %1699 = vmatprep.subr.bf16.mxu0 %v1435
        %1700 = vmatpush1.bf16.msra.mxu0 %v1434
        %1701 = vmatprep.subr.bf16.mxu0 %v1437
        %1702 = vmatpush1.bf16.msra.mxu0 %v1436
        %1703 = vmatprep.subr.bf16.mxu0 %v1439
        %1704 = vmatpush1.bf16.msra.mxu0 %v1438
        %1705 = vmatprep.subr.bf16.mxu0 %v1441
        %1706 = vmatpush1.bf16.msra.mxu0 %v1440
        %1707 = vmatprep.subr.bf16.mxu0 %v1443
        %1708 = vmatpush1.bf16.msra.mxu0 %v1442
        %1709 = vmatprep.subr.bf16.mxu0 %v1445
        %1710 = vmatpush1.bf16.msra.mxu0 %v1444
        %1711 = vmatprep.subr.bf16.mxu0 %v1447
        %1712 = vmatpush1.bf16.msra.mxu0 %v1446
        %1713 = vmatprep.subr.bf16.mxu0 %v1449
        %1714 = vmatpush1.bf16.msra.mxu0 %v1448
        %1715 = vmatprep.subr.bf16.mxu0 %v1451
        %1716 = vmatpush1.bf16.msra.mxu0 %v1450
        %1717 = vmatprep.subr.bf16.mxu0 %v1453
        %1718 = vmatpush1.bf16.msra.mxu0 %v1452
        %1719 = vmatprep.subr.bf16.mxu0 %v1455
        %1720 = vmatpush1.bf16.msra.mxu0 %v1454
        %1721 = vmatprep.subr.bf16.mxu0 %v1457
        %1722 = vmatpush1.bf16.msra.mxu0 %v1456
        %1723 = vmatprep.subr.bf16.mxu0 %v1459
        %1724 = vmatpush1.bf16.msra.mxu0 %v1458
        %1725 = vmatprep.subr.bf16.mxu0 %v1461
        %1726 = vmatpush1.bf16.msra.mxu0 %v1460
        %1727 = vmatprep.subr.bf16.mxu0 %v1463
        %1728 = vmatpush1.bf16.msra.mxu0 %v1462
        %1729 = vmatprep.mubr.bf16.mxu0 %v1006
        %1730 = vmatmul.mubr.bf16.gmra.mrb[0].mxu0 %v1004
        %v1731 = vpop.f32.mrb[0].mxu0
        %v1732 = vadd.f32 %v1691, %v1731
        %v1733 = vpop.f32.mrb[0].mxu0
        %v1734 = vadd.f32 %v1693, %v1733
        %v1735 = vpop.f32.mrb[0].mxu0
        %v1736 = vpop.f32.mrb[0].mxu0
        %1737 = vdwg.mxu0
        %1738 = vmatprep.subr.bf16.mxu0 %v1465
        %1739 = vmatpush1.bf16.msra.mxu0 %v1464
        %1740 = vmatprep.subr.bf16.mxu0 %v1467
        %1741 = vmatpush1.bf16.msra.mxu0 %v1466
        %1742 = vmatprep.subr.bf16.mxu0 %v1469
        %1743 = vmatpush1.bf16.msra.mxu0 %v1468
        %1744 = vmatprep.subr.bf16.mxu0 %v1471
        %1745 = vmatpush1.bf16.msra.mxu0 %v1470
        %1746 = vmatprep.subr.bf16.mxu0 %v1473
        %1747 = vmatpush1.bf16.msra.mxu0 %v1472
        %1748 = vmatprep.subr.bf16.mxu0 %v1475
        %1749 = vmatpush1.bf16.msra.mxu0 %v1474
        %1750 = vmatprep.subr.bf16.mxu0 %v1477
        %1751 = vmatpush1.bf16.msra.mxu0 %v1476
        %1752 = vmatprep.subr.bf16.mxu0 %v1479
        %1753 = vmatpush1.bf16.msra.mxu0 %v1478
        %1754 = vmatprep.subr.bf16.mxu0 %v1481
        %1755 = vmatpush1.bf16.msra.mxu0 %v1480
        %1756 = vmatprep.subr.bf16.mxu0 %v1483
        %1757 = vmatpush1.bf16.msra.mxu0 %v1482
        %1758 = vmatprep.subr.bf16.mxu0 %v1485
        %1759 = vmatpush1.bf16.msra.mxu0 %v1484
        %1760 = vmatprep.subr.bf16.mxu0 %v1487
        %1761 = vmatpush1.bf16.msra.mxu0 %v1486
        %1762 = vmatprep.subr.bf16.mxu0 %v1489
        %1763 = vmatpush1.bf16.msra.mxu0 %v1488
        %1764 = vmatprep.subr.bf16.mxu0 %v1491
        %1765 = vmatpush1.bf16.msra.mxu0 %v1490
        %1766 = vmatprep.subr.bf16.mxu0 %v1493
        %1767 = vmatpush1.bf16.msra.mxu0 %v1492
        %1768 = vmatprep.subr.bf16.mxu0 %v1495
        %1769 = vmatpush1.bf16.msra.mxu0 %v1494
        %1770 = vmatprep.mubr.bf16.mxu0 %v1003
        %1771 = vmatmul.mubr.bf16.gmra.mrb[0].mxu0 %v989
        %v1772 = vpop.f32.mrb[0].mxu0
        %v1773 = vadd.f32 %v1732, %v1772
        %v1774 = vpop.f32.mrb[0].mxu0
        %v1775 = vadd.f32 %v1734, %v1774
        %v1776 = vpop.f32.mrb[0].mxu0
        %v1777 = vpop.f32.mrb[0].mxu0
        %1778 = vdwg.mxu0
        %1779 = vmatprep.subr.bf16.mxu0 %v1497
        %1780 = vmatpush1.bf16.msra.mxu0 %v1496
        %1781 = vmatprep.subr.bf16.mxu0 %v1499
        %1782 = vmatpush1.bf16.msra.mxu0 %v1498
        %1783 = vmatprep.subr.bf16.mxu0 %v1501
        %1784 = vmatpush1.bf16.msra.mxu0 %v1500
        %1785 = vmatprep.subr.bf16.mxu0 %v1503
        %1786 = vmatpush1.bf16.msra.mxu0 %v1502
        %1787 = vmatprep.subr.bf16.mxu0 %v1505
        %1788 = vmatpush1.bf16.msra.mxu0 %v1504
        %1789 = vmatprep.subr.bf16.mxu0 %v1507
        %1790 = vmatpush1.bf16.msra.mxu0 %v1506
        %1791 = vmatprep.subr.bf16.mxu0 %v1509
        %1792 = vmatpush1.bf16.msra.mxu0 %v1508
        %1793 = vmatprep.subr.bf16.mxu0 %v1511
        %1794 = vmatpush1.bf16.msra.mxu0 %v1510
        %1795 = vmatprep.subr.bf16.mxu0 %v1513
        %1796 = vmatpush1.bf16.msra.mxu0 %v1512
        %1797 = vmatprep.subr.bf16.mxu0 %v1515
        %1798 = vmatpush1.bf16.msra.mxu0 %v1514
        %1799 = vmatprep.subr.bf16.mxu0 %v1517
        %1800 = vmatpush1.bf16.msra.mxu0 %v1516
        %1801 = vmatprep.subr.bf16.mxu0 %v1519
        %1802 = vmatpush1.bf16.msra.mxu0 %v1518
        %1803 = vmatprep.subr.bf16.mxu0 %v1521
        %1804 = vmatpush1.bf16.msra.mxu0 %v1520
        %1805 = vmatprep.subr.bf16.mxu0 %v1523
        %1806 = vmatpush1.bf16.msra.mxu0 %v1522
        %1807 = vmatprep.subr.bf16.mxu0 %v1525
        %1808 = vmatpush1.bf16.msra.mxu0 %v1524
        %1809 = vmatprep.subr.bf16.mxu0 %v1527
        %1810 = vmatpush1.bf16.msra.mxu0 %v1526
        %1811 = vmatprep.mubr.bf16.mxu0 %v1007
        %1812 = vmatmul.mubr.bf16.gmra.mrb[0].mxu0 %v1005
        %v1813 = vpop.f32.mrb[0].mxu0
        %v1814 = vadd.f32 %v1773, %v1813
        %v1815 = vpop.f32.mrb[0].mxu0
        %v1816 = vadd.f32 %v1775, %v1815
        %v1817 = vpop.f32.mrb[0].mxu0
        %v1818 = vpop.f32.mrb[0].mxu0
        %1819 = vdwg.mxu0
        %v1822 = vcombine.low %v1814, %v1816
        %v1824 = vunpack.c.l.s4 1983009808
        %v1825 = vunpack.c.0.s8 %v1824
        %v1826 = vlaneseq
        %v1827 = vshrl.u32 %v1826, 7
        %v1828 = vsub.s32 %v1825, %v1827
        %v1829 = vrot.slane %v1822, %v1828
        %v1831 = vadd.f32 %v828, %v1829
        %1832 = vst [vmem:[#allocation2] sm:$0xf] %v1831
        %p1833 = scmp.eq.s32.totalorder %s20, 3
        // Predicated region
        $region79: #{forward.7} parent=69 // pred_check
          %p1834 = pneg %p1833
        $region80: #{forward.7} parent=69 // pred_check_branch
          %1836 = sbr.rel (%p1834) target = $region82
        $region81: #{forward.7} parent=69 // pred_region
          %v1837 = vld [vmem:[#allocation2] sm:$0xf]
          %v1838 = vld [vmem:[%s809] sm:$0x3]
          %v1840 = vlaneseq
          %v1841 = vshrl.u32 %v1840, 7
          %v1842 = vsub.s32 0, %v1841
          %v1843 = vrot.slane %v1838, %v1842
          %v1844 = vlaneseq
          %v1845 = vshrl.u32 %v1844, 7
          %v1846 = vsub.s32 1, %v1845
          %v1847 = vrot.slane %v1838, %v1846
          %v1848 = vcombine.low %v1843, %v1847
          %v1850 = vunpack.c.l.s4 1983009808
          %v1851 = vunpack.c.0.s8 %v1850
          %v1852 = vlaneseq
          %v1853 = vshrl.u32 %v1852, 7
          %v1854 = vsub.s32 %v1851, %v1853
          %v1855 = vrot.slane %v1848, %v1854
          %v1857 = vadd.f32 %v1837, %v1855
          %v1858 = vmax.f32 %v1857, 0.0
          %v1861 = vunpack.c.l.s4 1983009808
          %v1862 = vunpack.c.0.s8 %v1861
          %v1863 = vlaneseq
          %v1864 = vshrl.u32 %v1863, 7
          %v1865 = vsub.s32 %v1862, %v1864
          %v1866 = vrot.slane %v1858, %v1865
          %v1867 = vcombine.high %v1866, %v1866
          %v1870 = vpack.c.bf16 %v1866, %v1866
          %v1871 = vpack.c.bf16 %v1867, %v1867
          %v1872 = vld [vmem:[%s816] sm:$0xff]
          %v1873 = vld [vmem:[%s816 + $0x8] sm:$0xff]
          %v1874 = vld [vmem:[%s816 + $0x10] sm:$0xff]
          %v1875 = vld [vmem:[%s816 + $0x18] sm:$0xff]
          %v1876 = vld [vmem:[%s816 + $0x20] sm:$0xff]
          %v1877 = vld [vmem:[%s816 + $0x28] sm:$0xff]
          %v1878 = vld [vmem:[%s816 + $0x30] sm:$0xff]
          %v1879 = vld [vmem:[%s816 + $0x38] sm:$0xff]
          %v1880 = vld [vmem:[%s816 + $0x40] sm:$0xff]
          %v1881 = vld [vmem:[%s816 + $0x48] sm:$0xff]
          %v1882 = vld [vmem:[%s816 + $0x50] sm:$0xff]
          %v1883 = vld [vmem:[%s816 + $0x58] sm:$0xff]
          %v1884 = vld [vmem:[%s816 + $0x60] sm:$0xff]
          %v1885 = vld [vmem:[%s816 + $0x68] sm:$0xff]
          %v1886 = vld [vmem:[%s816 + $0x70] sm:$0xff]
          %v1887 = vld [vmem:[%s816 + $0x78] sm:$0xff]
          %v1888 = vld [vmem:[%s816 + $0x80] sm:$0xff]
          %v1889 = vld [vmem:[%s816 + $0x88] sm:$0xff]
          %v1890 = vld [vmem:[%s816 + $0x90] sm:$0xff]
          %v1891 = vld [vmem:[%s816 + $0x98] sm:$0xff]
          %v1892 = vld [vmem:[%s816 + $0xa0] sm:$0xff]
          %v1893 = vld [vmem:[%s816 + $0xa8] sm:$0xff]
          %v1894 = vld [vmem:[%s816 + $0xb0] sm:$0xff]
          %v1895 = vld [vmem:[%s816 + $0xb8] sm:$0xff]
          %v1896 = vld [vmem:[%s816 + $0xc0] sm:$0xff]
          %v1897 = vld [vmem:[%s816 + $0xc8] sm:$0xff]
          %v1898 = vld [vmem:[%s816 + $0xd0] sm:$0xff]
          %v1899 = vld [vmem:[%s816 + $0xd8] sm:$0xff]
          %v1900 = vld [vmem:[%s816 + $0xe0] sm:$0xff]
          %v1901 = vld [vmem:[%s816 + $0xe8] sm:$0xff]
          %v1902 = vld [vmem:[%s816 + $0xf0] sm:$0xff]
          %v1903 = vld [vmem:[%s816 + $0xf8] sm:$0xff]
          %v1904 = vld [vmem:[%s816 + $0x100] sm:$0xff]
          %v1905 = vld [vmem:[%s816 + $0x108] sm:$0xff]
          %v1906 = vld [vmem:[%s816 + $0x110] sm:$0xff]
          %v1907 = vld [vmem:[%s816 + $0x118] sm:$0xff]
          %v1908 = vld [vmem:[%s816 + $0x120] sm:$0xff]
          %v1909 = vld [vmem:[%s816 + $0x128] sm:$0xff]
          %v1910 = vld [vmem:[%s816 + $0x130] sm:$0xff]
          %v1911 = vld [vmem:[%s816 + $0x138] sm:$0xff]
          %v1912 = vld [vmem:[%s816 + $0x140] sm:$0xff]
          %v1913 = vld [vmem:[%s816 + $0x148] sm:$0xff]
          %v1914 = vld [vmem:[%s816 + $0x150] sm:$0xff]
          %v1915 = vld [vmem:[%s816 + $0x158] sm:$0xff]
          %v1916 = vld [vmem:[%s816 + $0x160] sm:$0xff]
          %v1917 = vld [vmem:[%s816 + $0x168] sm:$0xff]
          %v1918 = vld [vmem:[%s816 + $0x170] sm:$0xff]
          %v1919 = vld [vmem:[%s816 + $0x178] sm:$0xff]
          %v1920 = vld [vmem:[%s816 + $0x180] sm:$0xff]
          %v1921 = vld [vmem:[%s816 + $0x188] sm:$0xff]
          %v1922 = vld [vmem:[%s816 + $0x190] sm:$0xff]
          %v1923 = vld [vmem:[%s816 + $0x198] sm:$0xff]
          %v1924 = vld [vmem:[%s816 + $0x1a0] sm:$0xff]
          %v1925 = vld [vmem:[%s816 + $0x1a8] sm:$0xff]
          %v1926 = vld [vmem:[%s816 + $0x1b0] sm:$0xff]
          %v1927 = vld [vmem:[%s816 + $0x1b8] sm:$0xff]
          %v1928 = vld [vmem:[%s816 + $0x1c0] sm:$0xff]
          %v1929 = vld [vmem:[%s816 + $0x1c8] sm:$0xff]
          %v1930 = vld [vmem:[%s816 + $0x1d0] sm:$0xff]
          %v1931 = vld [vmem:[%s816 + $0x1d8] sm:$0xff]
          %v1932 = vld [vmem:[%s816 + $0x1e0] sm:$0xff]
          %v1933 = vld [vmem:[%s816 + $0x1e8] sm:$0xff]
          %v1934 = vld [vmem:[%s816 + $0x1f0] sm:$0xff]
          %v1935 = vld [vmem:[%s816 + $0x1f8] sm:$0xff]
          %v1936 = vld [vmem:[%s816 + $0x200] sm:$0xff]
          %v1937 = vld [vmem:[%s816 + $0x208] sm:$0xff]
          %v1938 = vld [vmem:[%s816 + $0x210] sm:$0xff]
          %v1939 = vld [vmem:[%s816 + $0x218] sm:$0xff]
          %v1940 = vld [vmem:[%s816 + $0x220] sm:$0xff]
          %v1941 = vld [vmem:[%s816 + $0x228] sm:$0xff]
          %v1942 = vld [vmem:[%s816 + $0x230] sm:$0xff]
          %v1943 = vld [vmem:[%s816 + $0x238] sm:$0xff]
          %v1944 = vld [vmem:[%s816 + $0x240] sm:$0xff]
          %v1945 = vld [vmem:[%s816 + $0x248] sm:$0xff]
          %v1946 = vld [vmem:[%s816 + $0x250] sm:$0xff]
          %v1947 = vld [vmem:[%s816 + $0x258] sm:$0xff]
          %v1948 = vld [vmem:[%s816 + $0x260] sm:$0xff]
          %v1949 = vld [vmem:[%s816 + $0x268] sm:$0xff]
          %v1950 = vld [vmem:[%s816 + $0x270] sm:$0xff]
          %v1951 = vld [vmem:[%s816 + $0x278] sm:$0xff]
          %v1952 = vld [vmem:[%s816 + $0x280] sm:$0xff]
          %v1953 = vld [vmem:[%s816 + $0x288] sm:$0xff]
          %v1954 = vld [vmem:[%s816 + $0x290] sm:$0xff]
          %v1955 = vld [vmem:[%s816 + $0x298] sm:$0xff]
          %v1956 = vld [vmem:[%s816 + $0x2a0] sm:$0xff]
          %v1957 = vld [vmem:[%s816 + $0x2a8] sm:$0xff]
          %v1958 = vld [vmem:[%s816 + $0x2b0] sm:$0xff]
          %v1959 = vld [vmem:[%s816 + $0x2b8] sm:$0xff]
          %v1960 = vld [vmem:[%s816 + $0x2c0] sm:$0xff]
          %v1961 = vld [vmem:[%s816 + $0x2c8] sm:$0xff]
          %v1962 = vld [vmem:[%s816 + $0x2d0] sm:$0xff]
          %v1963 = vld [vmem:[%s816 + $0x2d8] sm:$0xff]
          %v1964 = vld [vmem:[%s816 + $0x2e0] sm:$0xff]
          %v1965 = vld [vmem:[%s816 + $0x2e8] sm:$0xff]
          %v1966 = vld [vmem:[%s816 + $0x2f0] sm:$0xff]
          %v1967 = vld [vmem:[%s816 + $0x2f8] sm:$0xff]
          %v1968 = vld [vmem:[%s816 + $0x300] sm:$0xff]
          %v1969 = vld [vmem:[%s816 + $0x308] sm:$0xff]
          %v1970 = vld [vmem:[%s816 + $0x310] sm:$0xff]
          %v1971 = vld [vmem:[%s816 + $0x318] sm:$0xff]
          %v1972 = vld [vmem:[%s816 + $0x320] sm:$0xff]
          %v1973 = vld [vmem:[%s816 + $0x328] sm:$0xff]
          %v1974 = vld [vmem:[%s816 + $0x330] sm:$0xff]
          %v1975 = vld [vmem:[%s816 + $0x338] sm:$0xff]
          %v1976 = vld [vmem:[%s816 + $0x340] sm:$0xff]
          %v1977 = vld [vmem:[%s816 + $0x348] sm:$0xff]
          %v1978 = vld [vmem:[%s816 + $0x350] sm:$0xff]
          %v1979 = vld [vmem:[%s816 + $0x358] sm:$0xff]
          %v1980 = vld [vmem:[%s816 + $0x360] sm:$0xff]
          %v1981 = vld [vmem:[%s816 + $0x368] sm:$0xff]
          %v1982 = vld [vmem:[%s816 + $0x370] sm:$0xff]
          %v1983 = vld [vmem:[%s816 + $0x378] sm:$0xff]
          %v1984 = vld [vmem:[%s816 + $0x380] sm:$0xff]
          %v1985 = vld [vmem:[%s816 + $0x388] sm:$0xff]
          %v1986 = vld [vmem:[%s816 + $0x390] sm:$0xff]
          %v1987 = vld [vmem:[%s816 + $0x398] sm:$0xff]
          %v1988 = vld [vmem:[%s816 + $0x3a0] sm:$0xff]
          %v1989 = vld [vmem:[%s816 + $0x3a8] sm:$0xff]
          %v1990 = vld [vmem:[%s816 + $0x3b0] sm:$0xff]
          %v1991 = vld [vmem:[%s816 + $0x3b8] sm:$0xff]
          %v1992 = vld [vmem:[%s816 + $0x3c0] sm:$0xff]
          %v1993 = vld [vmem:[%s816 + $0x3c8] sm:$0xff]
          %v1994 = vld [vmem:[%s816 + $0x3d0] sm:$0xff]
          %v1995 = vld [vmem:[%s816 + $0x3d8] sm:$0xff]
          %v1996 = vld [vmem:[%s816 + $0x3e0] sm:$0xff]
          %v1997 = vld [vmem:[%s816 + $0x3e8] sm:$0xff]
          %v1998 = vld [vmem:[%s816 + $0x3f0] sm:$0xff]
          %v1999 = vld [vmem:[%s816 + $0x3f8] sm:$0xff]
          %v2128 = vunpack.c.l.b16 %v1872
          %v2129 = vunpack.c.h.b16 %v1872
          %v2130 = vunpack.c.l.b16 %v1873
          %v2131 = vunpack.c.h.b16 %v1873
          %v2132 = vunpack.c.l.b16 %v1874
          %v2133 = vunpack.c.h.b16 %v1874
          %v2134 = vunpack.c.l.b16 %v1875
          %v2135 = vunpack.c.h.b16 %v1875
          %v2136 = vunpack.c.l.b16 %v1876
          %v2137 = vunpack.c.h.b16 %v1876
          %v2138 = vunpack.c.l.b16 %v1877
          %v2139 = vunpack.c.h.b16 %v1877
          %v2140 = vunpack.c.l.b16 %v1878
          %v2141 = vunpack.c.h.b16 %v1878
          %v2142 = vunpack.c.l.b16 %v1879
          %v2143 = vunpack.c.h.b16 %v1879
          %v2144 = vunpack.c.l.b16 %v1880
          %v2145 = vunpack.c.h.b16 %v1880
          %v2146 = vunpack.c.l.b16 %v1881
          %v2147 = vunpack.c.h.b16 %v1881
          %v2148 = vunpack.c.l.b16 %v1882
          %v2149 = vunpack.c.h.b16 %v1882
          %v2150 = vunpack.c.l.b16 %v1883
          %v2151 = vunpack.c.h.b16 %v1883
          %v2152 = vunpack.c.l.b16 %v1884
          %v2153 = vunpack.c.h.b16 %v1884
          %v2154 = vunpack.c.l.b16 %v1885
          %v2155 = vunpack.c.h.b16 %v1885
          %v2156 = vunpack.c.l.b16 %v1886
          %v2157 = vunpack.c.h.b16 %v1886
          %v2158 = vunpack.c.l.b16 %v1887
          %v2159 = vunpack.c.h.b16 %v1887
          %v2160 = vunpack.c.l.b16 %v1888
          %v2161 = vunpack.c.h.b16 %v1888
          %v2162 = vunpack.c.l.b16 %v1889
          %v2163 = vunpack.c.h.b16 %v1889
          %v2164 = vunpack.c.l.b16 %v1890
          %v2165 = vunpack.c.h.b16 %v1890
          %v2166 = vunpack.c.l.b16 %v1891
          %v2167 = vunpack.c.h.b16 %v1891
          %v2168 = vunpack.c.l.b16 %v1892
          %v2169 = vunpack.c.h.b16 %v1892
          %v2170 = vunpack.c.l.b16 %v1893
          %v2171 = vunpack.c.h.b16 %v1893
          %v2172 = vunpack.c.l.b16 %v1894
          %v2173 = vunpack.c.h.b16 %v1894
          %v2174 = vunpack.c.l.b16 %v1895
          %v2175 = vunpack.c.h.b16 %v1895
          %v2176 = vunpack.c.l.b16 %v1896
          %v2177 = vunpack.c.h.b16 %v1896
          %v2178 = vunpack.c.l.b16 %v1897
          %v2179 = vunpack.c.h.b16 %v1897
          %v2180 = vunpack.c.l.b16 %v1898
          %v2181 = vunpack.c.h.b16 %v1898
          %v2182 = vunpack.c.l.b16 %v1899
          %v2183 = vunpack.c.h.b16 %v1899
          %v2184 = vunpack.c.l.b16 %v1900
          %v2185 = vunpack.c.h.b16 %v1900
          %v2186 = vunpack.c.l.b16 %v1901
          %v2187 = vunpack.c.h.b16 %v1901
          %v2188 = vunpack.c.l.b16 %v1902
          %v2189 = vunpack.c.h.b16 %v1902
          %v2190 = vunpack.c.l.b16 %v1903
          %v2191 = vunpack.c.h.b16 %v1903
          %v2192 = vunpack.c.l.b16 %v1904
          %v2193 = vunpack.c.h.b16 %v1904
          %v2194 = vunpack.c.l.b16 %v1905
          %v2195 = vunpack.c.h.b16 %v1905
          %v2196 = vunpack.c.l.b16 %v1906
          %v2197 = vunpack.c.h.b16 %v1906
          %v2198 = vunpack.c.l.b16 %v1907
          %v2199 = vunpack.c.h.b16 %v1907
          %v2200 = vunpack.c.l.b16 %v1908
          %v2201 = vunpack.c.h.b16 %v1908
          %v2202 = vunpack.c.l.b16 %v1909
          %v2203 = vunpack.c.h.b16 %v1909
          %v2204 = vunpack.c.l.b16 %v1910
          %v2205 = vunpack.c.h.b16 %v1910
          %v2206 = vunpack.c.l.b16 %v1911
          %v2207 = vunpack.c.h.b16 %v1911
          %v2208 = vunpack.c.l.b16 %v1912
          %v2209 = vunpack.c.h.b16 %v1912
          %v2210 = vunpack.c.l.b16 %v1913
          %v2211 = vunpack.c.h.b16 %v1913
          %v2212 = vunpack.c.l.b16 %v1914
          %v2213 = vunpack.c.h.b16 %v1914
          %v2214 = vunpack.c.l.b16 %v1915
          %v2215 = vunpack.c.h.b16 %v1915
          %v2216 = vunpack.c.l.b16 %v1916
          %v2217 = vunpack.c.h.b16 %v1916
          %v2218 = vunpack.c.l.b16 %v1917
          %v2219 = vunpack.c.h.b16 %v1917
          %v2220 = vunpack.c.l.b16 %v1918
          %v2221 = vunpack.c.h.b16 %v1918
          %v2222 = vunpack.c.l.b16 %v1919
          %v2223 = vunpack.c.h.b16 %v1919
          %v2224 = vunpack.c.l.b16 %v1920
          %v2225 = vunpack.c.h.b16 %v1920
          %v2226 = vunpack.c.l.b16 %v1921
          %v2227 = vunpack.c.h.b16 %v1921
          %v2228 = vunpack.c.l.b16 %v1922
          %v2229 = vunpack.c.h.b16 %v1922
          %v2230 = vunpack.c.l.b16 %v1923
          %v2231 = vunpack.c.h.b16 %v1923
          %v2232 = vunpack.c.l.b16 %v1924
          %v2233 = vunpack.c.h.b16 %v1924
          %v2234 = vunpack.c.l.b16 %v1925
          %v2235 = vunpack.c.h.b16 %v1925
          %v2236 = vunpack.c.l.b16 %v1926
          %v2237 = vunpack.c.h.b16 %v1926
          %v2238 = vunpack.c.l.b16 %v1927
          %v2239 = vunpack.c.h.b16 %v1927
          %v2240 = vunpack.c.l.b16 %v1928
          %v2241 = vunpack.c.h.b16 %v1928
          %v2242 = vunpack.c.l.b16 %v1929
          %v2243 = vunpack.c.h.b16 %v1929
          %v2244 = vunpack.c.l.b16 %v1930
          %v2245 = vunpack.c.h.b16 %v1930
          %v2246 = vunpack.c.l.b16 %v1931
          %v2247 = vunpack.c.h.b16 %v1931
          %v2248 = vunpack.c.l.b16 %v1932
          %v2249 = vunpack.c.h.b16 %v1932
          %v2250 = vunpack.c.l.b16 %v1933
          %v2251 = vunpack.c.h.b16 %v1933
          %v2252 = vunpack.c.l.b16 %v1934
          %v2253 = vunpack.c.h.b16 %v1934
          %v2254 = vunpack.c.l.b16 %v1935
          %v2255 = vunpack.c.h.b16 %v1935
          %v2256 = vunpack.c.l.b16 %v1936
          %v2257 = vunpack.c.h.b16 %v1936
          %v2258 = vunpack.c.l.b16 %v1937
          %v2259 = vunpack.c.h.b16 %v1937
          %v2260 = vunpack.c.l.b16 %v1938
          %v2261 = vunpack.c.h.b16 %v1938
          %v2262 = vunpack.c.l.b16 %v1939
          %v2263 = vunpack.c.h.b16 %v1939
          %v2264 = vunpack.c.l.b16 %v1940
          %v2265 = vunpack.c.h.b16 %v1940
          %v2266 = vunpack.c.l.b16 %v1941
          %v2267 = vunpack.c.h.b16 %v1941
          %v2268 = vunpack.c.l.b16 %v1942
          %v2269 = vunpack.c.h.b16 %v1942
          %v2270 = vunpack.c.l.b16 %v1943
          %v2271 = vunpack.c.h.b16 %v1943
          %v2272 = vunpack.c.l.b16 %v1944
          %v2273 = vunpack.c.h.b16 %v1944
          %v2274 = vunpack.c.l.b16 %v1945
          %v2275 = vunpack.c.h.b16 %v1945
          %v2276 = vunpack.c.l.b16 %v1946
          %v2277 = vunpack.c.h.b16 %v1946
          %v2278 = vunpack.c.l.b16 %v1947
          %v2279 = vunpack.c.h.b16 %v1947
          %v2280 = vunpack.c.l.b16 %v1948
          %v2281 = vunpack.c.h.b16 %v1948
          %v2282 = vunpack.c.l.b16 %v1949
          %v2283 = vunpack.c.h.b16 %v1949
          %v2284 = vunpack.c.l.b16 %v1950
          %v2285 = vunpack.c.h.b16 %v1950
          %v2286 = vunpack.c.l.b16 %v1951
          %v2287 = vunpack.c.h.b16 %v1951
          %v2288 = vunpack.c.l.b16 %v1952
          %v2289 = vunpack.c.h.b16 %v1952
          %v2290 = vunpack.c.l.b16 %v1953
          %v2291 = vunpack.c.h.b16 %v1953
          %v2292 = vunpack.c.l.b16 %v1954
          %v2293 = vunpack.c.h.b16 %v1954
          %v2294 = vunpack.c.l.b16 %v1955
          %v2295 = vunpack.c.h.b16 %v1955
          %v2296 = vunpack.c.l.b16 %v1956
          %v2297 = vunpack.c.h.b16 %v1956
          %v2298 = vunpack.c.l.b16 %v1957
          %v2299 = vunpack.c.h.b16 %v1957
          %v2300 = vunpack.c.l.b16 %v1958
          %v2301 = vunpack.c.h.b16 %v1958
          %v2302 = vunpack.c.l.b16 %v1959
          %v2303 = vunpack.c.h.b16 %v1959
          %v2304 = vunpack.c.l.b16 %v1960
          %v2305 = vunpack.c.h.b16 %v1960
          %v2306 = vunpack.c.l.b16 %v1961
          %v2307 = vunpack.c.h.b16 %v1961
          %v2308 = vunpack.c.l.b16 %v1962
          %v2309 = vunpack.c.h.b16 %v1962
          %v2310 = vunpack.c.l.b16 %v1963
          %v2311 = vunpack.c.h.b16 %v1963
          %v2312 = vunpack.c.l.b16 %v1964
          %v2313 = vunpack.c.h.b16 %v1964
          %v2314 = vunpack.c.l.b16 %v1965
          %v2315 = vunpack.c.h.b16 %v1965
          %v2316 = vunpack.c.l.b16 %v1966
          %v2317 = vunpack.c.h.b16 %v1966
          %v2318 = vunpack.c.l.b16 %v1967
          %v2319 = vunpack.c.h.b16 %v1967
          %v2320 = vunpack.c.l.b16 %v1968
          %v2321 = vunpack.c.h.b16 %v1968
          %v2322 = vunpack.c.l.b16 %v1969
          %v2323 = vunpack.c.h.b16 %v1969
          %v2324 = vunpack.c.l.b16 %v1970
          %v2325 = vunpack.c.h.b16 %v1970
          %v2326 = vunpack.c.l.b16 %v1971
          %v2327 = vunpack.c.h.b16 %v1971
          %v2328 = vunpack.c.l.b16 %v1972
          %v2329 = vunpack.c.h.b16 %v1972
          %v2330 = vunpack.c.l.b16 %v1973
          %v2331 = vunpack.c.h.b16 %v1973
          %v2332 = vunpack.c.l.b16 %v1974
          %v2333 = vunpack.c.h.b16 %v1974
          %v2334 = vunpack.c.l.b16 %v1975
          %v2335 = vunpack.c.h.b16 %v1975
          %v2336 = vunpack.c.l.b16 %v1976
          %v2337 = vunpack.c.h.b16 %v1976
          %v2338 = vunpack.c.l.b16 %v1977
          %v2339 = vunpack.c.h.b16 %v1977
          %v2340 = vunpack.c.l.b16 %v1978
          %v2341 = vunpack.c.h.b16 %v1978
          %v2342 = vunpack.c.l.b16 %v1979
          %v2343 = vunpack.c.h.b16 %v1979
          %v2344 = vunpack.c.l.b16 %v1980
          %v2345 = vunpack.c.h.b16 %v1980
          %v2346 = vunpack.c.l.b16 %v1981
          %v2347 = vunpack.c.h.b16 %v1981
          %v2348 = vunpack.c.l.b16 %v1982
          %v2349 = vunpack.c.h.b16 %v1982
          %v2350 = vunpack.c.l.b16 %v1983
          %v2351 = vunpack.c.h.b16 %v1983
          %v2352 = vunpack.c.l.b16 %v1984
          %v2353 = vunpack.c.h.b16 %v1984
          %v2354 = vunpack.c.l.b16 %v1985
          %v2355 = vunpack.c.h.b16 %v1985
          %v2356 = vunpack.c.l.b16 %v1986
          %v2357 = vunpack.c.h.b16 %v1986
          %v2358 = vunpack.c.l.b16 %v1987
          %v2359 = vunpack.c.h.b16 %v1987
          %v2360 = vunpack.c.l.b16 %v1988
          %v2361 = vunpack.c.h.b16 %v1988
          %v2362 = vunpack.c.l.b16 %v1989
          %v2363 = vunpack.c.h.b16 %v1989
          %v2364 = vunpack.c.l.b16 %v1990
          %v2365 = vunpack.c.h.b16 %v1990
          %v2366 = vunpack.c.l.b16 %v1991
          %v2367 = vunpack.c.h.b16 %v1991
          %v2368 = vunpack.c.l.b16 %v1992
          %v2369 = vunpack.c.h.b16 %v1992
          %v2370 = vunpack.c.l.b16 %v1993
          %v2371 = vunpack.c.h.b16 %v1993
          %v2372 = vunpack.c.l.b16 %v1994
          %v2373 = vunpack.c.h.b16 %v1994
          %v2374 = vunpack.c.l.b16 %v1995
          %v2375 = vunpack.c.h.b16 %v1995
          %v2376 = vunpack.c.l.b16 %v1996
          %v2377 = vunpack.c.h.b16 %v1996
          %v2378 = vunpack.c.l.b16 %v1997
          %v2379 = vunpack.c.h.b16 %v1997
          %v2380 = vunpack.c.l.b16 %v1998
          %v2381 = vunpack.c.h.b16 %v1998
          %v2382 = vunpack.c.l.b16 %v1999
          %v2383 = vunpack.c.h.b16 %v1999
          %v2384 = vpack.c.b16 %v2136, %v2128
          %v2385 = vpack.c.b16 %v2137, %v2129
          %v2386 = vpack.c.b16 %v2138, %v2130
          %v2387 = vpack.c.b16 %v2139, %v2131
          %v2388 = vpack.c.b16 %v2140, %v2132
          %v2389 = vpack.c.b16 %v2141, %v2133
          %v2390 = vpack.c.b16 %v2142, %v2134
          %v2391 = vpack.c.b16 %v2143, %v2135
          %v2392 = vpack.c.b16 %v2152, %v2144
          %v2393 = vpack.c.b16 %v2153, %v2145
          %v2394 = vpack.c.b16 %v2154, %v2146
          %v2395 = vpack.c.b16 %v2155, %v2147
          %v2396 = vpack.c.b16 %v2156, %v2148
          %v2397 = vpack.c.b16 %v2157, %v2149
          %v2398 = vpack.c.b16 %v2158, %v2150
          %v2399 = vpack.c.b16 %v2159, %v2151
          %v2400 = vpack.c.b16 %v2168, %v2160
          %v2401 = vpack.c.b16 %v2169, %v2161
          %v2402 = vpack.c.b16 %v2170, %v2162
          %v2403 = vpack.c.b16 %v2171, %v2163
          %v2404 = vpack.c.b16 %v2172, %v2164
          %v2405 = vpack.c.b16 %v2173, %v2165
          %v2406 = vpack.c.b16 %v2174, %v2166
          %v2407 = vpack.c.b16 %v2175, %v2167
          %v2408 = vpack.c.b16 %v2184, %v2176
          %v2409 = vpack.c.b16 %v2185, %v2177
          %v2410 = vpack.c.b16 %v2186, %v2178
          %v2411 = vpack.c.b16 %v2187, %v2179
          %v2412 = vpack.c.b16 %v2188, %v2180
          %v2413 = vpack.c.b16 %v2189, %v2181
          %v2414 = vpack.c.b16 %v2190, %v2182
          %v2415 = vpack.c.b16 %v2191, %v2183
          %v2416 = vpack.c.b16 %v2200, %v2192
          %v2417 = vpack.c.b16 %v2201, %v2193
          %v2418 = vpack.c.b16 %v2202, %v2194
          %v2419 = vpack.c.b16 %v2203, %v2195
          %v2420 = vpack.c.b16 %v2204, %v2196
          %v2421 = vpack.c.b16 %v2205, %v2197
          %v2422 = vpack.c.b16 %v2206, %v2198
          %v2423 = vpack.c.b16 %v2207, %v2199
          %v2424 = vpack.c.b16 %v2216, %v2208
          %v2425 = vpack.c.b16 %v2217, %v2209
          %v2426 = vpack.c.b16 %v2218, %v2210
          %v2427 = vpack.c.b16 %v2219, %v2211
          %v2428 = vpack.c.b16 %v2220, %v2212
          %v2429 = vpack.c.b16 %v2221, %v2213
          %v2430 = vpack.c.b16 %v2222, %v2214
          %v2431 = vpack.c.b16 %v2223, %v2215
          %v2432 = vpack.c.b16 %v2232, %v2224
          %v2433 = vpack.c.b16 %v2233, %v2225
          %v2434 = vpack.c.b16 %v2234, %v2226
          %v2435 = vpack.c.b16 %v2235, %v2227
          %v2436 = vpack.c.b16 %v2236, %v2228
          %v2437 = vpack.c.b16 %v2237, %v2229
          %v2438 = vpack.c.b16 %v2238, %v2230
          %v2439 = vpack.c.b16 %v2239, %v2231
          %v2440 = vpack.c.b16 %v2248, %v2240
          %v2441 = vpack.c.b16 %v2249, %v2241
          %v2442 = vpack.c.b16 %v2250, %v2242
          %v2443 = vpack.c.b16 %v2251, %v2243
          %v2444 = vpack.c.b16 %v2252, %v2244
          %v2445 = vpack.c.b16 %v2253, %v2245
          %v2446 = vpack.c.b16 %v2254, %v2246
          %v2447 = vpack.c.b16 %v2255, %v2247
          %v2448 = vpack.c.b16 %v2264, %v2256
          %v2449 = vpack.c.b16 %v2265, %v2257
          %v2450 = vpack.c.b16 %v2266, %v2258
          %v2451 = vpack.c.b16 %v2267, %v2259
          %v2452 = vpack.c.b16 %v2268, %v2260
          %v2453 = vpack.c.b16 %v2269, %v2261
          %v2454 = vpack.c.b16 %v2270, %v2262
          %v2455 = vpack.c.b16 %v2271, %v2263
          %v2456 = vpack.c.b16 %v2280, %v2272
          %v2457 = vpack.c.b16 %v2281, %v2273
          %v2458 = vpack.c.b16 %v2282, %v2274
          %v2459 = vpack.c.b16 %v2283, %v2275
          %v2460 = vpack.c.b16 %v2284, %v2276
          %v2461 = vpack.c.b16 %v2285, %v2277
          %v2462 = vpack.c.b16 %v2286, %v2278
          %v2463 = vpack.c.b16 %v2287, %v2279
          %v2464 = vpack.c.b16 %v2296, %v2288
          %v2465 = vpack.c.b16 %v2297, %v2289
          %v2466 = vpack.c.b16 %v2298, %v2290
          %v2467 = vpack.c.b16 %v2299, %v2291
          %v2468 = vpack.c.b16 %v2300, %v2292
          %v2469 = vpack.c.b16 %v2301, %v2293
          %v2470 = vpack.c.b16 %v2302, %v2294
          %v2471 = vpack.c.b16 %v2303, %v2295
          %v2472 = vpack.c.b16 %v2312, %v2304
          %v2473 = vpack.c.b16 %v2313, %v2305
          %v2474 = vpack.c.b16 %v2314, %v2306
          %v2475 = vpack.c.b16 %v2315, %v2307
          %v2476 = vpack.c.b16 %v2316, %v2308
          %v2477 = vpack.c.b16 %v2317, %v2309
          %v2478 = vpack.c.b16 %v2318, %v2310
          %v2479 = vpack.c.b16 %v2319, %v2311
          %v2480 = vpack.c.b16 %v2328, %v2320
          %v2481 = vpack.c.b16 %v2329, %v2321
          %v2482 = vpack.c.b16 %v2330, %v2322
          %v2483 = vpack.c.b16 %v2331, %v2323
          %v2484 = vpack.c.b16 %v2332, %v2324
          %v2485 = vpack.c.b16 %v2333, %v2325
          %v2486 = vpack.c.b16 %v2334, %v2326
          %v2487 = vpack.c.b16 %v2335, %v2327
          %v2488 = vpack.c.b16 %v2344, %v2336
          %v2489 = vpack.c.b16 %v2345, %v2337
          %v2490 = vpack.c.b16 %v2346, %v2338
          %v2491 = vpack.c.b16 %v2347, %v2339
          %v2492 = vpack.c.b16 %v2348, %v2340
          %v2493 = vpack.c.b16 %v2349, %v2341
          %v2494 = vpack.c.b16 %v2350, %v2342
          %v2495 = vpack.c.b16 %v2351, %v2343
          %v2496 = vpack.c.b16 %v2360, %v2352
          %v2497 = vpack.c.b16 %v2361, %v2353
          %v2498 = vpack.c.b16 %v2362, %v2354
          %v2499 = vpack.c.b16 %v2363, %v2355
          %v2500 = vpack.c.b16 %v2364, %v2356
          %v2501 = vpack.c.b16 %v2365, %v2357
          %v2502 = vpack.c.b16 %v2366, %v2358
          %v2503 = vpack.c.b16 %v2367, %v2359
          %v2504 = vpack.c.b16 %v2376, %v2368
          %v2505 = vpack.c.b16 %v2377, %v2369
          %v2506 = vpack.c.b16 %v2378, %v2370
          %v2507 = vpack.c.b16 %v2379, %v2371
          %v2508 = vpack.c.b16 %v2380, %v2372
          %v2509 = vpack.c.b16 %v2381, %v2373
          %v2510 = vpack.c.b16 %v2382, %v2374
          %v2511 = vpack.c.b16 %v2383, %v2375
          %2640 = vmatprep.subr.bf16.mxu0 %v2385
          %2641 = vmatpush1.bf16.msra.mxu0 %v2384
          %2642 = vmatprep.subr.bf16.mxu0 %v2393
          %2643 = vmatpush1.bf16.msra.mxu0 %v2392
          %2644 = vmatprep.subr.bf16.mxu0 %v2401
          %2645 = vmatpush1.bf16.msra.mxu0 %v2400
          %2646 = vmatprep.subr.bf16.mxu0 %v2409
          %2647 = vmatpush1.bf16.msra.mxu0 %v2408
          %2648 = vmatprep.subr.bf16.mxu0 %v2417
          %2649 = vmatpush1.bf16.msra.mxu0 %v2416
          %2650 = vmatprep.subr.bf16.mxu0 %v2425
          %2651 = vmatpush1.bf16.msra.mxu0 %v2424
          %2652 = vmatprep.subr.bf16.mxu0 %v2433
          %2653 = vmatpush1.bf16.msra.mxu0 %v2432
          %2654 = vmatprep.subr.bf16.mxu0 %v2441
          %2655 = vmatpush1.bf16.msra.mxu0 %v2440
          %2656 = vmatprep.subr.bf16.mxu0 %v2449
          %2657 = vmatpush1.bf16.msra.mxu0 %v2448
          %2658 = vmatprep.subr.bf16.mxu0 %v2457
          %2659 = vmatpush1.bf16.msra.mxu0 %v2456
          %2660 = vmatprep.subr.bf16.mxu0 %v2465
          %2661 = vmatpush1.bf16.msra.mxu0 %v2464
          %2662 = vmatprep.subr.bf16.mxu0 %v2473
          %2663 = vmatpush1.bf16.msra.mxu0 %v2472
          %2664 = vmatprep.subr.bf16.mxu0 %v2481
          %2665 = vmatpush1.bf16.msra.mxu0 %v2480
          %2666 = vmatprep.subr.bf16.mxu0 %v2489
          %2667 = vmatpush1.bf16.msra.mxu0 %v2488
          %2668 = vmatprep.subr.bf16.mxu0 %v2497
          %2669 = vmatpush1.bf16.msra.mxu0 %v2496
          %2670 = vmatprep.subr.bf16.mxu0 %v2505
          %2671 = vmatpush1.bf16.msra.mxu0 %v2504
          %2672 = vmatprep.mubr.bf16.mxu0 %v1871
          %2673 = vmatmul.mubr.bf16.gmra.mrb[0].mxu0 %v1870
          %v2674 = vpop.f32.mrb[0].mxu0
          %v2675 = vadd.f32 0.0, %v2674
          %v2676 = vpop.f32.mrb[0].mxu0
          %v2677 = vadd.f32 0.0, %v2676
          %v2678 = vpop.f32.mrb[0].mxu0
          %v2679 = vpop.f32.mrb[0].mxu0
          %2680 = vdwg.mxu0
          %2681 = vmatprep.subr.bf16.mxu0 %v2387
          %2682 = vmatpush1.bf16.msra.mxu0 %v2386
          %2683 = vmatprep.subr.bf16.mxu0 %v2395
          %2684 = vmatpush1.bf16.msra.mxu0 %v2394
          %2685 = vmatprep.subr.bf16.mxu0 %v2403
          %2686 = vmatpush1.bf16.msra.mxu0 %v2402
          %2687 = vmatprep.subr.bf16.mxu0 %v2411
          %2688 = vmatpush1.bf16.msra.mxu0 %v2410
          %2689 = vmatprep.subr.bf16.mxu0 %v2419
          %2690 = vmatpush1.bf16.msra.mxu0 %v2418
          %2691 = vmatprep.subr.bf16.mxu0 %v2427
          %2692 = vmatpush1.bf16.msra.mxu0 %v2426
          %2693 = vmatprep.subr.bf16.mxu0 %v2435
          %2694 = vmatpush1.bf16.msra.mxu0 %v2434
          %2695 = vmatprep.subr.bf16.mxu0 %v2443
          %2696 = vmatpush1.bf16.msra.mxu0 %v2442
          %2697 = vmatprep.subr.bf16.mxu0 %v2451
          %2698 = vmatpush1.bf16.msra.mxu0 %v2450
          %2699 = vmatprep.subr.bf16.mxu0 %v2459
          %2700 = vmatpush1.bf16.msra.mxu0 %v2458
          %2701 = vmatprep.subr.bf16.mxu0 %v2467
          %2702 = vmatpush1.bf16.msra.mxu0 %v2466
          %2703 = vmatprep.subr.bf16.mxu0 %v2475
          %2704 = vmatpush1.bf16.msra.mxu0 %v2474
          %2705 = vmatprep.subr.bf16.mxu0 %v2483
          %2706 = vmatpush1.bf16.msra.mxu0 %v2482
          %2707 = vmatprep.subr.bf16.mxu0 %v2491
          %2708 = vmatpush1.bf16.msra.mxu0 %v2490
          %2709 = vmatprep.subr.bf16.mxu0 %v2499
          %2710 = vmatpush1.bf16.msra.mxu0 %v2498
          %2711 = vmatprep.subr.bf16.mxu0 %v2507
          %2712 = vmatpush1.bf16.msra.mxu0 %v2506
          %2713 = vmatprep.mubr.bf16.mxu0 %v1871
          %2714 = vmatmul.mubr.bf16.gmra.mrb[0].mxu0 %v1870
          %v2715 = vpop.f32.mrb[0].mxu0
          %v2716 = vadd.f32 0.0, %v2715
          %v2717 = vpop.f32.mrb[0].mxu0
          %v2718 = vadd.f32 0.0, %v2717
          %v2719 = vpop.f32.mrb[0].mxu0
          %v2720 = vpop.f32.mrb[0].mxu0
          %2721 = vdwg.mxu0
          %2722 = vmatprep.subr.bf16.mxu0 %v2389
          %2723 = vmatpush1.bf16.msra.mxu0 %v2388
          %2724 = vmatprep.subr.bf16.mxu0 %v2397
          %2725 = vmatpush1.bf16.msra.mxu0 %v2396
          %2726 = vmatprep.subr.bf16.mxu0 %v2405
          %2727 = vmatpush1.bf16.msra.mxu0 %v2404
          %2728 = vmatprep.subr.bf16.mxu0 %v2413
          %2729 = vmatpush1.bf16.msra.mxu0 %v2412
          %2730 = vmatprep.subr.bf16.mxu0 %v2421
          %2731 = vmatpush1.bf16.msra.mxu0 %v2420
          %2732 = vmatprep.subr.bf16.mxu0 %v2429
          %2733 = vmatpush1.bf16.msra.mxu0 %v2428
          %2734 = vmatprep.subr.bf16.mxu0 %v2437
          %2735 = vmatpush1.bf16.msra.mxu0 %v2436
          %2736 = vmatprep.subr.bf16.mxu0 %v2445
          %2737 = vmatpush1.bf16.msra.mxu0 %v2444
          %2738 = vmatprep.subr.bf16.mxu0 %v2453
          %2739 = vmatpush1.bf16.msra.mxu0 %v2452
          %2740 = vmatprep.subr.bf16.mxu0 %v2461
          %2741 = vmatpush1.bf16.msra.mxu0 %v2460
          %2742 = vmatprep.subr.bf16.mxu0 %v2469
          %2743 = vmatpush1.bf16.msra.mxu0 %v2468
          %2744 = vmatprep.subr.bf16.mxu0 %v2477
          %2745 = vmatpush1.bf16.msra.mxu0 %v2476
          %2746 = vmatprep.subr.bf16.mxu0 %v2485
          %2747 = vmatpush1.bf16.msra.mxu0 %v2484
          %2748 = vmatprep.subr.bf16.mxu0 %v2493
          %2749 = vmatpush1.bf16.msra.mxu0 %v2492
          %2750 = vmatprep.subr.bf16.mxu0 %v2501
          %2751 = vmatpush1.bf16.msra.mxu0 %v2500
          %2752 = vmatprep.subr.bf16.mxu0 %v2509
          %2753 = vmatpush1.bf16.msra.mxu0 %v2508
          %2754 = vmatprep.mubr.bf16.mxu0 %v1871
          %2755 = vmatmul.mubr.bf16.gmra.mrb[0].mxu0 %v1870
          %v2756 = vpop.f32.mrb[0].mxu0
          %v2757 = vadd.f32 0.0, %v2756
          %v2758 = vpop.f32.mrb[0].mxu0
          %v2759 = vadd.f32 0.0, %v2758
          %v2760 = vpop.f32.mrb[0].mxu0
          %v2761 = vpop.f32.mrb[0].mxu0
          %2762 = vdwg.mxu0
          %2763 = vmatprep.subr.bf16.mxu0 %v2391
          %2764 = vmatpush1.bf16.msra.mxu0 %v2390
          %2765 = vmatprep.subr.bf16.mxu0 %v2399
          %2766 = vmatpush1.bf16.msra.mxu0 %v2398
          %2767 = vmatprep.subr.bf16.mxu0 %v2407
          %2768 = vmatpush1.bf16.msra.mxu0 %v2406
          %2769 = vmatprep.subr.bf16.mxu0 %v2415
          %2770 = vmatpush1.bf16.msra.mxu0 %v2414
          %2771 = vmatprep.subr.bf16.mxu0 %v2423
          %2772 = vmatpush1.bf16.msra.mxu0 %v2422
          %2773 = vmatprep.subr.bf16.mxu0 %v2431
          %2774 = vmatpush1.bf16.msra.mxu0 %v2430
          %2775 = vmatprep.subr.bf16.mxu0 %v2439
          %2776 = vmatpush1.bf16.msra.mxu0 %v2438
          %2777 = vmatprep.subr.bf16.mxu0 %v2447
          %2778 = vmatpush1.bf16.msra.mxu0 %v2446
          %2779 = vmatprep.subr.bf16.mxu0 %v2455
          %2780 = vmatpush1.bf16.msra.mxu0 %v2454
          %2781 = vmatprep.subr.bf16.mxu0 %v2463
          %2782 = vmatpush1.bf16.msra.mxu0 %v2462
          %2783 = vmatprep.subr.bf16.mxu0 %v2471
          %2784 = vmatpush1.bf16.msra.mxu0 %v2470
          %2785 = vmatprep.subr.bf16.mxu0 %v2479
          %2786 = vmatpush1.bf16.msra.mxu0 %v2478
          %2787 = vmatprep.subr.bf16.mxu0 %v2487
          %2788 = vmatpush1.bf16.msra.mxu0 %v2486
          %2789 = vmatprep.subr.bf16.mxu0 %v2495
          %2790 = vmatpush1.bf16.msra.mxu0 %v2494
          %2791 = vmatprep.subr.bf16.mxu0 %v2503
          %2792 = vmatpush1.bf16.msra.mxu0 %v2502
          %2793 = vmatprep.subr.bf16.mxu0 %v2511
          %2794 = vmatpush1.bf16.msra.mxu0 %v2510
          %2795 = vmatprep.mubr.bf16.mxu0 %v1871
          %2796 = vmatmul.mubr.bf16.gmra.mrb[0].mxu0 %v1870
          %v2797 = vpop.f32.mrb[0].mxu0
          %v2798 = vadd.f32 0.0, %v2797
          %v2799 = vpop.f32.mrb[0].mxu0
          %v2800 = vadd.f32 0.0, %v2799
          %v2801 = vpop.f32.mrb[0].mxu0
          %v2802 = vpop.f32.mrb[0].mxu0
          %2803 = vdwg.mxu0
          %v2812 = vcombine.low %v2675, %v2677
          %v2813 = vcombine.low %v2716, %v2718
          %v2815 = vunpack.c.l.s4 1983009808
          %v2816 = vunpack.c.0.s8 %v2815
          %v2817 = vlaneseq
          %v2818 = vshrl.u32 %v2817, 7
          %v2819 = vsub.s32 %v2816, %v2818
          %v2820 = vrot.slane %v2812, %v2819
          %v2822 = vunpack.c.l.s4 1983009808
          %v2823 = vunpack.c.0.s8 %v2822
          %v2824 = vlaneseq
          %v2825 = vshrl.u32 %v2824, 7
          %v2826 = vsub.s32 %v2823, %v2825
          %v2827 = vrot.slane %v2813, %v2826
          %v2828 = vcombine.low %v2820, %v2827
          %v2829 = vcombine.low %v2757, %v2759
          %v2830 = vcombine.low %v2798, %v2800
          %v2832 = vunpack.c.l.s4 1983009808
          %v2833 = vunpack.c.0.s8 %v2832
          %v2834 = vlaneseq
          %v2835 = vshrl.u32 %v2834, 7
          %v2836 = vsub.s32 %v2833, %v2835
          %v2837 = vrot.slane %v2829, %v2836
          %v2839 = vunpack.c.l.s4 1983009808
          %v2840 = vunpack.c.0.s8 %v2839
          %v2841 = vlaneseq
          %v2842 = vshrl.u32 %v2841, 7
          %v2843 = vsub.s32 %v2840, %v2842
          %v2844 = vrot.slane %v2830, %v2843
          %v2845 = vcombine.low %v2837, %v2844
          %2848 = vst [vmem:[%s822] sm:$0xff] %v2828
          %2849 = vst [vmem:[%s822 + $0x8] sm:$0xff] %v2845
        $region82: #{forward.7} parent=69 // pred_fallthru
          _
        %p2850 = scmp.lt.s32.totalorder %s19, 1
        %s2851 = scalar_select %p2850, %s19, 1
        %s2852 = smul.addr %s2851, 8
        %s2853 = smul.addr %s2852, 2
        %s2854 = scalar_lea.vmem %s4, %s2853
        // Predicated region
        $region83: #{forward.7} parent=69 // pred_check
          %p2855 = pneg %p151
        $region84: #{forward.7} parent=69 // pred_check_branch
          %2857 = sbr.rel (%p2855) target = $region86
        $region85: #{forward.7} parent=69 // pred_region
          _
        $region86: #{forward.7} parent=69 // pred_fallthru
          _
      $region70: #{forward.7} parent=5 // pred_fallthru
        _
      %p2858 = scmp.le.s32.totalorder 2, %s10
      // Predicated region
      $region87: #{forward.7} parent=5 // pred_check
        %p2859 = pneg %p2858
      $region88: #{forward.7} parent=5 // pred_check_branch
        %2861 = sbr.rel (%p2859) target = $region90
      $region89: #{forward.7} parent=5 // pred_region
        %s2862 = ssub.s32 %s10, 2
        // Predicated region
        $region91: #{forward.7} parent=89 // pred_check
          %p2863 = pneg %p157
        $region92: #{forward.7} parent=89 // pred_check_branch
          %2865 = sbr.rel (%p2863) target = $region94
        $region93: #{forward.7} parent=89 // pred_region
          %p2866 = scmp.lt.s32.totalorder %s21, 1
          %s2867 = scalar_select %p2866, %s21, 1
          %s2868 = smul.addr %s2867, 8
          %s2869 = smul.addr %s2868, 2
          %s2870 = scalar_lea.vmem %s4, %s2869
        $region94: #{forward.7} parent=89 // pred_fallthru
          _
      $region90: #{forward.7} parent=5 // pred_fallthru
        _
    $region6: #{forward.7} parent=1 // loop_footer
      %s14 = sadd.s32 1, %s10
    $region7: #{forward.7} parent=1 // loop_footer_branch
      %9 = sbr.rel target = $region3
    $region8: #{forward.7} parent=1 // loop_exit
      _

</llo_original>
